<compile_context>
chip_gen: v5e
topology: v5e:2x2
jax: 0.10.0
libtpu: 0.0.40
codegen_flags: <defaults>
</compile_context>

<pallas_src>
import jax
import jax.numpy as jnp
from jax import lax
from jax.experimental import pallas as pl
from jax.experimental.pallas import tpu as pltpu


def _round_up(n: int, m: int) -> int:
    return ((n + m - 1) // m) * m


def siren_kernel(x_ref, w_ref, b_ref, o_ref):
    # x_ref: (tm, dim_in)      tile of input points
    # w_ref: (dim_out, dim_in) w0-scaled weight, VMEM-resident across the grid
    # b_ref: (1, dim_out)      w0-scaled bias (f32), resident
    # o_ref: (tm, dim_out)     output tile
    acc = lax.dot_general(
        x_ref[...], w_ref[...],
        # contract dim_in of both operands: MXU handles the transposed-RHS
        # contraction directly, no XLU transpose and no wrapper-side weight.T
        dimension_numbers=(((1,), (1,)), ((), ())),
        preferred_element_type=jnp.float32)
    o_ref[...] = jnp.sin(acc + b_ref[...]).astype(o_ref.dtype)


def siren_forward(x, weight, bias, w0=30.0, *, tm=512, out_dtype=None):
    """out = sin(w0 * (x @ weight.T + bias)).

    x: (N, dim_in); weight: (dim_out, dim_in); bias: (dim_out,).
    x / weight may be float32 or bfloat16; accumulation and the epilogue
    (bias add + sin) are always float32.
    """
    N, dim_in = x.shape
    dim_out, dim_in_w = weight.shape
    assert dim_in_w == dim_in, "weight must be (dim_out, dim_in)"
    if out_dtype is None:
        out_dtype = x.dtype

    # Fold w0 into the parameters (amortized over all N rows; in a real model
    # do this once at parameter-init time, not per call).
    w_scaled = (float(w0) * weight.astype(jnp.float32)).astype(x.dtype)
    b_scaled = (float(w0) * bias.astype(jnp.float32)).reshape(1, dim_out)

    # Row tile: large enough to amortize per-step overhead, multiple of 8
    # (sublane), never uselessly larger than the (rounded-up) batch.
    tm = _round_up(max(8, min(tm, _round_up(N, 8))), 8)
    grid = (pl.cdiv(N, tm),)

    # VMEM budget: double-buffered x and out tiles + resident weight/bias,
    # 2x headroom; clamped to a range safe on v5e/v6e (128 MiB) and v7x
    # (64 MiB physical).
    xb = jnp.dtype(x.dtype).itemsize
    ob = jnp.dtype(out_dtype).itemsize
    wb = jnp.dtype(w_scaled.dtype).itemsize
    need = (2 * tm * dim_in * xb + 2 * tm * dim_out * ob
            + 2 * dim_out * dim_in * wb + 2 * dim_out * 4)
    vmem_limit = int(min(max(2 * need, 16 * 1024 * 1024), 48 * 1024 * 1024))

    return pl.pallas_call(
        siren_kernel,
        out_shape=jax.ShapeDtypeStruct((N, dim_out), out_dtype),
        grid_spec=pltpu.PrefetchScalarGridSpec(
            num_scalar_prefetch=0,
            grid=grid,
            in_specs=[
                # x: tile rows, full feature dim (block == full array dim ok).
                pl.BlockSpec((tm, dim_in), lambda i: (i, 0)),
                # weight (untransposed): full array, same block every step
                # -> stays resident in VMEM, no per-step DMA.
                pl.BlockSpec((dim_out, dim_in), lambda i: (0, 0)),
                # bias row (f32): full array, resident.
                pl.BlockSpec((1, dim_out), lambda i: (0, 0)),
            ],
            out_specs=pl.BlockSpec((tm, dim_out), lambda i: (i, 0)),
        ),
        compiler_params=pltpu.CompilerParams(
            dimension_semantics=("parallel",),
            vmem_limit_bytes=vmem_limit),
    )(x, w_scaled, b_scaled)


if __name__ == "__main__":
    N, DIM_IN, DIM_OUT = 1024, 32, 64
    W0 = 30.0

    key = jax.random.PRNGKey(0)
    kx, kw, kb = jax.random.split(key, 3)

    x = jax.random.normal(kx, (N, DIM_IN), dtype=jnp.float32)
    # SIREN-style init (uniform in +-1/dim_in); synthetic parameters.
    weight = jax.random.uniform(kw, (DIM_OUT, DIM_IN), dtype=jnp.float32,
                                minval=-1.0 / DIM_IN, maxval=1.0 / DIM_IN)
    bias = jax.random.uniform(kb, (DIM_OUT,), dtype=jnp.float32,
                              minval=-1.0 / DIM_IN, maxval=1.0 / DIM_IN)

    # --- float32 path: semantics check against the module formula. ---
    out = jax.block_until_ready(siren_forward(x, weight, bias, w0=W0))
    assert out.shape == (N, DIM_OUT) and out.dtype == x.dtype

    # Reference with w0 folded exactly as the kernel does (mathematically the
    # module formula, reassociated) -> tight tolerance.
    ref_folded = jnp.sin(x @ (W0 * weight).T + W0 * bias)
    assert jnp.allclose(out, ref_folded, atol=1e-4, rtol=1e-4)

    # Reference in the literal module form; looser tolerance only to absorb
    # TPU default-matmul-precision (bf16-pass) rounding differences between
    # folding w0 before vs. after the contraction.
    ref_exact = jnp.sin(W0 * (x @ weight.T + bias))
    assert jnp.allclose(out, ref_exact, atol=5e-2, rtol=0.0)

    # --- bf16 fast path: halves HBM bytes for x / W / out. ---
    x_bf = x.astype(jnp.bfloat16)
    w_bf = weight.astype(jnp.bfloat16)
    out_bf = jax.block_until_ready(siren_forward(x_bf, w_bf, bias, w0=W0))
    assert out_bf.shape == (N, DIM_OUT) and out_bf.dtype == jnp.bfloat16
    w_bf_scaled = (W0 * w_bf.astype(jnp.float32)).astype(jnp.bfloat16)
    ref_bf = jnp.sin(
        x_bf.astype(jnp.float32) @ w_bf_scaled.astype(jnp.float32).T
        + W0 * bias)
    assert jnp.allclose(out_bf.astype(jnp.float32), ref_bf, atol=2e-2, rtol=0.0)

    print("KERNEL_OK")
</pallas_src>

<mosaic_0001>
module attributes {stable_mosaic.version = 11 : i64} {
  func.func @siren_kernel(%arg0: i32, %arg1: memref<512x32xf32, #tpu.memory_space<vmem>>, %arg2: memref<64x32xf32, #tpu.memory_space<vmem>>, %arg3: memref<1x64xf32, #tpu.memory_space<vmem>>, %arg4: memref<512x64xf32, #tpu.memory_space<vmem>>) attributes {dimension_semantics = [#tpu.dimension_semantics<parallel>], iteration_bounds = array<i64: 2>, scalar_prefetch = 0 : i64, scratch_operands = 0 : i64, tpu.core_type = #tpu.core_type<tc>, window_params = [{transform_indices = @transform_0, window_bounds = array<i64: 512, 32>}, {pipeline_mode = #tpu.pipeline_mode<synchronous>, transform_indices = @transform_1, window_bounds = array<i64: 64, 32>}, {pipeline_mode = #tpu.pipeline_mode<synchronous>, transform_indices = @transform_2, window_bounds = array<i64: 1, 64>}, {transform_indices = @transform_3, window_bounds = array<i64: 512, 64>}]} {
    %c0 = arith.constant 0 : index
    %c0_0 = arith.constant 0 : index
    %0 = vector.load %arg1[%c0, %c0_0] : memref<512x32xf32, #tpu.memory_space<vmem>>, vector<512x32xf32>
    %c0_1 = arith.constant 0 : index
    %c0_2 = arith.constant 0 : index
    %1 = vector.load %arg2[%c0_1, %c0_2] : memref<64x32xf32, #tpu.memory_space<vmem>>, vector<64x32xf32>
    %cst = arith.constant dense<0.000000e+00> : vector<512x64xf32>
    %2 = tpu.matmul %0, %1, %cst {dimension_numbers = #tpu.dot_dimension_numbers<[1], [1], [0], [0], [0, 0, 1, 0], [], []>} : vector<512x32xf32>, vector<64x32xf32>, vector<512x64xf32> -> vector<512x64xf32>
    %c0_3 = arith.constant 0 : index
    %c0_4 = arith.constant 0 : index
    %3 = vector.load %arg3[%c0_3, %c0_4] : memref<1x64xf32, #tpu.memory_space<vmem>>, vector<1x64xf32>
    %4 = vector.broadcast %3 : vector<1x64xf32> to vector<512x64xf32>
    %5 = arith.addf %2, %4 : vector<512x64xf32>
    %6 = math.sin %5 : vector<512x64xf32>
    %c0_5 = arith.constant 0 : index
    %c0_6 = arith.constant 0 : index
    %7 = vector.load %arg4[%c0_5, %c0_6] : memref<512x64xf32, #tpu.memory_space<vmem>>, vector<512x64xf32>
    tpu.vector_store %arg4[%c0_5, %c0_6], %6 {strides = array<i32>} : memref<512x64xf32, #tpu.memory_space<vmem>>, vector<512x64xf32>,
    return
  }
  func.func @transform_0(%arg0: i32) -> (i32, i32) {
    %c0_i32 = arith.constant 0 : i32
    %c0_i32_0 = arith.constant 0 : i32
    return %arg0, %c0_i32 : i32, i32
  }
  func.func @transform_1(%arg0: i32) -> (i32, i32) {
    %c0_i32 = arith.constant 0 : i32
    %c0_i32_0 = arith.constant 0 : i32
    %c0_i32_1 = arith.constant 0 : i32
    return %c0_i32, %c0_i32_0 : i32, i32
  }
  func.func @transform_2(%arg0: i32) -> (i32, i32) {
    %c0_i32 = arith.constant 0 : i32
    %c0_i32_0 = arith.constant 0 : i32
    %c0_i32_1 = arith.constant 0 : i32
    return %c0_i32, %c0_i32_0 : i32, i32
  }
  func.func @transform_3(%arg0: i32) -> (i32, i32) {
    %c0_i32 = arith.constant 0 : i32
    %c0_i32_0 = arith.constant 0 : i32
    return %arg0, %c0_i32 : i32, i32
  }
}

</mosaic_0001>

<llo_original>
// kernel: tpu_custom_call.1
$region0: #{tpu_custom_call.1}
  #allocation0 [shape = 'u32[]', space=smem, size = 0x4, offset = 0x4, fixed_abs, tag = 'smem constant byte address 0x4 - core index']
  #allocation1 [shape = 'u32[72,128]{1,0:T(1,128)}', space=vmem, size = 0x9000, scoped, tag = 'internal scratch']
  %s0 = inlined_call_operand.vmem [shape: f32[1024,32], index: 0, kind: input, shape index: {}]
  %s1 = inlined_call_operand.vmem [shape: f32[64,32], index: 1, kind: input, shape index: {}]
  %s2 = inlined_call_operand.vmem [shape: f32[1,64], index: 2, kind: input, shape index: {}]
  %s3 = inlined_call_operand.vmem [shape: f32[1024,64], index: 3, kind: output, shape index: {}]
  %s4 = sld [smem:[#allocation0]]
  $region45: #{tpu_custom_call.1} parent=0
    _
  %s6 = ssub.s32 1, %s4
  %s7 = scalar_select 0, %s6, %s4
  loop: start=0, step=1, limit=4
  $region2: #{tpu_custom_call.1} parent=0 // loop_pre_header
    _
  $region3: #{tpu_custom_call.1} parent=0 // loop_header
    %s9 = sphi 0, %s13
    %p10 = scmp.ge.s32.totalorder %s9, 4
    %s19 = sphi 0, %s21
    %s22 = sphi 0, %s19
    %s23 = sphi 0, %s22
    %s39 = sphi 0, %s23
    %s43 = sphi 0, %s43
    %s45 = sphi 0, %s43
    %s46 = sphi 0, %s45
    %s60 = sphi 0, %s46
    %s64 = sphi 0, %s64
    %s66 = sphi 0, %s64
    %s67 = sphi 0, %s66
    %s81 = sphi 0, %s67
    %s87 = sphi 0, %s89
    %s90 = sphi 0, %s87
    %s91 = sphi 0, %s90
    %s107 = sphi 0, %s91
  $region4: #{tpu_custom_call.1} parent=0 // loop_header_branch
    %12 = sbr.rel (%p10) target = $region8
  $region5: #{tpu_custom_call.1} parent=0 // loop_body
    %s14 = ssub.s32 %s9, 1
    %s15 = ssub.s32 %s9, 2
    %s16 = sadd.s32 %s9, 1
    %s17 = ssub.s32 %s9, %s16
    %p18 = scmp.eq.s32.totalorder %s17, 0
    %s20 = sadd.s32 %s19, 1
    %s21 = scalar_select %p18, %s19, %s20
    %p24 = pneg %p18
    %p25 = scmp.eq.s32.totalorder %s9, 1
    %p26 = por %p24, %p25
    %p27 = scmp.ne.s32.totalorder %s19, %s22
    %p28 = scmp.eq.s32.totalorder %s9, 0
    %p29 = por %p27, %p28
    %p30 = scmp.ne.s32.totalorder %s19, %s22
    %p31 = scmp.eq.s32.totalorder %s14, 1
    %p32 = por %p30, %p31
    %p33 = scmp.ne.s32.totalorder %s22, %s23
    %p34 = scmp.eq.s32.totalorder %s14, 0
    %p35 = por %p33, %p34
    %p36 = scmp.ne.s32.totalorder %s22, %s23
    %p37 = scmp.eq.s32.totalorder %s15, 1
    %p38 = por %p36, %p37
    %p40 = scmp.ne.s32.totalorder %s23, %s39
    %p41 = scmp.eq.s32.totalorder %s15, 0
    %p42 = por %p40, %p41
    %s44 = sadd.s32 %s43, 1
    %p47 = scmp.eq.s32.totalorder %s9, 1
    %p48 = scmp.ne.s32.totalorder %s43, %s45
    %p49 = scmp.eq.s32.totalorder %s9, 0
    %p50 = por %p48, %p49
    %p51 = scmp.ne.s32.totalorder %s43, %s45
    %p52 = scmp.eq.s32.totalorder %s14, 1
    %p53 = por %p51, %p52
    %p54 = scmp.ne.s32.totalorder %s45, %s46
    %p55 = scmp.eq.s32.totalorder %s14, 0
    %p56 = por %p54, %p55
    %p57 = scmp.ne.s32.totalorder %s45, %s46
    %p58 = scmp.eq.s32.totalorder %s15, 1
    %p59 = por %p57, %p58
    %p61 = scmp.ne.s32.totalorder %s46, %s60
    %p62 = scmp.eq.s32.totalorder %s15, 0
    %p63 = por %p61, %p62
    %s65 = sadd.s32 %s64, 1
    %p68 = scmp.eq.s32.totalorder %s9, 1
    %p69 = scmp.ne.s32.totalorder %s64, %s66
    %p70 = scmp.eq.s32.totalorder %s9, 0
    %p71 = por %p69, %p70
    %p72 = scmp.ne.s32.totalorder %s64, %s66
    %p73 = scmp.eq.s32.totalorder %s14, 1
    %p74 = por %p72, %p73
    %p75 = scmp.ne.s32.totalorder %s66, %s67
    %p76 = scmp.eq.s32.totalorder %s14, 0
    %p77 = por %p75, %p76
    %p78 = scmp.ne.s32.totalorder %s66, %s67
    %p79 = scmp.eq.s32.totalorder %s15, 1
    %p80 = por %p78, %p79
    %p82 = scmp.ne.s32.totalorder %s67, %s81
    %p83 = scmp.eq.s32.totalorder %s15, 0
    %p84 = por %p82, %p83
    %s85 = ssub.s32 %s9, %s16
    %p86 = scmp.eq.s32.totalorder %s85, 0
    %s88 = sadd.s32 %s87, 1
    %s89 = scalar_select %p86, %s87, %s88
    %p92 = pneg %p86
    %p93 = scmp.eq.s32.totalorder %s9, 1
    %p94 = por %p92, %p93
    %p95 = scmp.ne.s32.totalorder %s87, %s90
    %p96 = scmp.eq.s32.totalorder %s9, 0
    %p97 = por %p95, %p96
    %p98 = scmp.ne.s32.totalorder %s87, %s90
    %p99 = scmp.eq.s32.totalorder %s14, 1
    %p100 = por %p98, %p99
    %p101 = scmp.ne.s32.totalorder %s90, %s91
    %p102 = scmp.eq.s32.totalorder %s14, 0
    %p103 = por %p101, %p102
    %p104 = scmp.ne.s32.totalorder %s90, %s91
    %p105 = scmp.eq.s32.totalorder %s15, 1
    %p106 = por %p104, %p105
    %p108 = scmp.ne.s32.totalorder %s91, %s107
    %p109 = scmp.eq.s32.totalorder %s15, 0
    %p110 = por %p108, %p109
    %p111 = scmp.le.s32.totalorder 1, %s9
    %p112 = scmp.lt.s32.totalorder %s9, 3
    %p113 = pnand %p111, %p112
    %p114 = pneg %p113
    // Predicated region
    $region9: #{tpu_custom_call.1} parent=5 // pred_check
      _
    $region10: #{tpu_custom_call.1} parent=5 // pred_check_branch
      %116 = sbr.rel (%p113) target = $region12
    $region11: #{tpu_custom_call.1} parent=5 // pred_region
      %s117 = ssub.s32 %s9, 1
      // Predicated region
      $region13: #{tpu_custom_call.1} parent=11 // pred_check
        %p118 = pneg %p56
      $region14: #{tpu_custom_call.1} parent=11 // pred_check_branch
        %120 = sbr.rel (%p118) target = $region16
      $region15: #{tpu_custom_call.1} parent=11 // pred_region
        _
      $region16: #{tpu_custom_call.1} parent=11 // pred_fallthru
        _
      // Predicated region
      $region17: #{tpu_custom_call.1} parent=11 // pred_check
        %p121 = pneg %p77
      $region18: #{tpu_custom_call.1} parent=11 // pred_check_branch
        %123 = sbr.rel (%p121) target = $region20
      $region19: #{tpu_custom_call.1} parent=11 // pred_region
        _
      $region20: #{tpu_custom_call.1} parent=11 // pred_fallthru
        _
    $region12: #{tpu_custom_call.1} parent=5 // pred_fallthru
      _
    %p124 = scmp.lt.s32.totalorder %s9, 2
    // Predicated region
    $region21: #{tpu_custom_call.1} parent=5 // pred_check
      %p125 = pneg %p124
    $region22: #{tpu_custom_call.1} parent=5 // pred_check_branch
      %127 = sbr.rel (%p125) target = $region24
    $region23: #{tpu_custom_call.1} parent=5 // pred_region
      // Predicated region
      $region25: #{tpu_custom_call.1} parent=23 // pred_check
        %p128 = pneg %p29
      $region26: #{tpu_custom_call.1} parent=23 // pred_check_branch
        %130 = sbr.rel (%p128) target = $region28
      $region27: #{tpu_custom_call.1} parent=23 // pred_region
        %s131 = smul.u32 64, %s9
        %p132 = scmp.lt.s32.totalorder %s131, 127
        %s133 = scalar_select %p132, %s131, 127
        %s134 = smul.addr %s133, 8
        %s135 = scalar_lea.vmem %s0, %s134
        %s136 = smul.u32 64, %s9
      $region28: #{tpu_custom_call.1} parent=23 // pred_fallthru
        _
    $region24: #{tpu_custom_call.1} parent=5 // pred_fallthru
      _
    %p137 = scmp.le.s32.totalorder 1, %s9
    %p138 = scmp.lt.s32.totalorder %s9, 3
    %p139 = pnand %p137, %p138
    %p140 = pneg %p139
    // Predicated region
    $region29: #{tpu_custom_call.1} parent=5 // pred_check
      _
    $region30: #{tpu_custom_call.1} parent=5 // pred_check_branch
      %142 = sbr.rel (%p139) target = $region32
    $region31: #{tpu_custom_call.1} parent=5 // pred_region
      %s143 = ssub.s32 %s9, 1
      %s144 = smul.u32 64, %s14
      %p145 = scmp.lt.s32.totalorder %s144, 127
      %s146 = scalar_select %p145, %s144, 127
      %s147 = smul.addr %s146, 8
      %s148 = scalar_lea.vmem %s0, %s147
      %p149 = pneg %p35
      %p150 = pneg %p32
      %p151 = pneg %p56
      %p152 = pneg %p53
      %p153 = pneg %p77
      %p154 = pneg %p74
      %p155 = pneg %p103
      %p156 = pneg %p100
      %s157 = smul.u32 64, %s14
      %p158 = scmp.lt.s32.totalorder %s157, 127
      %s159 = scalar_select %p158, %s157, 127
      %s160 = smul.addr %s159, 8
      %s161 = scalar_lea.vmem %s3, %s160
      %s162 = smul.u32 64, %s14
      %p163 = scmp.lt.s32.totalorder %s162, 127
      %s164 = scalar_select %p163, %s162, 127
      %s165 = smul.addr %s164, 8
      %s166 = scalar_lea.vmem %s0, %s165
      %s167 = smul.u32 64, %s14
      %s168 = smul.u32 64, %s14
      %p169 = scmp.lt.s32.totalorder %s168, 127
      %s170 = scalar_select %p169, %s168, 127
      %s171 = smul.addr %s170, 8
      %s172 = scalar_lea.vmem %s3, %s171
      %s173 = smul.u32 64, %s14
      %v174 = vld [vmem:[%s166] sm:$0xff]
      %v175 = vld [vmem:[%s166 + $0x8] sm:$0xff]
      %v176 = vld [vmem:[%s166 + $0x10] sm:$0xff]
      %v177 = vld [vmem:[%s166 + $0x18] sm:$0xff]
      %v178 = vld [vmem:[%s166 + $0x20] sm:$0xff]
      %v179 = vld [vmem:[%s166 + $0x28] sm:$0xff]
      %v180 = vld [vmem:[%s166 + $0x30] sm:$0xff]
      %v181 = vld [vmem:[%s166 + $0x38] sm:$0xff]
      %v182 = vld [vmem:[%s166 + $0x40] sm:$0xff]
      %v183 = vld [vmem:[%s166 + $0x48] sm:$0xff]
      %v184 = vld [vmem:[%s166 + $0x50] sm:$0xff]
      %v185 = vld [vmem:[%s166 + $0x58] sm:$0xff]
      %v186 = vld [vmem:[%s166 + $0x60] sm:$0xff]
      %v187 = vld [vmem:[%s166 + $0x68] sm:$0xff]
      %v188 = vld [vmem:[%s166 + $0x70] sm:$0xff]
      %v189 = vld [vmem:[%s166 + $0x78] sm:$0xff]
      %v190 = vld [vmem:[%s166 + $0x80] sm:$0xff]
      %v191 = vld [vmem:[%s166 + $0x88] sm:$0xff]
      %v192 = vld [vmem:[%s166 + $0x90] sm:$0xff]
      %v193 = vld [vmem:[%s166 + $0x98] sm:$0xff]
      %v194 = vld [vmem:[%s166 + $0xa0] sm:$0xff]
      %v195 = vld [vmem:[%s166 + $0xa8] sm:$0xff]
      %v196 = vld [vmem:[%s166 + $0xb0] sm:$0xff]
      %v197 = vld [vmem:[%s166 + $0xb8] sm:$0xff]
      %v198 = vld [vmem:[%s166 + $0xc0] sm:$0xff]
      %v199 = vld [vmem:[%s166 + $0xc8] sm:$0xff]
      %v200 = vld [vmem:[%s166 + $0xd0] sm:$0xff]
      %v201 = vld [vmem:[%s166 + $0xd8] sm:$0xff]
      %v202 = vld [vmem:[%s166 + $0xe0] sm:$0xff]
      %v203 = vld [vmem:[%s166 + $0xe8] sm:$0xff]
      %v204 = vld [vmem:[%s166 + $0xf0] sm:$0xff]
      %v205 = vld [vmem:[%s166 + $0xf8] sm:$0xff]
      %v206 = vld [vmem:[%s166 + $0x100] sm:$0xff]
      %v207 = vld [vmem:[%s166 + $0x108] sm:$0xff]
      %v208 = vld [vmem:[%s166 + $0x110] sm:$0xff]
      %v209 = vld [vmem:[%s166 + $0x118] sm:$0xff]
      %v210 = vld [vmem:[%s166 + $0x120] sm:$0xff]
      %v211 = vld [vmem:[%s166 + $0x128] sm:$0xff]
      %v212 = vld [vmem:[%s166 + $0x130] sm:$0xff]
      %v213 = vld [vmem:[%s166 + $0x138] sm:$0xff]
      %v214 = vld [vmem:[%s166 + $0x140] sm:$0xff]
      %v215 = vld [vmem:[%s166 + $0x148] sm:$0xff]
      %v216 = vld [vmem:[%s166 + $0x150] sm:$0xff]
      %v217 = vld [vmem:[%s166 + $0x158] sm:$0xff]
      %v218 = vld [vmem:[%s166 + $0x160] sm:$0xff]
      %v219 = vld [vmem:[%s166 + $0x168] sm:$0xff]
      %v220 = vld [vmem:[%s166 + $0x170] sm:$0xff]
      %v221 = vld [vmem:[%s166 + $0x178] sm:$0xff]
      %v222 = vld [vmem:[%s166 + $0x180] sm:$0xff]
      %v223 = vld [vmem:[%s166 + $0x188] sm:$0xff]
      %v224 = vld [vmem:[%s166 + $0x190] sm:$0xff]
      %v225 = vld [vmem:[%s166 + $0x198] sm:$0xff]
      %v226 = vld [vmem:[%s166 + $0x1a0] sm:$0xff]
      %v227 = vld [vmem:[%s166 + $0x1a8] sm:$0xff]
      %v228 = vld [vmem:[%s166 + $0x1b0] sm:$0xff]
      %v229 = vld [vmem:[%s166 + $0x1b8] sm:$0xff]
      %v230 = vld [vmem:[%s166 + $0x1c0] sm:$0xff]
      %v231 = vld [vmem:[%s166 + $0x1c8] sm:$0xff]
      %v232 = vld [vmem:[%s166 + $0x1d0] sm:$0xff]
      %v233 = vld [vmem:[%s166 + $0x1d8] sm:$0xff]
      %v234 = vld [vmem:[%s166 + $0x1e0] sm:$0xff]
      %v235 = vld [vmem:[%s166 + $0x1e8] sm:$0xff]
      %v236 = vld [vmem:[%s166 + $0x1f0] sm:$0xff]
      %v237 = vld [vmem:[%s166 + $0x1f8] sm:$0xff]
      %v238 = vld [vmem:[%s1] sm:$0xff]
      %v239 = vld [vmem:[%s1 + $0x8] sm:$0xff]
      %v240 = vld [vmem:[%s1 + $0x10] sm:$0xff]
      %v241 = vld [vmem:[%s1 + $0x18] sm:$0xff]
      %v242 = vld [vmem:[%s1 + $0x20] sm:$0xff]
      %v243 = vld [vmem:[%s1 + $0x28] sm:$0xff]
      %v244 = vld [vmem:[%s1 + $0x30] sm:$0xff]
      %v245 = vld [vmem:[%s1 + $0x38] sm:$0xff]
      %v246 = vld [vmem:[%s2] sm:$0x1]
      %v248 = vperm.slane %v246, 0
      %vm250 = vcmask 261120
      %v252 = vsel %vm250, %v174, 0
      %v255 = vsel %vm250, %v175, 0
      %v258 = vsel %vm250, %v176, 0
      %v261 = vsel %vm250, %v177, 0
      %v264 = vsel %vm250, %v178, 0
      %v267 = vsel %vm250, %v179, 0
      %v270 = vsel %vm250, %v180, 0
      %v273 = vsel %vm250, %v181, 0
      %v276 = vsel %vm250, %v182, 0
      %v279 = vsel %vm250, %v183, 0
      %v282 = vsel %vm250, %v184, 0
      %v285 = vsel %vm250, %v185, 0
      %v288 = vsel %vm250, %v186, 0
      %v291 = vsel %vm250, %v187, 0
      %v294 = vsel %vm250, %v188, 0
      %v297 = vsel %vm250, %v189, 0
      %v300 = vsel %vm250, %v190, 0
      %v303 = vsel %vm250, %v191, 0
      %v306 = vsel %vm250, %v192, 0
      %v309 = vsel %vm250, %v193, 0
      %v312 = vsel %vm250, %v194, 0
      %v315 = vsel %vm250, %v195, 0
      %v318 = vsel %vm250, %v196, 0
      %v321 = vsel %vm250, %v197, 0
      %v324 = vsel %vm250, %v198, 0
      %v327 = vsel %vm250, %v199, 0
      %v330 = vsel %vm250, %v200, 0
      %v333 = vsel %vm250, %v201, 0
      %v336 = vsel %vm250, %v202, 0
      %v339 = vsel %vm250, %v203, 0
      %v342 = vsel %vm250, %v204, 0
      %v345 = vsel %vm250, %v205, 0
      %v348 = vsel %vm250, %v206, 0
      %v351 = vsel %vm250, %v207, 0
      %v354 = vsel %vm250, %v208, 0
      %v357 = vsel %vm250, %v209, 0
      %v360 = vsel %vm250, %v210, 0
      %v363 = vsel %vm250, %v211, 0
      %v366 = vsel %vm250, %v212, 0
      %v369 = vsel %vm250, %v213, 0
      %v372 = vsel %vm250, %v214, 0
      %v375 = vsel %vm250, %v215, 0
      %v378 = vsel %vm250, %v216, 0
      %v381 = vsel %vm250, %v217, 0
      %v384 = vsel %vm250, %v218, 0
      %v387 = vsel %vm250, %v219, 0
      %v390 = vsel %vm250, %v220, 0
      %v393 = vsel %vm250, %v221, 0
      %v396 = vsel %vm250, %v222, 0
      %v399 = vsel %vm250, %v223, 0
      %v402 = vsel %vm250, %v224, 0
      %v405 = vsel %vm250, %v225, 0
      %v408 = vsel %vm250, %v226, 0
      %v411 = vsel %vm250, %v227, 0
      %v414 = vsel %vm250, %v228, 0
      %v417 = vsel %vm250, %v229, 0
      %v420 = vsel %vm250, %v230, 0
      %v423 = vsel %vm250, %v231, 0
      %v426 = vsel %vm250, %v232, 0
      %v429 = vsel %vm250, %v233, 0
      %v432 = vsel %vm250, %v234, 0
      %v435 = vsel %vm250, %v235, 0
      %v438 = vsel %vm250, %v236, 0
      %v441 = vsel %vm250, %v237, 0
      %v444 = vsel %vm250, %v238, 0
      %v447 = vsel %vm250, %v239, 0
      %v450 = vsel %vm250, %v240, 0
      %v453 = vsel %vm250, %v241, 0
      %v456 = vsel %vm250, %v242, 0
      %v459 = vsel %vm250, %v243, 0
      %v462 = vsel %vm250, %v244, 0
      %v465 = vsel %vm250, %v245, 0
      %467 = vmatpush.xpose.msra.mxu0 0.0
      %468 = vmatpush.xpose.msra.mxu0 0.0
      %469 = vmatpush.xpose.msra.mxu0 0.0
      %470 = vmatpush.xpose.msra.mxu0 0.0
      %471 = vmatpush.xpose.msra.mxu0 0.0
      %472 = vmatpush.xpose.msra.mxu0 0.0
      %473 = vmatpush.xpose.msra.mxu0 0.0
      %474 = vmatpush.xpose.msra.mxu0 0.0
      %475 = vmatpush.xpose.msra.mxu0 %v465
      %476 = vmatpush.xpose.msra.mxu0 %v462
      %477 = vmatpush.xpose.msra.mxu0 %v459
      %478 = vmatpush.xpose.msra.mxu0 %v456
      %479 = vmatpush.xpose.msra.mxu0 %v453
      %480 = vmatpush.xpose.msra.mxu0 %v450
      %481 = vmatpush.xpose.msra.mxu0 %v447
      %482 = vmatpush.xpose.msra.mxu0 %v444
      %483 = vmatmul.f32.gmra.mxu0 %v252
      %v484 = vpop.f32.mrf.mxu0
      %v485 = vadd.f32 %v248, %v484
      %486 = vmatmul.f32.gmra.mxu0 %v255
      %v487 = vpop.f32.mrf.mxu0
      %v488 = vadd.f32 %v248, %v487
      %489 = vmatmul.f32.gmra.mxu0 %v258
      %v490 = vpop.f32.mrf.mxu0
      %v491 = vadd.f32 %v248, %v490
      %492 = vmatmul.f32.gmra.mxu0 %v261
      %v493 = vpop.f32.mrf.mxu0
      %v494 = vadd.f32 %v248, %v493
      %495 = vmatmul.f32.gmra.mxu0 %v264
      %v496 = vpop.f32.mrf.mxu0
      %v497 = vadd.f32 %v248, %v496
      %498 = vmatmul.f32.gmra.mxu0 %v267
      %v499 = vpop.f32.mrf.mxu0
      %v500 = vadd.f32 %v248, %v499
      %501 = vmatmul.f32.gmra.mxu0 %v270
      %v502 = vpop.f32.mrf.mxu0
      %v503 = vadd.f32 %v248, %v502
      %504 = vmatmul.f32.gmra.mxu0 %v273
      %v505 = vpop.f32.mrf.mxu0
      %v506 = vadd.f32 %v248, %v505
      %507 = vmatmul.f32.gmra.mxu0 %v276
      %v508 = vpop.f32.mrf.mxu0
      %v509 = vadd.f32 %v248, %v508
      %510 = vmatmul.f32.gmra.mxu0 %v279
      %v511 = vpop.f32.mrf.mxu0
      %v512 = vadd.f32 %v248, %v511
      %513 = vmatmul.f32.gmra.mxu0 %v282
      %v514 = vpop.f32.mrf.mxu0
      %v515 = vadd.f32 %v248, %v514
      %516 = vmatmul.f32.gmra.mxu0 %v285
      %v517 = vpop.f32.mrf.mxu0
      %v518 = vadd.f32 %v248, %v517
      %519 = vmatmul.f32.gmra.mxu0 %v288
      %v520 = vpop.f32.mrf.mxu0
      %v521 = vadd.f32 %v248, %v520
      %522 = vmatmul.f32.gmra.mxu0 %v291
      %v523 = vpop.f32.mrf.mxu0
      %v524 = vadd.f32 %v248, %v523
      %525 = vmatmul.f32.gmra.mxu0 %v294
      %v526 = vpop.f32.mrf.mxu0
      %v527 = vadd.f32 %v248, %v526
      %528 = vmatmul.f32.gmra.mxu0 %v297
      %v529 = vpop.f32.mrf.mxu0
      %v530 = vadd.f32 %v248, %v529
      %531 = vmatmul.f32.gmra.mxu0 %v300
      %v532 = vpop.f32.mrf.mxu0
      %v533 = vadd.f32 %v248, %v532
      %534 = vmatmul.f32.gmra.mxu0 %v303
      %v535 = vpop.f32.mrf.mxu0
      %v536 = vadd.f32 %v248, %v535
      %537 = vmatmul.f32.gmra.mxu0 %v306
      %v538 = vpop.f32.mrf.mxu0
      %v539 = vadd.f32 %v248, %v538
      %540 = vmatmul.f32.gmra.mxu0 %v309
      %v541 = vpop.f32.mrf.mxu0
      %v542 = vadd.f32 %v248, %v541
      %543 = vmatmul.f32.gmra.mxu0 %v312
      %v544 = vpop.f32.mrf.mxu0
      %v545 = vadd.f32 %v248, %v544
      %546 = vmatmul.f32.gmra.mxu0 %v315
      %v547 = vpop.f32.mrf.mxu0
      %v548 = vadd.f32 %v248, %v547
      %549 = vmatmul.f32.gmra.mxu0 %v318
      %v550 = vpop.f32.mrf.mxu0
      %v551 = vadd.f32 %v248, %v550
      %552 = vmatmul.f32.gmra.mxu0 %v321
      %v553 = vpop.f32.mrf.mxu0
      %v554 = vadd.f32 %v248, %v553
      %555 = vmatmul.f32.gmra.mxu0 %v324
      %v556 = vpop.f32.mrf.mxu0
      %v557 = vadd.f32 %v248, %v556
      %558 = vmatmul.f32.gmra.mxu0 %v327
      %v559 = vpop.f32.mrf.mxu0
      %v560 = vadd.f32 %v248, %v559
      %561 = vmatmul.f32.gmra.mxu0 %v330
      %v562 = vpop.f32.mrf.mxu0
      %v563 = vadd.f32 %v248, %v562
      %564 = vmatmul.f32.gmra.mxu0 %v333
      %v565 = vpop.f32.mrf.mxu0
      %v566 = vadd.f32 %v248, %v565
      %567 = vmatmul.f32.gmra.mxu0 %v336
      %v568 = vpop.f32.mrf.mxu0
      %v569 = vadd.f32 %v248, %v568
      %570 = vmatmul.f32.gmra.mxu0 %v339
      %v571 = vpop.f32.mrf.mxu0
      %v572 = vadd.f32 %v248, %v571
      %573 = vmatmul.f32.gmra.mxu0 %v342
      %v574 = vpop.f32.mrf.mxu0
      %v575 = vadd.f32 %v248, %v574
      %576 = vmatmul.f32.gmra.mxu0 %v345
      %v577 = vpop.f32.mrf.mxu0
      %v578 = vadd.f32 %v248, %v577
      %579 = vmatmul.f32.gmra.mxu0 %v348
      %v580 = vpop.f32.mrf.mxu0
      %v581 = vadd.f32 %v248, %v580
      %582 = vmatmul.f32.gmra.mxu0 %v351
      %v583 = vpop.f32.mrf.mxu0
      %v584 = vadd.f32 %v248, %v583
      %585 = vmatmul.f32.gmra.mxu0 %v354
      %v586 = vpop.f32.mrf.mxu0
      %v587 = vadd.f32 %v248, %v586
      %588 = vmatmul.f32.gmra.mxu0 %v357
      %v589 = vpop.f32.mrf.mxu0
      %v590 = vadd.f32 %v248, %v589
      %591 = vmatmul.f32.gmra.mxu0 %v360
      %v592 = vpop.f32.mrf.mxu0
      %v593 = vadd.f32 %v248, %v592
      %594 = vmatmul.f32.gmra.mxu0 %v363
      %v595 = vpop.f32.mrf.mxu0
      %v596 = vadd.f32 %v248, %v595
      %597 = vmatmul.f32.gmra.mxu0 %v366
      %v598 = vpop.f32.mrf.mxu0
      %v599 = vadd.f32 %v248, %v598
      %600 = vmatmul.f32.gmra.mxu0 %v369
      %v601 = vpop.f32.mrf.mxu0
      %v602 = vadd.f32 %v248, %v601
      %603 = vmatmul.f32.gmra.mxu0 %v372
      %v604 = vpop.f32.mrf.mxu0
      %v605 = vadd.f32 %v248, %v604
      %606 = vmatmul.f32.gmra.mxu0 %v375
      %v607 = vpop.f32.mrf.mxu0
      %v608 = vadd.f32 %v248, %v607
      %609 = vmatmul.f32.gmra.mxu0 %v378
      %v610 = vpop.f32.mrf.mxu0
      %v611 = vadd.f32 %v248, %v610
      %612 = vmatmul.f32.gmra.mxu0 %v381
      %v613 = vpop.f32.mrf.mxu0
      %v614 = vadd.f32 %v248, %v613
      %615 = vmatmul.f32.gmra.mxu0 %v384
      %v616 = vpop.f32.mrf.mxu0
      %v617 = vadd.f32 %v248, %v616
      %618 = vmatmul.f32.gmra.mxu0 %v387
      %v619 = vpop.f32.mrf.mxu0
      %v620 = vadd.f32 %v248, %v619
      %621 = vmatmul.f32.gmra.mxu0 %v390
      %v622 = vpop.f32.mrf.mxu0
      %v623 = vadd.f32 %v248, %v622
      %624 = vmatmul.f32.gmra.mxu0 %v393
      %v625 = vpop.f32.mrf.mxu0
      %v626 = vadd.f32 %v248, %v625
      %627 = vmatmul.f32.gmra.mxu0 %v396
      %v628 = vpop.f32.mrf.mxu0
      %v629 = vadd.f32 %v248, %v628
      %630 = vmatmul.f32.gmra.mxu0 %v399
      %v631 = vpop.f32.mrf.mxu0
      %v632 = vadd.f32 %v248, %v631
      %633 = vmatmul.f32.gmra.mxu0 %v402
      %v634 = vpop.f32.mrf.mxu0
      %v635 = vadd.f32 %v248, %v634
      %636 = vmatmul.f32.gmra.mxu0 %v405
      %v637 = vpop.f32.mrf.mxu0
      %v638 = vadd.f32 %v248, %v637
      %639 = vmatmul.f32.gmra.mxu0 %v408
      %v640 = vpop.f32.mrf.mxu0
      %v641 = vadd.f32 %v248, %v640
      %642 = vmatmul.f32.gmra.mxu0 %v411
      %v643 = vpop.f32.mrf.mxu0
      %v644 = vadd.f32 %v248, %v643
      %645 = vmatmul.f32.gmra.mxu0 %v414
      %v646 = vpop.f32.mrf.mxu0
      %v647 = vadd.f32 %v248, %v646
      %648 = vmatmul.f32.gmra.mxu0 %v417
      %v649 = vpop.f32.mrf.mxu0
      %v650 = vadd.f32 %v248, %v649
      %651 = vmatmul.f32.gmra.mxu0 %v420
      %v652 = vpop.f32.mrf.mxu0
      %v653 = vadd.f32 %v248, %v652
      %654 = vmatmul.f32.gmra.mxu0 %v423
      %v655 = vpop.f32.mrf.mxu0
      %v656 = vadd.f32 %v248, %v655
      %657 = vmatmul.f32.gmra.mxu0 %v426
      %v658 = vpop.f32.mrf.mxu0
      %v659 = vadd.f32 %v248, %v658
      %660 = vmatmul.f32.gmra.mxu0 %v429
      %v661 = vpop.f32.mrf.mxu0
      %v662 = vadd.f32 %v248, %v661
      %663 = vmatmul.f32.gmra.mxu0 %v432
      %v664 = vpop.f32.mrf.mxu0
      %v665 = vadd.f32 %v248, %v664
      %666 = vmatmul.f32.gmra.mxu0 %v435
      %v667 = vpop.f32.mrf.mxu0
      %v668 = vadd.f32 %v248, %v667
      %669 = vmatmul.f32.gmra.mxu0 %v438
      %v670 = vpop.f32.mrf.mxu0
      %v671 = vadd.f32 %v248, %v670
      %672 = vmatmul.f32.gmra.mxu0 %v441
      %v673 = vpop.f32.mrf.mxu0
      %v674 = vadd.f32 %v248, %v673
      %675 = vdwg.mxu0
      %v676 = vand.u32 2147483647, %v485
      %vm677 = vcmp.le.f32.partialorder %v676, 0.7853982
      %vm678 = vcmp.lt.s32.totalorder %v485, 0
      %v679 = vand.u32 %v485, 2139095040
      %v680 = vshrl.u32 %v679, 23
      %v681 = vsub.s32 %v680, 127
      %v682 = vand.u32 2147483647, %v485
      %v683 = vand.u32 %v682, 8388607
      %v684 = vor.u32 %v683, 8388608
      %v685 = vsub.s32 0, %v684
      %v686 = vadd.s32 %v681, 1
      %vm687 = vcmp.gt.s32.totalorder %v686, 0
      %v688 = vsel %vm687, %v686, 0
      %v689 = vshrl.u32 %v688, 5
      %v690 = vand.u32 %v688, 31
      %v691 = vsub.s32 32, %v690
      %v692 = vshrl.u32 683565275, %v691
      %v693 = vshll.u32 683565275, %v690
      %v694 = vshrl.u32 2475754826, %v691
      %v695 = vor.u32 %v693, %v694
      %v696 = vshll.u32 2475754826, %v690
      %v697 = vshrl.u32 2131351028, %v691
      %v698 = vor.u32 %v696, %v697
      %v699 = vshll.u32 2131351028, %v690
      %v700 = vshrl.u32 2102212464, %v691
      %v701 = vor.u32 %v699, %v700
      %v702 = vshll.u32 2102212464, %v690
      %v703 = vshrl.u32 920167782, %v691
      %v704 = vor.u32 %v702, %v703
      %v705 = vshll.u32 920167782, %v690
      %v706 = vshrl.u32 1326507024, %v691
      %v707 = vor.u32 %v705, %v706
      %vm708 = vcmp.lt.s32.totalorder %v689, 1
      %vm709 = vcmp.lt.s32.totalorder %v689, 2
      %vm710 = vcmp.lt.s32.totalorder %v689, 3
      %vm711 = vcmp.lt.s32.totalorder %v689, 4
      %v712 = vsel %vm708, %v692, %v695
      %v713 = vsel %vm711, %v701, 2102212464
      %v714 = vsel %vm710, %v698, %v713
      %v715 = vsel %vm709, %v712, %v714
      %v716 = vsel %vm708, %v695, %v698
      %v717 = vsel %vm711, %v704, 920167782
      %v718 = vsel %vm710, %v701, %v717
      %v719 = vsel %vm709, %v716, %v718
      %v720 = vsel %vm708, %v698, %v701
      %v721 = vsel %vm711, %v707, 1326507024
      %v722 = vsel %vm710, %v704, %v721
      %v723 = vsel %vm709, %v720, %v722
      %v724 = vshll.u32 %v684, 8
      %v725 = vand.u32 %v724, 65535
      %v726 = vshrl.u32 %v724, 16
      %v727 = vand.u32 %v723, 65535
      %v728 = vshrl.u32 %v723, 16
      %v729 = vmul.u32 %v725, %v727
      %v730 = vmul.u32 %v725, %v728
      %v731 = vmul.u32 %v726, %v727
      %v732 = vmul.u32 %v726, %v728
      %v733 = vshll.u32 %v730, 16
      %v734 = vshrl.u32 %v730, 16
      %v735 = vshll.u32 %v731, 16
      %v736 = vshrl.u32 %v731, 16
      %vm737 = vc.u32 %v729, %v733
      %v738 = vsel %vm737, 1, 0
      %v739 = vadd.s32 %v729, %v733
      %v740 = vadd.s32 %v732, %v738
      %vm741 = vc.u32 %v739, %v735
      %v742 = vsel %vm741, 1, 0
      %v743 = vadd.s32 %v739, %v735
      %v744 = vadd.s32 %v740, %v742
      %v745 = vadd.s32 %v744, %v734
      %v746 = vadd.s32 %v745, %v736
      %v747 = vand.u32 %v724, 65535
      %v748 = vshrl.u32 %v724, 16
      %v749 = vand.u32 %v719, 65535
      %v750 = vshrl.u32 %v719, 16
      %v751 = vmul.u32 %v747, %v749
      %v752 = vmul.u32 %v747, %v750
      %v753 = vmul.u32 %v748, %v749
      %v754 = vmul.u32 %v748, %v750
      %v755 = vshll.u32 %v752, 16
      %v756 = vshrl.u32 %v752, 16
      %v757 = vshll.u32 %v753, 16
      %v758 = vshrl.u32 %v753, 16
      %vm759 = vc.u32 %v751, %v755
      %v760 = vsel %vm759, 1, 0
      %v761 = vadd.s32 %v751, %v755
      %v762 = vadd.s32 %v754, %v760
      %vm763 = vc.u32 %v761, %v757
      %v764 = vsel %vm763, 1, 0
      %v765 = vadd.s32 %v761, %v757
      %v766 = vadd.s32 %v762, %v764
      %v767 = vadd.s32 %v766, %v756
      %v768 = vadd.s32 %v767, %v758
      %v769 = vmul.u32 %v724, %v715
      %v770 = vadd.s32 %v746, %v765
      %vm771 = vc.u32 %v746, %v765
      %v772 = vadd.s32 %v768, 1
      %v773 = vsel %vm771, %v772, %v768
      %v774 = vadd.s32 %v769, %v773
      %v775 = vadd.s32 %v774, 536870912
      %v776 = vshrl.u32 %v775, 30
      %v777 = vshll.u32 %v776, 30
      %v778 = vsub.s32 %v774, %v777
      %vm779 = vcmp.lt.s32.totalorder %v778, 0
      %v780 = vsub.s32 0, %v778
      %v781 = vsel %vm779, %v780, %v778
      %v782 = vclz %v781
      %v783 = vsub.s32 %v782, 2
      %vm784 = vcmp.gt.s32.totalorder 0, %v783
      %v785 = vsel %vm784, 0, %v783
      %v786 = vsub.s32 32, %v785
      %v787 = vshll.u32 %v778, %v785
      %v788 = vshrl.u32 %v770, %v786
      %v789 = vor.u32 %v787, %v788
      %v790 = vsub.s32 4294967266, %v785
      %v791 = vadd.s32 %v790, 127
      %v792 = vshll.u32 %v791, 23
      %v793 = vor.u32 4788187, %v792
      %v794 = vand.u32 2147483647, %v793
      %v796 = vcvt.s32.f32 %v789
      %v797 = vmul.f32 %v796, %v794
      %v798 = vxor.u32 %v797, 2147483648
      %v799 = vsel %vm678, %v798, %v797
      %v800 = vsub.s32 4, %v776
      %v801 = vsel %vm678, %v800, %v776
      %v802 = vsel %vm677, %v485, %v799
      %v803 = vsel %vm677, 0, %v801
      %v804 = vmul.f32 %v802, %v802
      %v805 = vmul.f32 %v804, -0.001358992
      %v806 = vadd.f32 %v805, 0.041655596
      %v807 = vmul.f32 %v804, %v806
      %v808 = vadd.f32 %v807, -0.4999988
      %v809 = vmul.f32 %v804, %v808
      %v810 = vadd.f32 1.0, %v809
      %v811 = vmul.f32 %v802, %v802
      %v812 = vmul.f32 %v811, -0.00019511016
      %v813 = vadd.f32 %v812, 0.008332121
      %v814 = vmul.f32 %v811, %v813
      %v815 = vadd.f32 %v814, -0.16666654
      %v816 = vmul.f32 %v811, %v815
      %v817 = vadd.f32 %v816, 1.0
      %v818 = vmul.f32 %v817, %v802
      %vm819 = vweird.f32 %v485
      %v820 = vadd.s32 %v803, 3
      %v821 = vand.u32 %v820, 3
      %vm822 = vcmp.lt.s32.totalorder %v821, 2
      %vm823 = vcmp.eq.s32.totalorder %v821, 0
      %v824 = vxor.u32 %v818, 2147483648
      %v825 = vsel %vm823, %v810, %v824
      %vm826 = vcmp.eq.s32.totalorder %v821, 2
      %v827 = vxor.u32 %v810, 2147483648
      %v828 = vsel %vm826, %v827, %v818
      %v829 = vsel %vm822, %v825, %v828
      %v830 = vsel %vm819, nan, %v829
      %v831 = vand.u32 2147483647, %v488
      %vm832 = vcmp.le.f32.partialorder %v831, 0.7853982
      %vm833 = vcmp.lt.s32.totalorder %v488, 0
      %v834 = vand.u32 %v488, 2139095040
      %v835 = vshrl.u32 %v834, 23
      %v836 = vsub.s32 %v835, 127
      %v837 = vand.u32 2147483647, %v488
      %v838 = vand.u32 %v837, 8388607
      %v839 = vor.u32 %v838, 8388608
      %v840 = vsub.s32 0, %v839
      %v841 = vadd.s32 %v836, 1
      %vm842 = vcmp.gt.s32.totalorder %v841, 0
      %v843 = vsel %vm842, %v841, 0
      %v844 = vshrl.u32 %v843, 5
      %v845 = vand.u32 %v843, 31
      %v846 = vsub.s32 32, %v845
      %v847 = vshrl.u32 683565275, %v846
      %v848 = vshll.u32 683565275, %v845
      %v849 = vshrl.u32 2475754826, %v846
      %v850 = vor.u32 %v848, %v849
      %v851 = vshll.u32 2475754826, %v845
      %v852 = vshrl.u32 2131351028, %v846
      %v853 = vor.u32 %v851, %v852
      %v854 = vshll.u32 2131351028, %v845
      %v855 = vshrl.u32 2102212464, %v846
      %v856 = vor.u32 %v854, %v855
      %v857 = vshll.u32 2102212464, %v845
      %v858 = vshrl.u32 920167782, %v846
      %v859 = vor.u32 %v857, %v858
      %v860 = vshll.u32 920167782, %v845
      %v861 = vshrl.u32 1326507024, %v846
      %v862 = vor.u32 %v860, %v861
      %vm863 = vcmp.lt.s32.totalorder %v844, 1
      %vm864 = vcmp.lt.s32.totalorder %v844, 2
      %vm865 = vcmp.lt.s32.totalorder %v844, 3
      %vm866 = vcmp.lt.s32.totalorder %v844, 4
      %v867 = vsel %vm863, %v847, %v850
      %v868 = vsel %vm866, %v856, 2102212464
      %v869 = vsel %vm865, %v853, %v868
      %v870 = vsel %vm864, %v867, %v869
      %v871 = vsel %vm863, %v850, %v853
      %v872 = vsel %vm866, %v859, 920167782
      %v873 = vsel %vm865, %v856, %v872
      %v874 = vsel %vm864, %v871, %v873
      %v875 = vsel %vm863, %v853, %v856
      %v876 = vsel %vm866, %v862, 1326507024
      %v877 = vsel %vm865, %v859, %v876
      %v878 = vsel %vm864, %v875, %v877
      %v879 = vshll.u32 %v839, 8
      %v880 = vand.u32 %v879, 65535
      %v881 = vshrl.u32 %v879, 16
      %v882 = vand.u32 %v878, 65535
      %v883 = vshrl.u32 %v878, 16
      %v884 = vmul.u32 %v880, %v882
      %v885 = vmul.u32 %v880, %v883
      %v886 = vmul.u32 %v881, %v882
      %v887 = vmul.u32 %v881, %v883
      %v888 = vshll.u32 %v885, 16
      %v889 = vshrl.u32 %v885, 16
      %v890 = vshll.u32 %v886, 16
      %v891 = vshrl.u32 %v886, 16
      %vm892 = vc.u32 %v884, %v888
      %v893 = vsel %vm892, 1, 0
      %v894 = vadd.s32 %v884, %v888
      %v895 = vadd.s32 %v887, %v893
      %vm896 = vc.u32 %v894, %v890
      %v897 = vsel %vm896, 1, 0
      %v898 = vadd.s32 %v894, %v890
      %v899 = vadd.s32 %v895, %v897
      %v900 = vadd.s32 %v899, %v889
      %v901 = vadd.s32 %v900, %v891
      %v902 = vand.u32 %v879, 65535
      %v903 = vshrl.u32 %v879, 16
      %v904 = vand.u32 %v874, 65535
      %v905 = vshrl.u32 %v874, 16
      %v906 = vmul.u32 %v902, %v904
      %v907 = vmul.u32 %v902, %v905
      %v908 = vmul.u32 %v903, %v904
      %v909 = vmul.u32 %v903, %v905
      %v910 = vshll.u32 %v907, 16
      %v911 = vshrl.u32 %v907, 16
      %v912 = vshll.u32 %v908, 16
      %v913 = vshrl.u32 %v908, 16
      %vm914 = vc.u32 %v906, %v910
      %v915 = vsel %vm914, 1, 0
      %v916 = vadd.s32 %v906, %v910
      %v917 = vadd.s32 %v909, %v915
      %vm918 = vc.u32 %v916, %v912
      %v919 = vsel %vm918, 1, 0
      %v920 = vadd.s32 %v916, %v912
      %v921 = vadd.s32 %v917, %v919
      %v922 = vadd.s32 %v921, %v911
      %v923 = vadd.s32 %v922, %v913
      %v924 = vmul.u32 %v879, %v870
      %v925 = vadd.s32 %v901, %v920
      %vm926 = vc.u32 %v901, %v920
      %v927 = vadd.s32 %v923, 1
      %v928 = vsel %vm926, %v927, %v923
      %v929 = vadd.s32 %v924, %v928
      %v930 = vadd.s32 %v929, 536870912
      %v931 = vshrl.u32 %v930, 30
      %v932 = vshll.u32 %v931, 30
      %v933 = vsub.s32 %v929, %v932
      %vm934 = vcmp.lt.s32.totalorder %v933, 0
      %v935 = vsub.s32 0, %v933
      %v936 = vsel %vm934, %v935, %v933
      %v937 = vclz %v936
      %v938 = vsub.s32 %v937, 2
      %vm939 = vcmp.gt.s32.totalorder 0, %v938
      %v940 = vsel %vm939, 0, %v938
      %v941 = vsub.s32 32, %v940
      %v942 = vshll.u32 %v933, %v940
      %v943 = vshrl.u32 %v925, %v941
      %v944 = vor.u32 %v942, %v943
      %v945 = vsub.s32 4294967266, %v940
      %v946 = vadd.s32 %v945, 127
      %v947 = vshll.u32 %v946, 23
      %v948 = vor.u32 4788187, %v947
      %v949 = vand.u32 2147483647, %v948
      %v951 = vcvt.s32.f32 %v944
      %v952 = vmul.f32 %v951, %v949
      %v953 = vxor.u32 %v952, 2147483648
      %v954 = vsel %vm833, %v953, %v952
      %v955 = vsub.s32 4, %v931
      %v956 = vsel %vm833, %v955, %v931
      %v957 = vsel %vm832, %v488, %v954
      %v958 = vsel %vm832, 0, %v956
      %v959 = vmul.f32 %v957, %v957
      %v960 = vmul.f32 %v959, -0.001358992
      %v961 = vadd.f32 %v960, 0.041655596
      %v962 = vmul.f32 %v959, %v961
      %v963 = vadd.f32 %v962, -0.4999988
      %v964 = vmul.f32 %v959, %v963
      %v965 = vadd.f32 1.0, %v964
      %v966 = vmul.f32 %v957, %v957
      %v967 = vmul.f32 %v966, -0.00019511016
      %v968 = vadd.f32 %v967, 0.008332121
      %v969 = vmul.f32 %v966, %v968
      %v970 = vadd.f32 %v969, -0.16666654
      %v971 = vmul.f32 %v966, %v970
      %v972 = vadd.f32 %v971, 1.0
      %v973 = vmul.f32 %v972, %v957
      %vm974 = vweird.f32 %v488
      %v975 = vadd.s32 %v958, 3
      %v976 = vand.u32 %v975, 3
      %vm977 = vcmp.lt.s32.totalorder %v976, 2
      %vm978 = vcmp.eq.s32.totalorder %v976, 0
      %v979 = vxor.u32 %v973, 2147483648
      %v980 = vsel %vm978, %v965, %v979
      %vm981 = vcmp.eq.s32.totalorder %v976, 2
      %v982 = vxor.u32 %v965, 2147483648
      %v983 = vsel %vm981, %v982, %v973
      %v984 = vsel %vm977, %v980, %v983
      %v985 = vsel %vm974, nan, %v984
      %v986 = vand.u32 2147483647, %v491
      %vm987 = vcmp.le.f32.partialorder %v986, 0.7853982
      %vm988 = vcmp.lt.s32.totalorder %v491, 0
      %v989 = vand.u32 %v491, 2139095040
      %v990 = vshrl.u32 %v989, 23
      %v991 = vsub.s32 %v990, 127
      %v992 = vand.u32 2147483647, %v491
      %v993 = vand.u32 %v992, 8388607
      %v994 = vor.u32 %v993, 8388608
      %v995 = vsub.s32 0, %v994
      %v996 = vadd.s32 %v991, 1
      %vm997 = vcmp.gt.s32.totalorder %v996, 0
      %v998 = vsel %vm997, %v996, 0
      %v999 = vshrl.u32 %v998, 5
      %v1000 = vand.u32 %v998, 31
      %v1001 = vsub.s32 32, %v1000
      %v1002 = vshrl.u32 683565275, %v1001
      %v1003 = vshll.u32 683565275, %v1000
      %v1004 = vshrl.u32 2475754826, %v1001
      %v1005 = vor.u32 %v1003, %v1004
      %v1006 = vshll.u32 2475754826, %v1000
      %v1007 = vshrl.u32 2131351028, %v1001
      %v1008 = vor.u32 %v1006, %v1007
      %v1009 = vshll.u32 2131351028, %v1000
      %v1010 = vshrl.u32 2102212464, %v1001
      %v1011 = vor.u32 %v1009, %v1010
      %v1012 = vshll.u32 2102212464, %v1000
      %v1013 = vshrl.u32 920167782, %v1001
      %v1014 = vor.u32 %v1012, %v1013
      %v1015 = vshll.u32 920167782, %v1000
      %v1016 = vshrl.u32 1326507024, %v1001
      %v1017 = vor.u32 %v1015, %v1016
      %vm1018 = vcmp.lt.s32.totalorder %v999, 1
      %vm1019 = vcmp.lt.s32.totalorder %v999, 2
      %vm1020 = vcmp.lt.s32.totalorder %v999, 3
      %vm1021 = vcmp.lt.s32.totalorder %v999, 4
      %v1022 = vsel %vm1018, %v1002, %v1005
      %v1023 = vsel %vm1021, %v1011, 2102212464
      %v1024 = vsel %vm1020, %v1008, %v1023
      %v1025 = vsel %vm1019, %v1022, %v1024
      %v1026 = vsel %vm1018, %v1005, %v1008
      %v1027 = vsel %vm1021, %v1014, 920167782
      %v1028 = vsel %vm1020, %v1011, %v1027
      %v1029 = vsel %vm1019, %v1026, %v1028
      %v1030 = vsel %vm1018, %v1008, %v1011
      %v1031 = vsel %vm1021, %v1017, 1326507024
      %v1032 = vsel %vm1020, %v1014, %v1031
      %v1033 = vsel %vm1019, %v1030, %v1032
      %v1034 = vshll.u32 %v994, 8
      %v1035 = vand.u32 %v1034, 65535
      %v1036 = vshrl.u32 %v1034, 16
      %v1037 = vand.u32 %v1033, 65535
      %v1038 = vshrl.u32 %v1033, 16
      %v1039 = vmul.u32 %v1035, %v1037
      %v1040 = vmul.u32 %v1035, %v1038
      %v1041 = vmul.u32 %v1036, %v1037
      %v1042 = vmul.u32 %v1036, %v1038
      %v1043 = vshll.u32 %v1040, 16
      %v1044 = vshrl.u32 %v1040, 16
      %v1045 = vshll.u32 %v1041, 16
      %v1046 = vshrl.u32 %v1041, 16
      %vm1047 = vc.u32 %v1039, %v1043
      %v1048 = vsel %vm1047, 1, 0
      %v1049 = vadd.s32 %v1039, %v1043
      %v1050 = vadd.s32 %v1042, %v1048
      %vm1051 = vc.u32 %v1049, %v1045
      %v1052 = vsel %vm1051, 1, 0
      %v1053 = vadd.s32 %v1049, %v1045
      %v1054 = vadd.s32 %v1050, %v1052
      %v1055 = vadd.s32 %v1054, %v1044
      %v1056 = vadd.s32 %v1055, %v1046
      %v1057 = vand.u32 %v1034, 65535
      %v1058 = vshrl.u32 %v1034, 16
      %v1059 = vand.u32 %v1029, 65535
      %v1060 = vshrl.u32 %v1029, 16
      %v1061 = vmul.u32 %v1057, %v1059
      %v1062 = vmul.u32 %v1057, %v1060
      %v1063 = vmul.u32 %v1058, %v1059
      %v1064 = vmul.u32 %v1058, %v1060
      %v1065 = vshll.u32 %v1062, 16
      %v1066 = vshrl.u32 %v1062, 16
      %v1067 = vshll.u32 %v1063, 16
      %v1068 = vshrl.u32 %v1063, 16
      %vm1069 = vc.u32 %v1061, %v1065
      %v1070 = vsel %vm1069, 1, 0
      %v1071 = vadd.s32 %v1061, %v1065
      %v1072 = vadd.s32 %v1064, %v1070
      %vm1073 = vc.u32 %v1071, %v1067
      %v1074 = vsel %vm1073, 1, 0
      %v1075 = vadd.s32 %v1071, %v1067
      %v1076 = vadd.s32 %v1072, %v1074
      %v1077 = vadd.s32 %v1076, %v1066
      %v1078 = vadd.s32 %v1077, %v1068
      %v1079 = vmul.u32 %v1034, %v1025
      %v1080 = vadd.s32 %v1056, %v1075
      %vm1081 = vc.u32 %v1056, %v1075
      %v1082 = vadd.s32 %v1078, 1
      %v1083 = vsel %vm1081, %v1082, %v1078
      %v1084 = vadd.s32 %v1079, %v1083
      %v1085 = vadd.s32 %v1084, 536870912
      %v1086 = vshrl.u32 %v1085, 30
      %v1087 = vshll.u32 %v1086, 30
      %v1088 = vsub.s32 %v1084, %v1087
      %vm1089 = vcmp.lt.s32.totalorder %v1088, 0
      %v1090 = vsub.s32 0, %v1088
      %v1091 = vsel %vm1089, %v1090, %v1088
      %v1092 = vclz %v1091
      %v1093 = vsub.s32 %v1092, 2
      %vm1094 = vcmp.gt.s32.totalorder 0, %v1093
      %v1095 = vsel %vm1094, 0, %v1093
      %v1096 = vsub.s32 32, %v1095
      %v1097 = vshll.u32 %v1088, %v1095
      %v1098 = vshrl.u32 %v1080, %v1096
      %v1099 = vor.u32 %v1097, %v1098
      %v1100 = vsub.s32 4294967266, %v1095
      %v1101 = vadd.s32 %v1100, 127
      %v1102 = vshll.u32 %v1101, 23
      %v1103 = vor.u32 4788187, %v1102
      %v1104 = vand.u32 2147483647, %v1103
      %v1106 = vcvt.s32.f32 %v1099
      %v1107 = vmul.f32 %v1106, %v1104
      %v1108 = vxor.u32 %v1107, 2147483648
      %v1109 = vsel %vm988, %v1108, %v1107
      %v1110 = vsub.s32 4, %v1086
      %v1111 = vsel %vm988, %v1110, %v1086
      %v1112 = vsel %vm987, %v491, %v1109
      %v1113 = vsel %vm987, 0, %v1111
      %v1114 = vmul.f32 %v1112, %v1112
      %v1115 = vmul.f32 %v1114, -0.001358992
      %v1116 = vadd.f32 %v1115, 0.041655596
      %v1117 = vmul.f32 %v1114, %v1116
      %v1118 = vadd.f32 %v1117, -0.4999988
      %v1119 = vmul.f32 %v1114, %v1118
      %v1120 = vadd.f32 1.0, %v1119
      %v1121 = vmul.f32 %v1112, %v1112
      %v1122 = vmul.f32 %v1121, -0.00019511016
      %v1123 = vadd.f32 %v1122, 0.008332121
      %v1124 = vmul.f32 %v1121, %v1123
      %v1125 = vadd.f32 %v1124, -0.16666654
      %v1126 = vmul.f32 %v1121, %v1125
      %v1127 = vadd.f32 %v1126, 1.0
      %v1128 = vmul.f32 %v1127, %v1112
      %vm1129 = vweird.f32 %v491
      %v1130 = vadd.s32 %v1113, 3
      %v1131 = vand.u32 %v1130, 3
      %vm1132 = vcmp.lt.s32.totalorder %v1131, 2
      %vm1133 = vcmp.eq.s32.totalorder %v1131, 0
      %v1134 = vxor.u32 %v1128, 2147483648
      %v1135 = vsel %vm1133, %v1120, %v1134
      %vm1136 = vcmp.eq.s32.totalorder %v1131, 2
      %v1137 = vxor.u32 %v1120, 2147483648
      %v1138 = vsel %vm1136, %v1137, %v1128
      %v1139 = vsel %vm1132, %v1135, %v1138
      %v1140 = vsel %vm1129, nan, %v1139
      %v1141 = vand.u32 2147483647, %v494
      %vm1142 = vcmp.le.f32.partialorder %v1141, 0.7853982
      %vm1143 = vcmp.lt.s32.totalorder %v494, 0
      %v1144 = vand.u32 %v494, 2139095040
      %v1145 = vshrl.u32 %v1144, 23
      %v1146 = vsub.s32 %v1145, 127
      %v1147 = vand.u32 2147483647, %v494
      %v1148 = vand.u32 %v1147, 8388607
      %v1149 = vor.u32 %v1148, 8388608
      %v1150 = vsub.s32 0, %v1149
      %v1151 = vadd.s32 %v1146, 1
      %vm1152 = vcmp.gt.s32.totalorder %v1151, 0
      %v1153 = vsel %vm1152, %v1151, 0
      %v1154 = vshrl.u32 %v1153, 5
      %v1155 = vand.u32 %v1153, 31
      %v1156 = vsub.s32 32, %v1155
      %v1157 = vshrl.u32 683565275, %v1156
      %v1158 = vshll.u32 683565275, %v1155
      %v1159 = vshrl.u32 2475754826, %v1156
      %v1160 = vor.u32 %v1158, %v1159
      %v1161 = vshll.u32 2475754826, %v1155
      %v1162 = vshrl.u32 2131351028, %v1156
      %v1163 = vor.u32 %v1161, %v1162
      %v1164 = vshll.u32 2131351028, %v1155
      %v1165 = vshrl.u32 2102212464, %v1156
      %v1166 = vor.u32 %v1164, %v1165
      %v1167 = vshll.u32 2102212464, %v1155
      %v1168 = vshrl.u32 920167782, %v1156
      %v1169 = vor.u32 %v1167, %v1168
      %v1170 = vshll.u32 920167782, %v1155
      %v1171 = vshrl.u32 1326507024, %v1156
      %v1172 = vor.u32 %v1170, %v1171
      %vm1173 = vcmp.lt.s32.totalorder %v1154, 1
      %vm1174 = vcmp.lt.s32.totalorder %v1154, 2
      %vm1175 = vcmp.lt.s32.totalorder %v1154, 3
      %vm1176 = vcmp.lt.s32.totalorder %v1154, 4
      %v1177 = vsel %vm1173, %v1157, %v1160
      %v1178 = vsel %vm1176, %v1166, 2102212464
      %v1179 = vsel %vm1175, %v1163, %v1178
      %v1180 = vsel %vm1174, %v1177, %v1179
      %v1181 = vsel %vm1173, %v1160, %v1163
      %v1182 = vsel %vm1176, %v1169, 920167782
      %v1183 = vsel %vm1175, %v1166, %v1182
      %v1184 = vsel %vm1174, %v1181, %v1183
      %v1185 = vsel %vm1173, %v1163, %v1166
      %v1186 = vsel %vm1176, %v1172, 1326507024
      %v1187 = vsel %vm1175, %v1169, %v1186
      %v1188 = vsel %vm1174, %v1185, %v1187
      %v1189 = vshll.u32 %v1149, 8
      %v1190 = vand.u32 %v1189, 65535
      %v1191 = vshrl.u32 %v1189, 16
      %v1192 = vand.u32 %v1188, 65535
      %v1193 = vshrl.u32 %v1188, 16
      %v1194 = vmul.u32 %v1190, %v1192
      %v1195 = vmul.u32 %v1190, %v1193
      %v1196 = vmul.u32 %v1191, %v1192
      %v1197 = vmul.u32 %v1191, %v1193
      %v1198 = vshll.u32 %v1195, 16
      %v1199 = vshrl.u32 %v1195, 16
      %v1200 = vshll.u32 %v1196, 16
      %v1201 = vshrl.u32 %v1196, 16
      %vm1202 = vc.u32 %v1194, %v1198
      %v1203 = vsel %vm1202, 1, 0
      %v1204 = vadd.s32 %v1194, %v1198
      %v1205 = vadd.s32 %v1197, %v1203
      %vm1206 = vc.u32 %v1204, %v1200
      %v1207 = vsel %vm1206, 1, 0
      %v1208 = vadd.s32 %v1204, %v1200
      %v1209 = vadd.s32 %v1205, %v1207
      %v1210 = vadd.s32 %v1209, %v1199
      %v1211 = vadd.s32 %v1210, %v1201
      %v1212 = vand.u32 %v1189, 65535
      %v1213 = vshrl.u32 %v1189, 16
      %v1214 = vand.u32 %v1184, 65535
      %v1215 = vshrl.u32 %v1184, 16
      %v1216 = vmul.u32 %v1212, %v1214
      %v1217 = vmul.u32 %v1212, %v1215
      %v1218 = vmul.u32 %v1213, %v1214
      %v1219 = vmul.u32 %v1213, %v1215
      %v1220 = vshll.u32 %v1217, 16
      %v1221 = vshrl.u32 %v1217, 16
      %v1222 = vshll.u32 %v1218, 16
      %v1223 = vshrl.u32 %v1218, 16
      %vm1224 = vc.u32 %v1216, %v1220
      %v1225 = vsel %vm1224, 1, 0
      %v1226 = vadd.s32 %v1216, %v1220
      %v1227 = vadd.s32 %v1219, %v1225
      %vm1228 = vc.u32 %v1226, %v1222
      %v1229 = vsel %vm1228, 1, 0
      %v1230 = vadd.s32 %v1226, %v1222
      %v1231 = vadd.s32 %v1227, %v1229
      %v1232 = vadd.s32 %v1231, %v1221
      %v1233 = vadd.s32 %v1232, %v1223
      %v1234 = vmul.u32 %v1189, %v1180
      %v1235 = vadd.s32 %v1211, %v1230
      %vm1236 = vc.u32 %v1211, %v1230
      %v1237 = vadd.s32 %v1233, 1
      %v1238 = vsel %vm1236, %v1237, %v1233
      %v1239 = vadd.s32 %v1234, %v1238
      %v1240 = vadd.s32 %v1239, 536870912
      %v1241 = vshrl.u32 %v1240, 30
      %v1242 = vshll.u32 %v1241, 30
      %v1243 = vsub.s32 %v1239, %v1242
      %vm1244 = vcmp.lt.s32.totalorder %v1243, 0
      %v1245 = vsub.s32 0, %v1243
      %v1246 = vsel %vm1244, %v1245, %v1243
      %v1247 = vclz %v1246
      %v1248 = vsub.s32 %v1247, 2
      %vm1249 = vcmp.gt.s32.totalorder 0, %v1248
      %v1250 = vsel %vm1249, 0, %v1248
      %v1251 = vsub.s32 32, %v1250
      %v1252 = vshll.u32 %v1243, %v1250
      %v1253 = vshrl.u32 %v1235, %v1251
      %v1254 = vor.u32 %v1252, %v1253
      %v1255 = vsub.s32 4294967266, %v1250
      %v1256 = vadd.s32 %v1255, 127
      %v1257 = vshll.u32 %v1256, 23
      %v1258 = vor.u32 4788187, %v1257
      %v1259 = vand.u32 2147483647, %v1258
      %v1261 = vcvt.s32.f32 %v1254
      %v1262 = vmul.f32 %v1261, %v1259
      %v1263 = vxor.u32 %v1262, 2147483648
      %v1264 = vsel %vm1143, %v1263, %v1262
      %v1265 = vsub.s32 4, %v1241
      %v1266 = vsel %vm1143, %v1265, %v1241
      %v1267 = vsel %vm1142, %v494, %v1264
      %v1268 = vsel %vm1142, 0, %v1266
      %v1269 = vmul.f32 %v1267, %v1267
      %v1270 = vmul.f32 %v1269, -0.001358992
      %v1271 = vadd.f32 %v1270, 0.041655596
      %v1272 = vmul.f32 %v1269, %v1271
      %v1273 = vadd.f32 %v1272, -0.4999988
      %v1274 = vmul.f32 %v1269, %v1273
      %v1275 = vadd.f32 1.0, %v1274
      %v1276 = vmul.f32 %v1267, %v1267
      %v1277 = vmul.f32 %v1276, -0.00019511016
      %v1278 = vadd.f32 %v1277, 0.008332121
      %v1279 = vmul.f32 %v1276, %v1278
      %v1280 = vadd.f32 %v1279, -0.16666654
      %v1281 = vmul.f32 %v1276, %v1280
      %v1282 = vadd.f32 %v1281, 1.0
      %v1283 = vmul.f32 %v1282, %v1267
      %vm1284 = vweird.f32 %v494
      %v1285 = vadd.s32 %v1268, 3
      %v1286 = vand.u32 %v1285, 3
      %vm1287 = vcmp.lt.s32.totalorder %v1286, 2
      %vm1288 = vcmp.eq.s32.totalorder %v1286, 0
      %v1289 = vxor.u32 %v1283, 2147483648
      %v1290 = vsel %vm1288, %v1275, %v1289
      %vm1291 = vcmp.eq.s32.totalorder %v1286, 2
      %v1292 = vxor.u32 %v1275, 2147483648
      %v1293 = vsel %vm1291, %v1292, %v1283
      %v1294 = vsel %vm1287, %v1290, %v1293
      %v1295 = vsel %vm1284, nan, %v1294
      %v1296 = vand.u32 2147483647, %v497
      %vm1297 = vcmp.le.f32.partialorder %v1296, 0.7853982
      %vm1298 = vcmp.lt.s32.totalorder %v497, 0
      %v1299 = vand.u32 %v497, 2139095040
      %v1300 = vshrl.u32 %v1299, 23
      %v1301 = vsub.s32 %v1300, 127
      %v1302 = vand.u32 2147483647, %v497
      %v1303 = vand.u32 %v1302, 8388607
      %v1304 = vor.u32 %v1303, 8388608
      %v1305 = vsub.s32 0, %v1304
      %v1306 = vadd.s32 %v1301, 1
      %vm1307 = vcmp.gt.s32.totalorder %v1306, 0
      %v1308 = vsel %vm1307, %v1306, 0
      %v1309 = vshrl.u32 %v1308, 5
      %v1310 = vand.u32 %v1308, 31
      %v1311 = vsub.s32 32, %v1310
      %v1312 = vshrl.u32 683565275, %v1311
      %v1313 = vshll.u32 683565275, %v1310
      %v1314 = vshrl.u32 2475754826, %v1311
      %v1315 = vor.u32 %v1313, %v1314
      %v1316 = vshll.u32 2475754826, %v1310
      %v1317 = vshrl.u32 2131351028, %v1311
      %v1318 = vor.u32 %v1316, %v1317
      %v1319 = vshll.u32 2131351028, %v1310
      %v1320 = vshrl.u32 2102212464, %v1311
      %v1321 = vor.u32 %v1319, %v1320
      %v1322 = vshll.u32 2102212464, %v1310
      %v1323 = vshrl.u32 920167782, %v1311
      %v1324 = vor.u32 %v1322, %v1323
      %v1325 = vshll.u32 920167782, %v1310
      %v1326 = vshrl.u32 1326507024, %v1311
      %v1327 = vor.u32 %v1325, %v1326
      %vm1328 = vcmp.lt.s32.totalorder %v1309, 1
      %vm1329 = vcmp.lt.s32.totalorder %v1309, 2
      %vm1330 = vcmp.lt.s32.totalorder %v1309, 3
      %vm1331 = vcmp.lt.s32.totalorder %v1309, 4
      %v1332 = vsel %vm1328, %v1312, %v1315
      %v1333 = vsel %vm1331, %v1321, 2102212464
      %v1334 = vsel %vm1330, %v1318, %v1333
      %v1335 = vsel %vm1329, %v1332, %v1334
      %v1336 = vsel %vm1328, %v1315, %v1318
      %v1337 = vsel %vm1331, %v1324, 920167782
      %v1338 = vsel %vm1330, %v1321, %v1337
      %v1339 = vsel %vm1329, %v1336, %v1338
      %v1340 = vsel %vm1328, %v1318, %v1321
      %v1341 = vsel %vm1331, %v1327, 1326507024
      %v1342 = vsel %vm1330, %v1324, %v1341
      %v1343 = vsel %vm1329, %v1340, %v1342
      %v1344 = vshll.u32 %v1304, 8
      %v1345 = vand.u32 %v1344, 65535
      %v1346 = vshrl.u32 %v1344, 16
      %v1347 = vand.u32 %v1343, 65535
      %v1348 = vshrl.u32 %v1343, 16
      %v1349 = vmul.u32 %v1345, %v1347
      %v1350 = vmul.u32 %v1345, %v1348
      %v1351 = vmul.u32 %v1346, %v1347
      %v1352 = vmul.u32 %v1346, %v1348
      %v1353 = vshll.u32 %v1350, 16
      %v1354 = vshrl.u32 %v1350, 16
      %v1355 = vshll.u32 %v1351, 16
      %v1356 = vshrl.u32 %v1351, 16
      %vm1357 = vc.u32 %v1349, %v1353
      %v1358 = vsel %vm1357, 1, 0
      %v1359 = vadd.s32 %v1349, %v1353
      %v1360 = vadd.s32 %v1352, %v1358
      %vm1361 = vc.u32 %v1359, %v1355
      %v1362 = vsel %vm1361, 1, 0
      %v1363 = vadd.s32 %v1359, %v1355
      %v1364 = vadd.s32 %v1360, %v1362
      %v1365 = vadd.s32 %v1364, %v1354
      %v1366 = vadd.s32 %v1365, %v1356
      %v1367 = vand.u32 %v1344, 65535
      %v1368 = vshrl.u32 %v1344, 16
      %v1369 = vand.u32 %v1339, 65535
      %v1370 = vshrl.u32 %v1339, 16
      %v1371 = vmul.u32 %v1367, %v1369
      %v1372 = vmul.u32 %v1367, %v1370
      %v1373 = vmul.u32 %v1368, %v1369
      %v1374 = vmul.u32 %v1368, %v1370
      %v1375 = vshll.u32 %v1372, 16
      %v1376 = vshrl.u32 %v1372, 16
      %v1377 = vshll.u32 %v1373, 16
      %v1378 = vshrl.u32 %v1373, 16
      %vm1379 = vc.u32 %v1371, %v1375
      %v1380 = vsel %vm1379, 1, 0
      %v1381 = vadd.s32 %v1371, %v1375
      %v1382 = vadd.s32 %v1374, %v1380
      %vm1383 = vc.u32 %v1381, %v1377
      %v1384 = vsel %vm1383, 1, 0
      %v1385 = vadd.s32 %v1381, %v1377
      %v1386 = vadd.s32 %v1382, %v1384
      %v1387 = vadd.s32 %v1386, %v1376
      %v1388 = vadd.s32 %v1387, %v1378
      %v1389 = vmul.u32 %v1344, %v1335
      %v1390 = vadd.s32 %v1366, %v1385
      %vm1391 = vc.u32 %v1366, %v1385
      %v1392 = vadd.s32 %v1388, 1
      %v1393 = vsel %vm1391, %v1392, %v1388
      %v1394 = vadd.s32 %v1389, %v1393
      %v1395 = vadd.s32 %v1394, 536870912
      %v1396 = vshrl.u32 %v1395, 30
      %v1397 = vshll.u32 %v1396, 30
      %v1398 = vsub.s32 %v1394, %v1397
      %vm1399 = vcmp.lt.s32.totalorder %v1398, 0
      %v1400 = vsub.s32 0, %v1398
      %v1401 = vsel %vm1399, %v1400, %v1398
      %v1402 = vclz %v1401
      %v1403 = vsub.s32 %v1402, 2
      %vm1404 = vcmp.gt.s32.totalorder 0, %v1403
      %v1405 = vsel %vm1404, 0, %v1403
      %v1406 = vsub.s32 32, %v1405
      %v1407 = vshll.u32 %v1398, %v1405
      %v1408 = vshrl.u32 %v1390, %v1406
      %v1409 = vor.u32 %v1407, %v1408
      %v1410 = vsub.s32 4294967266, %v1405
      %v1411 = vadd.s32 %v1410, 127
      %v1412 = vshll.u32 %v1411, 23
      %v1413 = vor.u32 4788187, %v1412
      %v1414 = vand.u32 2147483647, %v1413
      %v1416 = vcvt.s32.f32 %v1409
      %v1417 = vmul.f32 %v1416, %v1414
      %v1418 = vxor.u32 %v1417, 2147483648
      %v1419 = vsel %vm1298, %v1418, %v1417
      %v1420 = vsub.s32 4, %v1396
      %v1421 = vsel %vm1298, %v1420, %v1396
      %v1422 = vsel %vm1297, %v497, %v1419
      %v1423 = vsel %vm1297, 0, %v1421
      %v1424 = vmul.f32 %v1422, %v1422
      %v1425 = vmul.f32 %v1424, -0.001358992
      %v1426 = vadd.f32 %v1425, 0.041655596
      %v1427 = vmul.f32 %v1424, %v1426
      %v1428 = vadd.f32 %v1427, -0.4999988
      %v1429 = vmul.f32 %v1424, %v1428
      %v1430 = vadd.f32 1.0, %v1429
      %v1431 = vmul.f32 %v1422, %v1422
      %v1432 = vmul.f32 %v1431, -0.00019511016
      %v1433 = vadd.f32 %v1432, 0.008332121
      %v1434 = vmul.f32 %v1431, %v1433
      %v1435 = vadd.f32 %v1434, -0.16666654
      %v1436 = vmul.f32 %v1431, %v1435
      %v1437 = vadd.f32 %v1436, 1.0
      %v1438 = vmul.f32 %v1437, %v1422
      %vm1439 = vweird.f32 %v497
      %v1440 = vadd.s32 %v1423, 3
      %v1441 = vand.u32 %v1440, 3
      %vm1442 = vcmp.lt.s32.totalorder %v1441, 2
      %vm1443 = vcmp.eq.s32.totalorder %v1441, 0
      %v1444 = vxor.u32 %v1438, 2147483648
      %v1445 = vsel %vm1443, %v1430, %v1444
      %vm1446 = vcmp.eq.s32.totalorder %v1441, 2
      %v1447 = vxor.u32 %v1430, 2147483648
      %v1448 = vsel %vm1446, %v1447, %v1438
      %v1449 = vsel %vm1442, %v1445, %v1448
      %v1450 = vsel %vm1439, nan, %v1449
      %v1451 = vand.u32 2147483647, %v500
      %vm1452 = vcmp.le.f32.partialorder %v1451, 0.7853982
      %vm1453 = vcmp.lt.s32.totalorder %v500, 0
      %v1454 = vand.u32 %v500, 2139095040
      %v1455 = vshrl.u32 %v1454, 23
      %v1456 = vsub.s32 %v1455, 127
      %v1457 = vand.u32 2147483647, %v500
      %v1458 = vand.u32 %v1457, 8388607
      %v1459 = vor.u32 %v1458, 8388608
      %v1460 = vsub.s32 0, %v1459
      %v1461 = vadd.s32 %v1456, 1
      %vm1462 = vcmp.gt.s32.totalorder %v1461, 0
      %v1463 = vsel %vm1462, %v1461, 0
      %v1464 = vshrl.u32 %v1463, 5
      %v1465 = vand.u32 %v1463, 31
      %v1466 = vsub.s32 32, %v1465
      %v1467 = vshrl.u32 683565275, %v1466
      %v1468 = vshll.u32 683565275, %v1465
      %v1469 = vshrl.u32 2475754826, %v1466
      %v1470 = vor.u32 %v1468, %v1469
      %v1471 = vshll.u32 2475754826, %v1465
      %v1472 = vshrl.u32 2131351028, %v1466
      %v1473 = vor.u32 %v1471, %v1472
      %v1474 = vshll.u32 2131351028, %v1465
      %v1475 = vshrl.u32 2102212464, %v1466
      %v1476 = vor.u32 %v1474, %v1475
      %v1477 = vshll.u32 2102212464, %v1465
      %v1478 = vshrl.u32 920167782, %v1466
      %v1479 = vor.u32 %v1477, %v1478
      %v1480 = vshll.u32 920167782, %v1465
      %v1481 = vshrl.u32 1326507024, %v1466
      %v1482 = vor.u32 %v1480, %v1481
      %vm1483 = vcmp.lt.s32.totalorder %v1464, 1
      %vm1484 = vcmp.lt.s32.totalorder %v1464, 2
      %vm1485 = vcmp.lt.s32.totalorder %v1464, 3
      %vm1486 = vcmp.lt.s32.totalorder %v1464, 4
      %v1487 = vsel %vm1483, %v1467, %v1470
      %v1488 = vsel %vm1486, %v1476, 2102212464
      %v1489 = vsel %vm1485, %v1473, %v1488
      %v1490 = vsel %vm1484, %v1487, %v1489
      %v1491 = vsel %vm1483, %v1470, %v1473
      %v1492 = vsel %vm1486, %v1479, 920167782
      %v1493 = vsel %vm1485, %v1476, %v1492
      %v1494 = vsel %vm1484, %v1491, %v1493
      %v1495 = vsel %vm1483, %v1473, %v1476
      %v1496 = vsel %vm1486, %v1482, 1326507024
      %v1497 = vsel %vm1485, %v1479, %v1496
      %v1498 = vsel %vm1484, %v1495, %v1497
      %v1499 = vshll.u32 %v1459, 8
      %v1500 = vand.u32 %v1499, 65535
      %v1501 = vshrl.u32 %v1499, 16
      %v1502 = vand.u32 %v1498, 65535
      %v1503 = vshrl.u32 %v1498, 16
      %v1504 = vmul.u32 %v1500, %v1502
      %v1505 = vmul.u32 %v1500, %v1503
      %v1506 = vmul.u32 %v1501, %v1502
      %v1507 = vmul.u32 %v1501, %v1503
      %v1508 = vshll.u32 %v1505, 16
      %v1509 = vshrl.u32 %v1505, 16
      %v1510 = vshll.u32 %v1506, 16
      %v1511 = vshrl.u32 %v1506, 16
      %vm1512 = vc.u32 %v1504, %v1508
      %v1513 = vsel %vm1512, 1, 0
      %v1514 = vadd.s32 %v1504, %v1508
      %v1515 = vadd.s32 %v1507, %v1513
      %vm1516 = vc.u32 %v1514, %v1510
      %v1517 = vsel %vm1516, 1, 0
      %v1518 = vadd.s32 %v1514, %v1510
      %v1519 = vadd.s32 %v1515, %v1517
      %v1520 = vadd.s32 %v1519, %v1509
      %v1521 = vadd.s32 %v1520, %v1511
      %v1522 = vand.u32 %v1499, 65535
      %v1523 = vshrl.u32 %v1499, 16
      %v1524 = vand.u32 %v1494, 65535
      %v1525 = vshrl.u32 %v1494, 16
      %v1526 = vmul.u32 %v1522, %v1524
      %v1527 = vmul.u32 %v1522, %v1525
      %v1528 = vmul.u32 %v1523, %v1524
      %v1529 = vmul.u32 %v1523, %v1525
      %v1530 = vshll.u32 %v1527, 16
      %v1531 = vshrl.u32 %v1527, 16
      %v1532 = vshll.u32 %v1528, 16
      %v1533 = vshrl.u32 %v1528, 16
      %vm1534 = vc.u32 %v1526, %v1530
      %v1535 = vsel %vm1534, 1, 0
      %v1536 = vadd.s32 %v1526, %v1530
      %v1537 = vadd.s32 %v1529, %v1535
      %vm1538 = vc.u32 %v1536, %v1532
      %v1539 = vsel %vm1538, 1, 0
      %v1540 = vadd.s32 %v1536, %v1532
      %v1541 = vadd.s32 %v1537, %v1539
      %v1542 = vadd.s32 %v1541, %v1531
      %v1543 = vadd.s32 %v1542, %v1533
      %v1544 = vmul.u32 %v1499, %v1490
      %v1545 = vadd.s32 %v1521, %v1540
      %vm1546 = vc.u32 %v1521, %v1540
      %v1547 = vadd.s32 %v1543, 1
      %v1548 = vsel %vm1546, %v1547, %v1543
      %v1549 = vadd.s32 %v1544, %v1548
      %v1550 = vadd.s32 %v1549, 536870912
      %v1551 = vshrl.u32 %v1550, 30
      %v1552 = vshll.u32 %v1551, 30
      %v1553 = vsub.s32 %v1549, %v1552
      %vm1554 = vcmp.lt.s32.totalorder %v1553, 0
      %v1555 = vsub.s32 0, %v1553
      %v1556 = vsel %vm1554, %v1555, %v1553
      %v1557 = vclz %v1556
      %v1558 = vsub.s32 %v1557, 2
      %vm1559 = vcmp.gt.s32.totalorder 0, %v1558
      %v1560 = vsel %vm1559, 0, %v1558
      %v1561 = vsub.s32 32, %v1560
      %v1562 = vshll.u32 %v1553, %v1560
      %v1563 = vshrl.u32 %v1545, %v1561
      %v1564 = vor.u32 %v1562, %v1563
      %v1565 = vsub.s32 4294967266, %v1560
      %v1566 = vadd.s32 %v1565, 127
      %v1567 = vshll.u32 %v1566, 23
      %v1568 = vor.u32 4788187, %v1567
      %v1569 = vand.u32 2147483647, %v1568
      %v1571 = vcvt.s32.f32 %v1564
      %v1572 = vmul.f32 %v1571, %v1569
      %v1573 = vxor.u32 %v1572, 2147483648
      %v1574 = vsel %vm1453, %v1573, %v1572
      %v1575 = vsub.s32 4, %v1551
      %v1576 = vsel %vm1453, %v1575, %v1551
      %v1577 = vsel %vm1452, %v500, %v1574
      %v1578 = vsel %vm1452, 0, %v1576
      %v1579 = vmul.f32 %v1577, %v1577
      %v1580 = vmul.f32 %v1579, -0.001358992
      %v1581 = vadd.f32 %v1580, 0.041655596
      %v1582 = vmul.f32 %v1579, %v1581
      %v1583 = vadd.f32 %v1582, -0.4999988
      %v1584 = vmul.f32 %v1579, %v1583
      %v1585 = vadd.f32 1.0, %v1584
      %v1586 = vmul.f32 %v1577, %v1577
      %v1587 = vmul.f32 %v1586, -0.00019511016
      %v1588 = vadd.f32 %v1587, 0.008332121
      %v1589 = vmul.f32 %v1586, %v1588
      %v1590 = vadd.f32 %v1589, -0.16666654
      %v1591 = vmul.f32 %v1586, %v1590
      %v1592 = vadd.f32 %v1591, 1.0
      %v1593 = vmul.f32 %v1592, %v1577
      %vm1594 = vweird.f32 %v500
      %v1595 = vadd.s32 %v1578, 3
      %v1596 = vand.u32 %v1595, 3
      %vm1597 = vcmp.lt.s32.totalorder %v1596, 2
      %vm1598 = vcmp.eq.s32.totalorder %v1596, 0
      %v1599 = vxor.u32 %v1593, 2147483648
      %v1600 = vsel %vm1598, %v1585, %v1599
      %vm1601 = vcmp.eq.s32.totalorder %v1596, 2
      %v1602 = vxor.u32 %v1585, 2147483648
      %v1603 = vsel %vm1601, %v1602, %v1593
      %v1604 = vsel %vm1597, %v1600, %v1603
      %v1605 = vsel %vm1594, nan, %v1604
      %v1606 = vand.u32 2147483647, %v503
      %vm1607 = vcmp.le.f32.partialorder %v1606, 0.7853982
      %vm1608 = vcmp.lt.s32.totalorder %v503, 0
      %v1609 = vand.u32 %v503, 2139095040
      %v1610 = vshrl.u32 %v1609, 23
      %v1611 = vsub.s32 %v1610, 127
      %v1612 = vand.u32 2147483647, %v503
      %v1613 = vand.u32 %v1612, 8388607
      %v1614 = vor.u32 %v1613, 8388608
      %v1615 = vsub.s32 0, %v1614
      %v1616 = vadd.s32 %v1611, 1
      %vm1617 = vcmp.gt.s32.totalorder %v1616, 0
      %v1618 = vsel %vm1617, %v1616, 0
      %v1619 = vshrl.u32 %v1618, 5
      %v1620 = vand.u32 %v1618, 31
      %v1621 = vsub.s32 32, %v1620
      %v1622 = vshrl.u32 683565275, %v1621
      %v1623 = vshll.u32 683565275, %v1620
      %v1624 = vshrl.u32 2475754826, %v1621
      %v1625 = vor.u32 %v1623, %v1624
      %v1626 = vshll.u32 2475754826, %v1620
      %v1627 = vshrl.u32 2131351028, %v1621
      %v1628 = vor.u32 %v1626, %v1627
      %v1629 = vshll.u32 2131351028, %v1620
      %v1630 = vshrl.u32 2102212464, %v1621
      %v1631 = vor.u32 %v1629, %v1630
      %v1632 = vshll.u32 2102212464, %v1620
      %v1633 = vshrl.u32 920167782, %v1621
      %v1634 = vor.u32 %v1632, %v1633
      %v1635 = vshll.u32 920167782, %v1620
      %v1636 = vshrl.u32 1326507024, %v1621
      %v1637 = vor.u32 %v1635, %v1636
      %vm1638 = vcmp.lt.s32.totalorder %v1619, 1
      %vm1639 = vcmp.lt.s32.totalorder %v1619, 2
      %vm1640 = vcmp.lt.s32.totalorder %v1619, 3
      %vm1641 = vcmp.lt.s32.totalorder %v1619, 4
      %v1642 = vsel %vm1638, %v1622, %v1625
      %v1643 = vsel %vm1641, %v1631, 2102212464
      %v1644 = vsel %vm1640, %v1628, %v1643
      %v1645 = vsel %vm1639, %v1642, %v1644
      %v1646 = vsel %vm1638, %v1625, %v1628
      %v1647 = vsel %vm1641, %v1634, 920167782
      %v1648 = vsel %vm1640, %v1631, %v1647
      %v1649 = vsel %vm1639, %v1646, %v1648
      %v1650 = vsel %vm1638, %v1628, %v1631
      %v1651 = vsel %vm1641, %v1637, 1326507024
      %v1652 = vsel %vm1640, %v1634, %v1651
      %v1653 = vsel %vm1639, %v1650, %v1652
      %v1654 = vshll.u32 %v1614, 8
      %v1655 = vand.u32 %v1654, 65535
      %v1656 = vshrl.u32 %v1654, 16
      %v1657 = vand.u32 %v1653, 65535
      %v1658 = vshrl.u32 %v1653, 16
      %v1659 = vmul.u32 %v1655, %v1657
      %v1660 = vmul.u32 %v1655, %v1658
      %v1661 = vmul.u32 %v1656, %v1657
      %v1662 = vmul.u32 %v1656, %v1658
      %v1663 = vshll.u32 %v1660, 16
      %v1664 = vshrl.u32 %v1660, 16
      %v1665 = vshll.u32 %v1661, 16
      %v1666 = vshrl.u32 %v1661, 16
      %vm1667 = vc.u32 %v1659, %v1663
      %v1668 = vsel %vm1667, 1, 0
      %v1669 = vadd.s32 %v1659, %v1663
      %v1670 = vadd.s32 %v1662, %v1668
      %vm1671 = vc.u32 %v1669, %v1665
      %v1672 = vsel %vm1671, 1, 0
      %v1673 = vadd.s32 %v1669, %v1665
      %v1674 = vadd.s32 %v1670, %v1672
      %v1675 = vadd.s32 %v1674, %v1664
      %v1676 = vadd.s32 %v1675, %v1666
      %v1677 = vand.u32 %v1654, 65535
      %v1678 = vshrl.u32 %v1654, 16
      %v1679 = vand.u32 %v1649, 65535
      %v1680 = vshrl.u32 %v1649, 16
      %v1681 = vmul.u32 %v1677, %v1679
      %v1682 = vmul.u32 %v1677, %v1680
      %v1683 = vmul.u32 %v1678, %v1679
      %v1684 = vmul.u32 %v1678, %v1680
      %v1685 = vshll.u32 %v1682, 16
      %v1686 = vshrl.u32 %v1682, 16
      %v1687 = vshll.u32 %v1683, 16
      %v1688 = vshrl.u32 %v1683, 16
      %vm1689 = vc.u32 %v1681, %v1685
      %v1690 = vsel %vm1689, 1, 0
      %v1691 = vadd.s32 %v1681, %v1685
      %v1692 = vadd.s32 %v1684, %v1690
      %vm1693 = vc.u32 %v1691, %v1687
      %v1694 = vsel %vm1693, 1, 0
      %v1695 = vadd.s32 %v1691, %v1687
      %v1696 = vadd.s32 %v1692, %v1694
      %v1697 = vadd.s32 %v1696, %v1686
      %v1698 = vadd.s32 %v1697, %v1688
      %v1699 = vmul.u32 %v1654, %v1645
      %v1700 = vadd.s32 %v1676, %v1695
      %vm1701 = vc.u32 %v1676, %v1695
      %v1702 = vadd.s32 %v1698, 1
      %v1703 = vsel %vm1701, %v1702, %v1698
      %v1704 = vadd.s32 %v1699, %v1703
      %v1705 = vadd.s32 %v1704, 536870912
      %v1706 = vshrl.u32 %v1705, 30
      %v1707 = vshll.u32 %v1706, 30
      %v1708 = vsub.s32 %v1704, %v1707
      %vm1709 = vcmp.lt.s32.totalorder %v1708, 0
      %v1710 = vsub.s32 0, %v1708
      %v1711 = vsel %vm1709, %v1710, %v1708
      %v1712 = vclz %v1711
      %v1713 = vsub.s32 %v1712, 2
      %vm1714 = vcmp.gt.s32.totalorder 0, %v1713
      %v1715 = vsel %vm1714, 0, %v1713
      %v1716 = vsub.s32 32, %v1715
      %v1717 = vshll.u32 %v1708, %v1715
      %v1718 = vshrl.u32 %v1700, %v1716
      %v1719 = vor.u32 %v1717, %v1718
      %v1720 = vsub.s32 4294967266, %v1715
      %v1721 = vadd.s32 %v1720, 127
      %v1722 = vshll.u32 %v1721, 23
      %v1723 = vor.u32 4788187, %v1722
      %v1724 = vand.u32 2147483647, %v1723
      %v1726 = vcvt.s32.f32 %v1719
      %v1727 = vmul.f32 %v1726, %v1724
      %v1728 = vxor.u32 %v1727, 2147483648
      %v1729 = vsel %vm1608, %v1728, %v1727
      %v1730 = vsub.s32 4, %v1706
      %v1731 = vsel %vm1608, %v1730, %v1706
      %v1732 = vsel %vm1607, %v503, %v1729
      %v1733 = vsel %vm1607, 0, %v1731
      %v1734 = vmul.f32 %v1732, %v1732
      %v1735 = vmul.f32 %v1734, -0.001358992
      %v1736 = vadd.f32 %v1735, 0.041655596
      %v1737 = vmul.f32 %v1734, %v1736
      %v1738 = vadd.f32 %v1737, -0.4999988
      %v1739 = vmul.f32 %v1734, %v1738
      %v1740 = vadd.f32 1.0, %v1739
      %v1741 = vmul.f32 %v1732, %v1732
      %v1742 = vmul.f32 %v1741, -0.00019511016
      %v1743 = vadd.f32 %v1742, 0.008332121
      %v1744 = vmul.f32 %v1741, %v1743
      %v1745 = vadd.f32 %v1744, -0.16666654
      %v1746 = vmul.f32 %v1741, %v1745
      %v1747 = vadd.f32 %v1746, 1.0
      %v1748 = vmul.f32 %v1747, %v1732
      %vm1749 = vweird.f32 %v503
      %v1750 = vadd.s32 %v1733, 3
      %v1751 = vand.u32 %v1750, 3
      %vm1752 = vcmp.lt.s32.totalorder %v1751, 2
      %vm1753 = vcmp.eq.s32.totalorder %v1751, 0
      %v1754 = vxor.u32 %v1748, 2147483648
      %v1755 = vsel %vm1753, %v1740, %v1754
      %vm1756 = vcmp.eq.s32.totalorder %v1751, 2
      %v1757 = vxor.u32 %v1740, 2147483648
      %v1758 = vsel %vm1756, %v1757, %v1748
      %v1759 = vsel %vm1752, %v1755, %v1758
      %v1760 = vsel %vm1749, nan, %v1759
      %v1761 = vand.u32 2147483647, %v506
      %vm1762 = vcmp.le.f32.partialorder %v1761, 0.7853982
      %vm1763 = vcmp.lt.s32.totalorder %v506, 0
      %v1764 = vand.u32 %v506, 2139095040
      %v1765 = vshrl.u32 %v1764, 23
      %v1766 = vsub.s32 %v1765, 127
      %v1767 = vand.u32 2147483647, %v506
      %v1768 = vand.u32 %v1767, 8388607
      %v1769 = vor.u32 %v1768, 8388608
      %v1770 = vsub.s32 0, %v1769
      %v1771 = vadd.s32 %v1766, 1
      %vm1772 = vcmp.gt.s32.totalorder %v1771, 0
      %v1773 = vsel %vm1772, %v1771, 0
      %v1774 = vshrl.u32 %v1773, 5
      %v1775 = vand.u32 %v1773, 31
      %v1776 = vsub.s32 32, %v1775
      %v1777 = vshrl.u32 683565275, %v1776
      %v1778 = vshll.u32 683565275, %v1775
      %v1779 = vshrl.u32 2475754826, %v1776
      %v1780 = vor.u32 %v1778, %v1779
      %v1781 = vshll.u32 2475754826, %v1775
      %v1782 = vshrl.u32 2131351028, %v1776
      %v1783 = vor.u32 %v1781, %v1782
      %v1784 = vshll.u32 2131351028, %v1775
      %v1785 = vshrl.u32 2102212464, %v1776
      %v1786 = vor.u32 %v1784, %v1785
      %v1787 = vshll.u32 2102212464, %v1775
      %v1788 = vshrl.u32 920167782, %v1776
      %v1789 = vor.u32 %v1787, %v1788
      %v1790 = vshll.u32 920167782, %v1775
      %v1791 = vshrl.u32 1326507024, %v1776
      %v1792 = vor.u32 %v1790, %v1791
      %vm1793 = vcmp.lt.s32.totalorder %v1774, 1
      %vm1794 = vcmp.lt.s32.totalorder %v1774, 2
      %vm1795 = vcmp.lt.s32.totalorder %v1774, 3
      %vm1796 = vcmp.lt.s32.totalorder %v1774, 4
      %v1797 = vsel %vm1793, %v1777, %v1780
      %v1798 = vsel %vm1796, %v1786, 2102212464
      %v1799 = vsel %vm1795, %v1783, %v1798
      %v1800 = vsel %vm1794, %v1797, %v1799
      %v1801 = vsel %vm1793, %v1780, %v1783
      %v1802 = vsel %vm1796, %v1789, 920167782
      %v1803 = vsel %vm1795, %v1786, %v1802
      %v1804 = vsel %vm1794, %v1801, %v1803
      %v1805 = vsel %vm1793, %v1783, %v1786
      %v1806 = vsel %vm1796, %v1792, 1326507024
      %v1807 = vsel %vm1795, %v1789, %v1806
      %v1808 = vsel %vm1794, %v1805, %v1807
      %v1809 = vshll.u32 %v1769, 8
      %v1810 = vand.u32 %v1809, 65535
      %v1811 = vshrl.u32 %v1809, 16
      %v1812 = vand.u32 %v1808, 65535
      %v1813 = vshrl.u32 %v1808, 16
      %v1814 = vmul.u32 %v1810, %v1812
      %v1815 = vmul.u32 %v1810, %v1813
      %v1816 = vmul.u32 %v1811, %v1812
      %v1817 = vmul.u32 %v1811, %v1813
      %v1818 = vshll.u32 %v1815, 16
      %v1819 = vshrl.u32 %v1815, 16
      %v1820 = vshll.u32 %v1816, 16
      %v1821 = vshrl.u32 %v1816, 16
      %vm1822 = vc.u32 %v1814, %v1818
      %v1823 = vsel %vm1822, 1, 0
      %v1824 = vadd.s32 %v1814, %v1818
      %v1825 = vadd.s32 %v1817, %v1823
      %vm1826 = vc.u32 %v1824, %v1820
      %v1827 = vsel %vm1826, 1, 0
      %v1828 = vadd.s32 %v1824, %v1820
      %v1829 = vadd.s32 %v1825, %v1827
      %v1830 = vadd.s32 %v1829, %v1819
      %v1831 = vadd.s32 %v1830, %v1821
      %v1832 = vand.u32 %v1809, 65535
      %v1833 = vshrl.u32 %v1809, 16
      %v1834 = vand.u32 %v1804, 65535
      %v1835 = vshrl.u32 %v1804, 16
      %v1836 = vmul.u32 %v1832, %v1834
      %v1837 = vmul.u32 %v1832, %v1835
      %v1838 = vmul.u32 %v1833, %v1834
      %v1839 = vmul.u32 %v1833, %v1835
      %v1840 = vshll.u32 %v1837, 16
      %v1841 = vshrl.u32 %v1837, 16
      %v1842 = vshll.u32 %v1838, 16
      %v1843 = vshrl.u32 %v1838, 16
      %vm1844 = vc.u32 %v1836, %v1840
      %v1845 = vsel %vm1844, 1, 0
      %v1846 = vadd.s32 %v1836, %v1840
      %v1847 = vadd.s32 %v1839, %v1845
      %vm1848 = vc.u32 %v1846, %v1842
      %v1849 = vsel %vm1848, 1, 0
      %v1850 = vadd.s32 %v1846, %v1842
      %v1851 = vadd.s32 %v1847, %v1849
      %v1852 = vadd.s32 %v1851, %v1841
      %v1853 = vadd.s32 %v1852, %v1843
      %v1854 = vmul.u32 %v1809, %v1800
      %v1855 = vadd.s32 %v1831, %v1850
      %vm1856 = vc.u32 %v1831, %v1850
      %v1857 = vadd.s32 %v1853, 1
      %v1858 = vsel %vm1856, %v1857, %v1853
      %v1859 = vadd.s32 %v1854, %v1858
      %v1860 = vadd.s32 %v1859, 536870912
      %v1861 = vshrl.u32 %v1860, 30
      %v1862 = vshll.u32 %v1861, 30
      %v1863 = vsub.s32 %v1859, %v1862
      %vm1864 = vcmp.lt.s32.totalorder %v1863, 0
      %v1865 = vsub.s32 0, %v1863
      %v1866 = vsel %vm1864, %v1865, %v1863
      %v1867 = vclz %v1866
      %v1868 = vsub.s32 %v1867, 2
      %vm1869 = vcmp.gt.s32.totalorder 0, %v1868
      %v1870 = vsel %vm1869, 0, %v1868
      %v1871 = vsub.s32 32, %v1870
      %v1872 = vshll.u32 %v1863, %v1870
      %v1873 = vshrl.u32 %v1855, %v1871
      %v1874 = vor.u32 %v1872, %v1873
      %v1875 = vsub.s32 4294967266, %v1870
      %v1876 = vadd.s32 %v1875, 127
      %v1877 = vshll.u32 %v1876, 23
      %v1878 = vor.u32 4788187, %v1877
      %v1879 = vand.u32 2147483647, %v1878
      %v1881 = vcvt.s32.f32 %v1874
      %v1882 = vmul.f32 %v1881, %v1879
      %v1883 = vxor.u32 %v1882, 2147483648
      %v1884 = vsel %vm1763, %v1883, %v1882
      %v1885 = vsub.s32 4, %v1861
      %v1886 = vsel %vm1763, %v1885, %v1861
      %v1887 = vsel %vm1762, %v506, %v1884
      %v1888 = vsel %vm1762, 0, %v1886
      %v1889 = vmul.f32 %v1887, %v1887
      %v1890 = vmul.f32 %v1889, -0.001358992
      %v1891 = vadd.f32 %v1890, 0.041655596
      %v1892 = vmul.f32 %v1889, %v1891
      %v1893 = vadd.f32 %v1892, -0.4999988
      %v1894 = vmul.f32 %v1889, %v1893
      %v1895 = vadd.f32 1.0, %v1894
      %v1896 = vmul.f32 %v1887, %v1887
      %v1897 = vmul.f32 %v1896, -0.00019511016
      %v1898 = vadd.f32 %v1897, 0.008332121
      %v1899 = vmul.f32 %v1896, %v1898
      %v1900 = vadd.f32 %v1899, -0.16666654
      %v1901 = vmul.f32 %v1896, %v1900
      %v1902 = vadd.f32 %v1901, 1.0
      %v1903 = vmul.f32 %v1902, %v1887
      %vm1904 = vweird.f32 %v506
      %v1905 = vadd.s32 %v1888, 3
      %v1906 = vand.u32 %v1905, 3
      %vm1907 = vcmp.lt.s32.totalorder %v1906, 2
      %vm1908 = vcmp.eq.s32.totalorder %v1906, 0
      %v1909 = vxor.u32 %v1903, 2147483648
      %v1910 = vsel %vm1908, %v1895, %v1909
      %vm1911 = vcmp.eq.s32.totalorder %v1906, 2
      %v1912 = vxor.u32 %v1895, 2147483648
      %v1913 = vsel %vm1911, %v1912, %v1903
      %v1914 = vsel %vm1907, %v1910, %v1913
      %v1915 = vsel %vm1904, nan, %v1914
      %v1916 = vand.u32 2147483647, %v509
      %vm1917 = vcmp.le.f32.partialorder %v1916, 0.7853982
      %vm1918 = vcmp.lt.s32.totalorder %v509, 0
      %v1919 = vand.u32 %v509, 2139095040
      %v1920 = vshrl.u32 %v1919, 23
      %v1921 = vsub.s32 %v1920, 127
      %v1922 = vand.u32 2147483647, %v509
      %v1923 = vand.u32 %v1922, 8388607
      %v1924 = vor.u32 %v1923, 8388608
      %v1925 = vsub.s32 0, %v1924
      %v1926 = vadd.s32 %v1921, 1
      %vm1927 = vcmp.gt.s32.totalorder %v1926, 0
      %v1928 = vsel %vm1927, %v1926, 0
      %v1929 = vshrl.u32 %v1928, 5
      %v1930 = vand.u32 %v1928, 31
      %v1931 = vsub.s32 32, %v1930
      %v1932 = vshrl.u32 683565275, %v1931
      %v1933 = vshll.u32 683565275, %v1930
      %v1934 = vshrl.u32 2475754826, %v1931
      %v1935 = vor.u32 %v1933, %v1934
      %v1936 = vshll.u32 2475754826, %v1930
      %v1937 = vshrl.u32 2131351028, %v1931
      %v1938 = vor.u32 %v1936, %v1937
      %v1939 = vshll.u32 2131351028, %v1930
      %v1940 = vshrl.u32 2102212464, %v1931
      %v1941 = vor.u32 %v1939, %v1940
      %v1942 = vshll.u32 2102212464, %v1930
      %v1943 = vshrl.u32 920167782, %v1931
      %v1944 = vor.u32 %v1942, %v1943
      %v1945 = vshll.u32 920167782, %v1930
      %v1946 = vshrl.u32 1326507024, %v1931
      %v1947 = vor.u32 %v1945, %v1946
      %vm1948 = vcmp.lt.s32.totalorder %v1929, 1
      %vm1949 = vcmp.lt.s32.totalorder %v1929, 2
      %vm1950 = vcmp.lt.s32.totalorder %v1929, 3
      %vm1951 = vcmp.lt.s32.totalorder %v1929, 4
      %v1952 = vsel %vm1948, %v1932, %v1935
      %v1953 = vsel %vm1951, %v1941, 2102212464
      %v1954 = vsel %vm1950, %v1938, %v1953
      %v1955 = vsel %vm1949, %v1952, %v1954
      %v1956 = vsel %vm1948, %v1935, %v1938
      %v1957 = vsel %vm1951, %v1944, 920167782
      %v1958 = vsel %vm1950, %v1941, %v1957
      %v1959 = vsel %vm1949, %v1956, %v1958
      %v1960 = vsel %vm1948, %v1938, %v1941
      %v1961 = vsel %vm1951, %v1947, 1326507024
      %v1962 = vsel %vm1950, %v1944, %v1961
      %v1963 = vsel %vm1949, %v1960, %v1962
      %v1964 = vshll.u32 %v1924, 8
      %v1965 = vand.u32 %v1964, 65535
      %v1966 = vshrl.u32 %v1964, 16
      %v1967 = vand.u32 %v1963, 65535
      %v1968 = vshrl.u32 %v1963, 16
      %v1969 = vmul.u32 %v1965, %v1967
      %v1970 = vmul.u32 %v1965, %v1968
      %v1971 = vmul.u32 %v1966, %v1967
      %v1972 = vmul.u32 %v1966, %v1968
      %v1973 = vshll.u32 %v1970, 16
      %v1974 = vshrl.u32 %v1970, 16
      %v1975 = vshll.u32 %v1971, 16
      %v1976 = vshrl.u32 %v1971, 16
      %vm1977 = vc.u32 %v1969, %v1973
      %v1978 = vsel %vm1977, 1, 0
      %v1979 = vadd.s32 %v1969, %v1973
      %v1980 = vadd.s32 %v1972, %v1978
      %vm1981 = vc.u32 %v1979, %v1975
      %v1982 = vsel %vm1981, 1, 0
      %v1983 = vadd.s32 %v1979, %v1975
      %v1984 = vadd.s32 %v1980, %v1982
      %v1985 = vadd.s32 %v1984, %v1974
      %v1986 = vadd.s32 %v1985, %v1976
      %v1987 = vand.u32 %v1964, 65535
      %v1988 = vshrl.u32 %v1964, 16
      %v1989 = vand.u32 %v1959, 65535
      %v1990 = vshrl.u32 %v1959, 16
      %v1991 = vmul.u32 %v1987, %v1989
      %v1992 = vmul.u32 %v1987, %v1990
      %v1993 = vmul.u32 %v1988, %v1989
      %v1994 = vmul.u32 %v1988, %v1990
      %v1995 = vshll.u32 %v1992, 16
      %v1996 = vshrl.u32 %v1992, 16
      %v1997 = vshll.u32 %v1993, 16
      %v1998 = vshrl.u32 %v1993, 16
      %vm1999 = vc.u32 %v1991, %v1995
      %v2000 = vsel %vm1999, 1, 0
      %v2001 = vadd.s32 %v1991, %v1995
      %v2002 = vadd.s32 %v1994, %v2000
      %vm2003 = vc.u32 %v2001, %v1997
      %v2004 = vsel %vm2003, 1, 0
      %v2005 = vadd.s32 %v2001, %v1997
      %v2006 = vadd.s32 %v2002, %v2004
      %v2007 = vadd.s32 %v2006, %v1996
      %v2008 = vadd.s32 %v2007, %v1998
      %v2009 = vmul.u32 %v1964, %v1955
      %v2010 = vadd.s32 %v1986, %v2005
      %vm2011 = vc.u32 %v1986, %v2005
      %v2012 = vadd.s32 %v2008, 1
      %v2013 = vsel %vm2011, %v2012, %v2008
      %v2014 = vadd.s32 %v2009, %v2013
      %v2015 = vadd.s32 %v2014, 536870912
      %v2016 = vshrl.u32 %v2015, 30
      %v2017 = vshll.u32 %v2016, 30
      %v2018 = vsub.s32 %v2014, %v2017
      %vm2019 = vcmp.lt.s32.totalorder %v2018, 0
      %v2020 = vsub.s32 0, %v2018
      %v2021 = vsel %vm2019, %v2020, %v2018
      %v2022 = vclz %v2021
      %v2023 = vsub.s32 %v2022, 2
      %vm2024 = vcmp.gt.s32.totalorder 0, %v2023
      %v2025 = vsel %vm2024, 0, %v2023
      %v2026 = vsub.s32 32, %v2025
      %v2027 = vshll.u32 %v2018, %v2025
      %v2028 = vshrl.u32 %v2010, %v2026
      %v2029 = vor.u32 %v2027, %v2028
      %v2030 = vsub.s32 4294967266, %v2025
      %v2031 = vadd.s32 %v2030, 127
      %v2032 = vshll.u32 %v2031, 23
      %v2033 = vor.u32 4788187, %v2032
      %v2034 = vand.u32 2147483647, %v2033
      %v2036 = vcvt.s32.f32 %v2029
      %v2037 = vmul.f32 %v2036, %v2034
      %v2038 = vxor.u32 %v2037, 2147483648
      %v2039 = vsel %vm1918, %v2038, %v2037
      %v2040 = vsub.s32 4, %v2016
      %v2041 = vsel %vm1918, %v2040, %v2016
      %v2042 = vsel %vm1917, %v509, %v2039
      %v2043 = vsel %vm1917, 0, %v2041
      %v2044 = vmul.f32 %v2042, %v2042
      %v2045 = vmul.f32 %v2044, -0.001358992
      %v2046 = vadd.f32 %v2045, 0.041655596
      %v2047 = vmul.f32 %v2044, %v2046
      %v2048 = vadd.f32 %v2047, -0.4999988
      %v2049 = vmul.f32 %v2044, %v2048
      %v2050 = vadd.f32 1.0, %v2049
      %v2051 = vmul.f32 %v2042, %v2042
      %v2052 = vmul.f32 %v2051, -0.00019511016
      %v2053 = vadd.f32 %v2052, 0.008332121
      %v2054 = vmul.f32 %v2051, %v2053
      %v2055 = vadd.f32 %v2054, -0.16666654
      %v2056 = vmul.f32 %v2051, %v2055
      %v2057 = vadd.f32 %v2056, 1.0
      %v2058 = vmul.f32 %v2057, %v2042
      %vm2059 = vweird.f32 %v509
      %v2060 = vadd.s32 %v2043, 3
      %v2061 = vand.u32 %v2060, 3
      %vm2062 = vcmp.lt.s32.totalorder %v2061, 2
      %vm2063 = vcmp.eq.s32.totalorder %v2061, 0
      %v2064 = vxor.u32 %v2058, 2147483648
      %v2065 = vsel %vm2063, %v2050, %v2064
      %vm2066 = vcmp.eq.s32.totalorder %v2061, 2
      %v2067 = vxor.u32 %v2050, 2147483648
      %v2068 = vsel %vm2066, %v2067, %v2058
      %v2069 = vsel %vm2062, %v2065, %v2068
      %v2070 = vsel %vm2059, nan, %v2069
      %v2071 = vand.u32 2147483647, %v512
      %vm2072 = vcmp.le.f32.partialorder %v2071, 0.7853982
      %vm2073 = vcmp.lt.s32.totalorder %v512, 0
      %v2074 = vand.u32 %v512, 2139095040
      %v2075 = vshrl.u32 %v2074, 23
      %v2076 = vsub.s32 %v2075, 127
      %v2077 = vand.u32 2147483647, %v512
      %v2078 = vand.u32 %v2077, 8388607
      %v2079 = vor.u32 %v2078, 8388608
      %v2080 = vsub.s32 0, %v2079
      %v2081 = vadd.s32 %v2076, 1
      %vm2082 = vcmp.gt.s32.totalorder %v2081, 0
      %v2083 = vsel %vm2082, %v2081, 0
      %v2084 = vshrl.u32 %v2083, 5
      %v2085 = vand.u32 %v2083, 31
      %v2086 = vsub.s32 32, %v2085
      %v2087 = vshrl.u32 683565275, %v2086
      %v2088 = vshll.u32 683565275, %v2085
      %v2089 = vshrl.u32 2475754826, %v2086
      %v2090 = vor.u32 %v2088, %v2089
      %v2091 = vshll.u32 2475754826, %v2085
      %v2092 = vshrl.u32 2131351028, %v2086
      %v2093 = vor.u32 %v2091, %v2092
      %v2094 = vshll.u32 2131351028, %v2085
      %v2095 = vshrl.u32 2102212464, %v2086
      %v2096 = vor.u32 %v2094, %v2095
      %v2097 = vshll.u32 2102212464, %v2085
      %v2098 = vshrl.u32 920167782, %v2086
      %v2099 = vor.u32 %v2097, %v2098
      %v2100 = vshll.u32 920167782, %v2085
      %v2101 = vshrl.u32 1326507024, %v2086
      %v2102 = vor.u32 %v2100, %v2101
      %vm2103 = vcmp.lt.s32.totalorder %v2084, 1
      %vm2104 = vcmp.lt.s32.totalorder %v2084, 2
      %vm2105 = vcmp.lt.s32.totalorder %v2084, 3
      %vm2106 = vcmp.lt.s32.totalorder %v2084, 4
      %v2107 = vsel %vm2103, %v2087, %v2090
      %v2108 = vsel %vm2106, %v2096, 2102212464
      %v2109 = vsel %vm2105, %v2093, %v2108
      %v2110 = vsel %vm2104, %v2107, %v2109
      %v2111 = vsel %vm2103, %v2090, %v2093
      %v2112 = vsel %vm2106, %v2099, 920167782
      %v2113 = vsel %vm2105, %v2096, %v2112
      %v2114 = vsel %vm2104, %v2111, %v2113
      %v2115 = vsel %vm2103, %v2093, %v2096
      %v2116 = vsel %vm2106, %v2102, 1326507024
      %v2117 = vsel %vm2105, %v2099, %v2116
      %v2118 = vsel %vm2104, %v2115, %v2117
      %v2119 = vshll.u32 %v2079, 8
      %v2120 = vand.u32 %v2119, 65535
      %v2121 = vshrl.u32 %v2119, 16
      %v2122 = vand.u32 %v2118, 65535
      %v2123 = vshrl.u32 %v2118, 16
      %v2124 = vmul.u32 %v2120, %v2122
      %v2125 = vmul.u32 %v2120, %v2123
      %v2126 = vmul.u32 %v2121, %v2122
      %v2127 = vmul.u32 %v2121, %v2123
      %v2128 = vshll.u32 %v2125, 16
      %v2129 = vshrl.u32 %v2125, 16
      %v2130 = vshll.u32 %v2126, 16
      %v2131 = vshrl.u32 %v2126, 16
      %vm2132 = vc.u32 %v2124, %v2128
      %v2133 = vsel %vm2132, 1, 0
      %v2134 = vadd.s32 %v2124, %v2128
      %v2135 = vadd.s32 %v2127, %v2133
      %vm2136 = vc.u32 %v2134, %v2130
      %v2137 = vsel %vm2136, 1, 0
      %v2138 = vadd.s32 %v2134, %v2130
      %v2139 = vadd.s32 %v2135, %v2137
      %v2140 = vadd.s32 %v2139, %v2129
      %v2141 = vadd.s32 %v2140, %v2131
      %v2142 = vand.u32 %v2119, 65535
      %v2143 = vshrl.u32 %v2119, 16
      %v2144 = vand.u32 %v2114, 65535
      %v2145 = vshrl.u32 %v2114, 16
      %v2146 = vmul.u32 %v2142, %v2144
      %v2147 = vmul.u32 %v2142, %v2145
      %v2148 = vmul.u32 %v2143, %v2144
      %v2149 = vmul.u32 %v2143, %v2145
      %v2150 = vshll.u32 %v2147, 16
      %v2151 = vshrl.u32 %v2147, 16
      %v2152 = vshll.u32 %v2148, 16
      %v2153 = vshrl.u32 %v2148, 16
      %vm2154 = vc.u32 %v2146, %v2150
      %v2155 = vsel %vm2154, 1, 0
      %v2156 = vadd.s32 %v2146, %v2150
      %v2157 = vadd.s32 %v2149, %v2155
      %vm2158 = vc.u32 %v2156, %v2152
      %v2159 = vsel %vm2158, 1, 0
      %v2160 = vadd.s32 %v2156, %v2152
      %v2161 = vadd.s32 %v2157, %v2159
      %v2162 = vadd.s32 %v2161, %v2151
      %v2163 = vadd.s32 %v2162, %v2153
      %v2164 = vmul.u32 %v2119, %v2110
      %v2165 = vadd.s32 %v2141, %v2160
      %vm2166 = vc.u32 %v2141, %v2160
      %v2167 = vadd.s32 %v2163, 1
      %v2168 = vsel %vm2166, %v2167, %v2163
      %v2169 = vadd.s32 %v2164, %v2168
      %v2170 = vadd.s32 %v2169, 536870912
      %v2171 = vshrl.u32 %v2170, 30
      %v2172 = vshll.u32 %v2171, 30
      %v2173 = vsub.s32 %v2169, %v2172
      %vm2174 = vcmp.lt.s32.totalorder %v2173, 0
      %v2175 = vsub.s32 0, %v2173
      %v2176 = vsel %vm2174, %v2175, %v2173
      %v2177 = vclz %v2176
      %v2178 = vsub.s32 %v2177, 2
      %vm2179 = vcmp.gt.s32.totalorder 0, %v2178
      %v2180 = vsel %vm2179, 0, %v2178
      %v2181 = vsub.s32 32, %v2180
      %v2182 = vshll.u32 %v2173, %v2180
      %v2183 = vshrl.u32 %v2165, %v2181
      %v2184 = vor.u32 %v2182, %v2183
      %v2185 = vsub.s32 4294967266, %v2180
      %v2186 = vadd.s32 %v2185, 127
      %v2187 = vshll.u32 %v2186, 23
      %v2188 = vor.u32 4788187, %v2187
      %v2189 = vand.u32 2147483647, %v2188
      %v2191 = vcvt.s32.f32 %v2184
      %v2192 = vmul.f32 %v2191, %v2189
      %v2193 = vxor.u32 %v2192, 2147483648
      %v2194 = vsel %vm2073, %v2193, %v2192
      %v2195 = vsub.s32 4, %v2171
      %v2196 = vsel %vm2073, %v2195, %v2171
      %v2197 = vsel %vm2072, %v512, %v2194
      %v2198 = vsel %vm2072, 0, %v2196
      %v2199 = vmul.f32 %v2197, %v2197
      %v2200 = vmul.f32 %v2199, -0.001358992
      %v2201 = vadd.f32 %v2200, 0.041655596
      %v2202 = vmul.f32 %v2199, %v2201
      %v2203 = vadd.f32 %v2202, -0.4999988
      %v2204 = vmul.f32 %v2199, %v2203
      %v2205 = vadd.f32 1.0, %v2204
      %v2206 = vmul.f32 %v2197, %v2197
      %v2207 = vmul.f32 %v2206, -0.00019511016
      %v2208 = vadd.f32 %v2207, 0.008332121
      %v2209 = vmul.f32 %v2206, %v2208
      %v2210 = vadd.f32 %v2209, -0.16666654
      %v2211 = vmul.f32 %v2206, %v2210
      %v2212 = vadd.f32 %v2211, 1.0
      %v2213 = vmul.f32 %v2212, %v2197
      %vm2214 = vweird.f32 %v512
      %v2215 = vadd.s32 %v2198, 3
      %v2216 = vand.u32 %v2215, 3
      %vm2217 = vcmp.lt.s32.totalorder %v2216, 2
      %vm2218 = vcmp.eq.s32.totalorder %v2216, 0
      %v2219 = vxor.u32 %v2213, 2147483648
      %v2220 = vsel %vm2218, %v2205, %v2219
      %vm2221 = vcmp.eq.s32.totalorder %v2216, 2
      %v2222 = vxor.u32 %v2205, 2147483648
      %v2223 = vsel %vm2221, %v2222, %v2213
      %v2224 = vsel %vm2217, %v2220, %v2223
      %v2225 = vsel %vm2214, nan, %v2224
      %v2226 = vand.u32 2147483647, %v515
      %vm2227 = vcmp.le.f32.partialorder %v2226, 0.7853982
      %vm2228 = vcmp.lt.s32.totalorder %v515, 0
      %v2229 = vand.u32 %v515, 2139095040
      %v2230 = vshrl.u32 %v2229, 23
      %v2231 = vsub.s32 %v2230, 127
      %v2232 = vand.u32 2147483647, %v515
      %v2233 = vand.u32 %v2232, 8388607
      %v2234 = vor.u32 %v2233, 8388608
      %v2235 = vsub.s32 0, %v2234
      %v2236 = vadd.s32 %v2231, 1
      %vm2237 = vcmp.gt.s32.totalorder %v2236, 0
      %v2238 = vsel %vm2237, %v2236, 0
      %v2239 = vshrl.u32 %v2238, 5
      %v2240 = vand.u32 %v2238, 31
      %v2241 = vsub.s32 32, %v2240
      %v2242 = vshrl.u32 683565275, %v2241
      %v2243 = vshll.u32 683565275, %v2240
      %v2244 = vshrl.u32 2475754826, %v2241
      %v2245 = vor.u32 %v2243, %v2244
      %v2246 = vshll.u32 2475754826, %v2240
      %v2247 = vshrl.u32 2131351028, %v2241
      %v2248 = vor.u32 %v2246, %v2247
      %v2249 = vshll.u32 2131351028, %v2240
      %v2250 = vshrl.u32 2102212464, %v2241
      %v2251 = vor.u32 %v2249, %v2250
      %v2252 = vshll.u32 2102212464, %v2240
      %v2253 = vshrl.u32 920167782, %v2241
      %v2254 = vor.u32 %v2252, %v2253
      %v2255 = vshll.u32 920167782, %v2240
      %v2256 = vshrl.u32 1326507024, %v2241
      %v2257 = vor.u32 %v2255, %v2256
      %vm2258 = vcmp.lt.s32.totalorder %v2239, 1
      %vm2259 = vcmp.lt.s32.totalorder %v2239, 2
      %vm2260 = vcmp.lt.s32.totalorder %v2239, 3
      %vm2261 = vcmp.lt.s32.totalorder %v2239, 4
      %v2262 = vsel %vm2258, %v2242, %v2245
      %v2263 = vsel %vm2261, %v2251, 2102212464
      %v2264 = vsel %vm2260, %v2248, %v2263
      %v2265 = vsel %vm2259, %v2262, %v2264
      %v2266 = vsel %vm2258, %v2245, %v2248
      %v2267 = vsel %vm2261, %v2254, 920167782
      %v2268 = vsel %vm2260, %v2251, %v2267
      %v2269 = vsel %vm2259, %v2266, %v2268
      %v2270 = vsel %vm2258, %v2248, %v2251
      %v2271 = vsel %vm2261, %v2257, 1326507024
      %v2272 = vsel %vm2260, %v2254, %v2271
      %v2273 = vsel %vm2259, %v2270, %v2272
      %v2274 = vshll.u32 %v2234, 8
      %v2275 = vand.u32 %v2274, 65535
      %v2276 = vshrl.u32 %v2274, 16
      %v2277 = vand.u32 %v2273, 65535
      %v2278 = vshrl.u32 %v2273, 16
      %v2279 = vmul.u32 %v2275, %v2277
      %v2280 = vmul.u32 %v2275, %v2278
      %v2281 = vmul.u32 %v2276, %v2277
      %v2282 = vmul.u32 %v2276, %v2278
      %v2283 = vshll.u32 %v2280, 16
      %v2284 = vshrl.u32 %v2280, 16
      %v2285 = vshll.u32 %v2281, 16
      %v2286 = vshrl.u32 %v2281, 16
      %vm2287 = vc.u32 %v2279, %v2283
      %v2288 = vsel %vm2287, 1, 0
      %v2289 = vadd.s32 %v2279, %v2283
      %v2290 = vadd.s32 %v2282, %v2288
      %vm2291 = vc.u32 %v2289, %v2285
      %v2292 = vsel %vm2291, 1, 0
      %v2293 = vadd.s32 %v2289, %v2285
      %v2294 = vadd.s32 %v2290, %v2292
      %v2295 = vadd.s32 %v2294, %v2284
      %v2296 = vadd.s32 %v2295, %v2286
      %v2297 = vand.u32 %v2274, 65535
      %v2298 = vshrl.u32 %v2274, 16
      %v2299 = vand.u32 %v2269, 65535
      %v2300 = vshrl.u32 %v2269, 16
      %v2301 = vmul.u32 %v2297, %v2299
      %v2302 = vmul.u32 %v2297, %v2300
      %v2303 = vmul.u32 %v2298, %v2299
      %v2304 = vmul.u32 %v2298, %v2300
      %v2305 = vshll.u32 %v2302, 16
      %v2306 = vshrl.u32 %v2302, 16
      %v2307 = vshll.u32 %v2303, 16
      %v2308 = vshrl.u32 %v2303, 16
      %vm2309 = vc.u32 %v2301, %v2305
      %v2310 = vsel %vm2309, 1, 0
      %v2311 = vadd.s32 %v2301, %v2305
      %v2312 = vadd.s32 %v2304, %v2310
      %vm2313 = vc.u32 %v2311, %v2307
      %v2314 = vsel %vm2313, 1, 0
      %v2315 = vadd.s32 %v2311, %v2307
      %v2316 = vadd.s32 %v2312, %v2314
      %v2317 = vadd.s32 %v2316, %v2306
      %v2318 = vadd.s32 %v2317, %v2308
      %v2319 = vmul.u32 %v2274, %v2265
      %v2320 = vadd.s32 %v2296, %v2315
      %vm2321 = vc.u32 %v2296, %v2315
      %v2322 = vadd.s32 %v2318, 1
      %v2323 = vsel %vm2321, %v2322, %v2318
      %v2324 = vadd.s32 %v2319, %v2323
      %v2325 = vadd.s32 %v2324, 536870912
      %v2326 = vshrl.u32 %v2325, 30
      %v2327 = vshll.u32 %v2326, 30
      %v2328 = vsub.s32 %v2324, %v2327
      %vm2329 = vcmp.lt.s32.totalorder %v2328, 0
      %v2330 = vsub.s32 0, %v2328
      %v2331 = vsel %vm2329, %v2330, %v2328
      %v2332 = vclz %v2331
      %v2333 = vsub.s32 %v2332, 2
      %vm2334 = vcmp.gt.s32.totalorder 0, %v2333
      %v2335 = vsel %vm2334, 0, %v2333
      %v2336 = vsub.s32 32, %v2335
      %v2337 = vshll.u32 %v2328, %v2335
      %v2338 = vshrl.u32 %v2320, %v2336
      %v2339 = vor.u32 %v2337, %v2338
      %v2340 = vsub.s32 4294967266, %v2335
      %v2341 = vadd.s32 %v2340, 127
      %v2342 = vshll.u32 %v2341, 23
      %v2343 = vor.u32 4788187, %v2342
      %v2344 = vand.u32 2147483647, %v2343
      %v2346 = vcvt.s32.f32 %v2339
      %v2347 = vmul.f32 %v2346, %v2344
      %v2348 = vxor.u32 %v2347, 2147483648
      %v2349 = vsel %vm2228, %v2348, %v2347
      %v2350 = vsub.s32 4, %v2326
      %v2351 = vsel %vm2228, %v2350, %v2326
      %v2352 = vsel %vm2227, %v515, %v2349
      %v2353 = vsel %vm2227, 0, %v2351
      %v2354 = vmul.f32 %v2352, %v2352
      %v2355 = vmul.f32 %v2354, -0.001358992
      %v2356 = vadd.f32 %v2355, 0.041655596
      %v2357 = vmul.f32 %v2354, %v2356
      %v2358 = vadd.f32 %v2357, -0.4999988
      %v2359 = vmul.f32 %v2354, %v2358
      %v2360 = vadd.f32 1.0, %v2359
      %v2361 = vmul.f32 %v2352, %v2352
      %v2362 = vmul.f32 %v2361, -0.00019511016
      %v2363 = vadd.f32 %v2362, 0.008332121
      %v2364 = vmul.f32 %v2361, %v2363
      %v2365 = vadd.f32 %v2364, -0.16666654
      %v2366 = vmul.f32 %v2361, %v2365
      %v2367 = vadd.f32 %v2366, 1.0
      %v2368 = vmul.f32 %v2367, %v2352
      %vm2369 = vweird.f32 %v515
      %v2370 = vadd.s32 %v2353, 3
      %v2371 = vand.u32 %v2370, 3
      %vm2372 = vcmp.lt.s32.totalorder %v2371, 2
      %vm2373 = vcmp.eq.s32.totalorder %v2371, 0
      %v2374 = vxor.u32 %v2368, 2147483648
      %v2375 = vsel %vm2373, %v2360, %v2374
      %vm2376 = vcmp.eq.s32.totalorder %v2371, 2
      %v2377 = vxor.u32 %v2360, 2147483648
      %v2378 = vsel %vm2376, %v2377, %v2368
      %v2379 = vsel %vm2372, %v2375, %v2378
      %v2380 = vsel %vm2369, nan, %v2379
      %v2381 = vand.u32 2147483647, %v518
      %vm2382 = vcmp.le.f32.partialorder %v2381, 0.7853982
      %vm2383 = vcmp.lt.s32.totalorder %v518, 0
      %v2384 = vand.u32 %v518, 2139095040
      %v2385 = vshrl.u32 %v2384, 23
      %v2386 = vsub.s32 %v2385, 127
      %v2387 = vand.u32 2147483647, %v518
      %v2388 = vand.u32 %v2387, 8388607
      %v2389 = vor.u32 %v2388, 8388608
      %v2390 = vsub.s32 0, %v2389
      %v2391 = vadd.s32 %v2386, 1
      %vm2392 = vcmp.gt.s32.totalorder %v2391, 0
      %v2393 = vsel %vm2392, %v2391, 0
      %v2394 = vshrl.u32 %v2393, 5
      %v2395 = vand.u32 %v2393, 31
      %v2396 = vsub.s32 32, %v2395
      %v2397 = vshrl.u32 683565275, %v2396
      %v2398 = vshll.u32 683565275, %v2395
      %v2399 = vshrl.u32 2475754826, %v2396
      %v2400 = vor.u32 %v2398, %v2399
      %v2401 = vshll.u32 2475754826, %v2395
      %v2402 = vshrl.u32 2131351028, %v2396
      %v2403 = vor.u32 %v2401, %v2402
      %v2404 = vshll.u32 2131351028, %v2395
      %v2405 = vshrl.u32 2102212464, %v2396
      %v2406 = vor.u32 %v2404, %v2405
      %v2407 = vshll.u32 2102212464, %v2395
      %v2408 = vshrl.u32 920167782, %v2396
      %v2409 = vor.u32 %v2407, %v2408
      %v2410 = vshll.u32 920167782, %v2395
      %v2411 = vshrl.u32 1326507024, %v2396
      %v2412 = vor.u32 %v2410, %v2411
      %vm2413 = vcmp.lt.s32.totalorder %v2394, 1
      %vm2414 = vcmp.lt.s32.totalorder %v2394, 2
      %vm2415 = vcmp.lt.s32.totalorder %v2394, 3
      %vm2416 = vcmp.lt.s32.totalorder %v2394, 4
      %v2417 = vsel %vm2413, %v2397, %v2400
      %v2418 = vsel %vm2416, %v2406, 2102212464
      %v2419 = vsel %vm2415, %v2403, %v2418
      %v2420 = vsel %vm2414, %v2417, %v2419
      %v2421 = vsel %vm2413, %v2400, %v2403
      %v2422 = vsel %vm2416, %v2409, 920167782
      %v2423 = vsel %vm2415, %v2406, %v2422
      %v2424 = vsel %vm2414, %v2421, %v2423
      %v2425 = vsel %vm2413, %v2403, %v2406
      %v2426 = vsel %vm2416, %v2412, 1326507024
      %v2427 = vsel %vm2415, %v2409, %v2426
      %v2428 = vsel %vm2414, %v2425, %v2427
      %v2429 = vshll.u32 %v2389, 8
      %v2430 = vand.u32 %v2429, 65535
      %v2431 = vshrl.u32 %v2429, 16
      %v2432 = vand.u32 %v2428, 65535
      %v2433 = vshrl.u32 %v2428, 16
      %v2434 = vmul.u32 %v2430, %v2432
      %v2435 = vmul.u32 %v2430, %v2433
      %v2436 = vmul.u32 %v2431, %v2432
      %v2437 = vmul.u32 %v2431, %v2433
      %v2438 = vshll.u32 %v2435, 16
      %v2439 = vshrl.u32 %v2435, 16
      %v2440 = vshll.u32 %v2436, 16
      %v2441 = vshrl.u32 %v2436, 16
      %vm2442 = vc.u32 %v2434, %v2438
      %v2443 = vsel %vm2442, 1, 0
      %v2444 = vadd.s32 %v2434, %v2438
      %v2445 = vadd.s32 %v2437, %v2443
      %vm2446 = vc.u32 %v2444, %v2440
      %v2447 = vsel %vm2446, 1, 0
      %v2448 = vadd.s32 %v2444, %v2440
      %v2449 = vadd.s32 %v2445, %v2447
      %v2450 = vadd.s32 %v2449, %v2439
      %v2451 = vadd.s32 %v2450, %v2441
      %v2452 = vand.u32 %v2429, 65535
      %v2453 = vshrl.u32 %v2429, 16
      %v2454 = vand.u32 %v2424, 65535
      %v2455 = vshrl.u32 %v2424, 16
      %v2456 = vmul.u32 %v2452, %v2454
      %v2457 = vmul.u32 %v2452, %v2455
      %v2458 = vmul.u32 %v2453, %v2454
      %v2459 = vmul.u32 %v2453, %v2455
      %v2460 = vshll.u32 %v2457, 16
      %v2461 = vshrl.u32 %v2457, 16
      %v2462 = vshll.u32 %v2458, 16
      %v2463 = vshrl.u32 %v2458, 16
      %vm2464 = vc.u32 %v2456, %v2460
      %v2465 = vsel %vm2464, 1, 0
      %v2466 = vadd.s32 %v2456, %v2460
      %v2467 = vadd.s32 %v2459, %v2465
      %vm2468 = vc.u32 %v2466, %v2462
      %v2469 = vsel %vm2468, 1, 0
      %v2470 = vadd.s32 %v2466, %v2462
      %v2471 = vadd.s32 %v2467, %v2469
      %v2472 = vadd.s32 %v2471, %v2461
      %v2473 = vadd.s32 %v2472, %v2463
      %v2474 = vmul.u32 %v2429, %v2420
      %v2475 = vadd.s32 %v2451, %v2470
      %vm2476 = vc.u32 %v2451, %v2470
      %v2477 = vadd.s32 %v2473, 1
      %v2478 = vsel %vm2476, %v2477, %v2473
      %v2479 = vadd.s32 %v2474, %v2478
      %v2480 = vadd.s32 %v2479, 536870912
      %v2481 = vshrl.u32 %v2480, 30
      %v2482 = vshll.u32 %v2481, 30
      %v2483 = vsub.s32 %v2479, %v2482
      %vm2484 = vcmp.lt.s32.totalorder %v2483, 0
      %v2485 = vsub.s32 0, %v2483
      %v2486 = vsel %vm2484, %v2485, %v2483
      %v2487 = vclz %v2486
      %v2488 = vsub.s32 %v2487, 2
      %vm2489 = vcmp.gt.s32.totalorder 0, %v2488
      %v2490 = vsel %vm2489, 0, %v2488
      %v2491 = vsub.s32 32, %v2490
      %v2492 = vshll.u32 %v2483, %v2490
      %v2493 = vshrl.u32 %v2475, %v2491
      %v2494 = vor.u32 %v2492, %v2493
      %v2495 = vsub.s32 4294967266, %v2490
      %v2496 = vadd.s32 %v2495, 127
      %v2497 = vshll.u32 %v2496, 23
      %v2498 = vor.u32 4788187, %v2497
      %v2499 = vand.u32 2147483647, %v2498
      %v2501 = vcvt.s32.f32 %v2494
      %v2502 = vmul.f32 %v2501, %v2499
      %v2503 = vxor.u32 %v2502, 2147483648
      %v2504 = vsel %vm2383, %v2503, %v2502
      %v2505 = vsub.s32 4, %v2481
      %v2506 = vsel %vm2383, %v2505, %v2481
      %v2507 = vsel %vm2382, %v518, %v2504
      %v2508 = vsel %vm2382, 0, %v2506
      %v2509 = vmul.f32 %v2507, %v2507
      %v2510 = vmul.f32 %v2509, -0.001358992
      %v2511 = vadd.f32 %v2510, 0.041655596
      %v2512 = vmul.f32 %v2509, %v2511
      %v2513 = vadd.f32 %v2512, -0.4999988
      %v2514 = vmul.f32 %v2509, %v2513
      %v2515 = vadd.f32 1.0, %v2514
      %v2516 = vmul.f32 %v2507, %v2507
      %v2517 = vmul.f32 %v2516, -0.00019511016
      %v2518 = vadd.f32 %v2517, 0.008332121
      %v2519 = vmul.f32 %v2516, %v2518
      %v2520 = vadd.f32 %v2519, -0.16666654
      %v2521 = vmul.f32 %v2516, %v2520
      %v2522 = vadd.f32 %v2521, 1.0
      %v2523 = vmul.f32 %v2522, %v2507
      %vm2524 = vweird.f32 %v518
      %v2525 = vadd.s32 %v2508, 3
      %v2526 = vand.u32 %v2525, 3
      %vm2527 = vcmp.lt.s32.totalorder %v2526, 2
      %vm2528 = vcmp.eq.s32.totalorder %v2526, 0
      %v2529 = vxor.u32 %v2523, 2147483648
      %v2530 = vsel %vm2528, %v2515, %v2529
      %vm2531 = vcmp.eq.s32.totalorder %v2526, 2
      %v2532 = vxor.u32 %v2515, 2147483648
      %v2533 = vsel %vm2531, %v2532, %v2523
      %v2534 = vsel %vm2527, %v2530, %v2533
      %v2535 = vsel %vm2524, nan, %v2534
      %v2536 = vand.u32 2147483647, %v521
      %vm2537 = vcmp.le.f32.partialorder %v2536, 0.7853982
      %vm2538 = vcmp.lt.s32.totalorder %v521, 0
      %v2539 = vand.u32 %v521, 2139095040
      %v2540 = vshrl.u32 %v2539, 23
      %v2541 = vsub.s32 %v2540, 127
      %v2542 = vand.u32 2147483647, %v521
      %v2543 = vand.u32 %v2542, 8388607
      %v2544 = vor.u32 %v2543, 8388608
      %v2545 = vsub.s32 0, %v2544
      %v2546 = vadd.s32 %v2541, 1
      %vm2547 = vcmp.gt.s32.totalorder %v2546, 0
      %v2548 = vsel %vm2547, %v2546, 0
      %v2549 = vshrl.u32 %v2548, 5
      %v2550 = vand.u32 %v2548, 31
      %v2551 = vsub.s32 32, %v2550
      %v2552 = vshrl.u32 683565275, %v2551
      %v2553 = vshll.u32 683565275, %v2550
      %v2554 = vshrl.u32 2475754826, %v2551
      %v2555 = vor.u32 %v2553, %v2554
      %v2556 = vshll.u32 2475754826, %v2550
      %v2557 = vshrl.u32 2131351028, %v2551
      %v2558 = vor.u32 %v2556, %v2557
      %v2559 = vshll.u32 2131351028, %v2550
      %v2560 = vshrl.u32 2102212464, %v2551
      %v2561 = vor.u32 %v2559, %v2560
      %v2562 = vshll.u32 2102212464, %v2550
      %v2563 = vshrl.u32 920167782, %v2551
      %v2564 = vor.u32 %v2562, %v2563
      %v2565 = vshll.u32 920167782, %v2550
      %v2566 = vshrl.u32 1326507024, %v2551
      %v2567 = vor.u32 %v2565, %v2566
      %vm2568 = vcmp.lt.s32.totalorder %v2549, 1
      %vm2569 = vcmp.lt.s32.totalorder %v2549, 2
      %vm2570 = vcmp.lt.s32.totalorder %v2549, 3
      %vm2571 = vcmp.lt.s32.totalorder %v2549, 4
      %v2572 = vsel %vm2568, %v2552, %v2555
      %v2573 = vsel %vm2571, %v2561, 2102212464
      %v2574 = vsel %vm2570, %v2558, %v2573
      %v2575 = vsel %vm2569, %v2572, %v2574
      %v2576 = vsel %vm2568, %v2555, %v2558
      %v2577 = vsel %vm2571, %v2564, 920167782
      %v2578 = vsel %vm2570, %v2561, %v2577
      %v2579 = vsel %vm2569, %v2576, %v2578
      %v2580 = vsel %vm2568, %v2558, %v2561
      %v2581 = vsel %vm2571, %v2567, 1326507024
      %v2582 = vsel %vm2570, %v2564, %v2581
      %v2583 = vsel %vm2569, %v2580, %v2582
      %v2584 = vshll.u32 %v2544, 8
      %v2585 = vand.u32 %v2584, 65535
      %v2586 = vshrl.u32 %v2584, 16
      %v2587 = vand.u32 %v2583, 65535
      %v2588 = vshrl.u32 %v2583, 16
      %v2589 = vmul.u32 %v2585, %v2587
      %v2590 = vmul.u32 %v2585, %v2588
      %v2591 = vmul.u32 %v2586, %v2587
      %v2592 = vmul.u32 %v2586, %v2588
      %v2593 = vshll.u32 %v2590, 16
      %v2594 = vshrl.u32 %v2590, 16
      %v2595 = vshll.u32 %v2591, 16
      %v2596 = vshrl.u32 %v2591, 16
      %vm2597 = vc.u32 %v2589, %v2593
      %v2598 = vsel %vm2597, 1, 0
      %v2599 = vadd.s32 %v2589, %v2593
      %v2600 = vadd.s32 %v2592, %v2598
      %vm2601 = vc.u32 %v2599, %v2595
      %v2602 = vsel %vm2601, 1, 0
      %v2603 = vadd.s32 %v2599, %v2595
      %v2604 = vadd.s32 %v2600, %v2602
      %v2605 = vadd.s32 %v2604, %v2594
      %v2606 = vadd.s32 %v2605, %v2596
      %v2607 = vand.u32 %v2584, 65535
      %v2608 = vshrl.u32 %v2584, 16
      %v2609 = vand.u32 %v2579, 65535
      %v2610 = vshrl.u32 %v2579, 16
      %v2611 = vmul.u32 %v2607, %v2609
      %v2612 = vmul.u32 %v2607, %v2610
      %v2613 = vmul.u32 %v2608, %v2609
      %v2614 = vmul.u32 %v2608, %v2610
      %v2615 = vshll.u32 %v2612, 16
      %v2616 = vshrl.u32 %v2612, 16
      %v2617 = vshll.u32 %v2613, 16
      %v2618 = vshrl.u32 %v2613, 16
      %vm2619 = vc.u32 %v2611, %v2615
      %v2620 = vsel %vm2619, 1, 0
      %v2621 = vadd.s32 %v2611, %v2615
      %v2622 = vadd.s32 %v2614, %v2620
      %vm2623 = vc.u32 %v2621, %v2617
      %v2624 = vsel %vm2623, 1, 0
      %v2625 = vadd.s32 %v2621, %v2617
      %v2626 = vadd.s32 %v2622, %v2624
      %v2627 = vadd.s32 %v2626, %v2616
      %v2628 = vadd.s32 %v2627, %v2618
      %v2629 = vmul.u32 %v2584, %v2575
      %v2630 = vadd.s32 %v2606, %v2625
      %vm2631 = vc.u32 %v2606, %v2625
      %v2632 = vadd.s32 %v2628, 1
      %v2633 = vsel %vm2631, %v2632, %v2628
      %v2634 = vadd.s32 %v2629, %v2633
      %v2635 = vadd.s32 %v2634, 536870912
      %v2636 = vshrl.u32 %v2635, 30
      %v2637 = vshll.u32 %v2636, 30
      %v2638 = vsub.s32 %v2634, %v2637
      %vm2639 = vcmp.lt.s32.totalorder %v2638, 0
      %v2640 = vsub.s32 0, %v2638
      %v2641 = vsel %vm2639, %v2640, %v2638
      %v2642 = vclz %v2641
      %v2643 = vsub.s32 %v2642, 2
      %vm2644 = vcmp.gt.s32.totalorder 0, %v2643
      %v2645 = vsel %vm2644, 0, %v2643
      %v2646 = vsub.s32 32, %v2645
      %v2647 = vshll.u32 %v2638, %v2645
      %v2648 = vshrl.u32 %v2630, %v2646
      %v2649 = vor.u32 %v2647, %v2648
      %v2650 = vsub.s32 4294967266, %v2645
      %v2651 = vadd.s32 %v2650, 127
      %v2652 = vshll.u32 %v2651, 23
      %v2653 = vor.u32 4788187, %v2652
      %v2654 = vand.u32 2147483647, %v2653
      %v2656 = vcvt.s32.f32 %v2649
      %v2657 = vmul.f32 %v2656, %v2654
      %v2658 = vxor.u32 %v2657, 2147483648
      %v2659 = vsel %vm2538, %v2658, %v2657
      %v2660 = vsub.s32 4, %v2636
      %v2661 = vsel %vm2538, %v2660, %v2636
      %v2662 = vsel %vm2537, %v521, %v2659
      %v2663 = vsel %vm2537, 0, %v2661
      %v2664 = vmul.f32 %v2662, %v2662
      %v2665 = vmul.f32 %v2664, -0.001358992
      %v2666 = vadd.f32 %v2665, 0.041655596
      %v2667 = vmul.f32 %v2664, %v2666
      %v2668 = vadd.f32 %v2667, -0.4999988
      %v2669 = vmul.f32 %v2664, %v2668
      %v2670 = vadd.f32 1.0, %v2669
      %v2671 = vmul.f32 %v2662, %v2662
      %v2672 = vmul.f32 %v2671, -0.00019511016
      %v2673 = vadd.f32 %v2672, 0.008332121
      %v2674 = vmul.f32 %v2671, %v2673
      %v2675 = vadd.f32 %v2674, -0.16666654
      %v2676 = vmul.f32 %v2671, %v2675
      %v2677 = vadd.f32 %v2676, 1.0
      %v2678 = vmul.f32 %v2677, %v2662
      %vm2679 = vweird.f32 %v521
      %v2680 = vadd.s32 %v2663, 3
      %v2681 = vand.u32 %v2680, 3
      %vm2682 = vcmp.lt.s32.totalorder %v2681, 2
      %vm2683 = vcmp.eq.s32.totalorder %v2681, 0
      %v2684 = vxor.u32 %v2678, 2147483648
      %v2685 = vsel %vm2683, %v2670, %v2684
      %vm2686 = vcmp.eq.s32.totalorder %v2681, 2
      %v2687 = vxor.u32 %v2670, 2147483648
      %v2688 = vsel %vm2686, %v2687, %v2678
      %v2689 = vsel %vm2682, %v2685, %v2688
      %v2690 = vsel %vm2679, nan, %v2689
      %v2691 = vand.u32 2147483647, %v524
      %vm2692 = vcmp.le.f32.partialorder %v2691, 0.7853982
      %vm2693 = vcmp.lt.s32.totalorder %v524, 0
      %v2694 = vand.u32 %v524, 2139095040
      %v2695 = vshrl.u32 %v2694, 23
      %v2696 = vsub.s32 %v2695, 127
      %v2697 = vand.u32 2147483647, %v524
      %v2698 = vand.u32 %v2697, 8388607
      %v2699 = vor.u32 %v2698, 8388608
      %v2700 = vsub.s32 0, %v2699
      %v2701 = vadd.s32 %v2696, 1
      %vm2702 = vcmp.gt.s32.totalorder %v2701, 0
      %v2703 = vsel %vm2702, %v2701, 0
      %v2704 = vshrl.u32 %v2703, 5
      %v2705 = vand.u32 %v2703, 31
      %v2706 = vsub.s32 32, %v2705
      %v2707 = vshrl.u32 683565275, %v2706
      %v2708 = vshll.u32 683565275, %v2705
      %v2709 = vshrl.u32 2475754826, %v2706
      %v2710 = vor.u32 %v2708, %v2709
      %v2711 = vshll.u32 2475754826, %v2705
      %v2712 = vshrl.u32 2131351028, %v2706
      %v2713 = vor.u32 %v2711, %v2712
      %v2714 = vshll.u32 2131351028, %v2705
      %v2715 = vshrl.u32 2102212464, %v2706
      %v2716 = vor.u32 %v2714, %v2715
      %v2717 = vshll.u32 2102212464, %v2705
      %v2718 = vshrl.u32 920167782, %v2706
      %v2719 = vor.u32 %v2717, %v2718
      %v2720 = vshll.u32 920167782, %v2705
      %v2721 = vshrl.u32 1326507024, %v2706
      %v2722 = vor.u32 %v2720, %v2721
      %vm2723 = vcmp.lt.s32.totalorder %v2704, 1
      %vm2724 = vcmp.lt.s32.totalorder %v2704, 2
      %vm2725 = vcmp.lt.s32.totalorder %v2704, 3
      %vm2726 = vcmp.lt.s32.totalorder %v2704, 4
      %v2727 = vsel %vm2723, %v2707, %v2710
      %v2728 = vsel %vm2726, %v2716, 2102212464
      %v2729 = vsel %vm2725, %v2713, %v2728
      %v2730 = vsel %vm2724, %v2727, %v2729
      %v2731 = vsel %vm2723, %v2710, %v2713
      %v2732 = vsel %vm2726, %v2719, 920167782
      %v2733 = vsel %vm2725, %v2716, %v2732
      %v2734 = vsel %vm2724, %v2731, %v2733
      %v2735 = vsel %vm2723, %v2713, %v2716
      %v2736 = vsel %vm2726, %v2722, 1326507024
      %v2737 = vsel %vm2725, %v2719, %v2736
      %v2738 = vsel %vm2724, %v2735, %v2737
      %v2739 = vshll.u32 %v2699, 8
      %v2740 = vand.u32 %v2739, 65535
      %v2741 = vshrl.u32 %v2739, 16
      %v2742 = vand.u32 %v2738, 65535
      %v2743 = vshrl.u32 %v2738, 16
      %v2744 = vmul.u32 %v2740, %v2742
      %v2745 = vmul.u32 %v2740, %v2743
      %v2746 = vmul.u32 %v2741, %v2742
      %v2747 = vmul.u32 %v2741, %v2743
      %v2748 = vshll.u32 %v2745, 16
      %v2749 = vshrl.u32 %v2745, 16
      %v2750 = vshll.u32 %v2746, 16
      %v2751 = vshrl.u32 %v2746, 16
      %vm2752 = vc.u32 %v2744, %v2748
      %v2753 = vsel %vm2752, 1, 0
      %v2754 = vadd.s32 %v2744, %v2748
      %v2755 = vadd.s32 %v2747, %v2753
      %vm2756 = vc.u32 %v2754, %v2750
      %v2757 = vsel %vm2756, 1, 0
      %v2758 = vadd.s32 %v2754, %v2750
      %v2759 = vadd.s32 %v2755, %v2757
      %v2760 = vadd.s32 %v2759, %v2749
      %v2761 = vadd.s32 %v2760, %v2751
      %v2762 = vand.u32 %v2739, 65535
      %v2763 = vshrl.u32 %v2739, 16
      %v2764 = vand.u32 %v2734, 65535
      %v2765 = vshrl.u32 %v2734, 16
      %v2766 = vmul.u32 %v2762, %v2764
      %v2767 = vmul.u32 %v2762, %v2765
      %v2768 = vmul.u32 %v2763, %v2764
      %v2769 = vmul.u32 %v2763, %v2765
      %v2770 = vshll.u32 %v2767, 16
      %v2771 = vshrl.u32 %v2767, 16
      %v2772 = vshll.u32 %v2768, 16
      %v2773 = vshrl.u32 %v2768, 16
      %vm2774 = vc.u32 %v2766, %v2770
      %v2775 = vsel %vm2774, 1, 0
      %v2776 = vadd.s32 %v2766, %v2770
      %v2777 = vadd.s32 %v2769, %v2775
      %vm2778 = vc.u32 %v2776, %v2772
      %v2779 = vsel %vm2778, 1, 0
      %v2780 = vadd.s32 %v2776, %v2772
      %v2781 = vadd.s32 %v2777, %v2779
      %v2782 = vadd.s32 %v2781, %v2771
      %v2783 = vadd.s32 %v2782, %v2773
      %v2784 = vmul.u32 %v2739, %v2730
      %v2785 = vadd.s32 %v2761, %v2780
      %vm2786 = vc.u32 %v2761, %v2780
      %v2787 = vadd.s32 %v2783, 1
      %v2788 = vsel %vm2786, %v2787, %v2783
      %v2789 = vadd.s32 %v2784, %v2788
      %v2790 = vadd.s32 %v2789, 536870912
      %v2791 = vshrl.u32 %v2790, 30
      %v2792 = vshll.u32 %v2791, 30
      %v2793 = vsub.s32 %v2789, %v2792
      %vm2794 = vcmp.lt.s32.totalorder %v2793, 0
      %v2795 = vsub.s32 0, %v2793
      %v2796 = vsel %vm2794, %v2795, %v2793
      %v2797 = vclz %v2796
      %v2798 = vsub.s32 %v2797, 2
      %vm2799 = vcmp.gt.s32.totalorder 0, %v2798
      %v2800 = vsel %vm2799, 0, %v2798
      %v2801 = vsub.s32 32, %v2800
      %v2802 = vshll.u32 %v2793, %v2800
      %v2803 = vshrl.u32 %v2785, %v2801
      %v2804 = vor.u32 %v2802, %v2803
      %v2805 = vsub.s32 4294967266, %v2800
      %v2806 = vadd.s32 %v2805, 127
      %v2807 = vshll.u32 %v2806, 23
      %v2808 = vor.u32 4788187, %v2807
      %v2809 = vand.u32 2147483647, %v2808
      %v2811 = vcvt.s32.f32 %v2804
      %v2812 = vmul.f32 %v2811, %v2809
      %v2813 = vxor.u32 %v2812, 2147483648
      %v2814 = vsel %vm2693, %v2813, %v2812
      %v2815 = vsub.s32 4, %v2791
      %v2816 = vsel %vm2693, %v2815, %v2791
      %v2817 = vsel %vm2692, %v524, %v2814
      %v2818 = vsel %vm2692, 0, %v2816
      %v2819 = vmul.f32 %v2817, %v2817
      %v2820 = vmul.f32 %v2819, -0.001358992
      %v2821 = vadd.f32 %v2820, 0.041655596
      %v2822 = vmul.f32 %v2819, %v2821
      %v2823 = vadd.f32 %v2822, -0.4999988
      %v2824 = vmul.f32 %v2819, %v2823
      %v2825 = vadd.f32 1.0, %v2824
      %v2826 = vmul.f32 %v2817, %v2817
      %v2827 = vmul.f32 %v2826, -0.00019511016
      %v2828 = vadd.f32 %v2827, 0.008332121
      %v2829 = vmul.f32 %v2826, %v2828
      %v2830 = vadd.f32 %v2829, -0.16666654
      %v2831 = vmul.f32 %v2826, %v2830
      %v2832 = vadd.f32 %v2831, 1.0
      %v2833 = vmul.f32 %v2832, %v2817
      %vm2834 = vweird.f32 %v524
      %v2835 = vadd.s32 %v2818, 3
      %v2836 = vand.u32 %v2835, 3
      %vm2837 = vcmp.lt.s32.totalorder %v2836, 2
      %vm2838 = vcmp.eq.s32.totalorder %v2836, 0
      %v2839 = vxor.u32 %v2833, 2147483648
      %v2840 = vsel %vm2838, %v2825, %v2839
      %vm2841 = vcmp.eq.s32.totalorder %v2836, 2
      %v2842 = vxor.u32 %v2825, 2147483648
      %v2843 = vsel %vm2841, %v2842, %v2833
      %v2844 = vsel %vm2837, %v2840, %v2843
      %v2845 = vsel %vm2834, nan, %v2844
      %v2846 = vand.u32 2147483647, %v527
      %vm2847 = vcmp.le.f32.partialorder %v2846, 0.7853982
      %vm2848 = vcmp.lt.s32.totalorder %v527, 0
      %v2849 = vand.u32 %v527, 2139095040
      %v2850 = vshrl.u32 %v2849, 23
      %v2851 = vsub.s32 %v2850, 127
      %v2852 = vand.u32 2147483647, %v527
      %v2853 = vand.u32 %v2852, 8388607
      %v2854 = vor.u32 %v2853, 8388608
      %v2855 = vsub.s32 0, %v2854
      %v2856 = vadd.s32 %v2851, 1
      %vm2857 = vcmp.gt.s32.totalorder %v2856, 0
      %v2858 = vsel %vm2857, %v2856, 0
      %v2859 = vshrl.u32 %v2858, 5
      %v2860 = vand.u32 %v2858, 31
      %v2861 = vsub.s32 32, %v2860
      %v2862 = vshrl.u32 683565275, %v2861
      %v2863 = vshll.u32 683565275, %v2860
      %v2864 = vshrl.u32 2475754826, %v2861
      %v2865 = vor.u32 %v2863, %v2864
      %v2866 = vshll.u32 2475754826, %v2860
      %v2867 = vshrl.u32 2131351028, %v2861
      %v2868 = vor.u32 %v2866, %v2867
      %v2869 = vshll.u32 2131351028, %v2860
      %v2870 = vshrl.u32 2102212464, %v2861
      %v2871 = vor.u32 %v2869, %v2870
      %v2872 = vshll.u32 2102212464, %v2860
      %v2873 = vshrl.u32 920167782, %v2861
      %v2874 = vor.u32 %v2872, %v2873
      %v2875 = vshll.u32 920167782, %v2860
      %v2876 = vshrl.u32 1326507024, %v2861
      %v2877 = vor.u32 %v2875, %v2876
      %vm2878 = vcmp.lt.s32.totalorder %v2859, 1
      %vm2879 = vcmp.lt.s32.totalorder %v2859, 2
      %vm2880 = vcmp.lt.s32.totalorder %v2859, 3
      %vm2881 = vcmp.lt.s32.totalorder %v2859, 4
      %v2882 = vsel %vm2878, %v2862, %v2865
      %v2883 = vsel %vm2881, %v2871, 2102212464
      %v2884 = vsel %vm2880, %v2868, %v2883
      %v2885 = vsel %vm2879, %v2882, %v2884
      %v2886 = vsel %vm2878, %v2865, %v2868
      %v2887 = vsel %vm2881, %v2874, 920167782
      %v2888 = vsel %vm2880, %v2871, %v2887
      %v2889 = vsel %vm2879, %v2886, %v2888
      %v2890 = vsel %vm2878, %v2868, %v2871
      %v2891 = vsel %vm2881, %v2877, 1326507024
      %v2892 = vsel %vm2880, %v2874, %v2891
      %v2893 = vsel %vm2879, %v2890, %v2892
      %v2894 = vshll.u32 %v2854, 8
      %v2895 = vand.u32 %v2894, 65535
      %v2896 = vshrl.u32 %v2894, 16
      %v2897 = vand.u32 %v2893, 65535
      %v2898 = vshrl.u32 %v2893, 16
      %v2899 = vmul.u32 %v2895, %v2897
      %v2900 = vmul.u32 %v2895, %v2898
      %v2901 = vmul.u32 %v2896, %v2897
      %v2902 = vmul.u32 %v2896, %v2898
      %v2903 = vshll.u32 %v2900, 16
      %v2904 = vshrl.u32 %v2900, 16
      %v2905 = vshll.u32 %v2901, 16
      %v2906 = vshrl.u32 %v2901, 16
      %vm2907 = vc.u32 %v2899, %v2903
      %v2908 = vsel %vm2907, 1, 0
      %v2909 = vadd.s32 %v2899, %v2903
      %v2910 = vadd.s32 %v2902, %v2908
      %vm2911 = vc.u32 %v2909, %v2905
      %v2912 = vsel %vm2911, 1, 0
      %v2913 = vadd.s32 %v2909, %v2905
      %v2914 = vadd.s32 %v2910, %v2912
      %v2915 = vadd.s32 %v2914, %v2904
      %v2916 = vadd.s32 %v2915, %v2906
      %v2917 = vand.u32 %v2894, 65535
      %v2918 = vshrl.u32 %v2894, 16
      %v2919 = vand.u32 %v2889, 65535
      %v2920 = vshrl.u32 %v2889, 16
      %v2921 = vmul.u32 %v2917, %v2919
      %v2922 = vmul.u32 %v2917, %v2920
      %v2923 = vmul.u32 %v2918, %v2919
      %v2924 = vmul.u32 %v2918, %v2920
      %v2925 = vshll.u32 %v2922, 16
      %v2926 = vshrl.u32 %v2922, 16
      %v2927 = vshll.u32 %v2923, 16
      %v2928 = vshrl.u32 %v2923, 16
      %vm2929 = vc.u32 %v2921, %v2925
      %v2930 = vsel %vm2929, 1, 0
      %v2931 = vadd.s32 %v2921, %v2925
      %v2932 = vadd.s32 %v2924, %v2930
      %vm2933 = vc.u32 %v2931, %v2927
      %v2934 = vsel %vm2933, 1, 0
      %v2935 = vadd.s32 %v2931, %v2927
      %v2936 = vadd.s32 %v2932, %v2934
      %v2937 = vadd.s32 %v2936, %v2926
      %v2938 = vadd.s32 %v2937, %v2928
      %v2939 = vmul.u32 %v2894, %v2885
      %v2940 = vadd.s32 %v2916, %v2935
      %vm2941 = vc.u32 %v2916, %v2935
      %v2942 = vadd.s32 %v2938, 1
      %v2943 = vsel %vm2941, %v2942, %v2938
      %v2944 = vadd.s32 %v2939, %v2943
      %v2945 = vadd.s32 %v2944, 536870912
      %v2946 = vshrl.u32 %v2945, 30
      %v2947 = vshll.u32 %v2946, 30
      %v2948 = vsub.s32 %v2944, %v2947
      %vm2949 = vcmp.lt.s32.totalorder %v2948, 0
      %v2950 = vsub.s32 0, %v2948
      %v2951 = vsel %vm2949, %v2950, %v2948
      %v2952 = vclz %v2951
      %v2953 = vsub.s32 %v2952, 2
      %vm2954 = vcmp.gt.s32.totalorder 0, %v2953
      %v2955 = vsel %vm2954, 0, %v2953
      %v2956 = vsub.s32 32, %v2955
      %v2957 = vshll.u32 %v2948, %v2955
      %v2958 = vshrl.u32 %v2940, %v2956
      %v2959 = vor.u32 %v2957, %v2958
      %v2960 = vsub.s32 4294967266, %v2955
      %v2961 = vadd.s32 %v2960, 127
      %v2962 = vshll.u32 %v2961, 23
      %v2963 = vor.u32 4788187, %v2962
      %v2964 = vand.u32 2147483647, %v2963
      %v2966 = vcvt.s32.f32 %v2959
      %v2967 = vmul.f32 %v2966, %v2964
      %v2968 = vxor.u32 %v2967, 2147483648
      %v2969 = vsel %vm2848, %v2968, %v2967
      %v2970 = vsub.s32 4, %v2946
      %v2971 = vsel %vm2848, %v2970, %v2946
      %v2972 = vsel %vm2847, %v527, %v2969
      %v2973 = vsel %vm2847, 0, %v2971
      %v2974 = vmul.f32 %v2972, %v2972
      %v2975 = vmul.f32 %v2974, -0.001358992
      %v2976 = vadd.f32 %v2975, 0.041655596
      %v2977 = vmul.f32 %v2974, %v2976
      %v2978 = vadd.f32 %v2977, -0.4999988
      %v2979 = vmul.f32 %v2974, %v2978
      %v2980 = vadd.f32 1.0, %v2979
      %v2981 = vmul.f32 %v2972, %v2972
      %v2982 = vmul.f32 %v2981, -0.00019511016
      %v2983 = vadd.f32 %v2982, 0.008332121
      %v2984 = vmul.f32 %v2981, %v2983
      %v2985 = vadd.f32 %v2984, -0.16666654
      %v2986 = vmul.f32 %v2981, %v2985
      %v2987 = vadd.f32 %v2986, 1.0
      %v2988 = vmul.f32 %v2987, %v2972
      %vm2989 = vweird.f32 %v527
      %v2990 = vadd.s32 %v2973, 3
      %v2991 = vand.u32 %v2990, 3
      %vm2992 = vcmp.lt.s32.totalorder %v2991, 2
      %vm2993 = vcmp.eq.s32.totalorder %v2991, 0
      %v2994 = vxor.u32 %v2988, 2147483648
      %v2995 = vsel %vm2993, %v2980, %v2994
      %vm2996 = vcmp.eq.s32.totalorder %v2991, 2
      %v2997 = vxor.u32 %v2980, 2147483648
      %v2998 = vsel %vm2996, %v2997, %v2988
      %v2999 = vsel %vm2992, %v2995, %v2998
      %v3000 = vsel %vm2989, nan, %v2999
      %v3001 = vand.u32 2147483647, %v530
      %vm3002 = vcmp.le.f32.partialorder %v3001, 0.7853982
      %vm3003 = vcmp.lt.s32.totalorder %v530, 0
      %v3004 = vand.u32 %v530, 2139095040
      %v3005 = vshrl.u32 %v3004, 23
      %v3006 = vsub.s32 %v3005, 127
      %v3007 = vand.u32 2147483647, %v530
      %v3008 = vand.u32 %v3007, 8388607
      %v3009 = vor.u32 %v3008, 8388608
      %v3010 = vsub.s32 0, %v3009
      %v3011 = vadd.s32 %v3006, 1
      %vm3012 = vcmp.gt.s32.totalorder %v3011, 0
      %v3013 = vsel %vm3012, %v3011, 0
      %v3014 = vshrl.u32 %v3013, 5
      %v3015 = vand.u32 %v3013, 31
      %v3016 = vsub.s32 32, %v3015
      %v3017 = vshrl.u32 683565275, %v3016
      %v3018 = vshll.u32 683565275, %v3015
      %v3019 = vshrl.u32 2475754826, %v3016
      %v3020 = vor.u32 %v3018, %v3019
      %v3021 = vshll.u32 2475754826, %v3015
      %v3022 = vshrl.u32 2131351028, %v3016
      %v3023 = vor.u32 %v3021, %v3022
      %v3024 = vshll.u32 2131351028, %v3015
      %v3025 = vshrl.u32 2102212464, %v3016
      %v3026 = vor.u32 %v3024, %v3025
      %v3027 = vshll.u32 2102212464, %v3015
      %v3028 = vshrl.u32 920167782, %v3016
      %v3029 = vor.u32 %v3027, %v3028
      %v3030 = vshll.u32 920167782, %v3015
      %v3031 = vshrl.u32 1326507024, %v3016
      %v3032 = vor.u32 %v3030, %v3031
      %vm3033 = vcmp.lt.s32.totalorder %v3014, 1
      %vm3034 = vcmp.lt.s32.totalorder %v3014, 2
      %vm3035 = vcmp.lt.s32.totalorder %v3014, 3
      %vm3036 = vcmp.lt.s32.totalorder %v3014, 4
      %v3037 = vsel %vm3033, %v3017, %v3020
      %v3038 = vsel %vm3036, %v3026, 2102212464
      %v3039 = vsel %vm3035, %v3023, %v3038
      %v3040 = vsel %vm3034, %v3037, %v3039
      %v3041 = vsel %vm3033, %v3020, %v3023
      %v3042 = vsel %vm3036, %v3029, 920167782
      %v3043 = vsel %vm3035, %v3026, %v3042
      %v3044 = vsel %vm3034, %v3041, %v3043
      %v3045 = vsel %vm3033, %v3023, %v3026
      %v3046 = vsel %vm3036, %v3032, 1326507024
      %v3047 = vsel %vm3035, %v3029, %v3046
      %v3048 = vsel %vm3034, %v3045, %v3047
      %v3049 = vshll.u32 %v3009, 8
      %v3050 = vand.u32 %v3049, 65535
      %v3051 = vshrl.u32 %v3049, 16
      %v3052 = vand.u32 %v3048, 65535
      %v3053 = vshrl.u32 %v3048, 16
      %v3054 = vmul.u32 %v3050, %v3052
      %v3055 = vmul.u32 %v3050, %v3053
      %v3056 = vmul.u32 %v3051, %v3052
      %v3057 = vmul.u32 %v3051, %v3053
      %v3058 = vshll.u32 %v3055, 16
      %v3059 = vshrl.u32 %v3055, 16
      %v3060 = vshll.u32 %v3056, 16
      %v3061 = vshrl.u32 %v3056, 16
      %vm3062 = vc.u32 %v3054, %v3058
      %v3063 = vsel %vm3062, 1, 0
      %v3064 = vadd.s32 %v3054, %v3058
      %v3065 = vadd.s32 %v3057, %v3063
      %vm3066 = vc.u32 %v3064, %v3060
      %v3067 = vsel %vm3066, 1, 0
      %v3068 = vadd.s32 %v3064, %v3060
      %v3069 = vadd.s32 %v3065, %v3067
      %v3070 = vadd.s32 %v3069, %v3059
      %v3071 = vadd.s32 %v3070, %v3061
      %v3072 = vand.u32 %v3049, 65535
      %v3073 = vshrl.u32 %v3049, 16
      %v3074 = vand.u32 %v3044, 65535
      %v3075 = vshrl.u32 %v3044, 16
      %v3076 = vmul.u32 %v3072, %v3074
      %v3077 = vmul.u32 %v3072, %v3075
      %v3078 = vmul.u32 %v3073, %v3074
      %v3079 = vmul.u32 %v3073, %v3075
      %v3080 = vshll.u32 %v3077, 16
      %v3081 = vshrl.u32 %v3077, 16
      %v3082 = vshll.u32 %v3078, 16
      %v3083 = vshrl.u32 %v3078, 16
      %vm3084 = vc.u32 %v3076, %v3080
      %v3085 = vsel %vm3084, 1, 0
      %v3086 = vadd.s32 %v3076, %v3080
      %v3087 = vadd.s32 %v3079, %v3085
      %vm3088 = vc.u32 %v3086, %v3082
      %v3089 = vsel %vm3088, 1, 0
      %v3090 = vadd.s32 %v3086, %v3082
      %v3091 = vadd.s32 %v3087, %v3089
      %v3092 = vadd.s32 %v3091, %v3081
      %v3093 = vadd.s32 %v3092, %v3083
      %v3094 = vmul.u32 %v3049, %v3040
      %v3095 = vadd.s32 %v3071, %v3090
      %vm3096 = vc.u32 %v3071, %v3090
      %v3097 = vadd.s32 %v3093, 1
      %v3098 = vsel %vm3096, %v3097, %v3093
      %v3099 = vadd.s32 %v3094, %v3098
      %v3100 = vadd.s32 %v3099, 536870912
      %v3101 = vshrl.u32 %v3100, 30
      %v3102 = vshll.u32 %v3101, 30
      %v3103 = vsub.s32 %v3099, %v3102
      %vm3104 = vcmp.lt.s32.totalorder %v3103, 0
      %v3105 = vsub.s32 0, %v3103
      %v3106 = vsel %vm3104, %v3105, %v3103
      %v3107 = vclz %v3106
      %v3108 = vsub.s32 %v3107, 2
      %vm3109 = vcmp.gt.s32.totalorder 0, %v3108
      %v3110 = vsel %vm3109, 0, %v3108
      %v3111 = vsub.s32 32, %v3110
      %v3112 = vshll.u32 %v3103, %v3110
      %v3113 = vshrl.u32 %v3095, %v3111
      %v3114 = vor.u32 %v3112, %v3113
      %v3115 = vsub.s32 4294967266, %v3110
      %v3116 = vadd.s32 %v3115, 127
      %v3117 = vshll.u32 %v3116, 23
      %v3118 = vor.u32 4788187, %v3117
      %v3119 = vand.u32 2147483647, %v3118
      %v3121 = vcvt.s32.f32 %v3114
      %v3122 = vmul.f32 %v3121, %v3119
      %v3123 = vxor.u32 %v3122, 2147483648
      %v3124 = vsel %vm3003, %v3123, %v3122
      %v3125 = vsub.s32 4, %v3101
      %v3126 = vsel %vm3003, %v3125, %v3101
      %v3127 = vsel %vm3002, %v530, %v3124
      %v3128 = vsel %vm3002, 0, %v3126
      %v3129 = vmul.f32 %v3127, %v3127
      %v3130 = vmul.f32 %v3129, -0.001358992
      %v3131 = vadd.f32 %v3130, 0.041655596
      %v3132 = vmul.f32 %v3129, %v3131
      %v3133 = vadd.f32 %v3132, -0.4999988
      %v3134 = vmul.f32 %v3129, %v3133
      %v3135 = vadd.f32 1.0, %v3134
      %v3136 = vmul.f32 %v3127, %v3127
      %v3137 = vmul.f32 %v3136, -0.00019511016
      %v3138 = vadd.f32 %v3137, 0.008332121
      %v3139 = vmul.f32 %v3136, %v3138
      %v3140 = vadd.f32 %v3139, -0.16666654
      %v3141 = vmul.f32 %v3136, %v3140
      %v3142 = vadd.f32 %v3141, 1.0
      %v3143 = vmul.f32 %v3142, %v3127
      %vm3144 = vweird.f32 %v530
      %v3145 = vadd.s32 %v3128, 3
      %v3146 = vand.u32 %v3145, 3
      %vm3147 = vcmp.lt.s32.totalorder %v3146, 2
      %vm3148 = vcmp.eq.s32.totalorder %v3146, 0
      %v3149 = vxor.u32 %v3143, 2147483648
      %v3150 = vsel %vm3148, %v3135, %v3149
      %vm3151 = vcmp.eq.s32.totalorder %v3146, 2
      %v3152 = vxor.u32 %v3135, 2147483648
      %v3153 = vsel %vm3151, %v3152, %v3143
      %v3154 = vsel %vm3147, %v3150, %v3153
      %v3155 = vsel %vm3144, nan, %v3154
      %v3156 = vand.u32 2147483647, %v533
      %vm3157 = vcmp.le.f32.partialorder %v3156, 0.7853982
      %vm3158 = vcmp.lt.s32.totalorder %v533, 0
      %v3159 = vand.u32 %v533, 2139095040
      %v3160 = vshrl.u32 %v3159, 23
      %v3161 = vsub.s32 %v3160, 127
      %v3162 = vand.u32 2147483647, %v533
      %v3163 = vand.u32 %v3162, 8388607
      %v3164 = vor.u32 %v3163, 8388608
      %v3165 = vsub.s32 0, %v3164
      %v3166 = vadd.s32 %v3161, 1
      %vm3167 = vcmp.gt.s32.totalorder %v3166, 0
      %v3168 = vsel %vm3167, %v3166, 0
      %v3169 = vshrl.u32 %v3168, 5
      %v3170 = vand.u32 %v3168, 31
      %v3171 = vsub.s32 32, %v3170
      %v3172 = vshrl.u32 683565275, %v3171
      %v3173 = vshll.u32 683565275, %v3170
      %v3174 = vshrl.u32 2475754826, %v3171
      %v3175 = vor.u32 %v3173, %v3174
      %v3176 = vshll.u32 2475754826, %v3170
      %v3177 = vshrl.u32 2131351028, %v3171
      %v3178 = vor.u32 %v3176, %v3177
      %v3179 = vshll.u32 2131351028, %v3170
      %v3180 = vshrl.u32 2102212464, %v3171
      %v3181 = vor.u32 %v3179, %v3180
      %v3182 = vshll.u32 2102212464, %v3170
      %v3183 = vshrl.u32 920167782, %v3171
      %v3184 = vor.u32 %v3182, %v3183
      %v3185 = vshll.u32 920167782, %v3170
      %v3186 = vshrl.u32 1326507024, %v3171
      %v3187 = vor.u32 %v3185, %v3186
      %vm3188 = vcmp.lt.s32.totalorder %v3169, 1
      %vm3189 = vcmp.lt.s32.totalorder %v3169, 2
      %vm3190 = vcmp.lt.s32.totalorder %v3169, 3
      %vm3191 = vcmp.lt.s32.totalorder %v3169, 4
      %v3192 = vsel %vm3188, %v3172, %v3175
      %v3193 = vsel %vm3191, %v3181, 2102212464
      %v3194 = vsel %vm3190, %v3178, %v3193
      %v3195 = vsel %vm3189, %v3192, %v3194
      %v3196 = vsel %vm3188, %v3175, %v3178
      %v3197 = vsel %vm3191, %v3184, 920167782
      %v3198 = vsel %vm3190, %v3181, %v3197
      %v3199 = vsel %vm3189, %v3196, %v3198
      %v3200 = vsel %vm3188, %v3178, %v3181
      %v3201 = vsel %vm3191, %v3187, 1326507024
      %v3202 = vsel %vm3190, %v3184, %v3201
      %v3203 = vsel %vm3189, %v3200, %v3202
      %v3204 = vshll.u32 %v3164, 8
      %v3205 = vand.u32 %v3204, 65535
      %v3206 = vshrl.u32 %v3204, 16
      %v3207 = vand.u32 %v3203, 65535
      %v3208 = vshrl.u32 %v3203, 16
      %v3209 = vmul.u32 %v3205, %v3207
      %v3210 = vmul.u32 %v3205, %v3208
      %v3211 = vmul.u32 %v3206, %v3207
      %v3212 = vmul.u32 %v3206, %v3208
      %v3213 = vshll.u32 %v3210, 16
      %v3214 = vshrl.u32 %v3210, 16
      %v3215 = vshll.u32 %v3211, 16
      %v3216 = vshrl.u32 %v3211, 16
      %vm3217 = vc.u32 %v3209, %v3213
      %v3218 = vsel %vm3217, 1, 0
      %v3219 = vadd.s32 %v3209, %v3213
      %v3220 = vadd.s32 %v3212, %v3218
      %vm3221 = vc.u32 %v3219, %v3215
      %v3222 = vsel %vm3221, 1, 0
      %v3223 = vadd.s32 %v3219, %v3215
      %v3224 = vadd.s32 %v3220, %v3222
      %v3225 = vadd.s32 %v3224, %v3214
      %v3226 = vadd.s32 %v3225, %v3216
      %v3227 = vand.u32 %v3204, 65535
      %v3228 = vshrl.u32 %v3204, 16
      %v3229 = vand.u32 %v3199, 65535
      %v3230 = vshrl.u32 %v3199, 16
      %v3231 = vmul.u32 %v3227, %v3229
      %v3232 = vmul.u32 %v3227, %v3230
      %v3233 = vmul.u32 %v3228, %v3229
      %v3234 = vmul.u32 %v3228, %v3230
      %v3235 = vshll.u32 %v3232, 16
      %v3236 = vshrl.u32 %v3232, 16
      %v3237 = vshll.u32 %v3233, 16
      %v3238 = vshrl.u32 %v3233, 16
      %vm3239 = vc.u32 %v3231, %v3235
      %v3240 = vsel %vm3239, 1, 0
      %v3241 = vadd.s32 %v3231, %v3235
      %v3242 = vadd.s32 %v3234, %v3240
      %vm3243 = vc.u32 %v3241, %v3237
      %v3244 = vsel %vm3243, 1, 0
      %v3245 = vadd.s32 %v3241, %v3237
      %v3246 = vadd.s32 %v3242, %v3244
      %v3247 = vadd.s32 %v3246, %v3236
      %v3248 = vadd.s32 %v3247, %v3238
      %v3249 = vmul.u32 %v3204, %v3195
      %v3250 = vadd.s32 %v3226, %v3245
      %vm3251 = vc.u32 %v3226, %v3245
      %v3252 = vadd.s32 %v3248, 1
      %v3253 = vsel %vm3251, %v3252, %v3248
      %v3254 = vadd.s32 %v3249, %v3253
      %v3255 = vadd.s32 %v3254, 536870912
      %v3256 = vshrl.u32 %v3255, 30
      %v3257 = vshll.u32 %v3256, 30
      %v3258 = vsub.s32 %v3254, %v3257
      %vm3259 = vcmp.lt.s32.totalorder %v3258, 0
      %v3260 = vsub.s32 0, %v3258
      %v3261 = vsel %vm3259, %v3260, %v3258
      %v3262 = vclz %v3261
      %v3263 = vsub.s32 %v3262, 2
      %vm3264 = vcmp.gt.s32.totalorder 0, %v3263
      %v3265 = vsel %vm3264, 0, %v3263
      %v3266 = vsub.s32 32, %v3265
      %v3267 = vshll.u32 %v3258, %v3265
      %v3268 = vshrl.u32 %v3250, %v3266
      %v3269 = vor.u32 %v3267, %v3268
      %v3270 = vsub.s32 4294967266, %v3265
      %v3271 = vadd.s32 %v3270, 127
      %v3272 = vshll.u32 %v3271, 23
      %v3273 = vor.u32 4788187, %v3272
      %v3274 = vand.u32 2147483647, %v3273
      %v3276 = vcvt.s32.f32 %v3269
      %v3277 = vmul.f32 %v3276, %v3274
      %v3278 = vxor.u32 %v3277, 2147483648
      %v3279 = vsel %vm3158, %v3278, %v3277
      %v3280 = vsub.s32 4, %v3256
      %v3281 = vsel %vm3158, %v3280, %v3256
      %v3282 = vsel %vm3157, %v533, %v3279
      %v3283 = vsel %vm3157, 0, %v3281
      %v3284 = vmul.f32 %v3282, %v3282
      %v3285 = vmul.f32 %v3284, -0.001358992
      %v3286 = vadd.f32 %v3285, 0.041655596
      %v3287 = vmul.f32 %v3284, %v3286
      %v3288 = vadd.f32 %v3287, -0.4999988
      %v3289 = vmul.f32 %v3284, %v3288
      %v3290 = vadd.f32 1.0, %v3289
      %v3291 = vmul.f32 %v3282, %v3282
      %v3292 = vmul.f32 %v3291, -0.00019511016
      %v3293 = vadd.f32 %v3292, 0.008332121
      %v3294 = vmul.f32 %v3291, %v3293
      %v3295 = vadd.f32 %v3294, -0.16666654
      %v3296 = vmul.f32 %v3291, %v3295
      %v3297 = vadd.f32 %v3296, 1.0
      %v3298 = vmul.f32 %v3297, %v3282
      %vm3299 = vweird.f32 %v533
      %v3300 = vadd.s32 %v3283, 3
      %v3301 = vand.u32 %v3300, 3
      %vm3302 = vcmp.lt.s32.totalorder %v3301, 2
      %vm3303 = vcmp.eq.s32.totalorder %v3301, 0
      %v3304 = vxor.u32 %v3298, 2147483648
      %v3305 = vsel %vm3303, %v3290, %v3304
      %vm3306 = vcmp.eq.s32.totalorder %v3301, 2
      %v3307 = vxor.u32 %v3290, 2147483648
      %v3308 = vsel %vm3306, %v3307, %v3298
      %v3309 = vsel %vm3302, %v3305, %v3308
      %v3310 = vsel %vm3299, nan, %v3309
      %v3311 = vand.u32 2147483647, %v536
      %vm3312 = vcmp.le.f32.partialorder %v3311, 0.7853982
      %vm3313 = vcmp.lt.s32.totalorder %v536, 0
      %v3314 = vand.u32 %v536, 2139095040
      %v3315 = vshrl.u32 %v3314, 23
      %v3316 = vsub.s32 %v3315, 127
      %v3317 = vand.u32 2147483647, %v536
      %v3318 = vand.u32 %v3317, 8388607
      %v3319 = vor.u32 %v3318, 8388608
      %v3320 = vsub.s32 0, %v3319
      %v3321 = vadd.s32 %v3316, 1
      %vm3322 = vcmp.gt.s32.totalorder %v3321, 0
      %v3323 = vsel %vm3322, %v3321, 0
      %v3324 = vshrl.u32 %v3323, 5
      %v3325 = vand.u32 %v3323, 31
      %v3326 = vsub.s32 32, %v3325
      %v3327 = vshrl.u32 683565275, %v3326
      %v3328 = vshll.u32 683565275, %v3325
      %v3329 = vshrl.u32 2475754826, %v3326
      %v3330 = vor.u32 %v3328, %v3329
      %v3331 = vshll.u32 2475754826, %v3325
      %v3332 = vshrl.u32 2131351028, %v3326
      %v3333 = vor.u32 %v3331, %v3332
      %v3334 = vshll.u32 2131351028, %v3325
      %v3335 = vshrl.u32 2102212464, %v3326
      %v3336 = vor.u32 %v3334, %v3335
      %v3337 = vshll.u32 2102212464, %v3325
      %v3338 = vshrl.u32 920167782, %v3326
      %v3339 = vor.u32 %v3337, %v3338
      %v3340 = vshll.u32 920167782, %v3325
      %v3341 = vshrl.u32 1326507024, %v3326
      %v3342 = vor.u32 %v3340, %v3341
      %vm3343 = vcmp.lt.s32.totalorder %v3324, 1
      %vm3344 = vcmp.lt.s32.totalorder %v3324, 2
      %vm3345 = vcmp.lt.s32.totalorder %v3324, 3
      %vm3346 = vcmp.lt.s32.totalorder %v3324, 4
      %v3347 = vsel %vm3343, %v3327, %v3330
      %v3348 = vsel %vm3346, %v3336, 2102212464
      %v3349 = vsel %vm3345, %v3333, %v3348
      %v3350 = vsel %vm3344, %v3347, %v3349
      %v3351 = vsel %vm3343, %v3330, %v3333
      %v3352 = vsel %vm3346, %v3339, 920167782
      %v3353 = vsel %vm3345, %v3336, %v3352
      %v3354 = vsel %vm3344, %v3351, %v3353
      %v3355 = vsel %vm3343, %v3333, %v3336
      %v3356 = vsel %vm3346, %v3342, 1326507024
      %v3357 = vsel %vm3345, %v3339, %v3356
      %v3358 = vsel %vm3344, %v3355, %v3357
      %v3359 = vshll.u32 %v3319, 8
      %v3360 = vand.u32 %v3359, 65535
      %v3361 = vshrl.u32 %v3359, 16
      %v3362 = vand.u32 %v3358, 65535
      %v3363 = vshrl.u32 %v3358, 16
      %v3364 = vmul.u32 %v3360, %v3362
      %v3365 = vmul.u32 %v3360, %v3363
      %v3366 = vmul.u32 %v3361, %v3362
      %v3367 = vmul.u32 %v3361, %v3363
      %v3368 = vshll.u32 %v3365, 16
      %v3369 = vshrl.u32 %v3365, 16
      %v3370 = vshll.u32 %v3366, 16
      %v3371 = vshrl.u32 %v3366, 16
      %vm3372 = vc.u32 %v3364, %v3368
      %v3373 = vsel %vm3372, 1, 0
      %v3374 = vadd.s32 %v3364, %v3368
      %v3375 = vadd.s32 %v3367, %v3373
      %vm3376 = vc.u32 %v3374, %v3370
      %v3377 = vsel %vm3376, 1, 0
      %v3378 = vadd.s32 %v3374, %v3370
      %v3379 = vadd.s32 %v3375, %v3377
      %v3380 = vadd.s32 %v3379, %v3369
      %v3381 = vadd.s32 %v3380, %v3371
      %v3382 = vand.u32 %v3359, 65535
      %v3383 = vshrl.u32 %v3359, 16
      %v3384 = vand.u32 %v3354, 65535
      %v3385 = vshrl.u32 %v3354, 16
      %v3386 = vmul.u32 %v3382, %v3384
      %v3387 = vmul.u32 %v3382, %v3385
      %v3388 = vmul.u32 %v3383, %v3384
      %v3389 = vmul.u32 %v3383, %v3385
      %v3390 = vshll.u32 %v3387, 16
      %v3391 = vshrl.u32 %v3387, 16
      %v3392 = vshll.u32 %v3388, 16
      %v3393 = vshrl.u32 %v3388, 16
      %vm3394 = vc.u32 %v3386, %v3390
      %v3395 = vsel %vm3394, 1, 0
      %v3396 = vadd.s32 %v3386, %v3390
      %v3397 = vadd.s32 %v3389, %v3395
      %vm3398 = vc.u32 %v3396, %v3392
      %v3399 = vsel %vm3398, 1, 0
      %v3400 = vadd.s32 %v3396, %v3392
      %v3401 = vadd.s32 %v3397, %v3399
      %v3402 = vadd.s32 %v3401, %v3391
      %v3403 = vadd.s32 %v3402, %v3393
      %v3404 = vmul.u32 %v3359, %v3350
      %v3405 = vadd.s32 %v3381, %v3400
      %vm3406 = vc.u32 %v3381, %v3400
      %v3407 = vadd.s32 %v3403, 1
      %v3408 = vsel %vm3406, %v3407, %v3403
      %v3409 = vadd.s32 %v3404, %v3408
      %v3410 = vadd.s32 %v3409, 536870912
      %v3411 = vshrl.u32 %v3410, 30
      %v3412 = vshll.u32 %v3411, 30
      %v3413 = vsub.s32 %v3409, %v3412
      %vm3414 = vcmp.lt.s32.totalorder %v3413, 0
      %v3415 = vsub.s32 0, %v3413
      %v3416 = vsel %vm3414, %v3415, %v3413
      %v3417 = vclz %v3416
      %v3418 = vsub.s32 %v3417, 2
      %vm3419 = vcmp.gt.s32.totalorder 0, %v3418
      %v3420 = vsel %vm3419, 0, %v3418
      %v3421 = vsub.s32 32, %v3420
      %v3422 = vshll.u32 %v3413, %v3420
      %v3423 = vshrl.u32 %v3405, %v3421
      %v3424 = vor.u32 %v3422, %v3423
      %v3425 = vsub.s32 4294967266, %v3420
      %v3426 = vadd.s32 %v3425, 127
      %v3427 = vshll.u32 %v3426, 23
      %v3428 = vor.u32 4788187, %v3427
      %v3429 = vand.u32 2147483647, %v3428
      %v3431 = vcvt.s32.f32 %v3424
      %v3432 = vmul.f32 %v3431, %v3429
      %v3433 = vxor.u32 %v3432, 2147483648
      %v3434 = vsel %vm3313, %v3433, %v3432
      %v3435 = vsub.s32 4, %v3411
      %v3436 = vsel %vm3313, %v3435, %v3411
      %v3437 = vsel %vm3312, %v536, %v3434
      %v3438 = vsel %vm3312, 0, %v3436
      %v3439 = vmul.f32 %v3437, %v3437
      %v3440 = vmul.f32 %v3439, -0.001358992
      %v3441 = vadd.f32 %v3440, 0.041655596
      %v3442 = vmul.f32 %v3439, %v3441
      %v3443 = vadd.f32 %v3442, -0.4999988
      %v3444 = vmul.f32 %v3439, %v3443
      %v3445 = vadd.f32 1.0, %v3444
      %v3446 = vmul.f32 %v3437, %v3437
      %v3447 = vmul.f32 %v3446, -0.00019511016
      %v3448 = vadd.f32 %v3447, 0.008332121
      %v3449 = vmul.f32 %v3446, %v3448
      %v3450 = vadd.f32 %v3449, -0.16666654
      %v3451 = vmul.f32 %v3446, %v3450
      %v3452 = vadd.f32 %v3451, 1.0
      %v3453 = vmul.f32 %v3452, %v3437
      %vm3454 = vweird.f32 %v536
      %v3455 = vadd.s32 %v3438, 3
      %v3456 = vand.u32 %v3455, 3
      %vm3457 = vcmp.lt.s32.totalorder %v3456, 2
      %vm3458 = vcmp.eq.s32.totalorder %v3456, 0
      %v3459 = vxor.u32 %v3453, 2147483648
      %v3460 = vsel %vm3458, %v3445, %v3459
      %vm3461 = vcmp.eq.s32.totalorder %v3456, 2
      %v3462 = vxor.u32 %v3445, 2147483648
      %v3463 = vsel %vm3461, %v3462, %v3453
      %v3464 = vsel %vm3457, %v3460, %v3463
      %v3465 = vsel %vm3454, nan, %v3464
      %v3466 = vand.u32 2147483647, %v539
      %vm3467 = vcmp.le.f32.partialorder %v3466, 0.7853982
      %vm3468 = vcmp.lt.s32.totalorder %v539, 0
      %v3469 = vand.u32 %v539, 2139095040
      %v3470 = vshrl.u32 %v3469, 23
      %v3471 = vsub.s32 %v3470, 127
      %v3472 = vand.u32 2147483647, %v539
      %v3473 = vand.u32 %v3472, 8388607
      %v3474 = vor.u32 %v3473, 8388608
      %v3475 = vsub.s32 0, %v3474
      %v3476 = vadd.s32 %v3471, 1
      %vm3477 = vcmp.gt.s32.totalorder %v3476, 0
      %v3478 = vsel %vm3477, %v3476, 0
      %v3479 = vshrl.u32 %v3478, 5
      %v3480 = vand.u32 %v3478, 31
      %v3481 = vsub.s32 32, %v3480
      %v3482 = vshrl.u32 683565275, %v3481
      %v3483 = vshll.u32 683565275, %v3480
      %v3484 = vshrl.u32 2475754826, %v3481
      %v3485 = vor.u32 %v3483, %v3484
      %v3486 = vshll.u32 2475754826, %v3480
      %v3487 = vshrl.u32 2131351028, %v3481
      %v3488 = vor.u32 %v3486, %v3487
      %v3489 = vshll.u32 2131351028, %v3480
      %v3490 = vshrl.u32 2102212464, %v3481
      %v3491 = vor.u32 %v3489, %v3490
      %v3492 = vshll.u32 2102212464, %v3480
      %v3493 = vshrl.u32 920167782, %v3481
      %v3494 = vor.u32 %v3492, %v3493
      %v3495 = vshll.u32 920167782, %v3480
      %v3496 = vshrl.u32 1326507024, %v3481
      %v3497 = vor.u32 %v3495, %v3496
      %vm3498 = vcmp.lt.s32.totalorder %v3479, 1
      %vm3499 = vcmp.lt.s32.totalorder %v3479, 2
      %vm3500 = vcmp.lt.s32.totalorder %v3479, 3
      %vm3501 = vcmp.lt.s32.totalorder %v3479, 4
      %v3502 = vsel %vm3498, %v3482, %v3485
      %v3503 = vsel %vm3501, %v3491, 2102212464
      %v3504 = vsel %vm3500, %v3488, %v3503
      %v3505 = vsel %vm3499, %v3502, %v3504
      %v3506 = vsel %vm3498, %v3485, %v3488
      %v3507 = vsel %vm3501, %v3494, 920167782
      %v3508 = vsel %vm3500, %v3491, %v3507
      %v3509 = vsel %vm3499, %v3506, %v3508
      %v3510 = vsel %vm3498, %v3488, %v3491
      %v3511 = vsel %vm3501, %v3497, 1326507024
      %v3512 = vsel %vm3500, %v3494, %v3511
      %v3513 = vsel %vm3499, %v3510, %v3512
      %v3514 = vshll.u32 %v3474, 8
      %v3515 = vand.u32 %v3514, 65535
      %v3516 = vshrl.u32 %v3514, 16
      %v3517 = vand.u32 %v3513, 65535
      %v3518 = vshrl.u32 %v3513, 16
      %v3519 = vmul.u32 %v3515, %v3517
      %v3520 = vmul.u32 %v3515, %v3518
      %v3521 = vmul.u32 %v3516, %v3517
      %v3522 = vmul.u32 %v3516, %v3518
      %v3523 = vshll.u32 %v3520, 16
      %v3524 = vshrl.u32 %v3520, 16
      %v3525 = vshll.u32 %v3521, 16
      %v3526 = vshrl.u32 %v3521, 16
      %vm3527 = vc.u32 %v3519, %v3523
      %v3528 = vsel %vm3527, 1, 0
      %v3529 = vadd.s32 %v3519, %v3523
      %v3530 = vadd.s32 %v3522, %v3528
      %vm3531 = vc.u32 %v3529, %v3525
      %v3532 = vsel %vm3531, 1, 0
      %v3533 = vadd.s32 %v3529, %v3525
      %v3534 = vadd.s32 %v3530, %v3532
      %v3535 = vadd.s32 %v3534, %v3524
      %v3536 = vadd.s32 %v3535, %v3526
      %v3537 = vand.u32 %v3514, 65535
      %v3538 = vshrl.u32 %v3514, 16
      %v3539 = vand.u32 %v3509, 65535
      %v3540 = vshrl.u32 %v3509, 16
      %v3541 = vmul.u32 %v3537, %v3539
      %v3542 = vmul.u32 %v3537, %v3540
      %v3543 = vmul.u32 %v3538, %v3539
      %v3544 = vmul.u32 %v3538, %v3540
      %v3545 = vshll.u32 %v3542, 16
      %v3546 = vshrl.u32 %v3542, 16
      %v3547 = vshll.u32 %v3543, 16
      %v3548 = vshrl.u32 %v3543, 16
      %vm3549 = vc.u32 %v3541, %v3545
      %v3550 = vsel %vm3549, 1, 0
      %v3551 = vadd.s32 %v3541, %v3545
      %v3552 = vadd.s32 %v3544, %v3550
      %vm3553 = vc.u32 %v3551, %v3547
      %v3554 = vsel %vm3553, 1, 0
      %v3555 = vadd.s32 %v3551, %v3547
      %v3556 = vadd.s32 %v3552, %v3554
      %v3557 = vadd.s32 %v3556, %v3546
      %v3558 = vadd.s32 %v3557, %v3548
      %v3559 = vmul.u32 %v3514, %v3505
      %v3560 = vadd.s32 %v3536, %v3555
      %vm3561 = vc.u32 %v3536, %v3555
      %v3562 = vadd.s32 %v3558, 1
      %v3563 = vsel %vm3561, %v3562, %v3558
      %v3564 = vadd.s32 %v3559, %v3563
      %v3565 = vadd.s32 %v3564, 536870912
      %v3566 = vshrl.u32 %v3565, 30
      %v3567 = vshll.u32 %v3566, 30
      %v3568 = vsub.s32 %v3564, %v3567
      %vm3569 = vcmp.lt.s32.totalorder %v3568, 0
      %v3570 = vsub.s32 0, %v3568
      %v3571 = vsel %vm3569, %v3570, %v3568
      %v3572 = vclz %v3571
      %v3573 = vsub.s32 %v3572, 2
      %vm3574 = vcmp.gt.s32.totalorder 0, %v3573
      %v3575 = vsel %vm3574, 0, %v3573
      %v3576 = vsub.s32 32, %v3575
      %v3577 = vshll.u32 %v3568, %v3575
      %v3578 = vshrl.u32 %v3560, %v3576
      %v3579 = vor.u32 %v3577, %v3578
      %v3580 = vsub.s32 4294967266, %v3575
      %v3581 = vadd.s32 %v3580, 127
      %v3582 = vshll.u32 %v3581, 23
      %v3583 = vor.u32 4788187, %v3582
      %v3584 = vand.u32 2147483647, %v3583
      %v3586 = vcvt.s32.f32 %v3579
      %v3587 = vmul.f32 %v3586, %v3584
      %v3588 = vxor.u32 %v3587, 2147483648
      %v3589 = vsel %vm3468, %v3588, %v3587
      %v3590 = vsub.s32 4, %v3566
      %v3591 = vsel %vm3468, %v3590, %v3566
      %v3592 = vsel %vm3467, %v539, %v3589
      %v3593 = vsel %vm3467, 0, %v3591
      %v3594 = vmul.f32 %v3592, %v3592
      %v3595 = vmul.f32 %v3594, -0.001358992
      %v3596 = vadd.f32 %v3595, 0.041655596
      %v3597 = vmul.f32 %v3594, %v3596
      %v3598 = vadd.f32 %v3597, -0.4999988
      %v3599 = vmul.f32 %v3594, %v3598
      %v3600 = vadd.f32 1.0, %v3599
      %v3601 = vmul.f32 %v3592, %v3592
      %v3602 = vmul.f32 %v3601, -0.00019511016
      %v3603 = vadd.f32 %v3602, 0.008332121
      %v3604 = vmul.f32 %v3601, %v3603
      %v3605 = vadd.f32 %v3604, -0.16666654
      %v3606 = vmul.f32 %v3601, %v3605
      %v3607 = vadd.f32 %v3606, 1.0
      %v3608 = vmul.f32 %v3607, %v3592
      %vm3609 = vweird.f32 %v539
      %v3610 = vadd.s32 %v3593, 3
      %v3611 = vand.u32 %v3610, 3
      %vm3612 = vcmp.lt.s32.totalorder %v3611, 2
      %vm3613 = vcmp.eq.s32.totalorder %v3611, 0
      %v3614 = vxor.u32 %v3608, 2147483648
      %v3615 = vsel %vm3613, %v3600, %v3614
      %vm3616 = vcmp.eq.s32.totalorder %v3611, 2
      %v3617 = vxor.u32 %v3600, 2147483648
      %v3618 = vsel %vm3616, %v3617, %v3608
      %v3619 = vsel %vm3612, %v3615, %v3618
      %v3620 = vsel %vm3609, nan, %v3619
      %v3621 = vand.u32 2147483647, %v542
      %vm3622 = vcmp.le.f32.partialorder %v3621, 0.7853982
      %vm3623 = vcmp.lt.s32.totalorder %v542, 0
      %v3624 = vand.u32 %v542, 2139095040
      %v3625 = vshrl.u32 %v3624, 23
      %v3626 = vsub.s32 %v3625, 127
      %v3627 = vand.u32 2147483647, %v542
      %v3628 = vand.u32 %v3627, 8388607
      %v3629 = vor.u32 %v3628, 8388608
      %v3630 = vsub.s32 0, %v3629
      %v3631 = vadd.s32 %v3626, 1
      %vm3632 = vcmp.gt.s32.totalorder %v3631, 0
      %v3633 = vsel %vm3632, %v3631, 0
      %v3634 = vshrl.u32 %v3633, 5
      %v3635 = vand.u32 %v3633, 31
      %v3636 = vsub.s32 32, %v3635
      %v3637 = vshrl.u32 683565275, %v3636
      %v3638 = vshll.u32 683565275, %v3635
      %v3639 = vshrl.u32 2475754826, %v3636
      %v3640 = vor.u32 %v3638, %v3639
      %v3641 = vshll.u32 2475754826, %v3635
      %v3642 = vshrl.u32 2131351028, %v3636
      %v3643 = vor.u32 %v3641, %v3642
      %v3644 = vshll.u32 2131351028, %v3635
      %v3645 = vshrl.u32 2102212464, %v3636
      %v3646 = vor.u32 %v3644, %v3645
      %v3647 = vshll.u32 2102212464, %v3635
      %v3648 = vshrl.u32 920167782, %v3636
      %v3649 = vor.u32 %v3647, %v3648
      %v3650 = vshll.u32 920167782, %v3635
      %v3651 = vshrl.u32 1326507024, %v3636
      %v3652 = vor.u32 %v3650, %v3651
      %vm3653 = vcmp.lt.s32.totalorder %v3634, 1
      %vm3654 = vcmp.lt.s32.totalorder %v3634, 2
      %vm3655 = vcmp.lt.s32.totalorder %v3634, 3
      %vm3656 = vcmp.lt.s32.totalorder %v3634, 4
      %v3657 = vsel %vm3653, %v3637, %v3640
      %v3658 = vsel %vm3656, %v3646, 2102212464
      %v3659 = vsel %vm3655, %v3643, %v3658
      %v3660 = vsel %vm3654, %v3657, %v3659
      %v3661 = vsel %vm3653, %v3640, %v3643
      %v3662 = vsel %vm3656, %v3649, 920167782
      %v3663 = vsel %vm3655, %v3646, %v3662
      %v3664 = vsel %vm3654, %v3661, %v3663
      %v3665 = vsel %vm3653, %v3643, %v3646
      %v3666 = vsel %vm3656, %v3652, 1326507024
      %v3667 = vsel %vm3655, %v3649, %v3666
      %v3668 = vsel %vm3654, %v3665, %v3667
      %v3669 = vshll.u32 %v3629, 8
      %v3670 = vand.u32 %v3669, 65535
      %v3671 = vshrl.u32 %v3669, 16
      %v3672 = vand.u32 %v3668, 65535
      %v3673 = vshrl.u32 %v3668, 16
      %v3674 = vmul.u32 %v3670, %v3672
      %v3675 = vmul.u32 %v3670, %v3673
      %v3676 = vmul.u32 %v3671, %v3672
      %v3677 = vmul.u32 %v3671, %v3673
      %v3678 = vshll.u32 %v3675, 16
      %v3679 = vshrl.u32 %v3675, 16
      %v3680 = vshll.u32 %v3676, 16
      %v3681 = vshrl.u32 %v3676, 16
      %vm3682 = vc.u32 %v3674, %v3678
      %v3683 = vsel %vm3682, 1, 0
      %v3684 = vadd.s32 %v3674, %v3678
      %v3685 = vadd.s32 %v3677, %v3683
      %vm3686 = vc.u32 %v3684, %v3680
      %v3687 = vsel %vm3686, 1, 0
      %v3688 = vadd.s32 %v3684, %v3680
      %v3689 = vadd.s32 %v3685, %v3687
      %v3690 = vadd.s32 %v3689, %v3679
      %v3691 = vadd.s32 %v3690, %v3681
      %v3692 = vand.u32 %v3669, 65535
      %v3693 = vshrl.u32 %v3669, 16
      %v3694 = vand.u32 %v3664, 65535
      %v3695 = vshrl.u32 %v3664, 16
      %v3696 = vmul.u32 %v3692, %v3694
      %v3697 = vmul.u32 %v3692, %v3695
      %v3698 = vmul.u32 %v3693, %v3694
      %v3699 = vmul.u32 %v3693, %v3695
      %v3700 = vshll.u32 %v3697, 16
      %v3701 = vshrl.u32 %v3697, 16
      %v3702 = vshll.u32 %v3698, 16
      %v3703 = vshrl.u32 %v3698, 16
      %vm3704 = vc.u32 %v3696, %v3700
      %v3705 = vsel %vm3704, 1, 0
      %v3706 = vadd.s32 %v3696, %v3700
      %v3707 = vadd.s32 %v3699, %v3705
      %vm3708 = vc.u32 %v3706, %v3702
      %v3709 = vsel %vm3708, 1, 0
      %v3710 = vadd.s32 %v3706, %v3702
      %v3711 = vadd.s32 %v3707, %v3709
      %v3712 = vadd.s32 %v3711, %v3701
      %v3713 = vadd.s32 %v3712, %v3703
      %v3714 = vmul.u32 %v3669, %v3660
      %v3715 = vadd.s32 %v3691, %v3710
      %vm3716 = vc.u32 %v3691, %v3710
      %v3717 = vadd.s32 %v3713, 1
      %v3718 = vsel %vm3716, %v3717, %v3713
      %v3719 = vadd.s32 %v3714, %v3718
      %v3720 = vadd.s32 %v3719, 536870912
      %v3721 = vshrl.u32 %v3720, 30
      %v3722 = vshll.u32 %v3721, 30
      %v3723 = vsub.s32 %v3719, %v3722
      %vm3724 = vcmp.lt.s32.totalorder %v3723, 0
      %v3725 = vsub.s32 0, %v3723
      %v3726 = vsel %vm3724, %v3725, %v3723
      %v3727 = vclz %v3726
      %v3728 = vsub.s32 %v3727, 2
      %vm3729 = vcmp.gt.s32.totalorder 0, %v3728
      %v3730 = vsel %vm3729, 0, %v3728
      %v3731 = vsub.s32 32, %v3730
      %v3732 = vshll.u32 %v3723, %v3730
      %v3733 = vshrl.u32 %v3715, %v3731
      %v3734 = vor.u32 %v3732, %v3733
      %v3735 = vsub.s32 4294967266, %v3730
      %v3736 = vadd.s32 %v3735, 127
      %v3737 = vshll.u32 %v3736, 23
      %v3738 = vor.u32 4788187, %v3737
      %v3739 = vand.u32 2147483647, %v3738
      %v3741 = vcvt.s32.f32 %v3734
      %v3742 = vmul.f32 %v3741, %v3739
      %v3743 = vxor.u32 %v3742, 2147483648
      %v3744 = vsel %vm3623, %v3743, %v3742
      %v3745 = vsub.s32 4, %v3721
      %v3746 = vsel %vm3623, %v3745, %v3721
      %v3747 = vsel %vm3622, %v542, %v3744
      %v3748 = vsel %vm3622, 0, %v3746
      %v3749 = vmul.f32 %v3747, %v3747
      %v3750 = vmul.f32 %v3749, -0.001358992
      %v3751 = vadd.f32 %v3750, 0.041655596
      %v3752 = vmul.f32 %v3749, %v3751
      %v3753 = vadd.f32 %v3752, -0.4999988
      %v3754 = vmul.f32 %v3749, %v3753
      %v3755 = vadd.f32 1.0, %v3754
      %v3756 = vmul.f32 %v3747, %v3747
      %v3757 = vmul.f32 %v3756, -0.00019511016
      %v3758 = vadd.f32 %v3757, 0.008332121
      %v3759 = vmul.f32 %v3756, %v3758
      %v3760 = vadd.f32 %v3759, -0.16666654
      %v3761 = vmul.f32 %v3756, %v3760
      %v3762 = vadd.f32 %v3761, 1.0
      %v3763 = vmul.f32 %v3762, %v3747
      %vm3764 = vweird.f32 %v542
      %v3765 = vadd.s32 %v3748, 3
      %v3766 = vand.u32 %v3765, 3
      %vm3767 = vcmp.lt.s32.totalorder %v3766, 2
      %vm3768 = vcmp.eq.s32.totalorder %v3766, 0
      %v3769 = vxor.u32 %v3763, 2147483648
      %v3770 = vsel %vm3768, %v3755, %v3769
      %vm3771 = vcmp.eq.s32.totalorder %v3766, 2
      %v3772 = vxor.u32 %v3755, 2147483648
      %v3773 = vsel %vm3771, %v3772, %v3763
      %v3774 = vsel %vm3767, %v3770, %v3773
      %v3775 = vsel %vm3764, nan, %v3774
      %v3776 = vand.u32 2147483647, %v545
      %vm3777 = vcmp.le.f32.partialorder %v3776, 0.7853982
      %vm3778 = vcmp.lt.s32.totalorder %v545, 0
      %v3779 = vand.u32 %v545, 2139095040
      %v3780 = vshrl.u32 %v3779, 23
      %v3781 = vsub.s32 %v3780, 127
      %v3782 = vand.u32 2147483647, %v545
      %v3783 = vand.u32 %v3782, 8388607
      %v3784 = vor.u32 %v3783, 8388608
      %v3785 = vsub.s32 0, %v3784
      %v3786 = vadd.s32 %v3781, 1
      %vm3787 = vcmp.gt.s32.totalorder %v3786, 0
      %v3788 = vsel %vm3787, %v3786, 0
      %v3789 = vshrl.u32 %v3788, 5
      %v3790 = vand.u32 %v3788, 31
      %v3791 = vsub.s32 32, %v3790
      %v3792 = vshrl.u32 683565275, %v3791
      %v3793 = vshll.u32 683565275, %v3790
      %v3794 = vshrl.u32 2475754826, %v3791
      %v3795 = vor.u32 %v3793, %v3794
      %v3796 = vshll.u32 2475754826, %v3790
      %v3797 = vshrl.u32 2131351028, %v3791
      %v3798 = vor.u32 %v3796, %v3797
      %v3799 = vshll.u32 2131351028, %v3790
      %v3800 = vshrl.u32 2102212464, %v3791
      %v3801 = vor.u32 %v3799, %v3800
      %v3802 = vshll.u32 2102212464, %v3790
      %v3803 = vshrl.u32 920167782, %v3791
      %v3804 = vor.u32 %v3802, %v3803
      %v3805 = vshll.u32 920167782, %v3790
      %v3806 = vshrl.u32 1326507024, %v3791
      %v3807 = vor.u32 %v3805, %v3806
      %vm3808 = vcmp.lt.s32.totalorder %v3789, 1
      %vm3809 = vcmp.lt.s32.totalorder %v3789, 2
      %vm3810 = vcmp.lt.s32.totalorder %v3789, 3
      %vm3811 = vcmp.lt.s32.totalorder %v3789, 4
      %v3812 = vsel %vm3808, %v3792, %v3795
      %v3813 = vsel %vm3811, %v3801, 2102212464
      %v3814 = vsel %vm3810, %v3798, %v3813
      %v3815 = vsel %vm3809, %v3812, %v3814
      %v3816 = vsel %vm3808, %v3795, %v3798
      %v3817 = vsel %vm3811, %v3804, 920167782
      %v3818 = vsel %vm3810, %v3801, %v3817
      %v3819 = vsel %vm3809, %v3816, %v3818
      %v3820 = vsel %vm3808, %v3798, %v3801
      %v3821 = vsel %vm3811, %v3807, 1326507024
      %v3822 = vsel %vm3810, %v3804, %v3821
      %v3823 = vsel %vm3809, %v3820, %v3822
      %v3824 = vshll.u32 %v3784, 8
      %v3825 = vand.u32 %v3824, 65535
      %v3826 = vshrl.u32 %v3824, 16
      %v3827 = vand.u32 %v3823, 65535
      %v3828 = vshrl.u32 %v3823, 16
      %v3829 = vmul.u32 %v3825, %v3827
      %v3830 = vmul.u32 %v3825, %v3828
      %v3831 = vmul.u32 %v3826, %v3827
      %v3832 = vmul.u32 %v3826, %v3828
      %v3833 = vshll.u32 %v3830, 16
      %v3834 = vshrl.u32 %v3830, 16
      %v3835 = vshll.u32 %v3831, 16
      %v3836 = vshrl.u32 %v3831, 16
      %vm3837 = vc.u32 %v3829, %v3833
      %v3838 = vsel %vm3837, 1, 0
      %v3839 = vadd.s32 %v3829, %v3833
      %v3840 = vadd.s32 %v3832, %v3838
      %vm3841 = vc.u32 %v3839, %v3835
      %v3842 = vsel %vm3841, 1, 0
      %v3843 = vadd.s32 %v3839, %v3835
      %v3844 = vadd.s32 %v3840, %v3842
      %v3845 = vadd.s32 %v3844, %v3834
      %v3846 = vadd.s32 %v3845, %v3836
      %v3847 = vand.u32 %v3824, 65535
      %v3848 = vshrl.u32 %v3824, 16
      %v3849 = vand.u32 %v3819, 65535
      %v3850 = vshrl.u32 %v3819, 16
      %v3851 = vmul.u32 %v3847, %v3849
      %v3852 = vmul.u32 %v3847, %v3850
      %v3853 = vmul.u32 %v3848, %v3849
      %v3854 = vmul.u32 %v3848, %v3850
      %v3855 = vshll.u32 %v3852, 16
      %v3856 = vshrl.u32 %v3852, 16
      %v3857 = vshll.u32 %v3853, 16
      %v3858 = vshrl.u32 %v3853, 16
      %vm3859 = vc.u32 %v3851, %v3855
      %v3860 = vsel %vm3859, 1, 0
      %v3861 = vadd.s32 %v3851, %v3855
      %v3862 = vadd.s32 %v3854, %v3860
      %vm3863 = vc.u32 %v3861, %v3857
      %v3864 = vsel %vm3863, 1, 0
      %v3865 = vadd.s32 %v3861, %v3857
      %v3866 = vadd.s32 %v3862, %v3864
      %v3867 = vadd.s32 %v3866, %v3856
      %v3868 = vadd.s32 %v3867, %v3858
      %v3869 = vmul.u32 %v3824, %v3815
      %v3870 = vadd.s32 %v3846, %v3865
      %vm3871 = vc.u32 %v3846, %v3865
      %v3872 = vadd.s32 %v3868, 1
      %v3873 = vsel %vm3871, %v3872, %v3868
      %v3874 = vadd.s32 %v3869, %v3873
      %v3875 = vadd.s32 %v3874, 536870912
      %v3876 = vshrl.u32 %v3875, 30
      %v3877 = vshll.u32 %v3876, 30
      %v3878 = vsub.s32 %v3874, %v3877
      %vm3879 = vcmp.lt.s32.totalorder %v3878, 0
      %v3880 = vsub.s32 0, %v3878
      %v3881 = vsel %vm3879, %v3880, %v3878
      %v3882 = vclz %v3881
      %v3883 = vsub.s32 %v3882, 2
      %vm3884 = vcmp.gt.s32.totalorder 0, %v3883
      %v3885 = vsel %vm3884, 0, %v3883
      %v3886 = vsub.s32 32, %v3885
      %v3887 = vshll.u32 %v3878, %v3885
      %v3888 = vshrl.u32 %v3870, %v3886
      %v3889 = vor.u32 %v3887, %v3888
      %v3890 = vsub.s32 4294967266, %v3885
      %v3891 = vadd.s32 %v3890, 127
      %v3892 = vshll.u32 %v3891, 23
      %v3893 = vor.u32 4788187, %v3892
      %v3894 = vand.u32 2147483647, %v3893
      %v3896 = vcvt.s32.f32 %v3889
      %v3897 = vmul.f32 %v3896, %v3894
      %v3898 = vxor.u32 %v3897, 2147483648
      %v3899 = vsel %vm3778, %v3898, %v3897
      %v3900 = vsub.s32 4, %v3876
      %v3901 = vsel %vm3778, %v3900, %v3876
      %v3902 = vsel %vm3777, %v545, %v3899
      %v3903 = vsel %vm3777, 0, %v3901
      %v3904 = vmul.f32 %v3902, %v3902
      %v3905 = vmul.f32 %v3904, -0.001358992
      %v3906 = vadd.f32 %v3905, 0.041655596
      %v3907 = vmul.f32 %v3904, %v3906
      %v3908 = vadd.f32 %v3907, -0.4999988
      %v3909 = vmul.f32 %v3904, %v3908
      %v3910 = vadd.f32 1.0, %v3909
      %v3911 = vmul.f32 %v3902, %v3902
      %v3912 = vmul.f32 %v3911, -0.00019511016
      %v3913 = vadd.f32 %v3912, 0.008332121
      %v3914 = vmul.f32 %v3911, %v3913
      %v3915 = vadd.f32 %v3914, -0.16666654
      %v3916 = vmul.f32 %v3911, %v3915
      %v3917 = vadd.f32 %v3916, 1.0
      %v3918 = vmul.f32 %v3917, %v3902
      %vm3919 = vweird.f32 %v545
      %v3920 = vadd.s32 %v3903, 3
      %v3921 = vand.u32 %v3920, 3
      %vm3922 = vcmp.lt.s32.totalorder %v3921, 2
      %vm3923 = vcmp.eq.s32.totalorder %v3921, 0
      %v3924 = vxor.u32 %v3918, 2147483648
      %v3925 = vsel %vm3923, %v3910, %v3924
      %vm3926 = vcmp.eq.s32.totalorder %v3921, 2
      %v3927 = vxor.u32 %v3910, 2147483648
      %v3928 = vsel %vm3926, %v3927, %v3918
      %v3929 = vsel %vm3922, %v3925, %v3928
      %v3930 = vsel %vm3919, nan, %v3929
      %v3931 = vand.u32 2147483647, %v548
      %vm3932 = vcmp.le.f32.partialorder %v3931, 0.7853982
      %vm3933 = vcmp.lt.s32.totalorder %v548, 0
      %v3934 = vand.u32 %v548, 2139095040
      %v3935 = vshrl.u32 %v3934, 23
      %v3936 = vsub.s32 %v3935, 127
      %v3937 = vand.u32 2147483647, %v548
      %v3938 = vand.u32 %v3937, 8388607
      %v3939 = vor.u32 %v3938, 8388608
      %v3940 = vsub.s32 0, %v3939
      %v3941 = vadd.s32 %v3936, 1
      %vm3942 = vcmp.gt.s32.totalorder %v3941, 0
      %v3943 = vsel %vm3942, %v3941, 0
      %v3944 = vshrl.u32 %v3943, 5
      %v3945 = vand.u32 %v3943, 31
      %v3946 = vsub.s32 32, %v3945
      %v3947 = vshrl.u32 683565275, %v3946
      %v3948 = vshll.u32 683565275, %v3945
      %v3949 = vshrl.u32 2475754826, %v3946
      %v3950 = vor.u32 %v3948, %v3949
      %v3951 = vshll.u32 2475754826, %v3945
      %v3952 = vshrl.u32 2131351028, %v3946
      %v3953 = vor.u32 %v3951, %v3952
      %v3954 = vshll.u32 2131351028, %v3945
      %v3955 = vshrl.u32 2102212464, %v3946
      %v3956 = vor.u32 %v3954, %v3955
      %v3957 = vshll.u32 2102212464, %v3945
      %v3958 = vshrl.u32 920167782, %v3946
      %v3959 = vor.u32 %v3957, %v3958
      %v3960 = vshll.u32 920167782, %v3945
      %v3961 = vshrl.u32 1326507024, %v3946
      %v3962 = vor.u32 %v3960, %v3961
      %vm3963 = vcmp.lt.s32.totalorder %v3944, 1
      %vm3964 = vcmp.lt.s32.totalorder %v3944, 2
      %vm3965 = vcmp.lt.s32.totalorder %v3944, 3
      %vm3966 = vcmp.lt.s32.totalorder %v3944, 4
      %v3967 = vsel %vm3963, %v3947, %v3950
      %v3968 = vsel %vm3966, %v3956, 2102212464
      %v3969 = vsel %vm3965, %v3953, %v3968
      %v3970 = vsel %vm3964, %v3967, %v3969
      %v3971 = vsel %vm3963, %v3950, %v3953
      %v3972 = vsel %vm3966, %v3959, 920167782
      %v3973 = vsel %vm3965, %v3956, %v3972
      %v3974 = vsel %vm3964, %v3971, %v3973
      %v3975 = vsel %vm3963, %v3953, %v3956
      %v3976 = vsel %vm3966, %v3962, 1326507024
      %v3977 = vsel %vm3965, %v3959, %v3976
      %v3978 = vsel %vm3964, %v3975, %v3977
      %v3979 = vshll.u32 %v3939, 8
      %v3980 = vand.u32 %v3979, 65535
      %v3981 = vshrl.u32 %v3979, 16
      %v3982 = vand.u32 %v3978, 65535
      %v3983 = vshrl.u32 %v3978, 16
      %v3984 = vmul.u32 %v3980, %v3982
      %v3985 = vmul.u32 %v3980, %v3983
      %v3986 = vmul.u32 %v3981, %v3982
      %v3987 = vmul.u32 %v3981, %v3983
      %v3988 = vshll.u32 %v3985, 16
      %v3989 = vshrl.u32 %v3985, 16
      %v3990 = vshll.u32 %v3986, 16
      %v3991 = vshrl.u32 %v3986, 16
      %vm3992 = vc.u32 %v3984, %v3988
      %v3993 = vsel %vm3992, 1, 0
      %v3994 = vadd.s32 %v3984, %v3988
      %v3995 = vadd.s32 %v3987, %v3993
      %vm3996 = vc.u32 %v3994, %v3990
      %v3997 = vsel %vm3996, 1, 0
      %v3998 = vadd.s32 %v3994, %v3990
      %v3999 = vadd.s32 %v3995, %v3997
      %v4000 = vadd.s32 %v3999, %v3989
      %v4001 = vadd.s32 %v4000, %v3991
      %v4002 = vand.u32 %v3979, 65535
      %v4003 = vshrl.u32 %v3979, 16
      %v4004 = vand.u32 %v3974, 65535
      %v4005 = vshrl.u32 %v3974, 16
      %v4006 = vmul.u32 %v4002, %v4004
      %v4007 = vmul.u32 %v4002, %v4005
      %v4008 = vmul.u32 %v4003, %v4004
      %v4009 = vmul.u32 %v4003, %v4005
      %v4010 = vshll.u32 %v4007, 16
      %v4011 = vshrl.u32 %v4007, 16
      %v4012 = vshll.u32 %v4008, 16
      %v4013 = vshrl.u32 %v4008, 16
      %vm4014 = vc.u32 %v4006, %v4010
      %v4015 = vsel %vm4014, 1, 0
      %v4016 = vadd.s32 %v4006, %v4010
      %v4017 = vadd.s32 %v4009, %v4015
      %vm4018 = vc.u32 %v4016, %v4012
      %v4019 = vsel %vm4018, 1, 0
      %v4020 = vadd.s32 %v4016, %v4012
      %v4021 = vadd.s32 %v4017, %v4019
      %v4022 = vadd.s32 %v4021, %v4011
      %v4023 = vadd.s32 %v4022, %v4013
      %v4024 = vmul.u32 %v3979, %v3970
      %v4025 = vadd.s32 %v4001, %v4020
      %vm4026 = vc.u32 %v4001, %v4020
      %v4027 = vadd.s32 %v4023, 1
      %v4028 = vsel %vm4026, %v4027, %v4023
      %v4029 = vadd.s32 %v4024, %v4028
      %v4030 = vadd.s32 %v4029, 536870912
      %v4031 = vshrl.u32 %v4030, 30
      %v4032 = vshll.u32 %v4031, 30
      %v4033 = vsub.s32 %v4029, %v4032
      %vm4034 = vcmp.lt.s32.totalorder %v4033, 0
      %v4035 = vsub.s32 0, %v4033
      %v4036 = vsel %vm4034, %v4035, %v4033
      %v4037 = vclz %v4036
      %v4038 = vsub.s32 %v4037, 2
      %vm4039 = vcmp.gt.s32.totalorder 0, %v4038
      %v4040 = vsel %vm4039, 0, %v4038
      %v4041 = vsub.s32 32, %v4040
      %v4042 = vshll.u32 %v4033, %v4040
      %v4043 = vshrl.u32 %v4025, %v4041
      %v4044 = vor.u32 %v4042, %v4043
      %v4045 = vsub.s32 4294967266, %v4040
      %v4046 = vadd.s32 %v4045, 127
      %v4047 = vshll.u32 %v4046, 23
      %v4048 = vor.u32 4788187, %v4047
      %v4049 = vand.u32 2147483647, %v4048
      %v4051 = vcvt.s32.f32 %v4044
      %v4052 = vmul.f32 %v4051, %v4049
      %v4053 = vxor.u32 %v4052, 2147483648
      %v4054 = vsel %vm3933, %v4053, %v4052
      %v4055 = vsub.s32 4, %v4031
      %v4056 = vsel %vm3933, %v4055, %v4031
      %v4057 = vsel %vm3932, %v548, %v4054
      %v4058 = vsel %vm3932, 0, %v4056
      %v4059 = vmul.f32 %v4057, %v4057
      %v4060 = vmul.f32 %v4059, -0.001358992
      %v4061 = vadd.f32 %v4060, 0.041655596
      %v4062 = vmul.f32 %v4059, %v4061
      %v4063 = vadd.f32 %v4062, -0.4999988
      %v4064 = vmul.f32 %v4059, %v4063
      %v4065 = vadd.f32 1.0, %v4064
      %v4066 = vmul.f32 %v4057, %v4057
      %v4067 = vmul.f32 %v4066, -0.00019511016
      %v4068 = vadd.f32 %v4067, 0.008332121
      %v4069 = vmul.f32 %v4066, %v4068
      %v4070 = vadd.f32 %v4069, -0.16666654
      %v4071 = vmul.f32 %v4066, %v4070
      %v4072 = vadd.f32 %v4071, 1.0
      %v4073 = vmul.f32 %v4072, %v4057
      %vm4074 = vweird.f32 %v548
      %v4075 = vadd.s32 %v4058, 3
      %v4076 = vand.u32 %v4075, 3
      %vm4077 = vcmp.lt.s32.totalorder %v4076, 2
      %vm4078 = vcmp.eq.s32.totalorder %v4076, 0
      %v4079 = vxor.u32 %v4073, 2147483648
      %v4080 = vsel %vm4078, %v4065, %v4079
      %vm4081 = vcmp.eq.s32.totalorder %v4076, 2
      %v4082 = vxor.u32 %v4065, 2147483648
      %v4083 = vsel %vm4081, %v4082, %v4073
      %v4084 = vsel %vm4077, %v4080, %v4083
      %v4085 = vsel %vm4074, nan, %v4084
      %v4086 = vand.u32 2147483647, %v551
      %vm4087 = vcmp.le.f32.partialorder %v4086, 0.7853982
      %vm4088 = vcmp.lt.s32.totalorder %v551, 0
      %v4089 = vand.u32 %v551, 2139095040
      %v4090 = vshrl.u32 %v4089, 23
      %v4091 = vsub.s32 %v4090, 127
      %v4092 = vand.u32 2147483647, %v551
      %v4093 = vand.u32 %v4092, 8388607
      %v4094 = vor.u32 %v4093, 8388608
      %v4095 = vsub.s32 0, %v4094
      %v4096 = vadd.s32 %v4091, 1
      %vm4097 = vcmp.gt.s32.totalorder %v4096, 0
      %v4098 = vsel %vm4097, %v4096, 0
      %v4099 = vshrl.u32 %v4098, 5
      %v4100 = vand.u32 %v4098, 31
      %v4101 = vsub.s32 32, %v4100
      %v4102 = vshrl.u32 683565275, %v4101
      %v4103 = vshll.u32 683565275, %v4100
      %v4104 = vshrl.u32 2475754826, %v4101
      %v4105 = vor.u32 %v4103, %v4104
      %v4106 = vshll.u32 2475754826, %v4100
      %v4107 = vshrl.u32 2131351028, %v4101
      %v4108 = vor.u32 %v4106, %v4107
      %v4109 = vshll.u32 2131351028, %v4100
      %v4110 = vshrl.u32 2102212464, %v4101
      %v4111 = vor.u32 %v4109, %v4110
      %v4112 = vshll.u32 2102212464, %v4100
      %v4113 = vshrl.u32 920167782, %v4101
      %v4114 = vor.u32 %v4112, %v4113
      %v4115 = vshll.u32 920167782, %v4100
      %v4116 = vshrl.u32 1326507024, %v4101
      %v4117 = vor.u32 %v4115, %v4116
      %vm4118 = vcmp.lt.s32.totalorder %v4099, 1
      %vm4119 = vcmp.lt.s32.totalorder %v4099, 2
      %vm4120 = vcmp.lt.s32.totalorder %v4099, 3
      %vm4121 = vcmp.lt.s32.totalorder %v4099, 4
      %v4122 = vsel %vm4118, %v4102, %v4105
      %v4123 = vsel %vm4121, %v4111, 2102212464
      %v4124 = vsel %vm4120, %v4108, %v4123
      %v4125 = vsel %vm4119, %v4122, %v4124
      %v4126 = vsel %vm4118, %v4105, %v4108
      %v4127 = vsel %vm4121, %v4114, 920167782
      %v4128 = vsel %vm4120, %v4111, %v4127
      %v4129 = vsel %vm4119, %v4126, %v4128
      %v4130 = vsel %vm4118, %v4108, %v4111
      %v4131 = vsel %vm4121, %v4117, 1326507024
      %v4132 = vsel %vm4120, %v4114, %v4131
      %v4133 = vsel %vm4119, %v4130, %v4132
      %v4134 = vshll.u32 %v4094, 8
      %v4135 = vand.u32 %v4134, 65535
      %v4136 = vshrl.u32 %v4134, 16
      %v4137 = vand.u32 %v4133, 65535
      %v4138 = vshrl.u32 %v4133, 16
      %v4139 = vmul.u32 %v4135, %v4137
      %v4140 = vmul.u32 %v4135, %v4138
      %v4141 = vmul.u32 %v4136, %v4137
      %v4142 = vmul.u32 %v4136, %v4138
      %v4143 = vshll.u32 %v4140, 16
      %v4144 = vshrl.u32 %v4140, 16
      %v4145 = vshll.u32 %v4141, 16
      %v4146 = vshrl.u32 %v4141, 16
      %vm4147 = vc.u32 %v4139, %v4143
      %v4148 = vsel %vm4147, 1, 0
      %v4149 = vadd.s32 %v4139, %v4143
      %v4150 = vadd.s32 %v4142, %v4148
      %vm4151 = vc.u32 %v4149, %v4145
      %v4152 = vsel %vm4151, 1, 0
      %v4153 = vadd.s32 %v4149, %v4145
      %v4154 = vadd.s32 %v4150, %v4152
      %v4155 = vadd.s32 %v4154, %v4144
      %v4156 = vadd.s32 %v4155, %v4146
      %v4157 = vand.u32 %v4134, 65535
      %v4158 = vshrl.u32 %v4134, 16
      %v4159 = vand.u32 %v4129, 65535
      %v4160 = vshrl.u32 %v4129, 16
      %v4161 = vmul.u32 %v4157, %v4159
      %v4162 = vmul.u32 %v4157, %v4160
      %v4163 = vmul.u32 %v4158, %v4159
      %v4164 = vmul.u32 %v4158, %v4160
      %v4165 = vshll.u32 %v4162, 16
      %v4166 = vshrl.u32 %v4162, 16
      %v4167 = vshll.u32 %v4163, 16
      %v4168 = vshrl.u32 %v4163, 16
      %vm4169 = vc.u32 %v4161, %v4165
      %v4170 = vsel %vm4169, 1, 0
      %v4171 = vadd.s32 %v4161, %v4165
      %v4172 = vadd.s32 %v4164, %v4170
      %vm4173 = vc.u32 %v4171, %v4167
      %v4174 = vsel %vm4173, 1, 0
      %v4175 = vadd.s32 %v4171, %v4167
      %v4176 = vadd.s32 %v4172, %v4174
      %v4177 = vadd.s32 %v4176, %v4166
      %v4178 = vadd.s32 %v4177, %v4168
      %v4179 = vmul.u32 %v4134, %v4125
      %v4180 = vadd.s32 %v4156, %v4175
      %vm4181 = vc.u32 %v4156, %v4175
      %v4182 = vadd.s32 %v4178, 1
      %v4183 = vsel %vm4181, %v4182, %v4178
      %v4184 = vadd.s32 %v4179, %v4183
      %v4185 = vadd.s32 %v4184, 536870912
      %v4186 = vshrl.u32 %v4185, 30
      %v4187 = vshll.u32 %v4186, 30
      %v4188 = vsub.s32 %v4184, %v4187
      %vm4189 = vcmp.lt.s32.totalorder %v4188, 0
      %v4190 = vsub.s32 0, %v4188
      %v4191 = vsel %vm4189, %v4190, %v4188
      %v4192 = vclz %v4191
      %v4193 = vsub.s32 %v4192, 2
      %vm4194 = vcmp.gt.s32.totalorder 0, %v4193
      %v4195 = vsel %vm4194, 0, %v4193
      %v4196 = vsub.s32 32, %v4195
      %v4197 = vshll.u32 %v4188, %v4195
      %v4198 = vshrl.u32 %v4180, %v4196
      %v4199 = vor.u32 %v4197, %v4198
      %v4200 = vsub.s32 4294967266, %v4195
      %v4201 = vadd.s32 %v4200, 127
      %v4202 = vshll.u32 %v4201, 23
      %v4203 = vor.u32 4788187, %v4202
      %v4204 = vand.u32 2147483647, %v4203
      %v4206 = vcvt.s32.f32 %v4199
      %v4207 = vmul.f32 %v4206, %v4204
      %v4208 = vxor.u32 %v4207, 2147483648
      %v4209 = vsel %vm4088, %v4208, %v4207
      %v4210 = vsub.s32 4, %v4186
      %v4211 = vsel %vm4088, %v4210, %v4186
      %v4212 = vsel %vm4087, %v551, %v4209
      %v4213 = vsel %vm4087, 0, %v4211
      %v4214 = vmul.f32 %v4212, %v4212
      %v4215 = vmul.f32 %v4214, -0.001358992
      %v4216 = vadd.f32 %v4215, 0.041655596
      %v4217 = vmul.f32 %v4214, %v4216
      %v4218 = vadd.f32 %v4217, -0.4999988
      %v4219 = vmul.f32 %v4214, %v4218
      %v4220 = vadd.f32 1.0, %v4219
      %v4221 = vmul.f32 %v4212, %v4212
      %v4222 = vmul.f32 %v4221, -0.00019511016
      %v4223 = vadd.f32 %v4222, 0.008332121
      %v4224 = vmul.f32 %v4221, %v4223
      %v4225 = vadd.f32 %v4224, -0.16666654
      %v4226 = vmul.f32 %v4221, %v4225
      %v4227 = vadd.f32 %v4226, 1.0
      %v4228 = vmul.f32 %v4227, %v4212
      %vm4229 = vweird.f32 %v551
      %v4230 = vadd.s32 %v4213, 3
      %v4231 = vand.u32 %v4230, 3
      %vm4232 = vcmp.lt.s32.totalorder %v4231, 2
      %vm4233 = vcmp.eq.s32.totalorder %v4231, 0
      %v4234 = vxor.u32 %v4228, 2147483648
      %v4235 = vsel %vm4233, %v4220, %v4234
      %vm4236 = vcmp.eq.s32.totalorder %v4231, 2
      %v4237 = vxor.u32 %v4220, 2147483648
      %v4238 = vsel %vm4236, %v4237, %v4228
      %v4239 = vsel %vm4232, %v4235, %v4238
      %v4240 = vsel %vm4229, nan, %v4239
      %v4241 = vand.u32 2147483647, %v554
      %vm4242 = vcmp.le.f32.partialorder %v4241, 0.7853982
      %vm4243 = vcmp.lt.s32.totalorder %v554, 0
      %v4244 = vand.u32 %v554, 2139095040
      %v4245 = vshrl.u32 %v4244, 23
      %v4246 = vsub.s32 %v4245, 127
      %v4247 = vand.u32 2147483647, %v554
      %v4248 = vand.u32 %v4247, 8388607
      %v4249 = vor.u32 %v4248, 8388608
      %v4250 = vsub.s32 0, %v4249
      %v4251 = vadd.s32 %v4246, 1
      %vm4252 = vcmp.gt.s32.totalorder %v4251, 0
      %v4253 = vsel %vm4252, %v4251, 0
      %v4254 = vshrl.u32 %v4253, 5
      %v4255 = vand.u32 %v4253, 31
      %v4256 = vsub.s32 32, %v4255
      %v4257 = vshrl.u32 683565275, %v4256
      %v4258 = vshll.u32 683565275, %v4255
      %v4259 = vshrl.u32 2475754826, %v4256
      %v4260 = vor.u32 %v4258, %v4259
      %v4261 = vshll.u32 2475754826, %v4255
      %v4262 = vshrl.u32 2131351028, %v4256
      %v4263 = vor.u32 %v4261, %v4262
      %v4264 = vshll.u32 2131351028, %v4255
      %v4265 = vshrl.u32 2102212464, %v4256
      %v4266 = vor.u32 %v4264, %v4265
      %v4267 = vshll.u32 2102212464, %v4255
      %v4268 = vshrl.u32 920167782, %v4256
      %v4269 = vor.u32 %v4267, %v4268
      %v4270 = vshll.u32 920167782, %v4255
      %v4271 = vshrl.u32 1326507024, %v4256
      %v4272 = vor.u32 %v4270, %v4271
      %vm4273 = vcmp.lt.s32.totalorder %v4254, 1
      %vm4274 = vcmp.lt.s32.totalorder %v4254, 2
      %vm4275 = vcmp.lt.s32.totalorder %v4254, 3
      %vm4276 = vcmp.lt.s32.totalorder %v4254, 4
      %v4277 = vsel %vm4273, %v4257, %v4260
      %v4278 = vsel %vm4276, %v4266, 2102212464
      %v4279 = vsel %vm4275, %v4263, %v4278
      %v4280 = vsel %vm4274, %v4277, %v4279
      %v4281 = vsel %vm4273, %v4260, %v4263
      %v4282 = vsel %vm4276, %v4269, 920167782
      %v4283 = vsel %vm4275, %v4266, %v4282
      %v4284 = vsel %vm4274, %v4281, %v4283
      %v4285 = vsel %vm4273, %v4263, %v4266
      %v4286 = vsel %vm4276, %v4272, 1326507024
      %v4287 = vsel %vm4275, %v4269, %v4286
      %v4288 = vsel %vm4274, %v4285, %v4287
      %v4289 = vshll.u32 %v4249, 8
      %v4290 = vand.u32 %v4289, 65535
      %v4291 = vshrl.u32 %v4289, 16
      %v4292 = vand.u32 %v4288, 65535
      %v4293 = vshrl.u32 %v4288, 16
      %v4294 = vmul.u32 %v4290, %v4292
      %v4295 = vmul.u32 %v4290, %v4293
      %v4296 = vmul.u32 %v4291, %v4292
      %v4297 = vmul.u32 %v4291, %v4293
      %v4298 = vshll.u32 %v4295, 16
      %v4299 = vshrl.u32 %v4295, 16
      %v4300 = vshll.u32 %v4296, 16
      %v4301 = vshrl.u32 %v4296, 16
      %vm4302 = vc.u32 %v4294, %v4298
      %v4303 = vsel %vm4302, 1, 0
      %v4304 = vadd.s32 %v4294, %v4298
      %v4305 = vadd.s32 %v4297, %v4303
      %vm4306 = vc.u32 %v4304, %v4300
      %v4307 = vsel %vm4306, 1, 0
      %v4308 = vadd.s32 %v4304, %v4300
      %v4309 = vadd.s32 %v4305, %v4307
      %v4310 = vadd.s32 %v4309, %v4299
      %v4311 = vadd.s32 %v4310, %v4301
      %v4312 = vand.u32 %v4289, 65535
      %v4313 = vshrl.u32 %v4289, 16
      %v4314 = vand.u32 %v4284, 65535
      %v4315 = vshrl.u32 %v4284, 16
      %v4316 = vmul.u32 %v4312, %v4314
      %v4317 = vmul.u32 %v4312, %v4315
      %v4318 = vmul.u32 %v4313, %v4314
      %v4319 = vmul.u32 %v4313, %v4315
      %v4320 = vshll.u32 %v4317, 16
      %v4321 = vshrl.u32 %v4317, 16
      %v4322 = vshll.u32 %v4318, 16
      %v4323 = vshrl.u32 %v4318, 16
      %vm4324 = vc.u32 %v4316, %v4320
      %v4325 = vsel %vm4324, 1, 0
      %v4326 = vadd.s32 %v4316, %v4320
      %v4327 = vadd.s32 %v4319, %v4325
      %vm4328 = vc.u32 %v4326, %v4322
      %v4329 = vsel %vm4328, 1, 0
      %v4330 = vadd.s32 %v4326, %v4322
      %v4331 = vadd.s32 %v4327, %v4329
      %v4332 = vadd.s32 %v4331, %v4321
      %v4333 = vadd.s32 %v4332, %v4323
      %v4334 = vmul.u32 %v4289, %v4280
      %v4335 = vadd.s32 %v4311, %v4330
      %vm4336 = vc.u32 %v4311, %v4330
      %v4337 = vadd.s32 %v4333, 1
      %v4338 = vsel %vm4336, %v4337, %v4333
      %v4339 = vadd.s32 %v4334, %v4338
      %v4340 = vadd.s32 %v4339, 536870912
      %v4341 = vshrl.u32 %v4340, 30
      %v4342 = vshll.u32 %v4341, 30
      %v4343 = vsub.s32 %v4339, %v4342
      %vm4344 = vcmp.lt.s32.totalorder %v4343, 0
      %v4345 = vsub.s32 0, %v4343
      %v4346 = vsel %vm4344, %v4345, %v4343
      %v4347 = vclz %v4346
      %v4348 = vsub.s32 %v4347, 2
      %vm4349 = vcmp.gt.s32.totalorder 0, %v4348
      %v4350 = vsel %vm4349, 0, %v4348
      %v4351 = vsub.s32 32, %v4350
      %v4352 = vshll.u32 %v4343, %v4350
      %v4353 = vshrl.u32 %v4335, %v4351
      %v4354 = vor.u32 %v4352, %v4353
      %v4355 = vsub.s32 4294967266, %v4350
      %v4356 = vadd.s32 %v4355, 127
      %v4357 = vshll.u32 %v4356, 23
      %v4358 = vor.u32 4788187, %v4357
      %v4359 = vand.u32 2147483647, %v4358
      %v4361 = vcvt.s32.f32 %v4354
      %v4362 = vmul.f32 %v4361, %v4359
      %v4363 = vxor.u32 %v4362, 2147483648
      %v4364 = vsel %vm4243, %v4363, %v4362
      %v4365 = vsub.s32 4, %v4341
      %v4366 = vsel %vm4243, %v4365, %v4341
      %v4367 = vsel %vm4242, %v554, %v4364
      %v4368 = vsel %vm4242, 0, %v4366
      %v4369 = vmul.f32 %v4367, %v4367
      %v4370 = vmul.f32 %v4369, -0.001358992
      %v4371 = vadd.f32 %v4370, 0.041655596
      %v4372 = vmul.f32 %v4369, %v4371
      %v4373 = vadd.f32 %v4372, -0.4999988
      %v4374 = vmul.f32 %v4369, %v4373
      %v4375 = vadd.f32 1.0, %v4374
      %v4376 = vmul.f32 %v4367, %v4367
      %v4377 = vmul.f32 %v4376, -0.00019511016
      %v4378 = vadd.f32 %v4377, 0.008332121
      %v4379 = vmul.f32 %v4376, %v4378
      %v4380 = vadd.f32 %v4379, -0.16666654
      %v4381 = vmul.f32 %v4376, %v4380
      %v4382 = vadd.f32 %v4381, 1.0
      %v4383 = vmul.f32 %v4382, %v4367
      %vm4384 = vweird.f32 %v554
      %v4385 = vadd.s32 %v4368, 3
      %v4386 = vand.u32 %v4385, 3
      %vm4387 = vcmp.lt.s32.totalorder %v4386, 2
      %vm4388 = vcmp.eq.s32.totalorder %v4386, 0
      %v4389 = vxor.u32 %v4383, 2147483648
      %v4390 = vsel %vm4388, %v4375, %v4389
      %vm4391 = vcmp.eq.s32.totalorder %v4386, 2
      %v4392 = vxor.u32 %v4375, 2147483648
      %v4393 = vsel %vm4391, %v4392, %v4383
      %v4394 = vsel %vm4387, %v4390, %v4393
      %v4395 = vsel %vm4384, nan, %v4394
      %v4396 = vand.u32 2147483647, %v557
      %vm4397 = vcmp.le.f32.partialorder %v4396, 0.7853982
      %vm4398 = vcmp.lt.s32.totalorder %v557, 0
      %v4399 = vand.u32 %v557, 2139095040
      %v4400 = vshrl.u32 %v4399, 23
      %v4401 = vsub.s32 %v4400, 127
      %v4402 = vand.u32 2147483647, %v557
      %v4403 = vand.u32 %v4402, 8388607
      %v4404 = vor.u32 %v4403, 8388608
      %v4405 = vsub.s32 0, %v4404
      %v4406 = vadd.s32 %v4401, 1
      %vm4407 = vcmp.gt.s32.totalorder %v4406, 0
      %v4408 = vsel %vm4407, %v4406, 0
      %v4409 = vshrl.u32 %v4408, 5
      %v4410 = vand.u32 %v4408, 31
      %v4411 = vsub.s32 32, %v4410
      %v4412 = vshrl.u32 683565275, %v4411
      %v4413 = vshll.u32 683565275, %v4410
      %v4414 = vshrl.u32 2475754826, %v4411
      %v4415 = vor.u32 %v4413, %v4414
      %v4416 = vshll.u32 2475754826, %v4410
      %v4417 = vshrl.u32 2131351028, %v4411
      %v4418 = vor.u32 %v4416, %v4417
      %v4419 = vshll.u32 2131351028, %v4410
      %v4420 = vshrl.u32 2102212464, %v4411
      %v4421 = vor.u32 %v4419, %v4420
      %v4422 = vshll.u32 2102212464, %v4410
      %v4423 = vshrl.u32 920167782, %v4411
      %v4424 = vor.u32 %v4422, %v4423
      %v4425 = vshll.u32 920167782, %v4410
      %v4426 = vshrl.u32 1326507024, %v4411
      %v4427 = vor.u32 %v4425, %v4426
      %vm4428 = vcmp.lt.s32.totalorder %v4409, 1
      %vm4429 = vcmp.lt.s32.totalorder %v4409, 2
      %vm4430 = vcmp.lt.s32.totalorder %v4409, 3
      %vm4431 = vcmp.lt.s32.totalorder %v4409, 4
      %v4432 = vsel %vm4428, %v4412, %v4415
      %v4433 = vsel %vm4431, %v4421, 2102212464
      %v4434 = vsel %vm4430, %v4418, %v4433
      %v4435 = vsel %vm4429, %v4432, %v4434
      %v4436 = vsel %vm4428, %v4415, %v4418
      %v4437 = vsel %vm4431, %v4424, 920167782
      %v4438 = vsel %vm4430, %v4421, %v4437
      %v4439 = vsel %vm4429, %v4436, %v4438
      %v4440 = vsel %vm4428, %v4418, %v4421
      %v4441 = vsel %vm4431, %v4427, 1326507024
      %v4442 = vsel %vm4430, %v4424, %v4441
      %v4443 = vsel %vm4429, %v4440, %v4442
      %v4444 = vshll.u32 %v4404, 8
      %v4445 = vand.u32 %v4444, 65535
      %v4446 = vshrl.u32 %v4444, 16
      %v4447 = vand.u32 %v4443, 65535
      %v4448 = vshrl.u32 %v4443, 16
      %v4449 = vmul.u32 %v4445, %v4447
      %v4450 = vmul.u32 %v4445, %v4448
      %v4451 = vmul.u32 %v4446, %v4447
      %v4452 = vmul.u32 %v4446, %v4448
      %v4453 = vshll.u32 %v4450, 16
      %v4454 = vshrl.u32 %v4450, 16
      %v4455 = vshll.u32 %v4451, 16
      %v4456 = vshrl.u32 %v4451, 16
      %vm4457 = vc.u32 %v4449, %v4453
      %v4458 = vsel %vm4457, 1, 0
      %v4459 = vadd.s32 %v4449, %v4453
      %v4460 = vadd.s32 %v4452, %v4458
      %vm4461 = vc.u32 %v4459, %v4455
      %v4462 = vsel %vm4461, 1, 0
      %v4463 = vadd.s32 %v4459, %v4455
      %v4464 = vadd.s32 %v4460, %v4462
      %v4465 = vadd.s32 %v4464, %v4454
      %v4466 = vadd.s32 %v4465, %v4456
      %v4467 = vand.u32 %v4444, 65535
      %v4468 = vshrl.u32 %v4444, 16
      %v4469 = vand.u32 %v4439, 65535
      %v4470 = vshrl.u32 %v4439, 16
      %v4471 = vmul.u32 %v4467, %v4469
      %v4472 = vmul.u32 %v4467, %v4470
      %v4473 = vmul.u32 %v4468, %v4469
      %v4474 = vmul.u32 %v4468, %v4470
      %v4475 = vshll.u32 %v4472, 16
      %v4476 = vshrl.u32 %v4472, 16
      %v4477 = vshll.u32 %v4473, 16
      %v4478 = vshrl.u32 %v4473, 16
      %vm4479 = vc.u32 %v4471, %v4475
      %v4480 = vsel %vm4479, 1, 0
      %v4481 = vadd.s32 %v4471, %v4475
      %v4482 = vadd.s32 %v4474, %v4480
      %vm4483 = vc.u32 %v4481, %v4477
      %v4484 = vsel %vm4483, 1, 0
      %v4485 = vadd.s32 %v4481, %v4477
      %v4486 = vadd.s32 %v4482, %v4484
      %v4487 = vadd.s32 %v4486, %v4476
      %v4488 = vadd.s32 %v4487, %v4478
      %v4489 = vmul.u32 %v4444, %v4435
      %v4490 = vadd.s32 %v4466, %v4485
      %vm4491 = vc.u32 %v4466, %v4485
      %v4492 = vadd.s32 %v4488, 1
      %v4493 = vsel %vm4491, %v4492, %v4488
      %v4494 = vadd.s32 %v4489, %v4493
      %v4495 = vadd.s32 %v4494, 536870912
      %v4496 = vshrl.u32 %v4495, 30
      %v4497 = vshll.u32 %v4496, 30
      %v4498 = vsub.s32 %v4494, %v4497
      %vm4499 = vcmp.lt.s32.totalorder %v4498, 0
      %v4500 = vsub.s32 0, %v4498
      %v4501 = vsel %vm4499, %v4500, %v4498
      %v4502 = vclz %v4501
      %v4503 = vsub.s32 %v4502, 2
      %vm4504 = vcmp.gt.s32.totalorder 0, %v4503
      %v4505 = vsel %vm4504, 0, %v4503
      %v4506 = vsub.s32 32, %v4505
      %v4507 = vshll.u32 %v4498, %v4505
      %v4508 = vshrl.u32 %v4490, %v4506
      %v4509 = vor.u32 %v4507, %v4508
      %v4510 = vsub.s32 4294967266, %v4505
      %v4511 = vadd.s32 %v4510, 127
      %v4512 = vshll.u32 %v4511, 23
      %v4513 = vor.u32 4788187, %v4512
      %v4514 = vand.u32 2147483647, %v4513
      %v4516 = vcvt.s32.f32 %v4509
      %v4517 = vmul.f32 %v4516, %v4514
      %v4518 = vxor.u32 %v4517, 2147483648
      %v4519 = vsel %vm4398, %v4518, %v4517
      %v4520 = vsub.s32 4, %v4496
      %v4521 = vsel %vm4398, %v4520, %v4496
      %v4522 = vsel %vm4397, %v557, %v4519
      %v4523 = vsel %vm4397, 0, %v4521
      %v4524 = vmul.f32 %v4522, %v4522
      %v4525 = vmul.f32 %v4524, -0.001358992
      %v4526 = vadd.f32 %v4525, 0.041655596
      %v4527 = vmul.f32 %v4524, %v4526
      %v4528 = vadd.f32 %v4527, -0.4999988
      %v4529 = vmul.f32 %v4524, %v4528
      %v4530 = vadd.f32 1.0, %v4529
      %v4531 = vmul.f32 %v4522, %v4522
      %v4532 = vmul.f32 %v4531, -0.00019511016
      %v4533 = vadd.f32 %v4532, 0.008332121
      %v4534 = vmul.f32 %v4531, %v4533
      %v4535 = vadd.f32 %v4534, -0.16666654
      %v4536 = vmul.f32 %v4531, %v4535
      %v4537 = vadd.f32 %v4536, 1.0
      %v4538 = vmul.f32 %v4537, %v4522
      %vm4539 = vweird.f32 %v557
      %v4540 = vadd.s32 %v4523, 3
      %v4541 = vand.u32 %v4540, 3
      %vm4542 = vcmp.lt.s32.totalorder %v4541, 2
      %vm4543 = vcmp.eq.s32.totalorder %v4541, 0
      %v4544 = vxor.u32 %v4538, 2147483648
      %v4545 = vsel %vm4543, %v4530, %v4544
      %vm4546 = vcmp.eq.s32.totalorder %v4541, 2
      %v4547 = vxor.u32 %v4530, 2147483648
      %v4548 = vsel %vm4546, %v4547, %v4538
      %v4549 = vsel %vm4542, %v4545, %v4548
      %v4550 = vsel %vm4539, nan, %v4549
      %v4551 = vand.u32 2147483647, %v560
      %vm4552 = vcmp.le.f32.partialorder %v4551, 0.7853982
      %vm4553 = vcmp.lt.s32.totalorder %v560, 0
      %v4554 = vand.u32 %v560, 2139095040
      %v4555 = vshrl.u32 %v4554, 23
      %v4556 = vsub.s32 %v4555, 127
      %v4557 = vand.u32 2147483647, %v560
      %v4558 = vand.u32 %v4557, 8388607
      %v4559 = vor.u32 %v4558, 8388608
      %v4560 = vsub.s32 0, %v4559
      %v4561 = vadd.s32 %v4556, 1
      %vm4562 = vcmp.gt.s32.totalorder %v4561, 0
      %v4563 = vsel %vm4562, %v4561, 0
      %v4564 = vshrl.u32 %v4563, 5
      %v4565 = vand.u32 %v4563, 31
      %v4566 = vsub.s32 32, %v4565
      %v4567 = vshrl.u32 683565275, %v4566
      %v4568 = vshll.u32 683565275, %v4565
      %v4569 = vshrl.u32 2475754826, %v4566
      %v4570 = vor.u32 %v4568, %v4569
      %v4571 = vshll.u32 2475754826, %v4565
      %v4572 = vshrl.u32 2131351028, %v4566
      %v4573 = vor.u32 %v4571, %v4572
      %v4574 = vshll.u32 2131351028, %v4565
      %v4575 = vshrl.u32 2102212464, %v4566
      %v4576 = vor.u32 %v4574, %v4575
      %v4577 = vshll.u32 2102212464, %v4565
      %v4578 = vshrl.u32 920167782, %v4566
      %v4579 = vor.u32 %v4577, %v4578
      %v4580 = vshll.u32 920167782, %v4565
      %v4581 = vshrl.u32 1326507024, %v4566
      %v4582 = vor.u32 %v4580, %v4581
      %vm4583 = vcmp.lt.s32.totalorder %v4564, 1
      %vm4584 = vcmp.lt.s32.totalorder %v4564, 2
      %vm4585 = vcmp.lt.s32.totalorder %v4564, 3
      %vm4586 = vcmp.lt.s32.totalorder %v4564, 4
      %v4587 = vsel %vm4583, %v4567, %v4570
      %v4588 = vsel %vm4586, %v4576, 2102212464
      %v4589 = vsel %vm4585, %v4573, %v4588
      %v4590 = vsel %vm4584, %v4587, %v4589
      %v4591 = vsel %vm4583, %v4570, %v4573
      %v4592 = vsel %vm4586, %v4579, 920167782
      %v4593 = vsel %vm4585, %v4576, %v4592
      %v4594 = vsel %vm4584, %v4591, %v4593
      %v4595 = vsel %vm4583, %v4573, %v4576
      %v4596 = vsel %vm4586, %v4582, 1326507024
      %v4597 = vsel %vm4585, %v4579, %v4596
      %v4598 = vsel %vm4584, %v4595, %v4597
      %v4599 = vshll.u32 %v4559, 8
      %v4600 = vand.u32 %v4599, 65535
      %v4601 = vshrl.u32 %v4599, 16
      %v4602 = vand.u32 %v4598, 65535
      %v4603 = vshrl.u32 %v4598, 16
      %v4604 = vmul.u32 %v4600, %v4602
      %v4605 = vmul.u32 %v4600, %v4603
      %v4606 = vmul.u32 %v4601, %v4602
      %v4607 = vmul.u32 %v4601, %v4603
      %v4608 = vshll.u32 %v4605, 16
      %v4609 = vshrl.u32 %v4605, 16
      %v4610 = vshll.u32 %v4606, 16
      %v4611 = vshrl.u32 %v4606, 16
      %vm4612 = vc.u32 %v4604, %v4608
      %v4613 = vsel %vm4612, 1, 0
      %v4614 = vadd.s32 %v4604, %v4608
      %v4615 = vadd.s32 %v4607, %v4613
      %vm4616 = vc.u32 %v4614, %v4610
      %v4617 = vsel %vm4616, 1, 0
      %v4618 = vadd.s32 %v4614, %v4610
      %v4619 = vadd.s32 %v4615, %v4617
      %v4620 = vadd.s32 %v4619, %v4609
      %v4621 = vadd.s32 %v4620, %v4611
      %v4622 = vand.u32 %v4599, 65535
      %v4623 = vshrl.u32 %v4599, 16
      %v4624 = vand.u32 %v4594, 65535
      %v4625 = vshrl.u32 %v4594, 16
      %v4626 = vmul.u32 %v4622, %v4624
      %v4627 = vmul.u32 %v4622, %v4625
      %v4628 = vmul.u32 %v4623, %v4624
      %v4629 = vmul.u32 %v4623, %v4625
      %v4630 = vshll.u32 %v4627, 16
      %v4631 = vshrl.u32 %v4627, 16
      %v4632 = vshll.u32 %v4628, 16
      %v4633 = vshrl.u32 %v4628, 16
      %vm4634 = vc.u32 %v4626, %v4630
      %v4635 = vsel %vm4634, 1, 0
      %v4636 = vadd.s32 %v4626, %v4630
      %v4637 = vadd.s32 %v4629, %v4635
      %vm4638 = vc.u32 %v4636, %v4632
      %v4639 = vsel %vm4638, 1, 0
      %v4640 = vadd.s32 %v4636, %v4632
      %v4641 = vadd.s32 %v4637, %v4639
      %v4642 = vadd.s32 %v4641, %v4631
      %v4643 = vadd.s32 %v4642, %v4633
      %v4644 = vmul.u32 %v4599, %v4590
      %v4645 = vadd.s32 %v4621, %v4640
      %vm4646 = vc.u32 %v4621, %v4640
      %v4647 = vadd.s32 %v4643, 1
      %v4648 = vsel %vm4646, %v4647, %v4643
      %v4649 = vadd.s32 %v4644, %v4648
      %v4650 = vadd.s32 %v4649, 536870912
      %v4651 = vshrl.u32 %v4650, 30
      %v4652 = vshll.u32 %v4651, 30
      %v4653 = vsub.s32 %v4649, %v4652
      %vm4654 = vcmp.lt.s32.totalorder %v4653, 0
      %v4655 = vsub.s32 0, %v4653
      %v4656 = vsel %vm4654, %v4655, %v4653
      %v4657 = vclz %v4656
      %v4658 = vsub.s32 %v4657, 2
      %vm4659 = vcmp.gt.s32.totalorder 0, %v4658
      %v4660 = vsel %vm4659, 0, %v4658
      %v4661 = vsub.s32 32, %v4660
      %v4662 = vshll.u32 %v4653, %v4660
      %v4663 = vshrl.u32 %v4645, %v4661
      %v4664 = vor.u32 %v4662, %v4663
      %v4665 = vsub.s32 4294967266, %v4660
      %v4666 = vadd.s32 %v4665, 127
      %v4667 = vshll.u32 %v4666, 23
      %v4668 = vor.u32 4788187, %v4667
      %v4669 = vand.u32 2147483647, %v4668
      %v4671 = vcvt.s32.f32 %v4664
      %v4672 = vmul.f32 %v4671, %v4669
      %v4673 = vxor.u32 %v4672, 2147483648
      %v4674 = vsel %vm4553, %v4673, %v4672
      %v4675 = vsub.s32 4, %v4651
      %v4676 = vsel %vm4553, %v4675, %v4651
      %v4677 = vsel %vm4552, %v560, %v4674
      %v4678 = vsel %vm4552, 0, %v4676
      %v4679 = vmul.f32 %v4677, %v4677
      %v4680 = vmul.f32 %v4679, -0.001358992
      %v4681 = vadd.f32 %v4680, 0.041655596
      %v4682 = vmul.f32 %v4679, %v4681
      %v4683 = vadd.f32 %v4682, -0.4999988
      %v4684 = vmul.f32 %v4679, %v4683
      %v4685 = vadd.f32 1.0, %v4684
      %v4686 = vmul.f32 %v4677, %v4677
      %v4687 = vmul.f32 %v4686, -0.00019511016
      %v4688 = vadd.f32 %v4687, 0.008332121
      %v4689 = vmul.f32 %v4686, %v4688
      %v4690 = vadd.f32 %v4689, -0.16666654
      %v4691 = vmul.f32 %v4686, %v4690
      %v4692 = vadd.f32 %v4691, 1.0
      %v4693 = vmul.f32 %v4692, %v4677
      %vm4694 = vweird.f32 %v560
      %v4695 = vadd.s32 %v4678, 3
      %v4696 = vand.u32 %v4695, 3
      %vm4697 = vcmp.lt.s32.totalorder %v4696, 2
      %vm4698 = vcmp.eq.s32.totalorder %v4696, 0
      %v4699 = vxor.u32 %v4693, 2147483648
      %v4700 = vsel %vm4698, %v4685, %v4699
      %vm4701 = vcmp.eq.s32.totalorder %v4696, 2
      %v4702 = vxor.u32 %v4685, 2147483648
      %v4703 = vsel %vm4701, %v4702, %v4693
      %v4704 = vsel %vm4697, %v4700, %v4703
      %v4705 = vsel %vm4694, nan, %v4704
      %v4706 = vand.u32 2147483647, %v563
      %vm4707 = vcmp.le.f32.partialorder %v4706, 0.7853982
      %vm4708 = vcmp.lt.s32.totalorder %v563, 0
      %v4709 = vand.u32 %v563, 2139095040
      %v4710 = vshrl.u32 %v4709, 23
      %v4711 = vsub.s32 %v4710, 127
      %v4712 = vand.u32 2147483647, %v563
      %v4713 = vand.u32 %v4712, 8388607
      %v4714 = vor.u32 %v4713, 8388608
      %v4715 = vsub.s32 0, %v4714
      %v4716 = vadd.s32 %v4711, 1
      %vm4717 = vcmp.gt.s32.totalorder %v4716, 0
      %v4718 = vsel %vm4717, %v4716, 0
      %v4719 = vshrl.u32 %v4718, 5
      %v4720 = vand.u32 %v4718, 31
      %v4721 = vsub.s32 32, %v4720
      %v4722 = vshrl.u32 683565275, %v4721
      %v4723 = vshll.u32 683565275, %v4720
      %v4724 = vshrl.u32 2475754826, %v4721
      %v4725 = vor.u32 %v4723, %v4724
      %v4726 = vshll.u32 2475754826, %v4720
      %v4727 = vshrl.u32 2131351028, %v4721
      %v4728 = vor.u32 %v4726, %v4727
      %v4729 = vshll.u32 2131351028, %v4720
      %v4730 = vshrl.u32 2102212464, %v4721
      %v4731 = vor.u32 %v4729, %v4730
      %v4732 = vshll.u32 2102212464, %v4720
      %v4733 = vshrl.u32 920167782, %v4721
      %v4734 = vor.u32 %v4732, %v4733
      %v4735 = vshll.u32 920167782, %v4720
      %v4736 = vshrl.u32 1326507024, %v4721
      %v4737 = vor.u32 %v4735, %v4736
      %vm4738 = vcmp.lt.s32.totalorder %v4719, 1
      %vm4739 = vcmp.lt.s32.totalorder %v4719, 2
      %vm4740 = vcmp.lt.s32.totalorder %v4719, 3
      %vm4741 = vcmp.lt.s32.totalorder %v4719, 4
      %v4742 = vsel %vm4738, %v4722, %v4725
      %v4743 = vsel %vm4741, %v4731, 2102212464
      %v4744 = vsel %vm4740, %v4728, %v4743
      %v4745 = vsel %vm4739, %v4742, %v4744
      %v4746 = vsel %vm4738, %v4725, %v4728
      %v4747 = vsel %vm4741, %v4734, 920167782
      %v4748 = vsel %vm4740, %v4731, %v4747
      %v4749 = vsel %vm4739, %v4746, %v4748
      %v4750 = vsel %vm4738, %v4728, %v4731
      %v4751 = vsel %vm4741, %v4737, 1326507024
      %v4752 = vsel %vm4740, %v4734, %v4751
      %v4753 = vsel %vm4739, %v4750, %v4752
      %v4754 = vshll.u32 %v4714, 8
      %v4755 = vand.u32 %v4754, 65535
      %v4756 = vshrl.u32 %v4754, 16
      %v4757 = vand.u32 %v4753, 65535
      %v4758 = vshrl.u32 %v4753, 16
      %v4759 = vmul.u32 %v4755, %v4757
      %v4760 = vmul.u32 %v4755, %v4758
      %v4761 = vmul.u32 %v4756, %v4757
      %v4762 = vmul.u32 %v4756, %v4758
      %v4763 = vshll.u32 %v4760, 16
      %v4764 = vshrl.u32 %v4760, 16
      %v4765 = vshll.u32 %v4761, 16
      %v4766 = vshrl.u32 %v4761, 16
      %vm4767 = vc.u32 %v4759, %v4763
      %v4768 = vsel %vm4767, 1, 0
      %v4769 = vadd.s32 %v4759, %v4763
      %v4770 = vadd.s32 %v4762, %v4768
      %vm4771 = vc.u32 %v4769, %v4765
      %v4772 = vsel %vm4771, 1, 0
      %v4773 = vadd.s32 %v4769, %v4765
      %v4774 = vadd.s32 %v4770, %v4772
      %v4775 = vadd.s32 %v4774, %v4764
      %v4776 = vadd.s32 %v4775, %v4766
      %v4777 = vand.u32 %v4754, 65535
      %v4778 = vshrl.u32 %v4754, 16
      %v4779 = vand.u32 %v4749, 65535
      %v4780 = vshrl.u32 %v4749, 16
      %v4781 = vmul.u32 %v4777, %v4779
      %v4782 = vmul.u32 %v4777, %v4780
      %v4783 = vmul.u32 %v4778, %v4779
      %v4784 = vmul.u32 %v4778, %v4780
      %v4785 = vshll.u32 %v4782, 16
      %v4786 = vshrl.u32 %v4782, 16
      %v4787 = vshll.u32 %v4783, 16
      %v4788 = vshrl.u32 %v4783, 16
      %vm4789 = vc.u32 %v4781, %v4785
      %v4790 = vsel %vm4789, 1, 0
      %v4791 = vadd.s32 %v4781, %v4785
      %v4792 = vadd.s32 %v4784, %v4790
      %vm4793 = vc.u32 %v4791, %v4787
      %v4794 = vsel %vm4793, 1, 0
      %v4795 = vadd.s32 %v4791, %v4787
      %v4796 = vadd.s32 %v4792, %v4794
      %v4797 = vadd.s32 %v4796, %v4786
      %v4798 = vadd.s32 %v4797, %v4788
      %v4799 = vmul.u32 %v4754, %v4745
      %v4800 = vadd.s32 %v4776, %v4795
      %vm4801 = vc.u32 %v4776, %v4795
      %v4802 = vadd.s32 %v4798, 1
      %v4803 = vsel %vm4801, %v4802, %v4798
      %v4804 = vadd.s32 %v4799, %v4803
      %v4805 = vadd.s32 %v4804, 536870912
      %v4806 = vshrl.u32 %v4805, 30
      %v4807 = vshll.u32 %v4806, 30
      %v4808 = vsub.s32 %v4804, %v4807
      %vm4809 = vcmp.lt.s32.totalorder %v4808, 0
      %v4810 = vsub.s32 0, %v4808
      %v4811 = vsel %vm4809, %v4810, %v4808
      %v4812 = vclz %v4811
      %v4813 = vsub.s32 %v4812, 2
      %vm4814 = vcmp.gt.s32.totalorder 0, %v4813
      %v4815 = vsel %vm4814, 0, %v4813
      %v4816 = vsub.s32 32, %v4815
      %v4817 = vshll.u32 %v4808, %v4815
      %v4818 = vshrl.u32 %v4800, %v4816
      %v4819 = vor.u32 %v4817, %v4818
      %v4820 = vsub.s32 4294967266, %v4815
      %v4821 = vadd.s32 %v4820, 127
      %v4822 = vshll.u32 %v4821, 23
      %v4823 = vor.u32 4788187, %v4822
      %v4824 = vand.u32 2147483647, %v4823
      %v4826 = vcvt.s32.f32 %v4819
      %v4827 = vmul.f32 %v4826, %v4824
      %v4828 = vxor.u32 %v4827, 2147483648
      %v4829 = vsel %vm4708, %v4828, %v4827
      %v4830 = vsub.s32 4, %v4806
      %v4831 = vsel %vm4708, %v4830, %v4806
      %v4832 = vsel %vm4707, %v563, %v4829
      %v4833 = vsel %vm4707, 0, %v4831
      %v4834 = vmul.f32 %v4832, %v4832
      %v4835 = vmul.f32 %v4834, -0.001358992
      %v4836 = vadd.f32 %v4835, 0.041655596
      %v4837 = vmul.f32 %v4834, %v4836
      %v4838 = vadd.f32 %v4837, -0.4999988
      %v4839 = vmul.f32 %v4834, %v4838
      %v4840 = vadd.f32 1.0, %v4839
      %v4841 = vmul.f32 %v4832, %v4832
      %v4842 = vmul.f32 %v4841, -0.00019511016
      %v4843 = vadd.f32 %v4842, 0.008332121
      %v4844 = vmul.f32 %v4841, %v4843
      %v4845 = vadd.f32 %v4844, -0.16666654
      %v4846 = vmul.f32 %v4841, %v4845
      %v4847 = vadd.f32 %v4846, 1.0
      %v4848 = vmul.f32 %v4847, %v4832
      %vm4849 = vweird.f32 %v563
      %v4850 = vadd.s32 %v4833, 3
      %v4851 = vand.u32 %v4850, 3
      %vm4852 = vcmp.lt.s32.totalorder %v4851, 2
      %vm4853 = vcmp.eq.s32.totalorder %v4851, 0
      %v4854 = vxor.u32 %v4848, 2147483648
      %v4855 = vsel %vm4853, %v4840, %v4854
      %vm4856 = vcmp.eq.s32.totalorder %v4851, 2
      %v4857 = vxor.u32 %v4840, 2147483648
      %v4858 = vsel %vm4856, %v4857, %v4848
      %v4859 = vsel %vm4852, %v4855, %v4858
      %v4860 = vsel %vm4849, nan, %v4859
      %v4861 = vand.u32 2147483647, %v566
      %vm4862 = vcmp.le.f32.partialorder %v4861, 0.7853982
      %vm4863 = vcmp.lt.s32.totalorder %v566, 0
      %v4864 = vand.u32 %v566, 2139095040
      %v4865 = vshrl.u32 %v4864, 23
      %v4866 = vsub.s32 %v4865, 127
      %v4867 = vand.u32 2147483647, %v566
      %v4868 = vand.u32 %v4867, 8388607
      %v4869 = vor.u32 %v4868, 8388608
      %v4870 = vsub.s32 0, %v4869
      %v4871 = vadd.s32 %v4866, 1
      %vm4872 = vcmp.gt.s32.totalorder %v4871, 0
      %v4873 = vsel %vm4872, %v4871, 0
      %v4874 = vshrl.u32 %v4873, 5
      %v4875 = vand.u32 %v4873, 31
      %v4876 = vsub.s32 32, %v4875
      %v4877 = vshrl.u32 683565275, %v4876
      %v4878 = vshll.u32 683565275, %v4875
      %v4879 = vshrl.u32 2475754826, %v4876
      %v4880 = vor.u32 %v4878, %v4879
      %v4881 = vshll.u32 2475754826, %v4875
      %v4882 = vshrl.u32 2131351028, %v4876
      %v4883 = vor.u32 %v4881, %v4882
      %v4884 = vshll.u32 2131351028, %v4875
      %v4885 = vshrl.u32 2102212464, %v4876
      %v4886 = vor.u32 %v4884, %v4885
      %v4887 = vshll.u32 2102212464, %v4875
      %v4888 = vshrl.u32 920167782, %v4876
      %v4889 = vor.u32 %v4887, %v4888
      %v4890 = vshll.u32 920167782, %v4875
      %v4891 = vshrl.u32 1326507024, %v4876
      %v4892 = vor.u32 %v4890, %v4891
      %vm4893 = vcmp.lt.s32.totalorder %v4874, 1
      %vm4894 = vcmp.lt.s32.totalorder %v4874, 2
      %vm4895 = vcmp.lt.s32.totalorder %v4874, 3
      %vm4896 = vcmp.lt.s32.totalorder %v4874, 4
      %v4897 = vsel %vm4893, %v4877, %v4880
      %v4898 = vsel %vm4896, %v4886, 2102212464
      %v4899 = vsel %vm4895, %v4883, %v4898
      %v4900 = vsel %vm4894, %v4897, %v4899
      %v4901 = vsel %vm4893, %v4880, %v4883
      %v4902 = vsel %vm4896, %v4889, 920167782
      %v4903 = vsel %vm4895, %v4886, %v4902
      %v4904 = vsel %vm4894, %v4901, %v4903
      %v4905 = vsel %vm4893, %v4883, %v4886
      %v4906 = vsel %vm4896, %v4892, 1326507024
      %v4907 = vsel %vm4895, %v4889, %v4906
      %v4908 = vsel %vm4894, %v4905, %v4907
      %v4909 = vshll.u32 %v4869, 8
      %v4910 = vand.u32 %v4909, 65535
      %v4911 = vshrl.u32 %v4909, 16
      %v4912 = vand.u32 %v4908, 65535
      %v4913 = vshrl.u32 %v4908, 16
      %v4914 = vmul.u32 %v4910, %v4912
      %v4915 = vmul.u32 %v4910, %v4913
      %v4916 = vmul.u32 %v4911, %v4912
      %v4917 = vmul.u32 %v4911, %v4913
      %v4918 = vshll.u32 %v4915, 16
      %v4919 = vshrl.u32 %v4915, 16
      %v4920 = vshll.u32 %v4916, 16
      %v4921 = vshrl.u32 %v4916, 16
      %vm4922 = vc.u32 %v4914, %v4918
      %v4923 = vsel %vm4922, 1, 0
      %v4924 = vadd.s32 %v4914, %v4918
      %v4925 = vadd.s32 %v4917, %v4923
      %vm4926 = vc.u32 %v4924, %v4920
      %v4927 = vsel %vm4926, 1, 0
      %v4928 = vadd.s32 %v4924, %v4920
      %v4929 = vadd.s32 %v4925, %v4927
      %v4930 = vadd.s32 %v4929, %v4919
      %v4931 = vadd.s32 %v4930, %v4921
      %v4932 = vand.u32 %v4909, 65535
      %v4933 = vshrl.u32 %v4909, 16
      %v4934 = vand.u32 %v4904, 65535
      %v4935 = vshrl.u32 %v4904, 16
      %v4936 = vmul.u32 %v4932, %v4934
      %v4937 = vmul.u32 %v4932, %v4935
      %v4938 = vmul.u32 %v4933, %v4934
      %v4939 = vmul.u32 %v4933, %v4935
      %v4940 = vshll.u32 %v4937, 16
      %v4941 = vshrl.u32 %v4937, 16
      %v4942 = vshll.u32 %v4938, 16
      %v4943 = vshrl.u32 %v4938, 16
      %vm4944 = vc.u32 %v4936, %v4940
      %v4945 = vsel %vm4944, 1, 0
      %v4946 = vadd.s32 %v4936, %v4940
      %v4947 = vadd.s32 %v4939, %v4945
      %vm4948 = vc.u32 %v4946, %v4942
      %v4949 = vsel %vm4948, 1, 0
      %v4950 = vadd.s32 %v4946, %v4942
      %v4951 = vadd.s32 %v4947, %v4949
      %v4952 = vadd.s32 %v4951, %v4941
      %v4953 = vadd.s32 %v4952, %v4943
      %v4954 = vmul.u32 %v4909, %v4900
      %v4955 = vadd.s32 %v4931, %v4950
      %vm4956 = vc.u32 %v4931, %v4950
      %v4957 = vadd.s32 %v4953, 1
      %v4958 = vsel %vm4956, %v4957, %v4953
      %v4959 = vadd.s32 %v4954, %v4958
      %v4960 = vadd.s32 %v4959, 536870912
      %v4961 = vshrl.u32 %v4960, 30
      %v4962 = vshll.u32 %v4961, 30
      %v4963 = vsub.s32 %v4959, %v4962
      %vm4964 = vcmp.lt.s32.totalorder %v4963, 0
      %v4965 = vsub.s32 0, %v4963
      %v4966 = vsel %vm4964, %v4965, %v4963
      %v4967 = vclz %v4966
      %v4968 = vsub.s32 %v4967, 2
      %vm4969 = vcmp.gt.s32.totalorder 0, %v4968
      %v4970 = vsel %vm4969, 0, %v4968
      %v4971 = vsub.s32 32, %v4970
      %v4972 = vshll.u32 %v4963, %v4970
      %v4973 = vshrl.u32 %v4955, %v4971
      %v4974 = vor.u32 %v4972, %v4973
      %v4975 = vsub.s32 4294967266, %v4970
      %v4976 = vadd.s32 %v4975, 127
      %v4977 = vshll.u32 %v4976, 23
      %v4978 = vor.u32 4788187, %v4977
      %v4979 = vand.u32 2147483647, %v4978
      %v4981 = vcvt.s32.f32 %v4974
      %v4982 = vmul.f32 %v4981, %v4979
      %v4983 = vxor.u32 %v4982, 2147483648
      %v4984 = vsel %vm4863, %v4983, %v4982
      %v4985 = vsub.s32 4, %v4961
      %v4986 = vsel %vm4863, %v4985, %v4961
      %v4987 = vsel %vm4862, %v566, %v4984
      %v4988 = vsel %vm4862, 0, %v4986
      %v4989 = vmul.f32 %v4987, %v4987
      %v4990 = vmul.f32 %v4989, -0.001358992
      %v4991 = vadd.f32 %v4990, 0.041655596
      %v4992 = vmul.f32 %v4989, %v4991
      %v4993 = vadd.f32 %v4992, -0.4999988
      %v4994 = vmul.f32 %v4989, %v4993
      %v4995 = vadd.f32 1.0, %v4994
      %v4996 = vmul.f32 %v4987, %v4987
      %v4997 = vmul.f32 %v4996, -0.00019511016
      %v4998 = vadd.f32 %v4997, 0.008332121
      %v4999 = vmul.f32 %v4996, %v4998
      %v5000 = vadd.f32 %v4999, -0.16666654
      %v5001 = vmul.f32 %v4996, %v5000
      %v5002 = vadd.f32 %v5001, 1.0
      %v5003 = vmul.f32 %v5002, %v4987
      %vm5004 = vweird.f32 %v566
      %v5005 = vadd.s32 %v4988, 3
      %v5006 = vand.u32 %v5005, 3
      %vm5007 = vcmp.lt.s32.totalorder %v5006, 2
      %vm5008 = vcmp.eq.s32.totalorder %v5006, 0
      %v5009 = vxor.u32 %v5003, 2147483648
      %v5010 = vsel %vm5008, %v4995, %v5009
      %vm5011 = vcmp.eq.s32.totalorder %v5006, 2
      %v5012 = vxor.u32 %v4995, 2147483648
      %v5013 = vsel %vm5011, %v5012, %v5003
      %v5014 = vsel %vm5007, %v5010, %v5013
      %v5015 = vsel %vm5004, nan, %v5014
      %v5016 = vand.u32 2147483647, %v569
      %vm5017 = vcmp.le.f32.partialorder %v5016, 0.7853982
      %vm5018 = vcmp.lt.s32.totalorder %v569, 0
      %v5019 = vand.u32 %v569, 2139095040
      %v5020 = vshrl.u32 %v5019, 23
      %v5021 = vsub.s32 %v5020, 127
      %v5022 = vand.u32 2147483647, %v569
      %v5023 = vand.u32 %v5022, 8388607
      %v5024 = vor.u32 %v5023, 8388608
      %v5025 = vsub.s32 0, %v5024
      %v5026 = vadd.s32 %v5021, 1
      %vm5027 = vcmp.gt.s32.totalorder %v5026, 0
      %v5028 = vsel %vm5027, %v5026, 0
      %v5029 = vshrl.u32 %v5028, 5
      %v5030 = vand.u32 %v5028, 31
      %v5031 = vsub.s32 32, %v5030
      %v5032 = vshrl.u32 683565275, %v5031
      %v5033 = vshll.u32 683565275, %v5030
      %v5034 = vshrl.u32 2475754826, %v5031
      %v5035 = vor.u32 %v5033, %v5034
      %v5036 = vshll.u32 2475754826, %v5030
      %v5037 = vshrl.u32 2131351028, %v5031
      %v5038 = vor.u32 %v5036, %v5037
      %v5039 = vshll.u32 2131351028, %v5030
      %v5040 = vshrl.u32 2102212464, %v5031
      %v5041 = vor.u32 %v5039, %v5040
      %v5042 = vshll.u32 2102212464, %v5030
      %v5043 = vshrl.u32 920167782, %v5031
      %v5044 = vor.u32 %v5042, %v5043
      %v5045 = vshll.u32 920167782, %v5030
      %v5046 = vshrl.u32 1326507024, %v5031
      %v5047 = vor.u32 %v5045, %v5046
      %vm5048 = vcmp.lt.s32.totalorder %v5029, 1
      %vm5049 = vcmp.lt.s32.totalorder %v5029, 2
      %vm5050 = vcmp.lt.s32.totalorder %v5029, 3
      %vm5051 = vcmp.lt.s32.totalorder %v5029, 4
      %v5052 = vsel %vm5048, %v5032, %v5035
      %v5053 = vsel %vm5051, %v5041, 2102212464
      %v5054 = vsel %vm5050, %v5038, %v5053
      %v5055 = vsel %vm5049, %v5052, %v5054
      %v5056 = vsel %vm5048, %v5035, %v5038
      %v5057 = vsel %vm5051, %v5044, 920167782
      %v5058 = vsel %vm5050, %v5041, %v5057
      %v5059 = vsel %vm5049, %v5056, %v5058
      %v5060 = vsel %vm5048, %v5038, %v5041
      %v5061 = vsel %vm5051, %v5047, 1326507024
      %v5062 = vsel %vm5050, %v5044, %v5061
      %v5063 = vsel %vm5049, %v5060, %v5062
      %v5064 = vshll.u32 %v5024, 8
      %v5065 = vand.u32 %v5064, 65535
      %v5066 = vshrl.u32 %v5064, 16
      %v5067 = vand.u32 %v5063, 65535
      %v5068 = vshrl.u32 %v5063, 16
      %v5069 = vmul.u32 %v5065, %v5067
      %v5070 = vmul.u32 %v5065, %v5068
      %v5071 = vmul.u32 %v5066, %v5067
      %v5072 = vmul.u32 %v5066, %v5068
      %v5073 = vshll.u32 %v5070, 16
      %v5074 = vshrl.u32 %v5070, 16
      %v5075 = vshll.u32 %v5071, 16
      %v5076 = vshrl.u32 %v5071, 16
      %vm5077 = vc.u32 %v5069, %v5073
      %v5078 = vsel %vm5077, 1, 0
      %v5079 = vadd.s32 %v5069, %v5073
      %v5080 = vadd.s32 %v5072, %v5078
      %vm5081 = vc.u32 %v5079, %v5075
      %v5082 = vsel %vm5081, 1, 0
      %v5083 = vadd.s32 %v5079, %v5075
      %v5084 = vadd.s32 %v5080, %v5082
      %v5085 = vadd.s32 %v5084, %v5074
      %v5086 = vadd.s32 %v5085, %v5076
      %v5087 = vand.u32 %v5064, 65535
      %v5088 = vshrl.u32 %v5064, 16
      %v5089 = vand.u32 %v5059, 65535
      %v5090 = vshrl.u32 %v5059, 16
      %v5091 = vmul.u32 %v5087, %v5089
      %v5092 = vmul.u32 %v5087, %v5090
      %v5093 = vmul.u32 %v5088, %v5089
      %v5094 = vmul.u32 %v5088, %v5090
      %v5095 = vshll.u32 %v5092, 16
      %v5096 = vshrl.u32 %v5092, 16
      %v5097 = vshll.u32 %v5093, 16
      %v5098 = vshrl.u32 %v5093, 16
      %vm5099 = vc.u32 %v5091, %v5095
      %v5100 = vsel %vm5099, 1, 0
      %v5101 = vadd.s32 %v5091, %v5095
      %v5102 = vadd.s32 %v5094, %v5100
      %vm5103 = vc.u32 %v5101, %v5097
      %v5104 = vsel %vm5103, 1, 0
      %v5105 = vadd.s32 %v5101, %v5097
      %v5106 = vadd.s32 %v5102, %v5104
      %v5107 = vadd.s32 %v5106, %v5096
      %v5108 = vadd.s32 %v5107, %v5098
      %v5109 = vmul.u32 %v5064, %v5055
      %v5110 = vadd.s32 %v5086, %v5105
      %vm5111 = vc.u32 %v5086, %v5105
      %v5112 = vadd.s32 %v5108, 1
      %v5113 = vsel %vm5111, %v5112, %v5108
      %v5114 = vadd.s32 %v5109, %v5113
      %v5115 = vadd.s32 %v5114, 536870912
      %v5116 = vshrl.u32 %v5115, 30
      %v5117 = vshll.u32 %v5116, 30
      %v5118 = vsub.s32 %v5114, %v5117
      %vm5119 = vcmp.lt.s32.totalorder %v5118, 0
      %v5120 = vsub.s32 0, %v5118
      %v5121 = vsel %vm5119, %v5120, %v5118
      %v5122 = vclz %v5121
      %v5123 = vsub.s32 %v5122, 2
      %vm5124 = vcmp.gt.s32.totalorder 0, %v5123
      %v5125 = vsel %vm5124, 0, %v5123
      %v5126 = vsub.s32 32, %v5125
      %v5127 = vshll.u32 %v5118, %v5125
      %v5128 = vshrl.u32 %v5110, %v5126
      %v5129 = vor.u32 %v5127, %v5128
      %v5130 = vsub.s32 4294967266, %v5125
      %v5131 = vadd.s32 %v5130, 127
      %v5132 = vshll.u32 %v5131, 23
      %v5133 = vor.u32 4788187, %v5132
      %v5134 = vand.u32 2147483647, %v5133
      %v5136 = vcvt.s32.f32 %v5129
      %v5137 = vmul.f32 %v5136, %v5134
      %v5138 = vxor.u32 %v5137, 2147483648
      %v5139 = vsel %vm5018, %v5138, %v5137
      %v5140 = vsub.s32 4, %v5116
      %v5141 = vsel %vm5018, %v5140, %v5116
      %v5142 = vsel %vm5017, %v569, %v5139
      %v5143 = vsel %vm5017, 0, %v5141
      %v5144 = vmul.f32 %v5142, %v5142
      %v5145 = vmul.f32 %v5144, -0.001358992
      %v5146 = vadd.f32 %v5145, 0.041655596
      %v5147 = vmul.f32 %v5144, %v5146
      %v5148 = vadd.f32 %v5147, -0.4999988
      %v5149 = vmul.f32 %v5144, %v5148
      %v5150 = vadd.f32 1.0, %v5149
      %v5151 = vmul.f32 %v5142, %v5142
      %v5152 = vmul.f32 %v5151, -0.00019511016
      %v5153 = vadd.f32 %v5152, 0.008332121
      %v5154 = vmul.f32 %v5151, %v5153
      %v5155 = vadd.f32 %v5154, -0.16666654
      %v5156 = vmul.f32 %v5151, %v5155
      %v5157 = vadd.f32 %v5156, 1.0
      %v5158 = vmul.f32 %v5157, %v5142
      %vm5159 = vweird.f32 %v569
      %v5160 = vadd.s32 %v5143, 3
      %v5161 = vand.u32 %v5160, 3
      %vm5162 = vcmp.lt.s32.totalorder %v5161, 2
      %vm5163 = vcmp.eq.s32.totalorder %v5161, 0
      %v5164 = vxor.u32 %v5158, 2147483648
      %v5165 = vsel %vm5163, %v5150, %v5164
      %vm5166 = vcmp.eq.s32.totalorder %v5161, 2
      %v5167 = vxor.u32 %v5150, 2147483648
      %v5168 = vsel %vm5166, %v5167, %v5158
      %v5169 = vsel %vm5162, %v5165, %v5168
      %v5170 = vsel %vm5159, nan, %v5169
      %v5171 = vand.u32 2147483647, %v572
      %vm5172 = vcmp.le.f32.partialorder %v5171, 0.7853982
      %vm5173 = vcmp.lt.s32.totalorder %v572, 0
      %v5174 = vand.u32 %v572, 2139095040
      %v5175 = vshrl.u32 %v5174, 23
      %v5176 = vsub.s32 %v5175, 127
      %v5177 = vand.u32 2147483647, %v572
      %v5178 = vand.u32 %v5177, 8388607
      %v5179 = vor.u32 %v5178, 8388608
      %v5180 = vsub.s32 0, %v5179
      %v5181 = vadd.s32 %v5176, 1
      %vm5182 = vcmp.gt.s32.totalorder %v5181, 0
      %v5183 = vsel %vm5182, %v5181, 0
      %v5184 = vshrl.u32 %v5183, 5
      %v5185 = vand.u32 %v5183, 31
      %v5186 = vsub.s32 32, %v5185
      %v5187 = vshrl.u32 683565275, %v5186
      %v5188 = vshll.u32 683565275, %v5185
      %v5189 = vshrl.u32 2475754826, %v5186
      %v5190 = vor.u32 %v5188, %v5189
      %v5191 = vshll.u32 2475754826, %v5185
      %v5192 = vshrl.u32 2131351028, %v5186
      %v5193 = vor.u32 %v5191, %v5192
      %v5194 = vshll.u32 2131351028, %v5185
      %v5195 = vshrl.u32 2102212464, %v5186
      %v5196 = vor.u32 %v5194, %v5195
      %v5197 = vshll.u32 2102212464, %v5185
      %v5198 = vshrl.u32 920167782, %v5186
      %v5199 = vor.u32 %v5197, %v5198
      %v5200 = vshll.u32 920167782, %v5185
      %v5201 = vshrl.u32 1326507024, %v5186
      %v5202 = vor.u32 %v5200, %v5201
      %vm5203 = vcmp.lt.s32.totalorder %v5184, 1
      %vm5204 = vcmp.lt.s32.totalorder %v5184, 2
      %vm5205 = vcmp.lt.s32.totalorder %v5184, 3
      %vm5206 = vcmp.lt.s32.totalorder %v5184, 4
      %v5207 = vsel %vm5203, %v5187, %v5190
      %v5208 = vsel %vm5206, %v5196, 2102212464
      %v5209 = vsel %vm5205, %v5193, %v5208
      %v5210 = vsel %vm5204, %v5207, %v5209
      %v5211 = vsel %vm5203, %v5190, %v5193
      %v5212 = vsel %vm5206, %v5199, 920167782
      %v5213 = vsel %vm5205, %v5196, %v5212
      %v5214 = vsel %vm5204, %v5211, %v5213
      %v5215 = vsel %vm5203, %v5193, %v5196
      %v5216 = vsel %vm5206, %v5202, 1326507024
      %v5217 = vsel %vm5205, %v5199, %v5216
      %v5218 = vsel %vm5204, %v5215, %v5217
      %v5219 = vshll.u32 %v5179, 8
      %v5220 = vand.u32 %v5219, 65535
      %v5221 = vshrl.u32 %v5219, 16
      %v5222 = vand.u32 %v5218, 65535
      %v5223 = vshrl.u32 %v5218, 16
      %v5224 = vmul.u32 %v5220, %v5222
      %v5225 = vmul.u32 %v5220, %v5223
      %v5226 = vmul.u32 %v5221, %v5222
      %v5227 = vmul.u32 %v5221, %v5223
      %v5228 = vshll.u32 %v5225, 16
      %v5229 = vshrl.u32 %v5225, 16
      %v5230 = vshll.u32 %v5226, 16
      %v5231 = vshrl.u32 %v5226, 16
      %vm5232 = vc.u32 %v5224, %v5228
      %v5233 = vsel %vm5232, 1, 0
      %v5234 = vadd.s32 %v5224, %v5228
      %v5235 = vadd.s32 %v5227, %v5233
      %vm5236 = vc.u32 %v5234, %v5230
      %v5237 = vsel %vm5236, 1, 0
      %v5238 = vadd.s32 %v5234, %v5230
      %v5239 = vadd.s32 %v5235, %v5237
      %v5240 = vadd.s32 %v5239, %v5229
      %v5241 = vadd.s32 %v5240, %v5231
      %v5242 = vand.u32 %v5219, 65535
      %v5243 = vshrl.u32 %v5219, 16
      %v5244 = vand.u32 %v5214, 65535
      %v5245 = vshrl.u32 %v5214, 16
      %v5246 = vmul.u32 %v5242, %v5244
      %v5247 = vmul.u32 %v5242, %v5245
      %v5248 = vmul.u32 %v5243, %v5244
      %v5249 = vmul.u32 %v5243, %v5245
      %v5250 = vshll.u32 %v5247, 16
      %v5251 = vshrl.u32 %v5247, 16
      %v5252 = vshll.u32 %v5248, 16
      %v5253 = vshrl.u32 %v5248, 16
      %vm5254 = vc.u32 %v5246, %v5250
      %v5255 = vsel %vm5254, 1, 0
      %v5256 = vadd.s32 %v5246, %v5250
      %v5257 = vadd.s32 %v5249, %v5255
      %vm5258 = vc.u32 %v5256, %v5252
      %v5259 = vsel %vm5258, 1, 0
      %v5260 = vadd.s32 %v5256, %v5252
      %v5261 = vadd.s32 %v5257, %v5259
      %v5262 = vadd.s32 %v5261, %v5251
      %v5263 = vadd.s32 %v5262, %v5253
      %v5264 = vmul.u32 %v5219, %v5210
      %v5265 = vadd.s32 %v5241, %v5260
      %vm5266 = vc.u32 %v5241, %v5260
      %v5267 = vadd.s32 %v5263, 1
      %v5268 = vsel %vm5266, %v5267, %v5263
      %v5269 = vadd.s32 %v5264, %v5268
      %v5270 = vadd.s32 %v5269, 536870912
      %v5271 = vshrl.u32 %v5270, 30
      %v5272 = vshll.u32 %v5271, 30
      %v5273 = vsub.s32 %v5269, %v5272
      %vm5274 = vcmp.lt.s32.totalorder %v5273, 0
      %v5275 = vsub.s32 0, %v5273
      %v5276 = vsel %vm5274, %v5275, %v5273
      %v5277 = vclz %v5276
      %v5278 = vsub.s32 %v5277, 2
      %vm5279 = vcmp.gt.s32.totalorder 0, %v5278
      %v5280 = vsel %vm5279, 0, %v5278
      %v5281 = vsub.s32 32, %v5280
      %v5282 = vshll.u32 %v5273, %v5280
      %v5283 = vshrl.u32 %v5265, %v5281
      %v5284 = vor.u32 %v5282, %v5283
      %v5285 = vsub.s32 4294967266, %v5280
      %v5286 = vadd.s32 %v5285, 127
      %v5287 = vshll.u32 %v5286, 23
      %v5288 = vor.u32 4788187, %v5287
      %v5289 = vand.u32 2147483647, %v5288
      %v5291 = vcvt.s32.f32 %v5284
      %v5292 = vmul.f32 %v5291, %v5289
      %v5293 = vxor.u32 %v5292, 2147483648
      %v5294 = vsel %vm5173, %v5293, %v5292
      %v5295 = vsub.s32 4, %v5271
      %v5296 = vsel %vm5173, %v5295, %v5271
      %v5297 = vsel %vm5172, %v572, %v5294
      %v5298 = vsel %vm5172, 0, %v5296
      %v5299 = vmul.f32 %v5297, %v5297
      %v5300 = vmul.f32 %v5299, -0.001358992
      %v5301 = vadd.f32 %v5300, 0.041655596
      %v5302 = vmul.f32 %v5299, %v5301
      %v5303 = vadd.f32 %v5302, -0.4999988
      %v5304 = vmul.f32 %v5299, %v5303
      %v5305 = vadd.f32 1.0, %v5304
      %v5306 = vmul.f32 %v5297, %v5297
      %v5307 = vmul.f32 %v5306, -0.00019511016
      %v5308 = vadd.f32 %v5307, 0.008332121
      %v5309 = vmul.f32 %v5306, %v5308
      %v5310 = vadd.f32 %v5309, -0.16666654
      %v5311 = vmul.f32 %v5306, %v5310
      %v5312 = vadd.f32 %v5311, 1.0
      %v5313 = vmul.f32 %v5312, %v5297
      %vm5314 = vweird.f32 %v572
      %v5315 = vadd.s32 %v5298, 3
      %v5316 = vand.u32 %v5315, 3
      %vm5317 = vcmp.lt.s32.totalorder %v5316, 2
      %vm5318 = vcmp.eq.s32.totalorder %v5316, 0
      %v5319 = vxor.u32 %v5313, 2147483648
      %v5320 = vsel %vm5318, %v5305, %v5319
      %vm5321 = vcmp.eq.s32.totalorder %v5316, 2
      %v5322 = vxor.u32 %v5305, 2147483648
      %v5323 = vsel %vm5321, %v5322, %v5313
      %v5324 = vsel %vm5317, %v5320, %v5323
      %v5325 = vsel %vm5314, nan, %v5324
      %v5326 = vand.u32 2147483647, %v575
      %vm5327 = vcmp.le.f32.partialorder %v5326, 0.7853982
      %vm5328 = vcmp.lt.s32.totalorder %v575, 0
      %v5329 = vand.u32 %v575, 2139095040
      %v5330 = vshrl.u32 %v5329, 23
      %v5331 = vsub.s32 %v5330, 127
      %v5332 = vand.u32 2147483647, %v575
      %v5333 = vand.u32 %v5332, 8388607
      %v5334 = vor.u32 %v5333, 8388608
      %v5335 = vsub.s32 0, %v5334
      %v5336 = vadd.s32 %v5331, 1
      %vm5337 = vcmp.gt.s32.totalorder %v5336, 0
      %v5338 = vsel %vm5337, %v5336, 0
      %v5339 = vshrl.u32 %v5338, 5
      %v5340 = vand.u32 %v5338, 31
      %v5341 = vsub.s32 32, %v5340
      %v5342 = vshrl.u32 683565275, %v5341
      %v5343 = vshll.u32 683565275, %v5340
      %v5344 = vshrl.u32 2475754826, %v5341
      %v5345 = vor.u32 %v5343, %v5344
      %v5346 = vshll.u32 2475754826, %v5340
      %v5347 = vshrl.u32 2131351028, %v5341
      %v5348 = vor.u32 %v5346, %v5347
      %v5349 = vshll.u32 2131351028, %v5340
      %v5350 = vshrl.u32 2102212464, %v5341
      %v5351 = vor.u32 %v5349, %v5350
      %v5352 = vshll.u32 2102212464, %v5340
      %v5353 = vshrl.u32 920167782, %v5341
      %v5354 = vor.u32 %v5352, %v5353
      %v5355 = vshll.u32 920167782, %v5340
      %v5356 = vshrl.u32 1326507024, %v5341
      %v5357 = vor.u32 %v5355, %v5356
      %vm5358 = vcmp.lt.s32.totalorder %v5339, 1
      %vm5359 = vcmp.lt.s32.totalorder %v5339, 2
      %vm5360 = vcmp.lt.s32.totalorder %v5339, 3
      %vm5361 = vcmp.lt.s32.totalorder %v5339, 4
      %v5362 = vsel %vm5358, %v5342, %v5345
      %v5363 = vsel %vm5361, %v5351, 2102212464
      %v5364 = vsel %vm5360, %v5348, %v5363
      %v5365 = vsel %vm5359, %v5362, %v5364
      %v5366 = vsel %vm5358, %v5345, %v5348
      %v5367 = vsel %vm5361, %v5354, 920167782
      %v5368 = vsel %vm5360, %v5351, %v5367
      %v5369 = vsel %vm5359, %v5366, %v5368
      %v5370 = vsel %vm5358, %v5348, %v5351
      %v5371 = vsel %vm5361, %v5357, 1326507024
      %v5372 = vsel %vm5360, %v5354, %v5371
      %v5373 = vsel %vm5359, %v5370, %v5372
      %v5374 = vshll.u32 %v5334, 8
      %v5375 = vand.u32 %v5374, 65535
      %v5376 = vshrl.u32 %v5374, 16
      %v5377 = vand.u32 %v5373, 65535
      %v5378 = vshrl.u32 %v5373, 16
      %v5379 = vmul.u32 %v5375, %v5377
      %v5380 = vmul.u32 %v5375, %v5378
      %v5381 = vmul.u32 %v5376, %v5377
      %v5382 = vmul.u32 %v5376, %v5378
      %v5383 = vshll.u32 %v5380, 16
      %v5384 = vshrl.u32 %v5380, 16
      %v5385 = vshll.u32 %v5381, 16
      %v5386 = vshrl.u32 %v5381, 16
      %vm5387 = vc.u32 %v5379, %v5383
      %v5388 = vsel %vm5387, 1, 0
      %v5389 = vadd.s32 %v5379, %v5383
      %v5390 = vadd.s32 %v5382, %v5388
      %vm5391 = vc.u32 %v5389, %v5385
      %v5392 = vsel %vm5391, 1, 0
      %v5393 = vadd.s32 %v5389, %v5385
      %v5394 = vadd.s32 %v5390, %v5392
      %v5395 = vadd.s32 %v5394, %v5384
      %v5396 = vadd.s32 %v5395, %v5386
      %v5397 = vand.u32 %v5374, 65535
      %v5398 = vshrl.u32 %v5374, 16
      %v5399 = vand.u32 %v5369, 65535
      %v5400 = vshrl.u32 %v5369, 16
      %v5401 = vmul.u32 %v5397, %v5399
      %v5402 = vmul.u32 %v5397, %v5400
      %v5403 = vmul.u32 %v5398, %v5399
      %v5404 = vmul.u32 %v5398, %v5400
      %v5405 = vshll.u32 %v5402, 16
      %v5406 = vshrl.u32 %v5402, 16
      %v5407 = vshll.u32 %v5403, 16
      %v5408 = vshrl.u32 %v5403, 16
      %vm5409 = vc.u32 %v5401, %v5405
      %v5410 = vsel %vm5409, 1, 0
      %v5411 = vadd.s32 %v5401, %v5405
      %v5412 = vadd.s32 %v5404, %v5410
      %vm5413 = vc.u32 %v5411, %v5407
      %v5414 = vsel %vm5413, 1, 0
      %v5415 = vadd.s32 %v5411, %v5407
      %v5416 = vadd.s32 %v5412, %v5414
      %v5417 = vadd.s32 %v5416, %v5406
      %v5418 = vadd.s32 %v5417, %v5408
      %v5419 = vmul.u32 %v5374, %v5365
      %v5420 = vadd.s32 %v5396, %v5415
      %vm5421 = vc.u32 %v5396, %v5415
      %v5422 = vadd.s32 %v5418, 1
      %v5423 = vsel %vm5421, %v5422, %v5418
      %v5424 = vadd.s32 %v5419, %v5423
      %v5425 = vadd.s32 %v5424, 536870912
      %v5426 = vshrl.u32 %v5425, 30
      %v5427 = vshll.u32 %v5426, 30
      %v5428 = vsub.s32 %v5424, %v5427
      %vm5429 = vcmp.lt.s32.totalorder %v5428, 0
      %v5430 = vsub.s32 0, %v5428
      %v5431 = vsel %vm5429, %v5430, %v5428
      %v5432 = vclz %v5431
      %v5433 = vsub.s32 %v5432, 2
      %vm5434 = vcmp.gt.s32.totalorder 0, %v5433
      %v5435 = vsel %vm5434, 0, %v5433
      %v5436 = vsub.s32 32, %v5435
      %v5437 = vshll.u32 %v5428, %v5435
      %v5438 = vshrl.u32 %v5420, %v5436
      %v5439 = vor.u32 %v5437, %v5438
      %v5440 = vsub.s32 4294967266, %v5435
      %v5441 = vadd.s32 %v5440, 127
      %v5442 = vshll.u32 %v5441, 23
      %v5443 = vor.u32 4788187, %v5442
      %v5444 = vand.u32 2147483647, %v5443
      %v5446 = vcvt.s32.f32 %v5439
      %v5447 = vmul.f32 %v5446, %v5444
      %v5448 = vxor.u32 %v5447, 2147483648
      %v5449 = vsel %vm5328, %v5448, %v5447
      %v5450 = vsub.s32 4, %v5426
      %v5451 = vsel %vm5328, %v5450, %v5426
      %v5452 = vsel %vm5327, %v575, %v5449
      %v5453 = vsel %vm5327, 0, %v5451
      %v5454 = vmul.f32 %v5452, %v5452
      %v5455 = vmul.f32 %v5454, -0.001358992
      %v5456 = vadd.f32 %v5455, 0.041655596
      %v5457 = vmul.f32 %v5454, %v5456
      %v5458 = vadd.f32 %v5457, -0.4999988
      %v5459 = vmul.f32 %v5454, %v5458
      %v5460 = vadd.f32 1.0, %v5459
      %v5461 = vmul.f32 %v5452, %v5452
      %v5462 = vmul.f32 %v5461, -0.00019511016
      %v5463 = vadd.f32 %v5462, 0.008332121
      %v5464 = vmul.f32 %v5461, %v5463
      %v5465 = vadd.f32 %v5464, -0.16666654
      %v5466 = vmul.f32 %v5461, %v5465
      %v5467 = vadd.f32 %v5466, 1.0
      %v5468 = vmul.f32 %v5467, %v5452
      %vm5469 = vweird.f32 %v575
      %v5470 = vadd.s32 %v5453, 3
      %v5471 = vand.u32 %v5470, 3
      %vm5472 = vcmp.lt.s32.totalorder %v5471, 2
      %vm5473 = vcmp.eq.s32.totalorder %v5471, 0
      %v5474 = vxor.u32 %v5468, 2147483648
      %v5475 = vsel %vm5473, %v5460, %v5474
      %vm5476 = vcmp.eq.s32.totalorder %v5471, 2
      %v5477 = vxor.u32 %v5460, 2147483648
      %v5478 = vsel %vm5476, %v5477, %v5468
      %v5479 = vsel %vm5472, %v5475, %v5478
      %v5480 = vsel %vm5469, nan, %v5479
      %v5481 = vand.u32 2147483647, %v578
      %vm5482 = vcmp.le.f32.partialorder %v5481, 0.7853982
      %vm5483 = vcmp.lt.s32.totalorder %v578, 0
      %v5484 = vand.u32 %v578, 2139095040
      %v5485 = vshrl.u32 %v5484, 23
      %v5486 = vsub.s32 %v5485, 127
      %v5487 = vand.u32 2147483647, %v578
      %v5488 = vand.u32 %v5487, 8388607
      %v5489 = vor.u32 %v5488, 8388608
      %v5490 = vsub.s32 0, %v5489
      %v5491 = vadd.s32 %v5486, 1
      %vm5492 = vcmp.gt.s32.totalorder %v5491, 0
      %v5493 = vsel %vm5492, %v5491, 0
      %v5494 = vshrl.u32 %v5493, 5
      %v5495 = vand.u32 %v5493, 31
      %v5496 = vsub.s32 32, %v5495
      %v5497 = vshrl.u32 683565275, %v5496
      %v5498 = vshll.u32 683565275, %v5495
      %v5499 = vshrl.u32 2475754826, %v5496
      %v5500 = vor.u32 %v5498, %v5499
      %v5501 = vshll.u32 2475754826, %v5495
      %v5502 = vshrl.u32 2131351028, %v5496
      %v5503 = vor.u32 %v5501, %v5502
      %v5504 = vshll.u32 2131351028, %v5495
      %v5505 = vshrl.u32 2102212464, %v5496
      %v5506 = vor.u32 %v5504, %v5505
      %v5507 = vshll.u32 2102212464, %v5495
      %v5508 = vshrl.u32 920167782, %v5496
      %v5509 = vor.u32 %v5507, %v5508
      %v5510 = vshll.u32 920167782, %v5495
      %v5511 = vshrl.u32 1326507024, %v5496
      %v5512 = vor.u32 %v5510, %v5511
      %vm5513 = vcmp.lt.s32.totalorder %v5494, 1
      %vm5514 = vcmp.lt.s32.totalorder %v5494, 2
      %vm5515 = vcmp.lt.s32.totalorder %v5494, 3
      %vm5516 = vcmp.lt.s32.totalorder %v5494, 4
      %v5517 = vsel %vm5513, %v5497, %v5500
      %v5518 = vsel %vm5516, %v5506, 2102212464
      %v5519 = vsel %vm5515, %v5503, %v5518
      %v5520 = vsel %vm5514, %v5517, %v5519
      %v5521 = vsel %vm5513, %v5500, %v5503
      %v5522 = vsel %vm5516, %v5509, 920167782
      %v5523 = vsel %vm5515, %v5506, %v5522
      %v5524 = vsel %vm5514, %v5521, %v5523
      %v5525 = vsel %vm5513, %v5503, %v5506
      %v5526 = vsel %vm5516, %v5512, 1326507024
      %v5527 = vsel %vm5515, %v5509, %v5526
      %v5528 = vsel %vm5514, %v5525, %v5527
      %v5529 = vshll.u32 %v5489, 8
      %v5530 = vand.u32 %v5529, 65535
      %v5531 = vshrl.u32 %v5529, 16
      %v5532 = vand.u32 %v5528, 65535
      %v5533 = vshrl.u32 %v5528, 16
      %v5534 = vmul.u32 %v5530, %v5532
      %v5535 = vmul.u32 %v5530, %v5533
      %v5536 = vmul.u32 %v5531, %v5532
      %v5537 = vmul.u32 %v5531, %v5533
      %v5538 = vshll.u32 %v5535, 16
      %v5539 = vshrl.u32 %v5535, 16
      %v5540 = vshll.u32 %v5536, 16
      %v5541 = vshrl.u32 %v5536, 16
      %vm5542 = vc.u32 %v5534, %v5538
      %v5543 = vsel %vm5542, 1, 0
      %v5544 = vadd.s32 %v5534, %v5538
      %v5545 = vadd.s32 %v5537, %v5543
      %vm5546 = vc.u32 %v5544, %v5540
      %v5547 = vsel %vm5546, 1, 0
      %v5548 = vadd.s32 %v5544, %v5540
      %v5549 = vadd.s32 %v5545, %v5547
      %v5550 = vadd.s32 %v5549, %v5539
      %v5551 = vadd.s32 %v5550, %v5541
      %v5552 = vand.u32 %v5529, 65535
      %v5553 = vshrl.u32 %v5529, 16
      %v5554 = vand.u32 %v5524, 65535
      %v5555 = vshrl.u32 %v5524, 16
      %v5556 = vmul.u32 %v5552, %v5554
      %v5557 = vmul.u32 %v5552, %v5555
      %v5558 = vmul.u32 %v5553, %v5554
      %v5559 = vmul.u32 %v5553, %v5555
      %v5560 = vshll.u32 %v5557, 16
      %v5561 = vshrl.u32 %v5557, 16
      %v5562 = vshll.u32 %v5558, 16
      %v5563 = vshrl.u32 %v5558, 16
      %vm5564 = vc.u32 %v5556, %v5560
      %v5565 = vsel %vm5564, 1, 0
      %v5566 = vadd.s32 %v5556, %v5560
      %v5567 = vadd.s32 %v5559, %v5565
      %vm5568 = vc.u32 %v5566, %v5562
      %v5569 = vsel %vm5568, 1, 0
      %v5570 = vadd.s32 %v5566, %v5562
      %v5571 = vadd.s32 %v5567, %v5569
      %v5572 = vadd.s32 %v5571, %v5561
      %v5573 = vadd.s32 %v5572, %v5563
      %v5574 = vmul.u32 %v5529, %v5520
      %v5575 = vadd.s32 %v5551, %v5570
      %vm5576 = vc.u32 %v5551, %v5570
      %v5577 = vadd.s32 %v5573, 1
      %v5578 = vsel %vm5576, %v5577, %v5573
      %v5579 = vadd.s32 %v5574, %v5578
      %v5580 = vadd.s32 %v5579, 536870912
      %v5581 = vshrl.u32 %v5580, 30
      %v5582 = vshll.u32 %v5581, 30
      %v5583 = vsub.s32 %v5579, %v5582
      %vm5584 = vcmp.lt.s32.totalorder %v5583, 0
      %v5585 = vsub.s32 0, %v5583
      %v5586 = vsel %vm5584, %v5585, %v5583
      %v5587 = vclz %v5586
      %v5588 = vsub.s32 %v5587, 2
      %vm5589 = vcmp.gt.s32.totalorder 0, %v5588
      %v5590 = vsel %vm5589, 0, %v5588
      %v5591 = vsub.s32 32, %v5590
      %v5592 = vshll.u32 %v5583, %v5590
      %v5593 = vshrl.u32 %v5575, %v5591
      %v5594 = vor.u32 %v5592, %v5593
      %v5595 = vsub.s32 4294967266, %v5590
      %v5596 = vadd.s32 %v5595, 127
      %v5597 = vshll.u32 %v5596, 23
      %v5598 = vor.u32 4788187, %v5597
      %v5599 = vand.u32 2147483647, %v5598
      %v5601 = vcvt.s32.f32 %v5594
      %v5602 = vmul.f32 %v5601, %v5599
      %v5603 = vxor.u32 %v5602, 2147483648
      %v5604 = vsel %vm5483, %v5603, %v5602
      %v5605 = vsub.s32 4, %v5581
      %v5606 = vsel %vm5483, %v5605, %v5581
      %v5607 = vsel %vm5482, %v578, %v5604
      %v5608 = vsel %vm5482, 0, %v5606
      %v5609 = vmul.f32 %v5607, %v5607
      %v5610 = vmul.f32 %v5609, -0.001358992
      %v5611 = vadd.f32 %v5610, 0.041655596
      %v5612 = vmul.f32 %v5609, %v5611
      %v5613 = vadd.f32 %v5612, -0.4999988
      %v5614 = vmul.f32 %v5609, %v5613
      %v5615 = vadd.f32 1.0, %v5614
      %v5616 = vmul.f32 %v5607, %v5607
      %v5617 = vmul.f32 %v5616, -0.00019511016
      %v5618 = vadd.f32 %v5617, 0.008332121
      %v5619 = vmul.f32 %v5616, %v5618
      %v5620 = vadd.f32 %v5619, -0.16666654
      %v5621 = vmul.f32 %v5616, %v5620
      %v5622 = vadd.f32 %v5621, 1.0
      %v5623 = vmul.f32 %v5622, %v5607
      %vm5624 = vweird.f32 %v578
      %v5625 = vadd.s32 %v5608, 3
      %v5626 = vand.u32 %v5625, 3
      %vm5627 = vcmp.lt.s32.totalorder %v5626, 2
      %vm5628 = vcmp.eq.s32.totalorder %v5626, 0
      %v5629 = vxor.u32 %v5623, 2147483648
      %v5630 = vsel %vm5628, %v5615, %v5629
      %vm5631 = vcmp.eq.s32.totalorder %v5626, 2
      %v5632 = vxor.u32 %v5615, 2147483648
      %v5633 = vsel %vm5631, %v5632, %v5623
      %v5634 = vsel %vm5627, %v5630, %v5633
      %v5635 = vsel %vm5624, nan, %v5634
      %v5636 = vand.u32 2147483647, %v581
      %vm5637 = vcmp.le.f32.partialorder %v5636, 0.7853982
      %vm5638 = vcmp.lt.s32.totalorder %v581, 0
      %v5639 = vand.u32 %v581, 2139095040
      %v5640 = vshrl.u32 %v5639, 23
      %v5641 = vsub.s32 %v5640, 127
      %v5642 = vand.u32 2147483647, %v581
      %v5643 = vand.u32 %v5642, 8388607
      %v5644 = vor.u32 %v5643, 8388608
      %v5645 = vsub.s32 0, %v5644
      %v5646 = vadd.s32 %v5641, 1
      %vm5647 = vcmp.gt.s32.totalorder %v5646, 0
      %v5648 = vsel %vm5647, %v5646, 0
      %v5649 = vshrl.u32 %v5648, 5
      %v5650 = vand.u32 %v5648, 31
      %v5651 = vsub.s32 32, %v5650
      %v5652 = vshrl.u32 683565275, %v5651
      %v5653 = vshll.u32 683565275, %v5650
      %v5654 = vshrl.u32 2475754826, %v5651
      %v5655 = vor.u32 %v5653, %v5654
      %v5656 = vshll.u32 2475754826, %v5650
      %v5657 = vshrl.u32 2131351028, %v5651
      %v5658 = vor.u32 %v5656, %v5657
      %v5659 = vshll.u32 2131351028, %v5650
      %v5660 = vshrl.u32 2102212464, %v5651
      %v5661 = vor.u32 %v5659, %v5660
      %v5662 = vshll.u32 2102212464, %v5650
      %v5663 = vshrl.u32 920167782, %v5651
      %v5664 = vor.u32 %v5662, %v5663
      %v5665 = vshll.u32 920167782, %v5650
      %v5666 = vshrl.u32 1326507024, %v5651
      %v5667 = vor.u32 %v5665, %v5666
      %vm5668 = vcmp.lt.s32.totalorder %v5649, 1
      %vm5669 = vcmp.lt.s32.totalorder %v5649, 2
      %vm5670 = vcmp.lt.s32.totalorder %v5649, 3
      %vm5671 = vcmp.lt.s32.totalorder %v5649, 4
      %v5672 = vsel %vm5668, %v5652, %v5655
      %v5673 = vsel %vm5671, %v5661, 2102212464
      %v5674 = vsel %vm5670, %v5658, %v5673
      %v5675 = vsel %vm5669, %v5672, %v5674
      %v5676 = vsel %vm5668, %v5655, %v5658
      %v5677 = vsel %vm5671, %v5664, 920167782
      %v5678 = vsel %vm5670, %v5661, %v5677
      %v5679 = vsel %vm5669, %v5676, %v5678
      %v5680 = vsel %vm5668, %v5658, %v5661
      %v5681 = vsel %vm5671, %v5667, 1326507024
      %v5682 = vsel %vm5670, %v5664, %v5681
      %v5683 = vsel %vm5669, %v5680, %v5682
      %v5684 = vshll.u32 %v5644, 8
      %v5685 = vand.u32 %v5684, 65535
      %v5686 = vshrl.u32 %v5684, 16
      %v5687 = vand.u32 %v5683, 65535
      %v5688 = vshrl.u32 %v5683, 16
      %v5689 = vmul.u32 %v5685, %v5687
      %v5690 = vmul.u32 %v5685, %v5688
      %v5691 = vmul.u32 %v5686, %v5687
      %v5692 = vmul.u32 %v5686, %v5688
      %v5693 = vshll.u32 %v5690, 16
      %v5694 = vshrl.u32 %v5690, 16
      %v5695 = vshll.u32 %v5691, 16
      %v5696 = vshrl.u32 %v5691, 16
      %vm5697 = vc.u32 %v5689, %v5693
      %v5698 = vsel %vm5697, 1, 0
      %v5699 = vadd.s32 %v5689, %v5693
      %v5700 = vadd.s32 %v5692, %v5698
      %vm5701 = vc.u32 %v5699, %v5695
      %v5702 = vsel %vm5701, 1, 0
      %v5703 = vadd.s32 %v5699, %v5695
      %v5704 = vadd.s32 %v5700, %v5702
      %v5705 = vadd.s32 %v5704, %v5694
      %v5706 = vadd.s32 %v5705, %v5696
      %v5707 = vand.u32 %v5684, 65535
      %v5708 = vshrl.u32 %v5684, 16
      %v5709 = vand.u32 %v5679, 65535
      %v5710 = vshrl.u32 %v5679, 16
      %v5711 = vmul.u32 %v5707, %v5709
      %v5712 = vmul.u32 %v5707, %v5710
      %v5713 = vmul.u32 %v5708, %v5709
      %v5714 = vmul.u32 %v5708, %v5710
      %v5715 = vshll.u32 %v5712, 16
      %v5716 = vshrl.u32 %v5712, 16
      %v5717 = vshll.u32 %v5713, 16
      %v5718 = vshrl.u32 %v5713, 16
      %vm5719 = vc.u32 %v5711, %v5715
      %v5720 = vsel %vm5719, 1, 0
      %v5721 = vadd.s32 %v5711, %v5715
      %v5722 = vadd.s32 %v5714, %v5720
      %vm5723 = vc.u32 %v5721, %v5717
      %v5724 = vsel %vm5723, 1, 0
      %v5725 = vadd.s32 %v5721, %v5717
      %v5726 = vadd.s32 %v5722, %v5724
      %v5727 = vadd.s32 %v5726, %v5716
      %v5728 = vadd.s32 %v5727, %v5718
      %v5729 = vmul.u32 %v5684, %v5675
      %v5730 = vadd.s32 %v5706, %v5725
      %vm5731 = vc.u32 %v5706, %v5725
      %v5732 = vadd.s32 %v5728, 1
      %v5733 = vsel %vm5731, %v5732, %v5728
      %v5734 = vadd.s32 %v5729, %v5733
      %v5735 = vadd.s32 %v5734, 536870912
      %v5736 = vshrl.u32 %v5735, 30
      %v5737 = vshll.u32 %v5736, 30
      %v5738 = vsub.s32 %v5734, %v5737
      %vm5739 = vcmp.lt.s32.totalorder %v5738, 0
      %v5740 = vsub.s32 0, %v5738
      %v5741 = vsel %vm5739, %v5740, %v5738
      %v5742 = vclz %v5741
      %v5743 = vsub.s32 %v5742, 2
      %vm5744 = vcmp.gt.s32.totalorder 0, %v5743
      %v5745 = vsel %vm5744, 0, %v5743
      %v5746 = vsub.s32 32, %v5745
      %v5747 = vshll.u32 %v5738, %v5745
      %v5748 = vshrl.u32 %v5730, %v5746
      %v5749 = vor.u32 %v5747, %v5748
      %v5750 = vsub.s32 4294967266, %v5745
      %v5751 = vadd.s32 %v5750, 127
      %v5752 = vshll.u32 %v5751, 23
      %v5753 = vor.u32 4788187, %v5752
      %v5754 = vand.u32 2147483647, %v5753
      %v5756 = vcvt.s32.f32 %v5749
      %v5757 = vmul.f32 %v5756, %v5754
      %v5758 = vxor.u32 %v5757, 2147483648
      %v5759 = vsel %vm5638, %v5758, %v5757
      %v5760 = vsub.s32 4, %v5736
      %v5761 = vsel %vm5638, %v5760, %v5736
      %v5762 = vsel %vm5637, %v581, %v5759
      %v5763 = vsel %vm5637, 0, %v5761
      %v5764 = vmul.f32 %v5762, %v5762
      %v5765 = vmul.f32 %v5764, -0.001358992
      %v5766 = vadd.f32 %v5765, 0.041655596
      %v5767 = vmul.f32 %v5764, %v5766
      %v5768 = vadd.f32 %v5767, -0.4999988
      %v5769 = vmul.f32 %v5764, %v5768
      %v5770 = vadd.f32 1.0, %v5769
      %v5771 = vmul.f32 %v5762, %v5762
      %v5772 = vmul.f32 %v5771, -0.00019511016
      %v5773 = vadd.f32 %v5772, 0.008332121
      %v5774 = vmul.f32 %v5771, %v5773
      %v5775 = vadd.f32 %v5774, -0.16666654
      %v5776 = vmul.f32 %v5771, %v5775
      %v5777 = vadd.f32 %v5776, 1.0
      %v5778 = vmul.f32 %v5777, %v5762
      %vm5779 = vweird.f32 %v581
      %v5780 = vadd.s32 %v5763, 3
      %v5781 = vand.u32 %v5780, 3
      %vm5782 = vcmp.lt.s32.totalorder %v5781, 2
      %vm5783 = vcmp.eq.s32.totalorder %v5781, 0
      %v5784 = vxor.u32 %v5778, 2147483648
      %v5785 = vsel %vm5783, %v5770, %v5784
      %vm5786 = vcmp.eq.s32.totalorder %v5781, 2
      %v5787 = vxor.u32 %v5770, 2147483648
      %v5788 = vsel %vm5786, %v5787, %v5778
      %v5789 = vsel %vm5782, %v5785, %v5788
      %v5790 = vsel %vm5779, nan, %v5789
      %v5791 = vand.u32 2147483647, %v584
      %vm5792 = vcmp.le.f32.partialorder %v5791, 0.7853982
      %vm5793 = vcmp.lt.s32.totalorder %v584, 0
      %v5794 = vand.u32 %v584, 2139095040
      %v5795 = vshrl.u32 %v5794, 23
      %v5796 = vsub.s32 %v5795, 127
      %v5797 = vand.u32 2147483647, %v584
      %v5798 = vand.u32 %v5797, 8388607
      %v5799 = vor.u32 %v5798, 8388608
      %v5800 = vsub.s32 0, %v5799
      %v5801 = vadd.s32 %v5796, 1
      %vm5802 = vcmp.gt.s32.totalorder %v5801, 0
      %v5803 = vsel %vm5802, %v5801, 0
      %v5804 = vshrl.u32 %v5803, 5
      %v5805 = vand.u32 %v5803, 31
      %v5806 = vsub.s32 32, %v5805
      %v5807 = vshrl.u32 683565275, %v5806
      %v5808 = vshll.u32 683565275, %v5805
      %v5809 = vshrl.u32 2475754826, %v5806
      %v5810 = vor.u32 %v5808, %v5809
      %v5811 = vshll.u32 2475754826, %v5805
      %v5812 = vshrl.u32 2131351028, %v5806
      %v5813 = vor.u32 %v5811, %v5812
      %v5814 = vshll.u32 2131351028, %v5805
      %v5815 = vshrl.u32 2102212464, %v5806
      %v5816 = vor.u32 %v5814, %v5815
      %v5817 = vshll.u32 2102212464, %v5805
      %v5818 = vshrl.u32 920167782, %v5806
      %v5819 = vor.u32 %v5817, %v5818
      %v5820 = vshll.u32 920167782, %v5805
      %v5821 = vshrl.u32 1326507024, %v5806
      %v5822 = vor.u32 %v5820, %v5821
      %vm5823 = vcmp.lt.s32.totalorder %v5804, 1
      %vm5824 = vcmp.lt.s32.totalorder %v5804, 2
      %vm5825 = vcmp.lt.s32.totalorder %v5804, 3
      %vm5826 = vcmp.lt.s32.totalorder %v5804, 4
      %v5827 = vsel %vm5823, %v5807, %v5810
      %v5828 = vsel %vm5826, %v5816, 2102212464
      %v5829 = vsel %vm5825, %v5813, %v5828
      %v5830 = vsel %vm5824, %v5827, %v5829
      %v5831 = vsel %vm5823, %v5810, %v5813
      %v5832 = vsel %vm5826, %v5819, 920167782
      %v5833 = vsel %vm5825, %v5816, %v5832
      %v5834 = vsel %vm5824, %v5831, %v5833
      %v5835 = vsel %vm5823, %v5813, %v5816
      %v5836 = vsel %vm5826, %v5822, 1326507024
      %v5837 = vsel %vm5825, %v5819, %v5836
      %v5838 = vsel %vm5824, %v5835, %v5837
      %v5839 = vshll.u32 %v5799, 8
      %v5840 = vand.u32 %v5839, 65535
      %v5841 = vshrl.u32 %v5839, 16
      %v5842 = vand.u32 %v5838, 65535
      %v5843 = vshrl.u32 %v5838, 16
      %v5844 = vmul.u32 %v5840, %v5842
      %v5845 = vmul.u32 %v5840, %v5843
      %v5846 = vmul.u32 %v5841, %v5842
      %v5847 = vmul.u32 %v5841, %v5843
      %v5848 = vshll.u32 %v5845, 16
      %v5849 = vshrl.u32 %v5845, 16
      %v5850 = vshll.u32 %v5846, 16
      %v5851 = vshrl.u32 %v5846, 16
      %vm5852 = vc.u32 %v5844, %v5848
      %v5853 = vsel %vm5852, 1, 0
      %v5854 = vadd.s32 %v5844, %v5848
      %v5855 = vadd.s32 %v5847, %v5853
      %vm5856 = vc.u32 %v5854, %v5850
      %v5857 = vsel %vm5856, 1, 0
      %v5858 = vadd.s32 %v5854, %v5850
      %v5859 = vadd.s32 %v5855, %v5857
      %v5860 = vadd.s32 %v5859, %v5849
      %v5861 = vadd.s32 %v5860, %v5851
      %v5862 = vand.u32 %v5839, 65535
      %v5863 = vshrl.u32 %v5839, 16
      %v5864 = vand.u32 %v5834, 65535
      %v5865 = vshrl.u32 %v5834, 16
      %v5866 = vmul.u32 %v5862, %v5864
      %v5867 = vmul.u32 %v5862, %v5865
      %v5868 = vmul.u32 %v5863, %v5864
      %v5869 = vmul.u32 %v5863, %v5865
      %v5870 = vshll.u32 %v5867, 16
      %v5871 = vshrl.u32 %v5867, 16
      %v5872 = vshll.u32 %v5868, 16
      %v5873 = vshrl.u32 %v5868, 16
      %vm5874 = vc.u32 %v5866, %v5870
      %v5875 = vsel %vm5874, 1, 0
      %v5876 = vadd.s32 %v5866, %v5870
      %v5877 = vadd.s32 %v5869, %v5875
      %vm5878 = vc.u32 %v5876, %v5872
      %v5879 = vsel %vm5878, 1, 0
      %v5880 = vadd.s32 %v5876, %v5872
      %v5881 = vadd.s32 %v5877, %v5879
      %v5882 = vadd.s32 %v5881, %v5871
      %v5883 = vadd.s32 %v5882, %v5873
      %v5884 = vmul.u32 %v5839, %v5830
      %v5885 = vadd.s32 %v5861, %v5880
      %vm5886 = vc.u32 %v5861, %v5880
      %v5887 = vadd.s32 %v5883, 1
      %v5888 = vsel %vm5886, %v5887, %v5883
      %v5889 = vadd.s32 %v5884, %v5888
      %v5890 = vadd.s32 %v5889, 536870912
      %v5891 = vshrl.u32 %v5890, 30
      %v5892 = vshll.u32 %v5891, 30
      %v5893 = vsub.s32 %v5889, %v5892
      %vm5894 = vcmp.lt.s32.totalorder %v5893, 0
      %v5895 = vsub.s32 0, %v5893
      %v5896 = vsel %vm5894, %v5895, %v5893
      %v5897 = vclz %v5896
      %v5898 = vsub.s32 %v5897, 2
      %vm5899 = vcmp.gt.s32.totalorder 0, %v5898
      %v5900 = vsel %vm5899, 0, %v5898
      %v5901 = vsub.s32 32, %v5900
      %v5902 = vshll.u32 %v5893, %v5900
      %v5903 = vshrl.u32 %v5885, %v5901
      %v5904 = vor.u32 %v5902, %v5903
      %v5905 = vsub.s32 4294967266, %v5900
      %v5906 = vadd.s32 %v5905, 127
      %v5907 = vshll.u32 %v5906, 23
      %v5908 = vor.u32 4788187, %v5907
      %v5909 = vand.u32 2147483647, %v5908
      %v5911 = vcvt.s32.f32 %v5904
      %v5912 = vmul.f32 %v5911, %v5909
      %v5913 = vxor.u32 %v5912, 2147483648
      %v5914 = vsel %vm5793, %v5913, %v5912
      %v5915 = vsub.s32 4, %v5891
      %v5916 = vsel %vm5793, %v5915, %v5891
      %v5917 = vsel %vm5792, %v584, %v5914
      %v5918 = vsel %vm5792, 0, %v5916
      %v5919 = vmul.f32 %v5917, %v5917
      %v5920 = vmul.f32 %v5919, -0.001358992
      %v5921 = vadd.f32 %v5920, 0.041655596
      %v5922 = vmul.f32 %v5919, %v5921
      %v5923 = vadd.f32 %v5922, -0.4999988
      %v5924 = vmul.f32 %v5919, %v5923
      %v5925 = vadd.f32 1.0, %v5924
      %v5926 = vmul.f32 %v5917, %v5917
      %v5927 = vmul.f32 %v5926, -0.00019511016
      %v5928 = vadd.f32 %v5927, 0.008332121
      %v5929 = vmul.f32 %v5926, %v5928
      %v5930 = vadd.f32 %v5929, -0.16666654
      %v5931 = vmul.f32 %v5926, %v5930
      %v5932 = vadd.f32 %v5931, 1.0
      %v5933 = vmul.f32 %v5932, %v5917
      %vm5934 = vweird.f32 %v584
      %v5935 = vadd.s32 %v5918, 3
      %v5936 = vand.u32 %v5935, 3
      %vm5937 = vcmp.lt.s32.totalorder %v5936, 2
      %vm5938 = vcmp.eq.s32.totalorder %v5936, 0
      %v5939 = vxor.u32 %v5933, 2147483648
      %v5940 = vsel %vm5938, %v5925, %v5939
      %vm5941 = vcmp.eq.s32.totalorder %v5936, 2
      %v5942 = vxor.u32 %v5925, 2147483648
      %v5943 = vsel %vm5941, %v5942, %v5933
      %v5944 = vsel %vm5937, %v5940, %v5943
      %v5945 = vsel %vm5934, nan, %v5944
      %v5946 = vand.u32 2147483647, %v587
      %vm5947 = vcmp.le.f32.partialorder %v5946, 0.7853982
      %vm5948 = vcmp.lt.s32.totalorder %v587, 0
      %v5949 = vand.u32 %v587, 2139095040
      %v5950 = vshrl.u32 %v5949, 23
      %v5951 = vsub.s32 %v5950, 127
      %v5952 = vand.u32 2147483647, %v587
      %v5953 = vand.u32 %v5952, 8388607
      %v5954 = vor.u32 %v5953, 8388608
      %v5955 = vsub.s32 0, %v5954
      %v5956 = vadd.s32 %v5951, 1
      %vm5957 = vcmp.gt.s32.totalorder %v5956, 0
      %v5958 = vsel %vm5957, %v5956, 0
      %v5959 = vshrl.u32 %v5958, 5
      %v5960 = vand.u32 %v5958, 31
      %v5961 = vsub.s32 32, %v5960
      %v5962 = vshrl.u32 683565275, %v5961
      %v5963 = vshll.u32 683565275, %v5960
      %v5964 = vshrl.u32 2475754826, %v5961
      %v5965 = vor.u32 %v5963, %v5964
      %v5966 = vshll.u32 2475754826, %v5960
      %v5967 = vshrl.u32 2131351028, %v5961
      %v5968 = vor.u32 %v5966, %v5967
      %v5969 = vshll.u32 2131351028, %v5960
      %v5970 = vshrl.u32 2102212464, %v5961
      %v5971 = vor.u32 %v5969, %v5970
      %v5972 = vshll.u32 2102212464, %v5960
      %v5973 = vshrl.u32 920167782, %v5961
      %v5974 = vor.u32 %v5972, %v5973
      %v5975 = vshll.u32 920167782, %v5960
      %v5976 = vshrl.u32 1326507024, %v5961
      %v5977 = vor.u32 %v5975, %v5976
      %vm5978 = vcmp.lt.s32.totalorder %v5959, 1
      %vm5979 = vcmp.lt.s32.totalorder %v5959, 2
      %vm5980 = vcmp.lt.s32.totalorder %v5959, 3
      %vm5981 = vcmp.lt.s32.totalorder %v5959, 4
      %v5982 = vsel %vm5978, %v5962, %v5965
      %v5983 = vsel %vm5981, %v5971, 2102212464
      %v5984 = vsel %vm5980, %v5968, %v5983
      %v5985 = vsel %vm5979, %v5982, %v5984
      %v5986 = vsel %vm5978, %v5965, %v5968
      %v5987 = vsel %vm5981, %v5974, 920167782
      %v5988 = vsel %vm5980, %v5971, %v5987
      %v5989 = vsel %vm5979, %v5986, %v5988
      %v5990 = vsel %vm5978, %v5968, %v5971
      %v5991 = vsel %vm5981, %v5977, 1326507024
      %v5992 = vsel %vm5980, %v5974, %v5991
      %v5993 = vsel %vm5979, %v5990, %v5992
      %v5994 = vshll.u32 %v5954, 8
      %v5995 = vand.u32 %v5994, 65535
      %v5996 = vshrl.u32 %v5994, 16
      %v5997 = vand.u32 %v5993, 65535
      %v5998 = vshrl.u32 %v5993, 16
      %v5999 = vmul.u32 %v5995, %v5997
      %v6000 = vmul.u32 %v5995, %v5998
      %v6001 = vmul.u32 %v5996, %v5997
      %v6002 = vmul.u32 %v5996, %v5998
      %v6003 = vshll.u32 %v6000, 16
      %v6004 = vshrl.u32 %v6000, 16
      %v6005 = vshll.u32 %v6001, 16
      %v6006 = vshrl.u32 %v6001, 16
      %vm6007 = vc.u32 %v5999, %v6003
      %v6008 = vsel %vm6007, 1, 0
      %v6009 = vadd.s32 %v5999, %v6003
      %v6010 = vadd.s32 %v6002, %v6008
      %vm6011 = vc.u32 %v6009, %v6005
      %v6012 = vsel %vm6011, 1, 0
      %v6013 = vadd.s32 %v6009, %v6005
      %v6014 = vadd.s32 %v6010, %v6012
      %v6015 = vadd.s32 %v6014, %v6004
      %v6016 = vadd.s32 %v6015, %v6006
      %v6017 = vand.u32 %v5994, 65535
      %v6018 = vshrl.u32 %v5994, 16
      %v6019 = vand.u32 %v5989, 65535
      %v6020 = vshrl.u32 %v5989, 16
      %v6021 = vmul.u32 %v6017, %v6019
      %v6022 = vmul.u32 %v6017, %v6020
      %v6023 = vmul.u32 %v6018, %v6019
      %v6024 = vmul.u32 %v6018, %v6020
      %v6025 = vshll.u32 %v6022, 16
      %v6026 = vshrl.u32 %v6022, 16
      %v6027 = vshll.u32 %v6023, 16
      %v6028 = vshrl.u32 %v6023, 16
      %vm6029 = vc.u32 %v6021, %v6025
      %v6030 = vsel %vm6029, 1, 0
      %v6031 = vadd.s32 %v6021, %v6025
      %v6032 = vadd.s32 %v6024, %v6030
      %vm6033 = vc.u32 %v6031, %v6027
      %v6034 = vsel %vm6033, 1, 0
      %v6035 = vadd.s32 %v6031, %v6027
      %v6036 = vadd.s32 %v6032, %v6034
      %v6037 = vadd.s32 %v6036, %v6026
      %v6038 = vadd.s32 %v6037, %v6028
      %v6039 = vmul.u32 %v5994, %v5985
      %v6040 = vadd.s32 %v6016, %v6035
      %vm6041 = vc.u32 %v6016, %v6035
      %v6042 = vadd.s32 %v6038, 1
      %v6043 = vsel %vm6041, %v6042, %v6038
      %v6044 = vadd.s32 %v6039, %v6043
      %v6045 = vadd.s32 %v6044, 536870912
      %v6046 = vshrl.u32 %v6045, 30
      %v6047 = vshll.u32 %v6046, 30
      %v6048 = vsub.s32 %v6044, %v6047
      %vm6049 = vcmp.lt.s32.totalorder %v6048, 0
      %v6050 = vsub.s32 0, %v6048
      %v6051 = vsel %vm6049, %v6050, %v6048
      %v6052 = vclz %v6051
      %v6053 = vsub.s32 %v6052, 2
      %vm6054 = vcmp.gt.s32.totalorder 0, %v6053
      %v6055 = vsel %vm6054, 0, %v6053
      %v6056 = vsub.s32 32, %v6055
      %v6057 = vshll.u32 %v6048, %v6055
      %v6058 = vshrl.u32 %v6040, %v6056
      %v6059 = vor.u32 %v6057, %v6058
      %v6060 = vsub.s32 4294967266, %v6055
      %v6061 = vadd.s32 %v6060, 127
      %v6062 = vshll.u32 %v6061, 23
      %v6063 = vor.u32 4788187, %v6062
      %v6064 = vand.u32 2147483647, %v6063
      %v6066 = vcvt.s32.f32 %v6059
      %v6067 = vmul.f32 %v6066, %v6064
      %v6068 = vxor.u32 %v6067, 2147483648
      %v6069 = vsel %vm5948, %v6068, %v6067
      %v6070 = vsub.s32 4, %v6046
      %v6071 = vsel %vm5948, %v6070, %v6046
      %v6072 = vsel %vm5947, %v587, %v6069
      %v6073 = vsel %vm5947, 0, %v6071
      %v6074 = vmul.f32 %v6072, %v6072
      %v6075 = vmul.f32 %v6074, -0.001358992
      %v6076 = vadd.f32 %v6075, 0.041655596
      %v6077 = vmul.f32 %v6074, %v6076
      %v6078 = vadd.f32 %v6077, -0.4999988
      %v6079 = vmul.f32 %v6074, %v6078
      %v6080 = vadd.f32 1.0, %v6079
      %v6081 = vmul.f32 %v6072, %v6072
      %v6082 = vmul.f32 %v6081, -0.00019511016
      %v6083 = vadd.f32 %v6082, 0.008332121
      %v6084 = vmul.f32 %v6081, %v6083
      %v6085 = vadd.f32 %v6084, -0.16666654
      %v6086 = vmul.f32 %v6081, %v6085
      %v6087 = vadd.f32 %v6086, 1.0
      %v6088 = vmul.f32 %v6087, %v6072
      %vm6089 = vweird.f32 %v587
      %v6090 = vadd.s32 %v6073, 3
      %v6091 = vand.u32 %v6090, 3
      %vm6092 = vcmp.lt.s32.totalorder %v6091, 2
      %vm6093 = vcmp.eq.s32.totalorder %v6091, 0
      %v6094 = vxor.u32 %v6088, 2147483648
      %v6095 = vsel %vm6093, %v6080, %v6094
      %vm6096 = vcmp.eq.s32.totalorder %v6091, 2
      %v6097 = vxor.u32 %v6080, 2147483648
      %v6098 = vsel %vm6096, %v6097, %v6088
      %v6099 = vsel %vm6092, %v6095, %v6098
      %v6100 = vsel %vm6089, nan, %v6099
      %v6101 = vand.u32 2147483647, %v590
      %vm6102 = vcmp.le.f32.partialorder %v6101, 0.7853982
      %vm6103 = vcmp.lt.s32.totalorder %v590, 0
      %v6104 = vand.u32 %v590, 2139095040
      %v6105 = vshrl.u32 %v6104, 23
      %v6106 = vsub.s32 %v6105, 127
      %v6107 = vand.u32 2147483647, %v590
      %v6108 = vand.u32 %v6107, 8388607
      %v6109 = vor.u32 %v6108, 8388608
      %v6110 = vsub.s32 0, %v6109
      %v6111 = vadd.s32 %v6106, 1
      %vm6112 = vcmp.gt.s32.totalorder %v6111, 0
      %v6113 = vsel %vm6112, %v6111, 0
      %v6114 = vshrl.u32 %v6113, 5
      %v6115 = vand.u32 %v6113, 31
      %v6116 = vsub.s32 32, %v6115
      %v6117 = vshrl.u32 683565275, %v6116
      %v6118 = vshll.u32 683565275, %v6115
      %v6119 = vshrl.u32 2475754826, %v6116
      %v6120 = vor.u32 %v6118, %v6119
      %v6121 = vshll.u32 2475754826, %v6115
      %v6122 = vshrl.u32 2131351028, %v6116
      %v6123 = vor.u32 %v6121, %v6122
      %v6124 = vshll.u32 2131351028, %v6115
      %v6125 = vshrl.u32 2102212464, %v6116
      %v6126 = vor.u32 %v6124, %v6125
      %v6127 = vshll.u32 2102212464, %v6115
      %v6128 = vshrl.u32 920167782, %v6116
      %v6129 = vor.u32 %v6127, %v6128
      %v6130 = vshll.u32 920167782, %v6115
      %v6131 = vshrl.u32 1326507024, %v6116
      %v6132 = vor.u32 %v6130, %v6131
      %vm6133 = vcmp.lt.s32.totalorder %v6114, 1
      %vm6134 = vcmp.lt.s32.totalorder %v6114, 2
      %vm6135 = vcmp.lt.s32.totalorder %v6114, 3
      %vm6136 = vcmp.lt.s32.totalorder %v6114, 4
      %v6137 = vsel %vm6133, %v6117, %v6120
      %v6138 = vsel %vm6136, %v6126, 2102212464
      %v6139 = vsel %vm6135, %v6123, %v6138
      %v6140 = vsel %vm6134, %v6137, %v6139
      %v6141 = vsel %vm6133, %v6120, %v6123
      %v6142 = vsel %vm6136, %v6129, 920167782
      %v6143 = vsel %vm6135, %v6126, %v6142
      %v6144 = vsel %vm6134, %v6141, %v6143
      %v6145 = vsel %vm6133, %v6123, %v6126
      %v6146 = vsel %vm6136, %v6132, 1326507024
      %v6147 = vsel %vm6135, %v6129, %v6146
      %v6148 = vsel %vm6134, %v6145, %v6147
      %v6149 = vshll.u32 %v6109, 8
      %v6150 = vand.u32 %v6149, 65535
      %v6151 = vshrl.u32 %v6149, 16
      %v6152 = vand.u32 %v6148, 65535
      %v6153 = vshrl.u32 %v6148, 16
      %v6154 = vmul.u32 %v6150, %v6152
      %v6155 = vmul.u32 %v6150, %v6153
      %v6156 = vmul.u32 %v6151, %v6152
      %v6157 = vmul.u32 %v6151, %v6153
      %v6158 = vshll.u32 %v6155, 16
      %v6159 = vshrl.u32 %v6155, 16
      %v6160 = vshll.u32 %v6156, 16
      %v6161 = vshrl.u32 %v6156, 16
      %vm6162 = vc.u32 %v6154, %v6158
      %v6163 = vsel %vm6162, 1, 0
      %v6164 = vadd.s32 %v6154, %v6158
      %v6165 = vadd.s32 %v6157, %v6163
      %vm6166 = vc.u32 %v6164, %v6160
      %v6167 = vsel %vm6166, 1, 0
      %v6168 = vadd.s32 %v6164, %v6160
      %v6169 = vadd.s32 %v6165, %v6167
      %v6170 = vadd.s32 %v6169, %v6159
      %v6171 = vadd.s32 %v6170, %v6161
      %v6172 = vand.u32 %v6149, 65535
      %v6173 = vshrl.u32 %v6149, 16
      %v6174 = vand.u32 %v6144, 65535
      %v6175 = vshrl.u32 %v6144, 16
      %v6176 = vmul.u32 %v6172, %v6174
      %v6177 = vmul.u32 %v6172, %v6175
      %v6178 = vmul.u32 %v6173, %v6174
      %v6179 = vmul.u32 %v6173, %v6175
      %v6180 = vshll.u32 %v6177, 16
      %v6181 = vshrl.u32 %v6177, 16
      %v6182 = vshll.u32 %v6178, 16
      %v6183 = vshrl.u32 %v6178, 16
      %vm6184 = vc.u32 %v6176, %v6180
      %v6185 = vsel %vm6184, 1, 0
      %v6186 = vadd.s32 %v6176, %v6180
      %v6187 = vadd.s32 %v6179, %v6185
      %vm6188 = vc.u32 %v6186, %v6182
      %v6189 = vsel %vm6188, 1, 0
      %v6190 = vadd.s32 %v6186, %v6182
      %v6191 = vadd.s32 %v6187, %v6189
      %v6192 = vadd.s32 %v6191, %v6181
      %v6193 = vadd.s32 %v6192, %v6183
      %v6194 = vmul.u32 %v6149, %v6140
      %v6195 = vadd.s32 %v6171, %v6190
      %vm6196 = vc.u32 %v6171, %v6190
      %v6197 = vadd.s32 %v6193, 1
      %v6198 = vsel %vm6196, %v6197, %v6193
      %v6199 = vadd.s32 %v6194, %v6198
      %v6200 = vadd.s32 %v6199, 536870912
      %v6201 = vshrl.u32 %v6200, 30
      %v6202 = vshll.u32 %v6201, 30
      %v6203 = vsub.s32 %v6199, %v6202
      %vm6204 = vcmp.lt.s32.totalorder %v6203, 0
      %v6205 = vsub.s32 0, %v6203
      %v6206 = vsel %vm6204, %v6205, %v6203
      %v6207 = vclz %v6206
      %v6208 = vsub.s32 %v6207, 2
      %vm6209 = vcmp.gt.s32.totalorder 0, %v6208
      %v6210 = vsel %vm6209, 0, %v6208
      %v6211 = vsub.s32 32, %v6210
      %v6212 = vshll.u32 %v6203, %v6210
      %v6213 = vshrl.u32 %v6195, %v6211
      %v6214 = vor.u32 %v6212, %v6213
      %v6215 = vsub.s32 4294967266, %v6210
      %v6216 = vadd.s32 %v6215, 127
      %v6217 = vshll.u32 %v6216, 23
      %v6218 = vor.u32 4788187, %v6217
      %v6219 = vand.u32 2147483647, %v6218
      %v6221 = vcvt.s32.f32 %v6214
      %v6222 = vmul.f32 %v6221, %v6219
      %v6223 = vxor.u32 %v6222, 2147483648
      %v6224 = vsel %vm6103, %v6223, %v6222
      %v6225 = vsub.s32 4, %v6201
      %v6226 = vsel %vm6103, %v6225, %v6201
      %v6227 = vsel %vm6102, %v590, %v6224
      %v6228 = vsel %vm6102, 0, %v6226
      %v6229 = vmul.f32 %v6227, %v6227
      %v6230 = vmul.f32 %v6229, -0.001358992
      %v6231 = vadd.f32 %v6230, 0.041655596
      %v6232 = vmul.f32 %v6229, %v6231
      %v6233 = vadd.f32 %v6232, -0.4999988
      %v6234 = vmul.f32 %v6229, %v6233
      %v6235 = vadd.f32 1.0, %v6234
      %v6236 = vmul.f32 %v6227, %v6227
      %v6237 = vmul.f32 %v6236, -0.00019511016
      %v6238 = vadd.f32 %v6237, 0.008332121
      %v6239 = vmul.f32 %v6236, %v6238
      %v6240 = vadd.f32 %v6239, -0.16666654
      %v6241 = vmul.f32 %v6236, %v6240
      %v6242 = vadd.f32 %v6241, 1.0
      %v6243 = vmul.f32 %v6242, %v6227
      %vm6244 = vweird.f32 %v590
      %v6245 = vadd.s32 %v6228, 3
      %v6246 = vand.u32 %v6245, 3
      %vm6247 = vcmp.lt.s32.totalorder %v6246, 2
      %vm6248 = vcmp.eq.s32.totalorder %v6246, 0
      %v6249 = vxor.u32 %v6243, 2147483648
      %v6250 = vsel %vm6248, %v6235, %v6249
      %vm6251 = vcmp.eq.s32.totalorder %v6246, 2
      %v6252 = vxor.u32 %v6235, 2147483648
      %v6253 = vsel %vm6251, %v6252, %v6243
      %v6254 = vsel %vm6247, %v6250, %v6253
      %v6255 = vsel %vm6244, nan, %v6254
      %v6256 = vand.u32 2147483647, %v593
      %vm6257 = vcmp.le.f32.partialorder %v6256, 0.7853982
      %vm6258 = vcmp.lt.s32.totalorder %v593, 0
      %v6259 = vand.u32 %v593, 2139095040
      %v6260 = vshrl.u32 %v6259, 23
      %v6261 = vsub.s32 %v6260, 127
      %v6262 = vand.u32 2147483647, %v593
      %v6263 = vand.u32 %v6262, 8388607
      %v6264 = vor.u32 %v6263, 8388608
      %v6265 = vsub.s32 0, %v6264
      %v6266 = vadd.s32 %v6261, 1
      %vm6267 = vcmp.gt.s32.totalorder %v6266, 0
      %v6268 = vsel %vm6267, %v6266, 0
      %v6269 = vshrl.u32 %v6268, 5
      %v6270 = vand.u32 %v6268, 31
      %v6271 = vsub.s32 32, %v6270
      %v6272 = vshrl.u32 683565275, %v6271
      %v6273 = vshll.u32 683565275, %v6270
      %v6274 = vshrl.u32 2475754826, %v6271
      %v6275 = vor.u32 %v6273, %v6274
      %v6276 = vshll.u32 2475754826, %v6270
      %v6277 = vshrl.u32 2131351028, %v6271
      %v6278 = vor.u32 %v6276, %v6277
      %v6279 = vshll.u32 2131351028, %v6270
      %v6280 = vshrl.u32 2102212464, %v6271
      %v6281 = vor.u32 %v6279, %v6280
      %v6282 = vshll.u32 2102212464, %v6270
      %v6283 = vshrl.u32 920167782, %v6271
      %v6284 = vor.u32 %v6282, %v6283
      %v6285 = vshll.u32 920167782, %v6270
      %v6286 = vshrl.u32 1326507024, %v6271
      %v6287 = vor.u32 %v6285, %v6286
      %vm6288 = vcmp.lt.s32.totalorder %v6269, 1
      %vm6289 = vcmp.lt.s32.totalorder %v6269, 2
      %vm6290 = vcmp.lt.s32.totalorder %v6269, 3
      %vm6291 = vcmp.lt.s32.totalorder %v6269, 4
      %v6292 = vsel %vm6288, %v6272, %v6275
      %v6293 = vsel %vm6291, %v6281, 2102212464
      %v6294 = vsel %vm6290, %v6278, %v6293
      %v6295 = vsel %vm6289, %v6292, %v6294
      %v6296 = vsel %vm6288, %v6275, %v6278
      %v6297 = vsel %vm6291, %v6284, 920167782
      %v6298 = vsel %vm6290, %v6281, %v6297
      %v6299 = vsel %vm6289, %v6296, %v6298
      %v6300 = vsel %vm6288, %v6278, %v6281
      %v6301 = vsel %vm6291, %v6287, 1326507024
      %v6302 = vsel %vm6290, %v6284, %v6301
      %v6303 = vsel %vm6289, %v6300, %v6302
      %v6304 = vshll.u32 %v6264, 8
      %v6305 = vand.u32 %v6304, 65535
      %v6306 = vshrl.u32 %v6304, 16
      %v6307 = vand.u32 %v6303, 65535
      %v6308 = vshrl.u32 %v6303, 16
      %v6309 = vmul.u32 %v6305, %v6307
      %v6310 = vmul.u32 %v6305, %v6308
      %v6311 = vmul.u32 %v6306, %v6307
      %v6312 = vmul.u32 %v6306, %v6308
      %v6313 = vshll.u32 %v6310, 16
      %v6314 = vshrl.u32 %v6310, 16
      %v6315 = vshll.u32 %v6311, 16
      %v6316 = vshrl.u32 %v6311, 16
      %vm6317 = vc.u32 %v6309, %v6313
      %v6318 = vsel %vm6317, 1, 0
      %v6319 = vadd.s32 %v6309, %v6313
      %v6320 = vadd.s32 %v6312, %v6318
      %vm6321 = vc.u32 %v6319, %v6315
      %v6322 = vsel %vm6321, 1, 0
      %v6323 = vadd.s32 %v6319, %v6315
      %v6324 = vadd.s32 %v6320, %v6322
      %v6325 = vadd.s32 %v6324, %v6314
      %v6326 = vadd.s32 %v6325, %v6316
      %v6327 = vand.u32 %v6304, 65535
      %v6328 = vshrl.u32 %v6304, 16
      %v6329 = vand.u32 %v6299, 65535
      %v6330 = vshrl.u32 %v6299, 16
      %v6331 = vmul.u32 %v6327, %v6329
      %v6332 = vmul.u32 %v6327, %v6330
      %v6333 = vmul.u32 %v6328, %v6329
      %v6334 = vmul.u32 %v6328, %v6330
      %v6335 = vshll.u32 %v6332, 16
      %v6336 = vshrl.u32 %v6332, 16
      %v6337 = vshll.u32 %v6333, 16
      %v6338 = vshrl.u32 %v6333, 16
      %vm6339 = vc.u32 %v6331, %v6335
      %v6340 = vsel %vm6339, 1, 0
      %v6341 = vadd.s32 %v6331, %v6335
      %v6342 = vadd.s32 %v6334, %v6340
      %vm6343 = vc.u32 %v6341, %v6337
      %v6344 = vsel %vm6343, 1, 0
      %v6345 = vadd.s32 %v6341, %v6337
      %v6346 = vadd.s32 %v6342, %v6344
      %v6347 = vadd.s32 %v6346, %v6336
      %v6348 = vadd.s32 %v6347, %v6338
      %v6349 = vmul.u32 %v6304, %v6295
      %v6350 = vadd.s32 %v6326, %v6345
      %vm6351 = vc.u32 %v6326, %v6345
      %v6352 = vadd.s32 %v6348, 1
      %v6353 = vsel %vm6351, %v6352, %v6348
      %v6354 = vadd.s32 %v6349, %v6353
      %v6355 = vadd.s32 %v6354, 536870912
      %v6356 = vshrl.u32 %v6355, 30
      %v6357 = vshll.u32 %v6356, 30
      %v6358 = vsub.s32 %v6354, %v6357
      %vm6359 = vcmp.lt.s32.totalorder %v6358, 0
      %v6360 = vsub.s32 0, %v6358
      %v6361 = vsel %vm6359, %v6360, %v6358
      %v6362 = vclz %v6361
      %v6363 = vsub.s32 %v6362, 2
      %vm6364 = vcmp.gt.s32.totalorder 0, %v6363
      %v6365 = vsel %vm6364, 0, %v6363
      %v6366 = vsub.s32 32, %v6365
      %v6367 = vshll.u32 %v6358, %v6365
      %v6368 = vshrl.u32 %v6350, %v6366
      %v6369 = vor.u32 %v6367, %v6368
      %v6370 = vsub.s32 4294967266, %v6365
      %v6371 = vadd.s32 %v6370, 127
      %v6372 = vshll.u32 %v6371, 23
      %v6373 = vor.u32 4788187, %v6372
      %v6374 = vand.u32 2147483647, %v6373
      %v6376 = vcvt.s32.f32 %v6369
      %v6377 = vmul.f32 %v6376, %v6374
      %v6378 = vxor.u32 %v6377, 2147483648
      %v6379 = vsel %vm6258, %v6378, %v6377
      %v6380 = vsub.s32 4, %v6356
      %v6381 = vsel %vm6258, %v6380, %v6356
      %v6382 = vsel %vm6257, %v593, %v6379
      %v6383 = vsel %vm6257, 0, %v6381
      %v6384 = vmul.f32 %v6382, %v6382
      %v6385 = vmul.f32 %v6384, -0.001358992
      %v6386 = vadd.f32 %v6385, 0.041655596
      %v6387 = vmul.f32 %v6384, %v6386
      %v6388 = vadd.f32 %v6387, -0.4999988
      %v6389 = vmul.f32 %v6384, %v6388
      %v6390 = vadd.f32 1.0, %v6389
      %v6391 = vmul.f32 %v6382, %v6382
      %v6392 = vmul.f32 %v6391, -0.00019511016
      %v6393 = vadd.f32 %v6392, 0.008332121
      %v6394 = vmul.f32 %v6391, %v6393
      %v6395 = vadd.f32 %v6394, -0.16666654
      %v6396 = vmul.f32 %v6391, %v6395
      %v6397 = vadd.f32 %v6396, 1.0
      %v6398 = vmul.f32 %v6397, %v6382
      %vm6399 = vweird.f32 %v593
      %v6400 = vadd.s32 %v6383, 3
      %v6401 = vand.u32 %v6400, 3
      %vm6402 = vcmp.lt.s32.totalorder %v6401, 2
      %vm6403 = vcmp.eq.s32.totalorder %v6401, 0
      %v6404 = vxor.u32 %v6398, 2147483648
      %v6405 = vsel %vm6403, %v6390, %v6404
      %vm6406 = vcmp.eq.s32.totalorder %v6401, 2
      %v6407 = vxor.u32 %v6390, 2147483648
      %v6408 = vsel %vm6406, %v6407, %v6398
      %v6409 = vsel %vm6402, %v6405, %v6408
      %v6410 = vsel %vm6399, nan, %v6409
      %v6411 = vand.u32 2147483647, %v596
      %vm6412 = vcmp.le.f32.partialorder %v6411, 0.7853982
      %vm6413 = vcmp.lt.s32.totalorder %v596, 0
      %v6414 = vand.u32 %v596, 2139095040
      %v6415 = vshrl.u32 %v6414, 23
      %v6416 = vsub.s32 %v6415, 127
      %v6417 = vand.u32 2147483647, %v596
      %v6418 = vand.u32 %v6417, 8388607
      %v6419 = vor.u32 %v6418, 8388608
      %v6420 = vsub.s32 0, %v6419
      %v6421 = vadd.s32 %v6416, 1
      %vm6422 = vcmp.gt.s32.totalorder %v6421, 0
      %v6423 = vsel %vm6422, %v6421, 0
      %v6424 = vshrl.u32 %v6423, 5
      %v6425 = vand.u32 %v6423, 31
      %v6426 = vsub.s32 32, %v6425
      %v6427 = vshrl.u32 683565275, %v6426
      %v6428 = vshll.u32 683565275, %v6425
      %v6429 = vshrl.u32 2475754826, %v6426
      %v6430 = vor.u32 %v6428, %v6429
      %v6431 = vshll.u32 2475754826, %v6425
      %v6432 = vshrl.u32 2131351028, %v6426
      %v6433 = vor.u32 %v6431, %v6432
      %v6434 = vshll.u32 2131351028, %v6425
      %v6435 = vshrl.u32 2102212464, %v6426
      %v6436 = vor.u32 %v6434, %v6435
      %v6437 = vshll.u32 2102212464, %v6425
      %v6438 = vshrl.u32 920167782, %v6426
      %v6439 = vor.u32 %v6437, %v6438
      %v6440 = vshll.u32 920167782, %v6425
      %v6441 = vshrl.u32 1326507024, %v6426
      %v6442 = vor.u32 %v6440, %v6441
      %vm6443 = vcmp.lt.s32.totalorder %v6424, 1
      %vm6444 = vcmp.lt.s32.totalorder %v6424, 2
      %vm6445 = vcmp.lt.s32.totalorder %v6424, 3
      %vm6446 = vcmp.lt.s32.totalorder %v6424, 4
      %v6447 = vsel %vm6443, %v6427, %v6430
      %v6448 = vsel %vm6446, %v6436, 2102212464
      %v6449 = vsel %vm6445, %v6433, %v6448
      %v6450 = vsel %vm6444, %v6447, %v6449
      %v6451 = vsel %vm6443, %v6430, %v6433
      %v6452 = vsel %vm6446, %v6439, 920167782
      %v6453 = vsel %vm6445, %v6436, %v6452
      %v6454 = vsel %vm6444, %v6451, %v6453
      %v6455 = vsel %vm6443, %v6433, %v6436
      %v6456 = vsel %vm6446, %v6442, 1326507024
      %v6457 = vsel %vm6445, %v6439, %v6456
      %v6458 = vsel %vm6444, %v6455, %v6457
      %v6459 = vshll.u32 %v6419, 8
      %v6460 = vand.u32 %v6459, 65535
      %v6461 = vshrl.u32 %v6459, 16
      %v6462 = vand.u32 %v6458, 65535
      %v6463 = vshrl.u32 %v6458, 16
      %v6464 = vmul.u32 %v6460, %v6462
      %v6465 = vmul.u32 %v6460, %v6463
      %v6466 = vmul.u32 %v6461, %v6462
      %v6467 = vmul.u32 %v6461, %v6463
      %v6468 = vshll.u32 %v6465, 16
      %v6469 = vshrl.u32 %v6465, 16
      %v6470 = vshll.u32 %v6466, 16
      %v6471 = vshrl.u32 %v6466, 16
      %vm6472 = vc.u32 %v6464, %v6468
      %v6473 = vsel %vm6472, 1, 0
      %v6474 = vadd.s32 %v6464, %v6468
      %v6475 = vadd.s32 %v6467, %v6473
      %vm6476 = vc.u32 %v6474, %v6470
      %v6477 = vsel %vm6476, 1, 0
      %v6478 = vadd.s32 %v6474, %v6470
      %v6479 = vadd.s32 %v6475, %v6477
      %v6480 = vadd.s32 %v6479, %v6469
      %v6481 = vadd.s32 %v6480, %v6471
      %v6482 = vand.u32 %v6459, 65535
      %v6483 = vshrl.u32 %v6459, 16
      %v6484 = vand.u32 %v6454, 65535
      %v6485 = vshrl.u32 %v6454, 16
      %v6486 = vmul.u32 %v6482, %v6484
      %v6487 = vmul.u32 %v6482, %v6485
      %v6488 = vmul.u32 %v6483, %v6484
      %v6489 = vmul.u32 %v6483, %v6485
      %v6490 = vshll.u32 %v6487, 16
      %v6491 = vshrl.u32 %v6487, 16
      %v6492 = vshll.u32 %v6488, 16
      %v6493 = vshrl.u32 %v6488, 16
      %vm6494 = vc.u32 %v6486, %v6490
      %v6495 = vsel %vm6494, 1, 0
      %v6496 = vadd.s32 %v6486, %v6490
      %v6497 = vadd.s32 %v6489, %v6495
      %vm6498 = vc.u32 %v6496, %v6492
      %v6499 = vsel %vm6498, 1, 0
      %v6500 = vadd.s32 %v6496, %v6492
      %v6501 = vadd.s32 %v6497, %v6499
      %v6502 = vadd.s32 %v6501, %v6491
      %v6503 = vadd.s32 %v6502, %v6493
      %v6504 = vmul.u32 %v6459, %v6450
      %v6505 = vadd.s32 %v6481, %v6500
      %vm6506 = vc.u32 %v6481, %v6500
      %v6507 = vadd.s32 %v6503, 1
      %v6508 = vsel %vm6506, %v6507, %v6503
      %v6509 = vadd.s32 %v6504, %v6508
      %v6510 = vadd.s32 %v6509, 536870912
      %v6511 = vshrl.u32 %v6510, 30
      %v6512 = vshll.u32 %v6511, 30
      %v6513 = vsub.s32 %v6509, %v6512
      %vm6514 = vcmp.lt.s32.totalorder %v6513, 0
      %v6515 = vsub.s32 0, %v6513
      %v6516 = vsel %vm6514, %v6515, %v6513
      %v6517 = vclz %v6516
      %v6518 = vsub.s32 %v6517, 2
      %vm6519 = vcmp.gt.s32.totalorder 0, %v6518
      %v6520 = vsel %vm6519, 0, %v6518
      %v6521 = vsub.s32 32, %v6520
      %v6522 = vshll.u32 %v6513, %v6520
      %v6523 = vshrl.u32 %v6505, %v6521
      %v6524 = vor.u32 %v6522, %v6523
      %v6525 = vsub.s32 4294967266, %v6520
      %v6526 = vadd.s32 %v6525, 127
      %v6527 = vshll.u32 %v6526, 23
      %v6528 = vor.u32 4788187, %v6527
      %v6529 = vand.u32 2147483647, %v6528
      %v6531 = vcvt.s32.f32 %v6524
      %v6532 = vmul.f32 %v6531, %v6529
      %v6533 = vxor.u32 %v6532, 2147483648
      %v6534 = vsel %vm6413, %v6533, %v6532
      %v6535 = vsub.s32 4, %v6511
      %v6536 = vsel %vm6413, %v6535, %v6511
      %v6537 = vsel %vm6412, %v596, %v6534
      %v6538 = vsel %vm6412, 0, %v6536
      %v6539 = vmul.f32 %v6537, %v6537
      %v6540 = vmul.f32 %v6539, -0.001358992
      %v6541 = vadd.f32 %v6540, 0.041655596
      %v6542 = vmul.f32 %v6539, %v6541
      %v6543 = vadd.f32 %v6542, -0.4999988
      %v6544 = vmul.f32 %v6539, %v6543
      %v6545 = vadd.f32 1.0, %v6544
      %v6546 = vmul.f32 %v6537, %v6537
      %v6547 = vmul.f32 %v6546, -0.00019511016
      %v6548 = vadd.f32 %v6547, 0.008332121
      %v6549 = vmul.f32 %v6546, %v6548
      %v6550 = vadd.f32 %v6549, -0.16666654
      %v6551 = vmul.f32 %v6546, %v6550
      %v6552 = vadd.f32 %v6551, 1.0
      %v6553 = vmul.f32 %v6552, %v6537
      %vm6554 = vweird.f32 %v596
      %v6555 = vadd.s32 %v6538, 3
      %v6556 = vand.u32 %v6555, 3
      %vm6557 = vcmp.lt.s32.totalorder %v6556, 2
      %vm6558 = vcmp.eq.s32.totalorder %v6556, 0
      %v6559 = vxor.u32 %v6553, 2147483648
      %v6560 = vsel %vm6558, %v6545, %v6559
      %vm6561 = vcmp.eq.s32.totalorder %v6556, 2
      %v6562 = vxor.u32 %v6545, 2147483648
      %v6563 = vsel %vm6561, %v6562, %v6553
      %v6564 = vsel %vm6557, %v6560, %v6563
      %v6565 = vsel %vm6554, nan, %v6564
      %v6566 = vand.u32 2147483647, %v599
      %vm6567 = vcmp.le.f32.partialorder %v6566, 0.7853982
      %vm6568 = vcmp.lt.s32.totalorder %v599, 0
      %v6569 = vand.u32 %v599, 2139095040
      %v6570 = vshrl.u32 %v6569, 23
      %v6571 = vsub.s32 %v6570, 127
      %v6572 = vand.u32 2147483647, %v599
      %v6573 = vand.u32 %v6572, 8388607
      %v6574 = vor.u32 %v6573, 8388608
      %v6575 = vsub.s32 0, %v6574
      %v6576 = vadd.s32 %v6571, 1
      %vm6577 = vcmp.gt.s32.totalorder %v6576, 0
      %v6578 = vsel %vm6577, %v6576, 0
      %v6579 = vshrl.u32 %v6578, 5
      %v6580 = vand.u32 %v6578, 31
      %v6581 = vsub.s32 32, %v6580
      %v6582 = vshrl.u32 683565275, %v6581
      %v6583 = vshll.u32 683565275, %v6580
      %v6584 = vshrl.u32 2475754826, %v6581
      %v6585 = vor.u32 %v6583, %v6584
      %v6586 = vshll.u32 2475754826, %v6580
      %v6587 = vshrl.u32 2131351028, %v6581
      %v6588 = vor.u32 %v6586, %v6587
      %v6589 = vshll.u32 2131351028, %v6580
      %v6590 = vshrl.u32 2102212464, %v6581
      %v6591 = vor.u32 %v6589, %v6590
      %v6592 = vshll.u32 2102212464, %v6580
      %v6593 = vshrl.u32 920167782, %v6581
      %v6594 = vor.u32 %v6592, %v6593
      %v6595 = vshll.u32 920167782, %v6580
      %v6596 = vshrl.u32 1326507024, %v6581
      %v6597 = vor.u32 %v6595, %v6596
      %vm6598 = vcmp.lt.s32.totalorder %v6579, 1
      %vm6599 = vcmp.lt.s32.totalorder %v6579, 2
      %vm6600 = vcmp.lt.s32.totalorder %v6579, 3
      %vm6601 = vcmp.lt.s32.totalorder %v6579, 4
      %v6602 = vsel %vm6598, %v6582, %v6585
      %v6603 = vsel %vm6601, %v6591, 2102212464
      %v6604 = vsel %vm6600, %v6588, %v6603
      %v6605 = vsel %vm6599, %v6602, %v6604
      %v6606 = vsel %vm6598, %v6585, %v6588
      %v6607 = vsel %vm6601, %v6594, 920167782
      %v6608 = vsel %vm6600, %v6591, %v6607
      %v6609 = vsel %vm6599, %v6606, %v6608
      %v6610 = vsel %vm6598, %v6588, %v6591
      %v6611 = vsel %vm6601, %v6597, 1326507024
      %v6612 = vsel %vm6600, %v6594, %v6611
      %v6613 = vsel %vm6599, %v6610, %v6612
      %v6614 = vshll.u32 %v6574, 8
      %v6615 = vand.u32 %v6614, 65535
      %v6616 = vshrl.u32 %v6614, 16
      %v6617 = vand.u32 %v6613, 65535
      %v6618 = vshrl.u32 %v6613, 16
      %v6619 = vmul.u32 %v6615, %v6617
      %v6620 = vmul.u32 %v6615, %v6618
      %v6621 = vmul.u32 %v6616, %v6617
      %v6622 = vmul.u32 %v6616, %v6618
      %v6623 = vshll.u32 %v6620, 16
      %v6624 = vshrl.u32 %v6620, 16
      %v6625 = vshll.u32 %v6621, 16
      %v6626 = vshrl.u32 %v6621, 16
      %vm6627 = vc.u32 %v6619, %v6623
      %v6628 = vsel %vm6627, 1, 0
      %v6629 = vadd.s32 %v6619, %v6623
      %v6630 = vadd.s32 %v6622, %v6628
      %vm6631 = vc.u32 %v6629, %v6625
      %v6632 = vsel %vm6631, 1, 0
      %v6633 = vadd.s32 %v6629, %v6625
      %v6634 = vadd.s32 %v6630, %v6632
      %v6635 = vadd.s32 %v6634, %v6624
      %v6636 = vadd.s32 %v6635, %v6626
      %v6637 = vand.u32 %v6614, 65535
      %v6638 = vshrl.u32 %v6614, 16
      %v6639 = vand.u32 %v6609, 65535
      %v6640 = vshrl.u32 %v6609, 16
      %v6641 = vmul.u32 %v6637, %v6639
      %v6642 = vmul.u32 %v6637, %v6640
      %v6643 = vmul.u32 %v6638, %v6639
      %v6644 = vmul.u32 %v6638, %v6640
      %v6645 = vshll.u32 %v6642, 16
      %v6646 = vshrl.u32 %v6642, 16
      %v6647 = vshll.u32 %v6643, 16
      %v6648 = vshrl.u32 %v6643, 16
      %vm6649 = vc.u32 %v6641, %v6645
      %v6650 = vsel %vm6649, 1, 0
      %v6651 = vadd.s32 %v6641, %v6645
      %v6652 = vadd.s32 %v6644, %v6650
      %vm6653 = vc.u32 %v6651, %v6647
      %v6654 = vsel %vm6653, 1, 0
      %v6655 = vadd.s32 %v6651, %v6647
      %v6656 = vadd.s32 %v6652, %v6654
      %v6657 = vadd.s32 %v6656, %v6646
      %v6658 = vadd.s32 %v6657, %v6648
      %v6659 = vmul.u32 %v6614, %v6605
      %v6660 = vadd.s32 %v6636, %v6655
      %vm6661 = vc.u32 %v6636, %v6655
      %v6662 = vadd.s32 %v6658, 1
      %v6663 = vsel %vm6661, %v6662, %v6658
      %v6664 = vadd.s32 %v6659, %v6663
      %v6665 = vadd.s32 %v6664, 536870912
      %v6666 = vshrl.u32 %v6665, 30
      %v6667 = vshll.u32 %v6666, 30
      %v6668 = vsub.s32 %v6664, %v6667
      %vm6669 = vcmp.lt.s32.totalorder %v6668, 0
      %v6670 = vsub.s32 0, %v6668
      %v6671 = vsel %vm6669, %v6670, %v6668
      %v6672 = vclz %v6671
      %v6673 = vsub.s32 %v6672, 2
      %vm6674 = vcmp.gt.s32.totalorder 0, %v6673
      %v6675 = vsel %vm6674, 0, %v6673
      %v6676 = vsub.s32 32, %v6675
      %v6677 = vshll.u32 %v6668, %v6675
      %v6678 = vshrl.u32 %v6660, %v6676
      %v6679 = vor.u32 %v6677, %v6678
      %v6680 = vsub.s32 4294967266, %v6675
      %v6681 = vadd.s32 %v6680, 127
      %v6682 = vshll.u32 %v6681, 23
      %v6683 = vor.u32 4788187, %v6682
      %v6684 = vand.u32 2147483647, %v6683
      %v6686 = vcvt.s32.f32 %v6679
      %v6687 = vmul.f32 %v6686, %v6684
      %v6688 = vxor.u32 %v6687, 2147483648
      %v6689 = vsel %vm6568, %v6688, %v6687
      %v6690 = vsub.s32 4, %v6666
      %v6691 = vsel %vm6568, %v6690, %v6666
      %v6692 = vsel %vm6567, %v599, %v6689
      %v6693 = vsel %vm6567, 0, %v6691
      %v6694 = vmul.f32 %v6692, %v6692
      %v6695 = vmul.f32 %v6694, -0.001358992
      %v6696 = vadd.f32 %v6695, 0.041655596
      %v6697 = vmul.f32 %v6694, %v6696
      %v6698 = vadd.f32 %v6697, -0.4999988
      %v6699 = vmul.f32 %v6694, %v6698
      %v6700 = vadd.f32 1.0, %v6699
      %v6701 = vmul.f32 %v6692, %v6692
      %v6702 = vmul.f32 %v6701, -0.00019511016
      %v6703 = vadd.f32 %v6702, 0.008332121
      %v6704 = vmul.f32 %v6701, %v6703
      %v6705 = vadd.f32 %v6704, -0.16666654
      %v6706 = vmul.f32 %v6701, %v6705
      %v6707 = vadd.f32 %v6706, 1.0
      %v6708 = vmul.f32 %v6707, %v6692
      %vm6709 = vweird.f32 %v599
      %v6710 = vadd.s32 %v6693, 3
      %v6711 = vand.u32 %v6710, 3
      %vm6712 = vcmp.lt.s32.totalorder %v6711, 2
      %vm6713 = vcmp.eq.s32.totalorder %v6711, 0
      %v6714 = vxor.u32 %v6708, 2147483648
      %v6715 = vsel %vm6713, %v6700, %v6714
      %vm6716 = vcmp.eq.s32.totalorder %v6711, 2
      %v6717 = vxor.u32 %v6700, 2147483648
      %v6718 = vsel %vm6716, %v6717, %v6708
      %v6719 = vsel %vm6712, %v6715, %v6718
      %v6720 = vsel %vm6709, nan, %v6719
      %v6721 = vand.u32 2147483647, %v602
      %vm6722 = vcmp.le.f32.partialorder %v6721, 0.7853982
      %vm6723 = vcmp.lt.s32.totalorder %v602, 0
      %v6724 = vand.u32 %v602, 2139095040
      %v6725 = vshrl.u32 %v6724, 23
      %v6726 = vsub.s32 %v6725, 127
      %v6727 = vand.u32 2147483647, %v602
      %v6728 = vand.u32 %v6727, 8388607
      %v6729 = vor.u32 %v6728, 8388608
      %v6730 = vsub.s32 0, %v6729
      %v6731 = vadd.s32 %v6726, 1
      %vm6732 = vcmp.gt.s32.totalorder %v6731, 0
      %v6733 = vsel %vm6732, %v6731, 0
      %v6734 = vshrl.u32 %v6733, 5
      %v6735 = vand.u32 %v6733, 31
      %v6736 = vsub.s32 32, %v6735
      %v6737 = vshrl.u32 683565275, %v6736
      %v6738 = vshll.u32 683565275, %v6735
      %v6739 = vshrl.u32 2475754826, %v6736
      %v6740 = vor.u32 %v6738, %v6739
      %v6741 = vshll.u32 2475754826, %v6735
      %v6742 = vshrl.u32 2131351028, %v6736
      %v6743 = vor.u32 %v6741, %v6742
      %v6744 = vshll.u32 2131351028, %v6735
      %v6745 = vshrl.u32 2102212464, %v6736
      %v6746 = vor.u32 %v6744, %v6745
      %v6747 = vshll.u32 2102212464, %v6735
      %v6748 = vshrl.u32 920167782, %v6736
      %v6749 = vor.u32 %v6747, %v6748
      %v6750 = vshll.u32 920167782, %v6735
      %v6751 = vshrl.u32 1326507024, %v6736
      %v6752 = vor.u32 %v6750, %v6751
      %vm6753 = vcmp.lt.s32.totalorder %v6734, 1
      %vm6754 = vcmp.lt.s32.totalorder %v6734, 2
      %vm6755 = vcmp.lt.s32.totalorder %v6734, 3
      %vm6756 = vcmp.lt.s32.totalorder %v6734, 4
      %v6757 = vsel %vm6753, %v6737, %v6740
      %v6758 = vsel %vm6756, %v6746, 2102212464
      %v6759 = vsel %vm6755, %v6743, %v6758
      %v6760 = vsel %vm6754, %v6757, %v6759
      %v6761 = vsel %vm6753, %v6740, %v6743
      %v6762 = vsel %vm6756, %v6749, 920167782
      %v6763 = vsel %vm6755, %v6746, %v6762
      %v6764 = vsel %vm6754, %v6761, %v6763
      %v6765 = vsel %vm6753, %v6743, %v6746
      %v6766 = vsel %vm6756, %v6752, 1326507024
      %v6767 = vsel %vm6755, %v6749, %v6766
      %v6768 = vsel %vm6754, %v6765, %v6767
      %v6769 = vshll.u32 %v6729, 8
      %v6770 = vand.u32 %v6769, 65535
      %v6771 = vshrl.u32 %v6769, 16
      %v6772 = vand.u32 %v6768, 65535
      %v6773 = vshrl.u32 %v6768, 16
      %v6774 = vmul.u32 %v6770, %v6772
      %v6775 = vmul.u32 %v6770, %v6773
      %v6776 = vmul.u32 %v6771, %v6772
      %v6777 = vmul.u32 %v6771, %v6773
      %v6778 = vshll.u32 %v6775, 16
      %v6779 = vshrl.u32 %v6775, 16
      %v6780 = vshll.u32 %v6776, 16
      %v6781 = vshrl.u32 %v6776, 16
      %vm6782 = vc.u32 %v6774, %v6778
      %v6783 = vsel %vm6782, 1, 0
      %v6784 = vadd.s32 %v6774, %v6778
      %v6785 = vadd.s32 %v6777, %v6783
      %vm6786 = vc.u32 %v6784, %v6780
      %v6787 = vsel %vm6786, 1, 0
      %v6788 = vadd.s32 %v6784, %v6780
      %v6789 = vadd.s32 %v6785, %v6787
      %v6790 = vadd.s32 %v6789, %v6779
      %v6791 = vadd.s32 %v6790, %v6781
      %v6792 = vand.u32 %v6769, 65535
      %v6793 = vshrl.u32 %v6769, 16
      %v6794 = vand.u32 %v6764, 65535
      %v6795 = vshrl.u32 %v6764, 16
      %v6796 = vmul.u32 %v6792, %v6794
      %v6797 = vmul.u32 %v6792, %v6795
      %v6798 = vmul.u32 %v6793, %v6794
      %v6799 = vmul.u32 %v6793, %v6795
      %v6800 = vshll.u32 %v6797, 16
      %v6801 = vshrl.u32 %v6797, 16
      %v6802 = vshll.u32 %v6798, 16
      %v6803 = vshrl.u32 %v6798, 16
      %vm6804 = vc.u32 %v6796, %v6800
      %v6805 = vsel %vm6804, 1, 0
      %v6806 = vadd.s32 %v6796, %v6800
      %v6807 = vadd.s32 %v6799, %v6805
      %vm6808 = vc.u32 %v6806, %v6802
      %v6809 = vsel %vm6808, 1, 0
      %v6810 = vadd.s32 %v6806, %v6802
      %v6811 = vadd.s32 %v6807, %v6809
      %v6812 = vadd.s32 %v6811, %v6801
      %v6813 = vadd.s32 %v6812, %v6803
      %v6814 = vmul.u32 %v6769, %v6760
      %v6815 = vadd.s32 %v6791, %v6810
      %vm6816 = vc.u32 %v6791, %v6810
      %v6817 = vadd.s32 %v6813, 1
      %v6818 = vsel %vm6816, %v6817, %v6813
      %v6819 = vadd.s32 %v6814, %v6818
      %v6820 = vadd.s32 %v6819, 536870912
      %v6821 = vshrl.u32 %v6820, 30
      %v6822 = vshll.u32 %v6821, 30
      %v6823 = vsub.s32 %v6819, %v6822
      %vm6824 = vcmp.lt.s32.totalorder %v6823, 0
      %v6825 = vsub.s32 0, %v6823
      %v6826 = vsel %vm6824, %v6825, %v6823
      %v6827 = vclz %v6826
      %v6828 = vsub.s32 %v6827, 2
      %vm6829 = vcmp.gt.s32.totalorder 0, %v6828
      %v6830 = vsel %vm6829, 0, %v6828
      %v6831 = vsub.s32 32, %v6830
      %v6832 = vshll.u32 %v6823, %v6830
      %v6833 = vshrl.u32 %v6815, %v6831
      %v6834 = vor.u32 %v6832, %v6833
      %v6835 = vsub.s32 4294967266, %v6830
      %v6836 = vadd.s32 %v6835, 127
      %v6837 = vshll.u32 %v6836, 23
      %v6838 = vor.u32 4788187, %v6837
      %v6839 = vand.u32 2147483647, %v6838
      %v6841 = vcvt.s32.f32 %v6834
      %v6842 = vmul.f32 %v6841, %v6839
      %v6843 = vxor.u32 %v6842, 2147483648
      %v6844 = vsel %vm6723, %v6843, %v6842
      %v6845 = vsub.s32 4, %v6821
      %v6846 = vsel %vm6723, %v6845, %v6821
      %v6847 = vsel %vm6722, %v602, %v6844
      %v6848 = vsel %vm6722, 0, %v6846
      %v6849 = vmul.f32 %v6847, %v6847
      %v6850 = vmul.f32 %v6849, -0.001358992
      %v6851 = vadd.f32 %v6850, 0.041655596
      %v6852 = vmul.f32 %v6849, %v6851
      %v6853 = vadd.f32 %v6852, -0.4999988
      %v6854 = vmul.f32 %v6849, %v6853
      %v6855 = vadd.f32 1.0, %v6854
      %v6856 = vmul.f32 %v6847, %v6847
      %v6857 = vmul.f32 %v6856, -0.00019511016
      %v6858 = vadd.f32 %v6857, 0.008332121
      %v6859 = vmul.f32 %v6856, %v6858
      %v6860 = vadd.f32 %v6859, -0.16666654
      %v6861 = vmul.f32 %v6856, %v6860
      %v6862 = vadd.f32 %v6861, 1.0
      %v6863 = vmul.f32 %v6862, %v6847
      %vm6864 = vweird.f32 %v602
      %v6865 = vadd.s32 %v6848, 3
      %v6866 = vand.u32 %v6865, 3
      %vm6867 = vcmp.lt.s32.totalorder %v6866, 2
      %vm6868 = vcmp.eq.s32.totalorder %v6866, 0
      %v6869 = vxor.u32 %v6863, 2147483648
      %v6870 = vsel %vm6868, %v6855, %v6869
      %vm6871 = vcmp.eq.s32.totalorder %v6866, 2
      %v6872 = vxor.u32 %v6855, 2147483648
      %v6873 = vsel %vm6871, %v6872, %v6863
      %v6874 = vsel %vm6867, %v6870, %v6873
      %v6875 = vsel %vm6864, nan, %v6874
      %v6876 = vand.u32 2147483647, %v605
      %vm6877 = vcmp.le.f32.partialorder %v6876, 0.7853982
      %vm6878 = vcmp.lt.s32.totalorder %v605, 0
      %v6879 = vand.u32 %v605, 2139095040
      %v6880 = vshrl.u32 %v6879, 23
      %v6881 = vsub.s32 %v6880, 127
      %v6882 = vand.u32 2147483647, %v605
      %v6883 = vand.u32 %v6882, 8388607
      %v6884 = vor.u32 %v6883, 8388608
      %v6885 = vsub.s32 0, %v6884
      %v6886 = vadd.s32 %v6881, 1
      %vm6887 = vcmp.gt.s32.totalorder %v6886, 0
      %v6888 = vsel %vm6887, %v6886, 0
      %v6889 = vshrl.u32 %v6888, 5
      %v6890 = vand.u32 %v6888, 31
      %v6891 = vsub.s32 32, %v6890
      %v6892 = vshrl.u32 683565275, %v6891
      %v6893 = vshll.u32 683565275, %v6890
      %v6894 = vshrl.u32 2475754826, %v6891
      %v6895 = vor.u32 %v6893, %v6894
      %v6896 = vshll.u32 2475754826, %v6890
      %v6897 = vshrl.u32 2131351028, %v6891
      %v6898 = vor.u32 %v6896, %v6897
      %v6899 = vshll.u32 2131351028, %v6890
      %v6900 = vshrl.u32 2102212464, %v6891
      %v6901 = vor.u32 %v6899, %v6900
      %v6902 = vshll.u32 2102212464, %v6890
      %v6903 = vshrl.u32 920167782, %v6891
      %v6904 = vor.u32 %v6902, %v6903
      %v6905 = vshll.u32 920167782, %v6890
      %v6906 = vshrl.u32 1326507024, %v6891
      %v6907 = vor.u32 %v6905, %v6906
      %vm6908 = vcmp.lt.s32.totalorder %v6889, 1
      %vm6909 = vcmp.lt.s32.totalorder %v6889, 2
      %vm6910 = vcmp.lt.s32.totalorder %v6889, 3
      %vm6911 = vcmp.lt.s32.totalorder %v6889, 4
      %v6912 = vsel %vm6908, %v6892, %v6895
      %v6913 = vsel %vm6911, %v6901, 2102212464
      %v6914 = vsel %vm6910, %v6898, %v6913
      %v6915 = vsel %vm6909, %v6912, %v6914
      %v6916 = vsel %vm6908, %v6895, %v6898
      %v6917 = vsel %vm6911, %v6904, 920167782
      %v6918 = vsel %vm6910, %v6901, %v6917
      %v6919 = vsel %vm6909, %v6916, %v6918
      %v6920 = vsel %vm6908, %v6898, %v6901
      %v6921 = vsel %vm6911, %v6907, 1326507024
      %v6922 = vsel %vm6910, %v6904, %v6921
      %v6923 = vsel %vm6909, %v6920, %v6922
      %v6924 = vshll.u32 %v6884, 8
      %v6925 = vand.u32 %v6924, 65535
      %v6926 = vshrl.u32 %v6924, 16
      %v6927 = vand.u32 %v6923, 65535
      %v6928 = vshrl.u32 %v6923, 16
      %v6929 = vmul.u32 %v6925, %v6927
      %v6930 = vmul.u32 %v6925, %v6928
      %v6931 = vmul.u32 %v6926, %v6927
      %v6932 = vmul.u32 %v6926, %v6928
      %v6933 = vshll.u32 %v6930, 16
      %v6934 = vshrl.u32 %v6930, 16
      %v6935 = vshll.u32 %v6931, 16
      %v6936 = vshrl.u32 %v6931, 16
      %vm6937 = vc.u32 %v6929, %v6933
      %v6938 = vsel %vm6937, 1, 0
      %v6939 = vadd.s32 %v6929, %v6933
      %v6940 = vadd.s32 %v6932, %v6938
      %vm6941 = vc.u32 %v6939, %v6935
      %v6942 = vsel %vm6941, 1, 0
      %v6943 = vadd.s32 %v6939, %v6935
      %v6944 = vadd.s32 %v6940, %v6942
      %v6945 = vadd.s32 %v6944, %v6934
      %v6946 = vadd.s32 %v6945, %v6936
      %v6947 = vand.u32 %v6924, 65535
      %v6948 = vshrl.u32 %v6924, 16
      %v6949 = vand.u32 %v6919, 65535
      %v6950 = vshrl.u32 %v6919, 16
      %v6951 = vmul.u32 %v6947, %v6949
      %v6952 = vmul.u32 %v6947, %v6950
      %v6953 = vmul.u32 %v6948, %v6949
      %v6954 = vmul.u32 %v6948, %v6950
      %v6955 = vshll.u32 %v6952, 16
      %v6956 = vshrl.u32 %v6952, 16
      %v6957 = vshll.u32 %v6953, 16
      %v6958 = vshrl.u32 %v6953, 16
      %vm6959 = vc.u32 %v6951, %v6955
      %v6960 = vsel %vm6959, 1, 0
      %v6961 = vadd.s32 %v6951, %v6955
      %v6962 = vadd.s32 %v6954, %v6960
      %vm6963 = vc.u32 %v6961, %v6957
      %v6964 = vsel %vm6963, 1, 0
      %v6965 = vadd.s32 %v6961, %v6957
      %v6966 = vadd.s32 %v6962, %v6964
      %v6967 = vadd.s32 %v6966, %v6956
      %v6968 = vadd.s32 %v6967, %v6958
      %v6969 = vmul.u32 %v6924, %v6915
      %v6970 = vadd.s32 %v6946, %v6965
      %vm6971 = vc.u32 %v6946, %v6965
      %v6972 = vadd.s32 %v6968, 1
      %v6973 = vsel %vm6971, %v6972, %v6968
      %v6974 = vadd.s32 %v6969, %v6973
      %v6975 = vadd.s32 %v6974, 536870912
      %v6976 = vshrl.u32 %v6975, 30
      %v6977 = vshll.u32 %v6976, 30
      %v6978 = vsub.s32 %v6974, %v6977
      %vm6979 = vcmp.lt.s32.totalorder %v6978, 0
      %v6980 = vsub.s32 0, %v6978
      %v6981 = vsel %vm6979, %v6980, %v6978
      %v6982 = vclz %v6981
      %v6983 = vsub.s32 %v6982, 2
      %vm6984 = vcmp.gt.s32.totalorder 0, %v6983
      %v6985 = vsel %vm6984, 0, %v6983
      %v6986 = vsub.s32 32, %v6985
      %v6987 = vshll.u32 %v6978, %v6985
      %v6988 = vshrl.u32 %v6970, %v6986
      %v6989 = vor.u32 %v6987, %v6988
      %v6990 = vsub.s32 4294967266, %v6985
      %v6991 = vadd.s32 %v6990, 127
      %v6992 = vshll.u32 %v6991, 23
      %v6993 = vor.u32 4788187, %v6992
      %v6994 = vand.u32 2147483647, %v6993
      %v6996 = vcvt.s32.f32 %v6989
      %v6997 = vmul.f32 %v6996, %v6994
      %v6998 = vxor.u32 %v6997, 2147483648
      %v6999 = vsel %vm6878, %v6998, %v6997
      %v7000 = vsub.s32 4, %v6976
      %v7001 = vsel %vm6878, %v7000, %v6976
      %v7002 = vsel %vm6877, %v605, %v6999
      %v7003 = vsel %vm6877, 0, %v7001
      %v7004 = vmul.f32 %v7002, %v7002
      %v7005 = vmul.f32 %v7004, -0.001358992
      %v7006 = vadd.f32 %v7005, 0.041655596
      %v7007 = vmul.f32 %v7004, %v7006
      %v7008 = vadd.f32 %v7007, -0.4999988
      %v7009 = vmul.f32 %v7004, %v7008
      %v7010 = vadd.f32 1.0, %v7009
      %v7011 = vmul.f32 %v7002, %v7002
      %v7012 = vmul.f32 %v7011, -0.00019511016
      %v7013 = vadd.f32 %v7012, 0.008332121
      %v7014 = vmul.f32 %v7011, %v7013
      %v7015 = vadd.f32 %v7014, -0.16666654
      %v7016 = vmul.f32 %v7011, %v7015
      %v7017 = vadd.f32 %v7016, 1.0
      %v7018 = vmul.f32 %v7017, %v7002
      %vm7019 = vweird.f32 %v605
      %v7020 = vadd.s32 %v7003, 3
      %v7021 = vand.u32 %v7020, 3
      %vm7022 = vcmp.lt.s32.totalorder %v7021, 2
      %vm7023 = vcmp.eq.s32.totalorder %v7021, 0
      %v7024 = vxor.u32 %v7018, 2147483648
      %v7025 = vsel %vm7023, %v7010, %v7024
      %vm7026 = vcmp.eq.s32.totalorder %v7021, 2
      %v7027 = vxor.u32 %v7010, 2147483648
      %v7028 = vsel %vm7026, %v7027, %v7018
      %v7029 = vsel %vm7022, %v7025, %v7028
      %v7030 = vsel %vm7019, nan, %v7029
      %v7031 = vand.u32 2147483647, %v608
      %vm7032 = vcmp.le.f32.partialorder %v7031, 0.7853982
      %vm7033 = vcmp.lt.s32.totalorder %v608, 0
      %v7034 = vand.u32 %v608, 2139095040
      %v7035 = vshrl.u32 %v7034, 23
      %v7036 = vsub.s32 %v7035, 127
      %v7037 = vand.u32 2147483647, %v608
      %v7038 = vand.u32 %v7037, 8388607
      %v7039 = vor.u32 %v7038, 8388608
      %v7040 = vsub.s32 0, %v7039
      %v7041 = vadd.s32 %v7036, 1
      %vm7042 = vcmp.gt.s32.totalorder %v7041, 0
      %v7043 = vsel %vm7042, %v7041, 0
      %v7044 = vshrl.u32 %v7043, 5
      %v7045 = vand.u32 %v7043, 31
      %v7046 = vsub.s32 32, %v7045
      %v7047 = vshrl.u32 683565275, %v7046
      %v7048 = vshll.u32 683565275, %v7045
      %v7049 = vshrl.u32 2475754826, %v7046
      %v7050 = vor.u32 %v7048, %v7049
      %v7051 = vshll.u32 2475754826, %v7045
      %v7052 = vshrl.u32 2131351028, %v7046
      %v7053 = vor.u32 %v7051, %v7052
      %v7054 = vshll.u32 2131351028, %v7045
      %v7055 = vshrl.u32 2102212464, %v7046
      %v7056 = vor.u32 %v7054, %v7055
      %v7057 = vshll.u32 2102212464, %v7045
      %v7058 = vshrl.u32 920167782, %v7046
      %v7059 = vor.u32 %v7057, %v7058
      %v7060 = vshll.u32 920167782, %v7045
      %v7061 = vshrl.u32 1326507024, %v7046
      %v7062 = vor.u32 %v7060, %v7061
      %vm7063 = vcmp.lt.s32.totalorder %v7044, 1
      %vm7064 = vcmp.lt.s32.totalorder %v7044, 2
      %vm7065 = vcmp.lt.s32.totalorder %v7044, 3
      %vm7066 = vcmp.lt.s32.totalorder %v7044, 4
      %v7067 = vsel %vm7063, %v7047, %v7050
      %v7068 = vsel %vm7066, %v7056, 2102212464
      %v7069 = vsel %vm7065, %v7053, %v7068
      %v7070 = vsel %vm7064, %v7067, %v7069
      %v7071 = vsel %vm7063, %v7050, %v7053
      %v7072 = vsel %vm7066, %v7059, 920167782
      %v7073 = vsel %vm7065, %v7056, %v7072
      %v7074 = vsel %vm7064, %v7071, %v7073
      %v7075 = vsel %vm7063, %v7053, %v7056
      %v7076 = vsel %vm7066, %v7062, 1326507024
      %v7077 = vsel %vm7065, %v7059, %v7076
      %v7078 = vsel %vm7064, %v7075, %v7077
      %v7079 = vshll.u32 %v7039, 8
      %v7080 = vand.u32 %v7079, 65535
      %v7081 = vshrl.u32 %v7079, 16
      %v7082 = vand.u32 %v7078, 65535
      %v7083 = vshrl.u32 %v7078, 16
      %v7084 = vmul.u32 %v7080, %v7082
      %v7085 = vmul.u32 %v7080, %v7083
      %v7086 = vmul.u32 %v7081, %v7082
      %v7087 = vmul.u32 %v7081, %v7083
      %v7088 = vshll.u32 %v7085, 16
      %v7089 = vshrl.u32 %v7085, 16
      %v7090 = vshll.u32 %v7086, 16
      %v7091 = vshrl.u32 %v7086, 16
      %vm7092 = vc.u32 %v7084, %v7088
      %v7093 = vsel %vm7092, 1, 0
      %v7094 = vadd.s32 %v7084, %v7088
      %v7095 = vadd.s32 %v7087, %v7093
      %vm7096 = vc.u32 %v7094, %v7090
      %v7097 = vsel %vm7096, 1, 0
      %v7098 = vadd.s32 %v7094, %v7090
      %v7099 = vadd.s32 %v7095, %v7097
      %v7100 = vadd.s32 %v7099, %v7089
      %v7101 = vadd.s32 %v7100, %v7091
      %v7102 = vand.u32 %v7079, 65535
      %v7103 = vshrl.u32 %v7079, 16
      %v7104 = vand.u32 %v7074, 65535
      %v7105 = vshrl.u32 %v7074, 16
      %v7106 = vmul.u32 %v7102, %v7104
      %v7107 = vmul.u32 %v7102, %v7105
      %v7108 = vmul.u32 %v7103, %v7104
      %v7109 = vmul.u32 %v7103, %v7105
      %v7110 = vshll.u32 %v7107, 16
      %v7111 = vshrl.u32 %v7107, 16
      %v7112 = vshll.u32 %v7108, 16
      %v7113 = vshrl.u32 %v7108, 16
      %vm7114 = vc.u32 %v7106, %v7110
      %v7115 = vsel %vm7114, 1, 0
      %v7116 = vadd.s32 %v7106, %v7110
      %v7117 = vadd.s32 %v7109, %v7115
      %vm7118 = vc.u32 %v7116, %v7112
      %v7119 = vsel %vm7118, 1, 0
      %v7120 = vadd.s32 %v7116, %v7112
      %v7121 = vadd.s32 %v7117, %v7119
      %v7122 = vadd.s32 %v7121, %v7111
      %v7123 = vadd.s32 %v7122, %v7113
      %v7124 = vmul.u32 %v7079, %v7070
      %v7125 = vadd.s32 %v7101, %v7120
      %vm7126 = vc.u32 %v7101, %v7120
      %v7127 = vadd.s32 %v7123, 1
      %v7128 = vsel %vm7126, %v7127, %v7123
      %v7129 = vadd.s32 %v7124, %v7128
      %v7130 = vadd.s32 %v7129, 536870912
      %v7131 = vshrl.u32 %v7130, 30
      %v7132 = vshll.u32 %v7131, 30
      %v7133 = vsub.s32 %v7129, %v7132
      %vm7134 = vcmp.lt.s32.totalorder %v7133, 0
      %v7135 = vsub.s32 0, %v7133
      %v7136 = vsel %vm7134, %v7135, %v7133
      %v7137 = vclz %v7136
      %v7138 = vsub.s32 %v7137, 2
      %vm7139 = vcmp.gt.s32.totalorder 0, %v7138
      %v7140 = vsel %vm7139, 0, %v7138
      %v7141 = vsub.s32 32, %v7140
      %v7142 = vshll.u32 %v7133, %v7140
      %v7143 = vshrl.u32 %v7125, %v7141
      %v7144 = vor.u32 %v7142, %v7143
      %v7145 = vsub.s32 4294967266, %v7140
      %v7146 = vadd.s32 %v7145, 127
      %v7147 = vshll.u32 %v7146, 23
      %v7148 = vor.u32 4788187, %v7147
      %v7149 = vand.u32 2147483647, %v7148
      %v7151 = vcvt.s32.f32 %v7144
      %v7152 = vmul.f32 %v7151, %v7149
      %v7153 = vxor.u32 %v7152, 2147483648
      %v7154 = vsel %vm7033, %v7153, %v7152
      %v7155 = vsub.s32 4, %v7131
      %v7156 = vsel %vm7033, %v7155, %v7131
      %v7157 = vsel %vm7032, %v608, %v7154
      %v7158 = vsel %vm7032, 0, %v7156
      %v7159 = vmul.f32 %v7157, %v7157
      %v7160 = vmul.f32 %v7159, -0.001358992
      %v7161 = vadd.f32 %v7160, 0.041655596
      %v7162 = vmul.f32 %v7159, %v7161
      %v7163 = vadd.f32 %v7162, -0.4999988
      %v7164 = vmul.f32 %v7159, %v7163
      %v7165 = vadd.f32 1.0, %v7164
      %v7166 = vmul.f32 %v7157, %v7157
      %v7167 = vmul.f32 %v7166, -0.00019511016
      %v7168 = vadd.f32 %v7167, 0.008332121
      %v7169 = vmul.f32 %v7166, %v7168
      %v7170 = vadd.f32 %v7169, -0.16666654
      %v7171 = vmul.f32 %v7166, %v7170
      %v7172 = vadd.f32 %v7171, 1.0
      %v7173 = vmul.f32 %v7172, %v7157
      %vm7174 = vweird.f32 %v608
      %v7175 = vadd.s32 %v7158, 3
      %v7176 = vand.u32 %v7175, 3
      %vm7177 = vcmp.lt.s32.totalorder %v7176, 2
      %vm7178 = vcmp.eq.s32.totalorder %v7176, 0
      %v7179 = vxor.u32 %v7173, 2147483648
      %v7180 = vsel %vm7178, %v7165, %v7179
      %vm7181 = vcmp.eq.s32.totalorder %v7176, 2
      %v7182 = vxor.u32 %v7165, 2147483648
      %v7183 = vsel %vm7181, %v7182, %v7173
      %v7184 = vsel %vm7177, %v7180, %v7183
      %v7185 = vsel %vm7174, nan, %v7184
      %v7186 = vand.u32 2147483647, %v611
      %vm7187 = vcmp.le.f32.partialorder %v7186, 0.7853982
      %vm7188 = vcmp.lt.s32.totalorder %v611, 0
      %v7189 = vand.u32 %v611, 2139095040
      %v7190 = vshrl.u32 %v7189, 23
      %v7191 = vsub.s32 %v7190, 127
      %v7192 = vand.u32 2147483647, %v611
      %v7193 = vand.u32 %v7192, 8388607
      %v7194 = vor.u32 %v7193, 8388608
      %v7195 = vsub.s32 0, %v7194
      %v7196 = vadd.s32 %v7191, 1
      %vm7197 = vcmp.gt.s32.totalorder %v7196, 0
      %v7198 = vsel %vm7197, %v7196, 0
      %v7199 = vshrl.u32 %v7198, 5
      %v7200 = vand.u32 %v7198, 31
      %v7201 = vsub.s32 32, %v7200
      %v7202 = vshrl.u32 683565275, %v7201
      %v7203 = vshll.u32 683565275, %v7200
      %v7204 = vshrl.u32 2475754826, %v7201
      %v7205 = vor.u32 %v7203, %v7204
      %v7206 = vshll.u32 2475754826, %v7200
      %v7207 = vshrl.u32 2131351028, %v7201
      %v7208 = vor.u32 %v7206, %v7207
      %v7209 = vshll.u32 2131351028, %v7200
      %v7210 = vshrl.u32 2102212464, %v7201
      %v7211 = vor.u32 %v7209, %v7210
      %v7212 = vshll.u32 2102212464, %v7200
      %v7213 = vshrl.u32 920167782, %v7201
      %v7214 = vor.u32 %v7212, %v7213
      %v7215 = vshll.u32 920167782, %v7200
      %v7216 = vshrl.u32 1326507024, %v7201
      %v7217 = vor.u32 %v7215, %v7216
      %vm7218 = vcmp.lt.s32.totalorder %v7199, 1
      %vm7219 = vcmp.lt.s32.totalorder %v7199, 2
      %vm7220 = vcmp.lt.s32.totalorder %v7199, 3
      %vm7221 = vcmp.lt.s32.totalorder %v7199, 4
      %v7222 = vsel %vm7218, %v7202, %v7205
      %v7223 = vsel %vm7221, %v7211, 2102212464
      %v7224 = vsel %vm7220, %v7208, %v7223
      %v7225 = vsel %vm7219, %v7222, %v7224
      %v7226 = vsel %vm7218, %v7205, %v7208
      %v7227 = vsel %vm7221, %v7214, 920167782
      %v7228 = vsel %vm7220, %v7211, %v7227
      %v7229 = vsel %vm7219, %v7226, %v7228
      %v7230 = vsel %vm7218, %v7208, %v7211
      %v7231 = vsel %vm7221, %v7217, 1326507024
      %v7232 = vsel %vm7220, %v7214, %v7231
      %v7233 = vsel %vm7219, %v7230, %v7232
      %v7234 = vshll.u32 %v7194, 8
      %v7235 = vand.u32 %v7234, 65535
      %v7236 = vshrl.u32 %v7234, 16
      %v7237 = vand.u32 %v7233, 65535
      %v7238 = vshrl.u32 %v7233, 16
      %v7239 = vmul.u32 %v7235, %v7237
      %v7240 = vmul.u32 %v7235, %v7238
      %v7241 = vmul.u32 %v7236, %v7237
      %v7242 = vmul.u32 %v7236, %v7238
      %v7243 = vshll.u32 %v7240, 16
      %v7244 = vshrl.u32 %v7240, 16
      %v7245 = vshll.u32 %v7241, 16
      %v7246 = vshrl.u32 %v7241, 16
      %vm7247 = vc.u32 %v7239, %v7243
      %v7248 = vsel %vm7247, 1, 0
      %v7249 = vadd.s32 %v7239, %v7243
      %v7250 = vadd.s32 %v7242, %v7248
      %vm7251 = vc.u32 %v7249, %v7245
      %v7252 = vsel %vm7251, 1, 0
      %v7253 = vadd.s32 %v7249, %v7245
      %v7254 = vadd.s32 %v7250, %v7252
      %v7255 = vadd.s32 %v7254, %v7244
      %v7256 = vadd.s32 %v7255, %v7246
      %v7257 = vand.u32 %v7234, 65535
      %v7258 = vshrl.u32 %v7234, 16
      %v7259 = vand.u32 %v7229, 65535
      %v7260 = vshrl.u32 %v7229, 16
      %v7261 = vmul.u32 %v7257, %v7259
      %v7262 = vmul.u32 %v7257, %v7260
      %v7263 = vmul.u32 %v7258, %v7259
      %v7264 = vmul.u32 %v7258, %v7260
      %v7265 = vshll.u32 %v7262, 16
      %v7266 = vshrl.u32 %v7262, 16
      %v7267 = vshll.u32 %v7263, 16
      %v7268 = vshrl.u32 %v7263, 16
      %vm7269 = vc.u32 %v7261, %v7265
      %v7270 = vsel %vm7269, 1, 0
      %v7271 = vadd.s32 %v7261, %v7265
      %v7272 = vadd.s32 %v7264, %v7270
      %vm7273 = vc.u32 %v7271, %v7267
      %v7274 = vsel %vm7273, 1, 0
      %v7275 = vadd.s32 %v7271, %v7267
      %v7276 = vadd.s32 %v7272, %v7274
      %v7277 = vadd.s32 %v7276, %v7266
      %v7278 = vadd.s32 %v7277, %v7268
      %v7279 = vmul.u32 %v7234, %v7225
      %v7280 = vadd.s32 %v7256, %v7275
      %vm7281 = vc.u32 %v7256, %v7275
      %v7282 = vadd.s32 %v7278, 1
      %v7283 = vsel %vm7281, %v7282, %v7278
      %v7284 = vadd.s32 %v7279, %v7283
      %v7285 = vadd.s32 %v7284, 536870912
      %v7286 = vshrl.u32 %v7285, 30
      %v7287 = vshll.u32 %v7286, 30
      %v7288 = vsub.s32 %v7284, %v7287
      %vm7289 = vcmp.lt.s32.totalorder %v7288, 0
      %v7290 = vsub.s32 0, %v7288
      %v7291 = vsel %vm7289, %v7290, %v7288
      %v7292 = vclz %v7291
      %v7293 = vsub.s32 %v7292, 2
      %vm7294 = vcmp.gt.s32.totalorder 0, %v7293
      %v7295 = vsel %vm7294, 0, %v7293
      %v7296 = vsub.s32 32, %v7295
      %v7297 = vshll.u32 %v7288, %v7295
      %v7298 = vshrl.u32 %v7280, %v7296
      %v7299 = vor.u32 %v7297, %v7298
      %v7300 = vsub.s32 4294967266, %v7295
      %v7301 = vadd.s32 %v7300, 127
      %v7302 = vshll.u32 %v7301, 23
      %v7303 = vor.u32 4788187, %v7302
      %v7304 = vand.u32 2147483647, %v7303
      %v7306 = vcvt.s32.f32 %v7299
      %v7307 = vmul.f32 %v7306, %v7304
      %v7308 = vxor.u32 %v7307, 2147483648
      %v7309 = vsel %vm7188, %v7308, %v7307
      %v7310 = vsub.s32 4, %v7286
      %v7311 = vsel %vm7188, %v7310, %v7286
      %v7312 = vsel %vm7187, %v611, %v7309
      %v7313 = vsel %vm7187, 0, %v7311
      %v7314 = vmul.f32 %v7312, %v7312
      %v7315 = vmul.f32 %v7314, -0.001358992
      %v7316 = vadd.f32 %v7315, 0.041655596
      %v7317 = vmul.f32 %v7314, %v7316
      %v7318 = vadd.f32 %v7317, -0.4999988
      %v7319 = vmul.f32 %v7314, %v7318
      %v7320 = vadd.f32 1.0, %v7319
      %v7321 = vmul.f32 %v7312, %v7312
      %v7322 = vmul.f32 %v7321, -0.00019511016
      %v7323 = vadd.f32 %v7322, 0.008332121
      %v7324 = vmul.f32 %v7321, %v7323
      %v7325 = vadd.f32 %v7324, -0.16666654
      %v7326 = vmul.f32 %v7321, %v7325
      %v7327 = vadd.f32 %v7326, 1.0
      %v7328 = vmul.f32 %v7327, %v7312
      %vm7329 = vweird.f32 %v611
      %v7330 = vadd.s32 %v7313, 3
      %v7331 = vand.u32 %v7330, 3
      %vm7332 = vcmp.lt.s32.totalorder %v7331, 2
      %vm7333 = vcmp.eq.s32.totalorder %v7331, 0
      %v7334 = vxor.u32 %v7328, 2147483648
      %v7335 = vsel %vm7333, %v7320, %v7334
      %vm7336 = vcmp.eq.s32.totalorder %v7331, 2
      %v7337 = vxor.u32 %v7320, 2147483648
      %v7338 = vsel %vm7336, %v7337, %v7328
      %v7339 = vsel %vm7332, %v7335, %v7338
      %v7340 = vsel %vm7329, nan, %v7339
      %v7341 = vand.u32 2147483647, %v614
      %vm7342 = vcmp.le.f32.partialorder %v7341, 0.7853982
      %vm7343 = vcmp.lt.s32.totalorder %v614, 0
      %v7344 = vand.u32 %v614, 2139095040
      %v7345 = vshrl.u32 %v7344, 23
      %v7346 = vsub.s32 %v7345, 127
      %v7347 = vand.u32 2147483647, %v614
      %v7348 = vand.u32 %v7347, 8388607
      %v7349 = vor.u32 %v7348, 8388608
      %v7350 = vsub.s32 0, %v7349
      %v7351 = vadd.s32 %v7346, 1
      %vm7352 = vcmp.gt.s32.totalorder %v7351, 0
      %v7353 = vsel %vm7352, %v7351, 0
      %v7354 = vshrl.u32 %v7353, 5
      %v7355 = vand.u32 %v7353, 31
      %v7356 = vsub.s32 32, %v7355
      %v7357 = vshrl.u32 683565275, %v7356
      %v7358 = vshll.u32 683565275, %v7355
      %v7359 = vshrl.u32 2475754826, %v7356
      %v7360 = vor.u32 %v7358, %v7359
      %v7361 = vshll.u32 2475754826, %v7355
      %v7362 = vshrl.u32 2131351028, %v7356
      %v7363 = vor.u32 %v7361, %v7362
      %v7364 = vshll.u32 2131351028, %v7355
      %v7365 = vshrl.u32 2102212464, %v7356
      %v7366 = vor.u32 %v7364, %v7365
      %v7367 = vshll.u32 2102212464, %v7355
      %v7368 = vshrl.u32 920167782, %v7356
      %v7369 = vor.u32 %v7367, %v7368
      %v7370 = vshll.u32 920167782, %v7355
      %v7371 = vshrl.u32 1326507024, %v7356
      %v7372 = vor.u32 %v7370, %v7371
      %vm7373 = vcmp.lt.s32.totalorder %v7354, 1
      %vm7374 = vcmp.lt.s32.totalorder %v7354, 2
      %vm7375 = vcmp.lt.s32.totalorder %v7354, 3
      %vm7376 = vcmp.lt.s32.totalorder %v7354, 4
      %v7377 = vsel %vm7373, %v7357, %v7360
      %v7378 = vsel %vm7376, %v7366, 2102212464
      %v7379 = vsel %vm7375, %v7363, %v7378
      %v7380 = vsel %vm7374, %v7377, %v7379
      %v7381 = vsel %vm7373, %v7360, %v7363
      %v7382 = vsel %vm7376, %v7369, 920167782
      %v7383 = vsel %vm7375, %v7366, %v7382
      %v7384 = vsel %vm7374, %v7381, %v7383
      %v7385 = vsel %vm7373, %v7363, %v7366
      %v7386 = vsel %vm7376, %v7372, 1326507024
      %v7387 = vsel %vm7375, %v7369, %v7386
      %v7388 = vsel %vm7374, %v7385, %v7387
      %v7389 = vshll.u32 %v7349, 8
      %v7390 = vand.u32 %v7389, 65535
      %v7391 = vshrl.u32 %v7389, 16
      %v7392 = vand.u32 %v7388, 65535
      %v7393 = vshrl.u32 %v7388, 16
      %v7394 = vmul.u32 %v7390, %v7392
      %v7395 = vmul.u32 %v7390, %v7393
      %v7396 = vmul.u32 %v7391, %v7392
      %v7397 = vmul.u32 %v7391, %v7393
      %v7398 = vshll.u32 %v7395, 16
      %v7399 = vshrl.u32 %v7395, 16
      %v7400 = vshll.u32 %v7396, 16
      %v7401 = vshrl.u32 %v7396, 16
      %vm7402 = vc.u32 %v7394, %v7398
      %v7403 = vsel %vm7402, 1, 0
      %v7404 = vadd.s32 %v7394, %v7398
      %v7405 = vadd.s32 %v7397, %v7403
      %vm7406 = vc.u32 %v7404, %v7400
      %v7407 = vsel %vm7406, 1, 0
      %v7408 = vadd.s32 %v7404, %v7400
      %v7409 = vadd.s32 %v7405, %v7407
      %v7410 = vadd.s32 %v7409, %v7399
      %v7411 = vadd.s32 %v7410, %v7401
      %v7412 = vand.u32 %v7389, 65535
      %v7413 = vshrl.u32 %v7389, 16
      %v7414 = vand.u32 %v7384, 65535
      %v7415 = vshrl.u32 %v7384, 16
      %v7416 = vmul.u32 %v7412, %v7414
      %v7417 = vmul.u32 %v7412, %v7415
      %v7418 = vmul.u32 %v7413, %v7414
      %v7419 = vmul.u32 %v7413, %v7415
      %v7420 = vshll.u32 %v7417, 16
      %v7421 = vshrl.u32 %v7417, 16
      %v7422 = vshll.u32 %v7418, 16
      %v7423 = vshrl.u32 %v7418, 16
      %vm7424 = vc.u32 %v7416, %v7420
      %v7425 = vsel %vm7424, 1, 0
      %v7426 = vadd.s32 %v7416, %v7420
      %v7427 = vadd.s32 %v7419, %v7425
      %vm7428 = vc.u32 %v7426, %v7422
      %v7429 = vsel %vm7428, 1, 0
      %v7430 = vadd.s32 %v7426, %v7422
      %v7431 = vadd.s32 %v7427, %v7429
      %v7432 = vadd.s32 %v7431, %v7421
      %v7433 = vadd.s32 %v7432, %v7423
      %v7434 = vmul.u32 %v7389, %v7380
      %v7435 = vadd.s32 %v7411, %v7430
      %vm7436 = vc.u32 %v7411, %v7430
      %v7437 = vadd.s32 %v7433, 1
      %v7438 = vsel %vm7436, %v7437, %v7433
      %v7439 = vadd.s32 %v7434, %v7438
      %v7440 = vadd.s32 %v7439, 536870912
      %v7441 = vshrl.u32 %v7440, 30
      %v7442 = vshll.u32 %v7441, 30
      %v7443 = vsub.s32 %v7439, %v7442
      %vm7444 = vcmp.lt.s32.totalorder %v7443, 0
      %v7445 = vsub.s32 0, %v7443
      %v7446 = vsel %vm7444, %v7445, %v7443
      %v7447 = vclz %v7446
      %v7448 = vsub.s32 %v7447, 2
      %vm7449 = vcmp.gt.s32.totalorder 0, %v7448
      %v7450 = vsel %vm7449, 0, %v7448
      %v7451 = vsub.s32 32, %v7450
      %v7452 = vshll.u32 %v7443, %v7450
      %v7453 = vshrl.u32 %v7435, %v7451
      %v7454 = vor.u32 %v7452, %v7453
      %v7455 = vsub.s32 4294967266, %v7450
      %v7456 = vadd.s32 %v7455, 127
      %v7457 = vshll.u32 %v7456, 23
      %v7458 = vor.u32 4788187, %v7457
      %v7459 = vand.u32 2147483647, %v7458
      %v7461 = vcvt.s32.f32 %v7454
      %v7462 = vmul.f32 %v7461, %v7459
      %v7463 = vxor.u32 %v7462, 2147483648
      %v7464 = vsel %vm7343, %v7463, %v7462
      %v7465 = vsub.s32 4, %v7441
      %v7466 = vsel %vm7343, %v7465, %v7441
      %v7467 = vsel %vm7342, %v614, %v7464
      %v7468 = vsel %vm7342, 0, %v7466
      %v7469 = vmul.f32 %v7467, %v7467
      %v7470 = vmul.f32 %v7469, -0.001358992
      %v7471 = vadd.f32 %v7470, 0.041655596
      %v7472 = vmul.f32 %v7469, %v7471
      %v7473 = vadd.f32 %v7472, -0.4999988
      %v7474 = vmul.f32 %v7469, %v7473
      %v7475 = vadd.f32 1.0, %v7474
      %v7476 = vmul.f32 %v7467, %v7467
      %v7477 = vmul.f32 %v7476, -0.00019511016
      %v7478 = vadd.f32 %v7477, 0.008332121
      %v7479 = vmul.f32 %v7476, %v7478
      %v7480 = vadd.f32 %v7479, -0.16666654
      %v7481 = vmul.f32 %v7476, %v7480
      %v7482 = vadd.f32 %v7481, 1.0
      %v7483 = vmul.f32 %v7482, %v7467
      %vm7484 = vweird.f32 %v614
      %v7485 = vadd.s32 %v7468, 3
      %v7486 = vand.u32 %v7485, 3
      %vm7487 = vcmp.lt.s32.totalorder %v7486, 2
      %vm7488 = vcmp.eq.s32.totalorder %v7486, 0
      %v7489 = vxor.u32 %v7483, 2147483648
      %v7490 = vsel %vm7488, %v7475, %v7489
      %vm7491 = vcmp.eq.s32.totalorder %v7486, 2
      %v7492 = vxor.u32 %v7475, 2147483648
      %v7493 = vsel %vm7491, %v7492, %v7483
      %v7494 = vsel %vm7487, %v7490, %v7493
      %v7495 = vsel %vm7484, nan, %v7494
      %v7496 = vand.u32 2147483647, %v617
      %vm7497 = vcmp.le.f32.partialorder %v7496, 0.7853982
      %vm7498 = vcmp.lt.s32.totalorder %v617, 0
      %v7499 = vand.u32 %v617, 2139095040
      %v7500 = vshrl.u32 %v7499, 23
      %v7501 = vsub.s32 %v7500, 127
      %v7502 = vand.u32 2147483647, %v617
      %v7503 = vand.u32 %v7502, 8388607
      %v7504 = vor.u32 %v7503, 8388608
      %v7505 = vsub.s32 0, %v7504
      %v7506 = vadd.s32 %v7501, 1
      %vm7507 = vcmp.gt.s32.totalorder %v7506, 0
      %v7508 = vsel %vm7507, %v7506, 0
      %v7509 = vshrl.u32 %v7508, 5
      %v7510 = vand.u32 %v7508, 31
      %v7511 = vsub.s32 32, %v7510
      %v7512 = vshrl.u32 683565275, %v7511
      %v7513 = vshll.u32 683565275, %v7510
      %v7514 = vshrl.u32 2475754826, %v7511
      %v7515 = vor.u32 %v7513, %v7514
      %v7516 = vshll.u32 2475754826, %v7510
      %v7517 = vshrl.u32 2131351028, %v7511
      %v7518 = vor.u32 %v7516, %v7517
      %v7519 = vshll.u32 2131351028, %v7510
      %v7520 = vshrl.u32 2102212464, %v7511
      %v7521 = vor.u32 %v7519, %v7520
      %v7522 = vshll.u32 2102212464, %v7510
      %v7523 = vshrl.u32 920167782, %v7511
      %v7524 = vor.u32 %v7522, %v7523
      %v7525 = vshll.u32 920167782, %v7510
      %v7526 = vshrl.u32 1326507024, %v7511
      %v7527 = vor.u32 %v7525, %v7526
      %vm7528 = vcmp.lt.s32.totalorder %v7509, 1
      %vm7529 = vcmp.lt.s32.totalorder %v7509, 2
      %vm7530 = vcmp.lt.s32.totalorder %v7509, 3
      %vm7531 = vcmp.lt.s32.totalorder %v7509, 4
      %v7532 = vsel %vm7528, %v7512, %v7515
      %v7533 = vsel %vm7531, %v7521, 2102212464
      %v7534 = vsel %vm7530, %v7518, %v7533
      %v7535 = vsel %vm7529, %v7532, %v7534
      %v7536 = vsel %vm7528, %v7515, %v7518
      %v7537 = vsel %vm7531, %v7524, 920167782
      %v7538 = vsel %vm7530, %v7521, %v7537
      %v7539 = vsel %vm7529, %v7536, %v7538
      %v7540 = vsel %vm7528, %v7518, %v7521
      %v7541 = vsel %vm7531, %v7527, 1326507024
      %v7542 = vsel %vm7530, %v7524, %v7541
      %v7543 = vsel %vm7529, %v7540, %v7542
      %v7544 = vshll.u32 %v7504, 8
      %v7545 = vand.u32 %v7544, 65535
      %v7546 = vshrl.u32 %v7544, 16
      %v7547 = vand.u32 %v7543, 65535
      %v7548 = vshrl.u32 %v7543, 16
      %v7549 = vmul.u32 %v7545, %v7547
      %v7550 = vmul.u32 %v7545, %v7548
      %v7551 = vmul.u32 %v7546, %v7547
      %v7552 = vmul.u32 %v7546, %v7548
      %v7553 = vshll.u32 %v7550, 16
      %v7554 = vshrl.u32 %v7550, 16
      %v7555 = vshll.u32 %v7551, 16
      %v7556 = vshrl.u32 %v7551, 16
      %vm7557 = vc.u32 %v7549, %v7553
      %v7558 = vsel %vm7557, 1, 0
      %v7559 = vadd.s32 %v7549, %v7553
      %v7560 = vadd.s32 %v7552, %v7558
      %vm7561 = vc.u32 %v7559, %v7555
      %v7562 = vsel %vm7561, 1, 0
      %v7563 = vadd.s32 %v7559, %v7555
      %v7564 = vadd.s32 %v7560, %v7562
      %v7565 = vadd.s32 %v7564, %v7554
      %v7566 = vadd.s32 %v7565, %v7556
      %v7567 = vand.u32 %v7544, 65535
      %v7568 = vshrl.u32 %v7544, 16
      %v7569 = vand.u32 %v7539, 65535
      %v7570 = vshrl.u32 %v7539, 16
      %v7571 = vmul.u32 %v7567, %v7569
      %v7572 = vmul.u32 %v7567, %v7570
      %v7573 = vmul.u32 %v7568, %v7569
      %v7574 = vmul.u32 %v7568, %v7570
      %v7575 = vshll.u32 %v7572, 16
      %v7576 = vshrl.u32 %v7572, 16
      %v7577 = vshll.u32 %v7573, 16
      %v7578 = vshrl.u32 %v7573, 16
      %vm7579 = vc.u32 %v7571, %v7575
      %v7580 = vsel %vm7579, 1, 0
      %v7581 = vadd.s32 %v7571, %v7575
      %v7582 = vadd.s32 %v7574, %v7580
      %vm7583 = vc.u32 %v7581, %v7577
      %v7584 = vsel %vm7583, 1, 0
      %v7585 = vadd.s32 %v7581, %v7577
      %v7586 = vadd.s32 %v7582, %v7584
      %v7587 = vadd.s32 %v7586, %v7576
      %v7588 = vadd.s32 %v7587, %v7578
      %v7589 = vmul.u32 %v7544, %v7535
      %v7590 = vadd.s32 %v7566, %v7585
      %vm7591 = vc.u32 %v7566, %v7585
      %v7592 = vadd.s32 %v7588, 1
      %v7593 = vsel %vm7591, %v7592, %v7588
      %v7594 = vadd.s32 %v7589, %v7593
      %v7595 = vadd.s32 %v7594, 536870912
      %v7596 = vshrl.u32 %v7595, 30
      %v7597 = vshll.u32 %v7596, 30
      %v7598 = vsub.s32 %v7594, %v7597
      %vm7599 = vcmp.lt.s32.totalorder %v7598, 0
      %v7600 = vsub.s32 0, %v7598
      %v7601 = vsel %vm7599, %v7600, %v7598
      %v7602 = vclz %v7601
      %v7603 = vsub.s32 %v7602, 2
      %vm7604 = vcmp.gt.s32.totalorder 0, %v7603
      %v7605 = vsel %vm7604, 0, %v7603
      %v7606 = vsub.s32 32, %v7605
      %v7607 = vshll.u32 %v7598, %v7605
      %v7608 = vshrl.u32 %v7590, %v7606
      %v7609 = vor.u32 %v7607, %v7608
      %v7610 = vsub.s32 4294967266, %v7605
      %v7611 = vadd.s32 %v7610, 127
      %v7612 = vshll.u32 %v7611, 23
      %v7613 = vor.u32 4788187, %v7612
      %v7614 = vand.u32 2147483647, %v7613
      %v7616 = vcvt.s32.f32 %v7609
      %v7617 = vmul.f32 %v7616, %v7614
      %v7618 = vxor.u32 %v7617, 2147483648
      %v7619 = vsel %vm7498, %v7618, %v7617
      %v7620 = vsub.s32 4, %v7596
      %v7621 = vsel %vm7498, %v7620, %v7596
      %v7622 = vsel %vm7497, %v617, %v7619
      %v7623 = vsel %vm7497, 0, %v7621
      %v7624 = vmul.f32 %v7622, %v7622
      %v7625 = vmul.f32 %v7624, -0.001358992
      %v7626 = vadd.f32 %v7625, 0.041655596
      %v7627 = vmul.f32 %v7624, %v7626
      %v7628 = vadd.f32 %v7627, -0.4999988
      %v7629 = vmul.f32 %v7624, %v7628
      %v7630 = vadd.f32 1.0, %v7629
      %v7631 = vmul.f32 %v7622, %v7622
      %v7632 = vmul.f32 %v7631, -0.00019511016
      %v7633 = vadd.f32 %v7632, 0.008332121
      %v7634 = vmul.f32 %v7631, %v7633
      %v7635 = vadd.f32 %v7634, -0.16666654
      %v7636 = vmul.f32 %v7631, %v7635
      %v7637 = vadd.f32 %v7636, 1.0
      %v7638 = vmul.f32 %v7637, %v7622
      %vm7639 = vweird.f32 %v617
      %v7640 = vadd.s32 %v7623, 3
      %v7641 = vand.u32 %v7640, 3
      %vm7642 = vcmp.lt.s32.totalorder %v7641, 2
      %vm7643 = vcmp.eq.s32.totalorder %v7641, 0
      %v7644 = vxor.u32 %v7638, 2147483648
      %v7645 = vsel %vm7643, %v7630, %v7644
      %vm7646 = vcmp.eq.s32.totalorder %v7641, 2
      %v7647 = vxor.u32 %v7630, 2147483648
      %v7648 = vsel %vm7646, %v7647, %v7638
      %v7649 = vsel %vm7642, %v7645, %v7648
      %v7650 = vsel %vm7639, nan, %v7649
      %v7651 = vand.u32 2147483647, %v620
      %vm7652 = vcmp.le.f32.partialorder %v7651, 0.7853982
      %vm7653 = vcmp.lt.s32.totalorder %v620, 0
      %v7654 = vand.u32 %v620, 2139095040
      %v7655 = vshrl.u32 %v7654, 23
      %v7656 = vsub.s32 %v7655, 127
      %v7657 = vand.u32 2147483647, %v620
      %v7658 = vand.u32 %v7657, 8388607
      %v7659 = vor.u32 %v7658, 8388608
      %v7660 = vsub.s32 0, %v7659
      %v7661 = vadd.s32 %v7656, 1
      %vm7662 = vcmp.gt.s32.totalorder %v7661, 0
      %v7663 = vsel %vm7662, %v7661, 0
      %v7664 = vshrl.u32 %v7663, 5
      %v7665 = vand.u32 %v7663, 31
      %v7666 = vsub.s32 32, %v7665
      %v7667 = vshrl.u32 683565275, %v7666
      %v7668 = vshll.u32 683565275, %v7665
      %v7669 = vshrl.u32 2475754826, %v7666
      %v7670 = vor.u32 %v7668, %v7669
      %v7671 = vshll.u32 2475754826, %v7665
      %v7672 = vshrl.u32 2131351028, %v7666
      %v7673 = vor.u32 %v7671, %v7672
      %v7674 = vshll.u32 2131351028, %v7665
      %v7675 = vshrl.u32 2102212464, %v7666
      %v7676 = vor.u32 %v7674, %v7675
      %v7677 = vshll.u32 2102212464, %v7665
      %v7678 = vshrl.u32 920167782, %v7666
      %v7679 = vor.u32 %v7677, %v7678
      %v7680 = vshll.u32 920167782, %v7665
      %v7681 = vshrl.u32 1326507024, %v7666
      %v7682 = vor.u32 %v7680, %v7681
      %vm7683 = vcmp.lt.s32.totalorder %v7664, 1
      %vm7684 = vcmp.lt.s32.totalorder %v7664, 2
      %vm7685 = vcmp.lt.s32.totalorder %v7664, 3
      %vm7686 = vcmp.lt.s32.totalorder %v7664, 4
      %v7687 = vsel %vm7683, %v7667, %v7670
      %v7688 = vsel %vm7686, %v7676, 2102212464
      %v7689 = vsel %vm7685, %v7673, %v7688
      %v7690 = vsel %vm7684, %v7687, %v7689
      %v7691 = vsel %vm7683, %v7670, %v7673
      %v7692 = vsel %vm7686, %v7679, 920167782
      %v7693 = vsel %vm7685, %v7676, %v7692
      %v7694 = vsel %vm7684, %v7691, %v7693
      %v7695 = vsel %vm7683, %v7673, %v7676
      %v7696 = vsel %vm7686, %v7682, 1326507024
      %v7697 = vsel %vm7685, %v7679, %v7696
      %v7698 = vsel %vm7684, %v7695, %v7697
      %v7699 = vshll.u32 %v7659, 8
      %v7700 = vand.u32 %v7699, 65535
      %v7701 = vshrl.u32 %v7699, 16
      %v7702 = vand.u32 %v7698, 65535
      %v7703 = vshrl.u32 %v7698, 16
      %v7704 = vmul.u32 %v7700, %v7702
      %v7705 = vmul.u32 %v7700, %v7703
      %v7706 = vmul.u32 %v7701, %v7702
      %v7707 = vmul.u32 %v7701, %v7703
      %v7708 = vshll.u32 %v7705, 16
      %v7709 = vshrl.u32 %v7705, 16
      %v7710 = vshll.u32 %v7706, 16
      %v7711 = vshrl.u32 %v7706, 16
      %vm7712 = vc.u32 %v7704, %v7708
      %v7713 = vsel %vm7712, 1, 0
      %v7714 = vadd.s32 %v7704, %v7708
      %v7715 = vadd.s32 %v7707, %v7713
      %vm7716 = vc.u32 %v7714, %v7710
      %v7717 = vsel %vm7716, 1, 0
      %v7718 = vadd.s32 %v7714, %v7710
      %v7719 = vadd.s32 %v7715, %v7717
      %v7720 = vadd.s32 %v7719, %v7709
      %v7721 = vadd.s32 %v7720, %v7711
      %v7722 = vand.u32 %v7699, 65535
      %v7723 = vshrl.u32 %v7699, 16
      %v7724 = vand.u32 %v7694, 65535
      %v7725 = vshrl.u32 %v7694, 16
      %v7726 = vmul.u32 %v7722, %v7724
      %v7727 = vmul.u32 %v7722, %v7725
      %v7728 = vmul.u32 %v7723, %v7724
      %v7729 = vmul.u32 %v7723, %v7725
      %v7730 = vshll.u32 %v7727, 16
      %v7731 = vshrl.u32 %v7727, 16
      %v7732 = vshll.u32 %v7728, 16
      %v7733 = vshrl.u32 %v7728, 16
      %vm7734 = vc.u32 %v7726, %v7730
      %v7735 = vsel %vm7734, 1, 0
      %v7736 = vadd.s32 %v7726, %v7730
      %v7737 = vadd.s32 %v7729, %v7735
      %vm7738 = vc.u32 %v7736, %v7732
      %v7739 = vsel %vm7738, 1, 0
      %v7740 = vadd.s32 %v7736, %v7732
      %v7741 = vadd.s32 %v7737, %v7739
      %v7742 = vadd.s32 %v7741, %v7731
      %v7743 = vadd.s32 %v7742, %v7733
      %v7744 = vmul.u32 %v7699, %v7690
      %v7745 = vadd.s32 %v7721, %v7740
      %vm7746 = vc.u32 %v7721, %v7740
      %v7747 = vadd.s32 %v7743, 1
      %v7748 = vsel %vm7746, %v7747, %v7743
      %v7749 = vadd.s32 %v7744, %v7748
      %v7750 = vadd.s32 %v7749, 536870912
      %v7751 = vshrl.u32 %v7750, 30
      %v7752 = vshll.u32 %v7751, 30
      %v7753 = vsub.s32 %v7749, %v7752
      %vm7754 = vcmp.lt.s32.totalorder %v7753, 0
      %v7755 = vsub.s32 0, %v7753
      %v7756 = vsel %vm7754, %v7755, %v7753
      %v7757 = vclz %v7756
      %v7758 = vsub.s32 %v7757, 2
      %vm7759 = vcmp.gt.s32.totalorder 0, %v7758
      %v7760 = vsel %vm7759, 0, %v7758
      %v7761 = vsub.s32 32, %v7760
      %v7762 = vshll.u32 %v7753, %v7760
      %v7763 = vshrl.u32 %v7745, %v7761
      %v7764 = vor.u32 %v7762, %v7763
      %v7765 = vsub.s32 4294967266, %v7760
      %v7766 = vadd.s32 %v7765, 127
      %v7767 = vshll.u32 %v7766, 23
      %v7768 = vor.u32 4788187, %v7767
      %v7769 = vand.u32 2147483647, %v7768
      %v7771 = vcvt.s32.f32 %v7764
      %v7772 = vmul.f32 %v7771, %v7769
      %v7773 = vxor.u32 %v7772, 2147483648
      %v7774 = vsel %vm7653, %v7773, %v7772
      %v7775 = vsub.s32 4, %v7751
      %v7776 = vsel %vm7653, %v7775, %v7751
      %v7777 = vsel %vm7652, %v620, %v7774
      %v7778 = vsel %vm7652, 0, %v7776
      %v7779 = vmul.f32 %v7777, %v7777
      %v7780 = vmul.f32 %v7779, -0.001358992
      %v7781 = vadd.f32 %v7780, 0.041655596
      %v7782 = vmul.f32 %v7779, %v7781
      %v7783 = vadd.f32 %v7782, -0.4999988
      %v7784 = vmul.f32 %v7779, %v7783
      %v7785 = vadd.f32 1.0, %v7784
      %v7786 = vmul.f32 %v7777, %v7777
      %v7787 = vmul.f32 %v7786, -0.00019511016
      %v7788 = vadd.f32 %v7787, 0.008332121
      %v7789 = vmul.f32 %v7786, %v7788
      %v7790 = vadd.f32 %v7789, -0.16666654
      %v7791 = vmul.f32 %v7786, %v7790
      %v7792 = vadd.f32 %v7791, 1.0
      %v7793 = vmul.f32 %v7792, %v7777
      %vm7794 = vweird.f32 %v620
      %v7795 = vadd.s32 %v7778, 3
      %v7796 = vand.u32 %v7795, 3
      %vm7797 = vcmp.lt.s32.totalorder %v7796, 2
      %vm7798 = vcmp.eq.s32.totalorder %v7796, 0
      %v7799 = vxor.u32 %v7793, 2147483648
      %v7800 = vsel %vm7798, %v7785, %v7799
      %vm7801 = vcmp.eq.s32.totalorder %v7796, 2
      %v7802 = vxor.u32 %v7785, 2147483648
      %v7803 = vsel %vm7801, %v7802, %v7793
      %v7804 = vsel %vm7797, %v7800, %v7803
      %v7805 = vsel %vm7794, nan, %v7804
      %v7806 = vand.u32 2147483647, %v623
      %vm7807 = vcmp.le.f32.partialorder %v7806, 0.7853982
      %vm7808 = vcmp.lt.s32.totalorder %v623, 0
      %v7809 = vand.u32 %v623, 2139095040
      %v7810 = vshrl.u32 %v7809, 23
      %v7811 = vsub.s32 %v7810, 127
      %v7812 = vand.u32 2147483647, %v623
      %v7813 = vand.u32 %v7812, 8388607
      %v7814 = vor.u32 %v7813, 8388608
      %v7815 = vsub.s32 0, %v7814
      %v7816 = vadd.s32 %v7811, 1
      %vm7817 = vcmp.gt.s32.totalorder %v7816, 0
      %v7818 = vsel %vm7817, %v7816, 0
      %v7819 = vshrl.u32 %v7818, 5
      %v7820 = vand.u32 %v7818, 31
      %v7821 = vsub.s32 32, %v7820
      %v7822 = vshrl.u32 683565275, %v7821
      %v7823 = vshll.u32 683565275, %v7820
      %v7824 = vshrl.u32 2475754826, %v7821
      %v7825 = vor.u32 %v7823, %v7824
      %v7826 = vshll.u32 2475754826, %v7820
      %v7827 = vshrl.u32 2131351028, %v7821
      %v7828 = vor.u32 %v7826, %v7827
      %v7829 = vshll.u32 2131351028, %v7820
      %v7830 = vshrl.u32 2102212464, %v7821
      %v7831 = vor.u32 %v7829, %v7830
      %v7832 = vshll.u32 2102212464, %v7820
      %v7833 = vshrl.u32 920167782, %v7821
      %v7834 = vor.u32 %v7832, %v7833
      %v7835 = vshll.u32 920167782, %v7820
      %v7836 = vshrl.u32 1326507024, %v7821
      %v7837 = vor.u32 %v7835, %v7836
      %vm7838 = vcmp.lt.s32.totalorder %v7819, 1
      %vm7839 = vcmp.lt.s32.totalorder %v7819, 2
      %vm7840 = vcmp.lt.s32.totalorder %v7819, 3
      %vm7841 = vcmp.lt.s32.totalorder %v7819, 4
      %v7842 = vsel %vm7838, %v7822, %v7825
      %v7843 = vsel %vm7841, %v7831, 2102212464
      %v7844 = vsel %vm7840, %v7828, %v7843
      %v7845 = vsel %vm7839, %v7842, %v7844
      %v7846 = vsel %vm7838, %v7825, %v7828
      %v7847 = vsel %vm7841, %v7834, 920167782
      %v7848 = vsel %vm7840, %v7831, %v7847
      %v7849 = vsel %vm7839, %v7846, %v7848
      %v7850 = vsel %vm7838, %v7828, %v7831
      %v7851 = vsel %vm7841, %v7837, 1326507024
      %v7852 = vsel %vm7840, %v7834, %v7851
      %v7853 = vsel %vm7839, %v7850, %v7852
      %v7854 = vshll.u32 %v7814, 8
      %v7855 = vand.u32 %v7854, 65535
      %v7856 = vshrl.u32 %v7854, 16
      %v7857 = vand.u32 %v7853, 65535
      %v7858 = vshrl.u32 %v7853, 16
      %v7859 = vmul.u32 %v7855, %v7857
      %v7860 = vmul.u32 %v7855, %v7858
      %v7861 = vmul.u32 %v7856, %v7857
      %v7862 = vmul.u32 %v7856, %v7858
      %v7863 = vshll.u32 %v7860, 16
      %v7864 = vshrl.u32 %v7860, 16
      %v7865 = vshll.u32 %v7861, 16
      %v7866 = vshrl.u32 %v7861, 16
      %vm7867 = vc.u32 %v7859, %v7863
      %v7868 = vsel %vm7867, 1, 0
      %v7869 = vadd.s32 %v7859, %v7863
      %v7870 = vadd.s32 %v7862, %v7868
      %vm7871 = vc.u32 %v7869, %v7865
      %v7872 = vsel %vm7871, 1, 0
      %v7873 = vadd.s32 %v7869, %v7865
      %v7874 = vadd.s32 %v7870, %v7872
      %v7875 = vadd.s32 %v7874, %v7864
      %v7876 = vadd.s32 %v7875, %v7866
      %v7877 = vand.u32 %v7854, 65535
      %v7878 = vshrl.u32 %v7854, 16
      %v7879 = vand.u32 %v7849, 65535
      %v7880 = vshrl.u32 %v7849, 16
      %v7881 = vmul.u32 %v7877, %v7879
      %v7882 = vmul.u32 %v7877, %v7880
      %v7883 = vmul.u32 %v7878, %v7879
      %v7884 = vmul.u32 %v7878, %v7880
      %v7885 = vshll.u32 %v7882, 16
      %v7886 = vshrl.u32 %v7882, 16
      %v7887 = vshll.u32 %v7883, 16
      %v7888 = vshrl.u32 %v7883, 16
      %vm7889 = vc.u32 %v7881, %v7885
      %v7890 = vsel %vm7889, 1, 0
      %v7891 = vadd.s32 %v7881, %v7885
      %v7892 = vadd.s32 %v7884, %v7890
      %vm7893 = vc.u32 %v7891, %v7887
      %v7894 = vsel %vm7893, 1, 0
      %v7895 = vadd.s32 %v7891, %v7887
      %v7896 = vadd.s32 %v7892, %v7894
      %v7897 = vadd.s32 %v7896, %v7886
      %v7898 = vadd.s32 %v7897, %v7888
      %v7899 = vmul.u32 %v7854, %v7845
      %v7900 = vadd.s32 %v7876, %v7895
      %vm7901 = vc.u32 %v7876, %v7895
      %v7902 = vadd.s32 %v7898, 1
      %v7903 = vsel %vm7901, %v7902, %v7898
      %v7904 = vadd.s32 %v7899, %v7903
      %v7905 = vadd.s32 %v7904, 536870912
      %v7906 = vshrl.u32 %v7905, 30
      %v7907 = vshll.u32 %v7906, 30
      %v7908 = vsub.s32 %v7904, %v7907
      %vm7909 = vcmp.lt.s32.totalorder %v7908, 0
      %v7910 = vsub.s32 0, %v7908
      %v7911 = vsel %vm7909, %v7910, %v7908
      %v7912 = vclz %v7911
      %v7913 = vsub.s32 %v7912, 2
      %vm7914 = vcmp.gt.s32.totalorder 0, %v7913
      %v7915 = vsel %vm7914, 0, %v7913
      %v7916 = vsub.s32 32, %v7915
      %v7917 = vshll.u32 %v7908, %v7915
      %v7918 = vshrl.u32 %v7900, %v7916
      %v7919 = vor.u32 %v7917, %v7918
      %v7920 = vsub.s32 4294967266, %v7915
      %v7921 = vadd.s32 %v7920, 127
      %v7922 = vshll.u32 %v7921, 23
      %v7923 = vor.u32 4788187, %v7922
      %v7924 = vand.u32 2147483647, %v7923
      %v7926 = vcvt.s32.f32 %v7919
      %v7927 = vmul.f32 %v7926, %v7924
      %v7928 = vxor.u32 %v7927, 2147483648
      %v7929 = vsel %vm7808, %v7928, %v7927
      %v7930 = vsub.s32 4, %v7906
      %v7931 = vsel %vm7808, %v7930, %v7906
      %v7932 = vsel %vm7807, %v623, %v7929
      %v7933 = vsel %vm7807, 0, %v7931
      %v7934 = vmul.f32 %v7932, %v7932
      %v7935 = vmul.f32 %v7934, -0.001358992
      %v7936 = vadd.f32 %v7935, 0.041655596
      %v7937 = vmul.f32 %v7934, %v7936
      %v7938 = vadd.f32 %v7937, -0.4999988
      %v7939 = vmul.f32 %v7934, %v7938
      %v7940 = vadd.f32 1.0, %v7939
      %v7941 = vmul.f32 %v7932, %v7932
      %v7942 = vmul.f32 %v7941, -0.00019511016
      %v7943 = vadd.f32 %v7942, 0.008332121
      %v7944 = vmul.f32 %v7941, %v7943
      %v7945 = vadd.f32 %v7944, -0.16666654
      %v7946 = vmul.f32 %v7941, %v7945
      %v7947 = vadd.f32 %v7946, 1.0
      %v7948 = vmul.f32 %v7947, %v7932
      %vm7949 = vweird.f32 %v623
      %v7950 = vadd.s32 %v7933, 3
      %v7951 = vand.u32 %v7950, 3
      %vm7952 = vcmp.lt.s32.totalorder %v7951, 2
      %vm7953 = vcmp.eq.s32.totalorder %v7951, 0
      %v7954 = vxor.u32 %v7948, 2147483648
      %v7955 = vsel %vm7953, %v7940, %v7954
      %vm7956 = vcmp.eq.s32.totalorder %v7951, 2
      %v7957 = vxor.u32 %v7940, 2147483648
      %v7958 = vsel %vm7956, %v7957, %v7948
      %v7959 = vsel %vm7952, %v7955, %v7958
      %v7960 = vsel %vm7949, nan, %v7959
      %v7961 = vand.u32 2147483647, %v626
      %vm7962 = vcmp.le.f32.partialorder %v7961, 0.7853982
      %vm7963 = vcmp.lt.s32.totalorder %v626, 0
      %v7964 = vand.u32 %v626, 2139095040
      %v7965 = vshrl.u32 %v7964, 23
      %v7966 = vsub.s32 %v7965, 127
      %v7967 = vand.u32 2147483647, %v626
      %v7968 = vand.u32 %v7967, 8388607
      %v7969 = vor.u32 %v7968, 8388608
      %v7970 = vsub.s32 0, %v7969
      %v7971 = vadd.s32 %v7966, 1
      %vm7972 = vcmp.gt.s32.totalorder %v7971, 0
      %v7973 = vsel %vm7972, %v7971, 0
      %v7974 = vshrl.u32 %v7973, 5
      %v7975 = vand.u32 %v7973, 31
      %v7976 = vsub.s32 32, %v7975
      %v7977 = vshrl.u32 683565275, %v7976
      %v7978 = vshll.u32 683565275, %v7975
      %v7979 = vshrl.u32 2475754826, %v7976
      %v7980 = vor.u32 %v7978, %v7979
      %v7981 = vshll.u32 2475754826, %v7975
      %v7982 = vshrl.u32 2131351028, %v7976
      %v7983 = vor.u32 %v7981, %v7982
      %v7984 = vshll.u32 2131351028, %v7975
      %v7985 = vshrl.u32 2102212464, %v7976
      %v7986 = vor.u32 %v7984, %v7985
      %v7987 = vshll.u32 2102212464, %v7975
      %v7988 = vshrl.u32 920167782, %v7976
      %v7989 = vor.u32 %v7987, %v7988
      %v7990 = vshll.u32 920167782, %v7975
      %v7991 = vshrl.u32 1326507024, %v7976
      %v7992 = vor.u32 %v7990, %v7991
      %vm7993 = vcmp.lt.s32.totalorder %v7974, 1
      %vm7994 = vcmp.lt.s32.totalorder %v7974, 2
      %vm7995 = vcmp.lt.s32.totalorder %v7974, 3
      %vm7996 = vcmp.lt.s32.totalorder %v7974, 4
      %v7997 = vsel %vm7993, %v7977, %v7980
      %v7998 = vsel %vm7996, %v7986, 2102212464
      %v7999 = vsel %vm7995, %v7983, %v7998
      %v8000 = vsel %vm7994, %v7997, %v7999
      %v8001 = vsel %vm7993, %v7980, %v7983
      %v8002 = vsel %vm7996, %v7989, 920167782
      %v8003 = vsel %vm7995, %v7986, %v8002
      %v8004 = vsel %vm7994, %v8001, %v8003
      %v8005 = vsel %vm7993, %v7983, %v7986
      %v8006 = vsel %vm7996, %v7992, 1326507024
      %v8007 = vsel %vm7995, %v7989, %v8006
      %v8008 = vsel %vm7994, %v8005, %v8007
      %v8009 = vshll.u32 %v7969, 8
      %v8010 = vand.u32 %v8009, 65535
      %v8011 = vshrl.u32 %v8009, 16
      %v8012 = vand.u32 %v8008, 65535
      %v8013 = vshrl.u32 %v8008, 16
      %v8014 = vmul.u32 %v8010, %v8012
      %v8015 = vmul.u32 %v8010, %v8013
      %v8016 = vmul.u32 %v8011, %v8012
      %v8017 = vmul.u32 %v8011, %v8013
      %v8018 = vshll.u32 %v8015, 16
      %v8019 = vshrl.u32 %v8015, 16
      %v8020 = vshll.u32 %v8016, 16
      %v8021 = vshrl.u32 %v8016, 16
      %vm8022 = vc.u32 %v8014, %v8018
      %v8023 = vsel %vm8022, 1, 0
      %v8024 = vadd.s32 %v8014, %v8018
      %v8025 = vadd.s32 %v8017, %v8023
      %vm8026 = vc.u32 %v8024, %v8020
      %v8027 = vsel %vm8026, 1, 0
      %v8028 = vadd.s32 %v8024, %v8020
      %v8029 = vadd.s32 %v8025, %v8027
      %v8030 = vadd.s32 %v8029, %v8019
      %v8031 = vadd.s32 %v8030, %v8021
      %v8032 = vand.u32 %v8009, 65535
      %v8033 = vshrl.u32 %v8009, 16
      %v8034 = vand.u32 %v8004, 65535
      %v8035 = vshrl.u32 %v8004, 16
      %v8036 = vmul.u32 %v8032, %v8034
      %v8037 = vmul.u32 %v8032, %v8035
      %v8038 = vmul.u32 %v8033, %v8034
      %v8039 = vmul.u32 %v8033, %v8035
      %v8040 = vshll.u32 %v8037, 16
      %v8041 = vshrl.u32 %v8037, 16
      %v8042 = vshll.u32 %v8038, 16
      %v8043 = vshrl.u32 %v8038, 16
      %vm8044 = vc.u32 %v8036, %v8040
      %v8045 = vsel %vm8044, 1, 0
      %v8046 = vadd.s32 %v8036, %v8040
      %v8047 = vadd.s32 %v8039, %v8045
      %vm8048 = vc.u32 %v8046, %v8042
      %v8049 = vsel %vm8048, 1, 0
      %v8050 = vadd.s32 %v8046, %v8042
      %v8051 = vadd.s32 %v8047, %v8049
      %v8052 = vadd.s32 %v8051, %v8041
      %v8053 = vadd.s32 %v8052, %v8043
      %v8054 = vmul.u32 %v8009, %v8000
      %v8055 = vadd.s32 %v8031, %v8050
      %vm8056 = vc.u32 %v8031, %v8050
      %v8057 = vadd.s32 %v8053, 1
      %v8058 = vsel %vm8056, %v8057, %v8053
      %v8059 = vadd.s32 %v8054, %v8058
      %v8060 = vadd.s32 %v8059, 536870912
      %v8061 = vshrl.u32 %v8060, 30
      %v8062 = vshll.u32 %v8061, 30
      %v8063 = vsub.s32 %v8059, %v8062
      %vm8064 = vcmp.lt.s32.totalorder %v8063, 0
      %v8065 = vsub.s32 0, %v8063
      %v8066 = vsel %vm8064, %v8065, %v8063
      %v8067 = vclz %v8066
      %v8068 = vsub.s32 %v8067, 2
      %vm8069 = vcmp.gt.s32.totalorder 0, %v8068
      %v8070 = vsel %vm8069, 0, %v8068
      %v8071 = vsub.s32 32, %v8070
      %v8072 = vshll.u32 %v8063, %v8070
      %v8073 = vshrl.u32 %v8055, %v8071
      %v8074 = vor.u32 %v8072, %v8073
      %v8075 = vsub.s32 4294967266, %v8070
      %v8076 = vadd.s32 %v8075, 127
      %v8077 = vshll.u32 %v8076, 23
      %v8078 = vor.u32 4788187, %v8077
      %v8079 = vand.u32 2147483647, %v8078
      %v8081 = vcvt.s32.f32 %v8074
      %v8082 = vmul.f32 %v8081, %v8079
      %v8083 = vxor.u32 %v8082, 2147483648
      %v8084 = vsel %vm7963, %v8083, %v8082
      %v8085 = vsub.s32 4, %v8061
      %v8086 = vsel %vm7963, %v8085, %v8061
      %v8087 = vsel %vm7962, %v626, %v8084
      %v8088 = vsel %vm7962, 0, %v8086
      %v8089 = vmul.f32 %v8087, %v8087
      %v8090 = vmul.f32 %v8089, -0.001358992
      %v8091 = vadd.f32 %v8090, 0.041655596
      %v8092 = vmul.f32 %v8089, %v8091
      %v8093 = vadd.f32 %v8092, -0.4999988
      %v8094 = vmul.f32 %v8089, %v8093
      %v8095 = vadd.f32 1.0, %v8094
      %v8096 = vmul.f32 %v8087, %v8087
      %v8097 = vmul.f32 %v8096, -0.00019511016
      %v8098 = vadd.f32 %v8097, 0.008332121
      %v8099 = vmul.f32 %v8096, %v8098
      %v8100 = vadd.f32 %v8099, -0.16666654
      %v8101 = vmul.f32 %v8096, %v8100
      %v8102 = vadd.f32 %v8101, 1.0
      %v8103 = vmul.f32 %v8102, %v8087
      %vm8104 = vweird.f32 %v626
      %v8105 = vadd.s32 %v8088, 3
      %v8106 = vand.u32 %v8105, 3
      %vm8107 = vcmp.lt.s32.totalorder %v8106, 2
      %vm8108 = vcmp.eq.s32.totalorder %v8106, 0
      %v8109 = vxor.u32 %v8103, 2147483648
      %v8110 = vsel %vm8108, %v8095, %v8109
      %vm8111 = vcmp.eq.s32.totalorder %v8106, 2
      %v8112 = vxor.u32 %v8095, 2147483648
      %v8113 = vsel %vm8111, %v8112, %v8103
      %v8114 = vsel %vm8107, %v8110, %v8113
      %v8115 = vsel %vm8104, nan, %v8114
      %v8116 = vand.u32 2147483647, %v629
      %vm8117 = vcmp.le.f32.partialorder %v8116, 0.7853982
      %vm8118 = vcmp.lt.s32.totalorder %v629, 0
      %v8119 = vand.u32 %v629, 2139095040
      %v8120 = vshrl.u32 %v8119, 23
      %v8121 = vsub.s32 %v8120, 127
      %v8122 = vand.u32 2147483647, %v629
      %v8123 = vand.u32 %v8122, 8388607
      %v8124 = vor.u32 %v8123, 8388608
      %v8125 = vsub.s32 0, %v8124
      %v8126 = vadd.s32 %v8121, 1
      %vm8127 = vcmp.gt.s32.totalorder %v8126, 0
      %v8128 = vsel %vm8127, %v8126, 0
      %v8129 = vshrl.u32 %v8128, 5
      %v8130 = vand.u32 %v8128, 31
      %v8131 = vsub.s32 32, %v8130
      %v8132 = vshrl.u32 683565275, %v8131
      %v8133 = vshll.u32 683565275, %v8130
      %v8134 = vshrl.u32 2475754826, %v8131
      %v8135 = vor.u32 %v8133, %v8134
      %v8136 = vshll.u32 2475754826, %v8130
      %v8137 = vshrl.u32 2131351028, %v8131
      %v8138 = vor.u32 %v8136, %v8137
      %v8139 = vshll.u32 2131351028, %v8130
      %v8140 = vshrl.u32 2102212464, %v8131
      %v8141 = vor.u32 %v8139, %v8140
      %v8142 = vshll.u32 2102212464, %v8130
      %v8143 = vshrl.u32 920167782, %v8131
      %v8144 = vor.u32 %v8142, %v8143
      %v8145 = vshll.u32 920167782, %v8130
      %v8146 = vshrl.u32 1326507024, %v8131
      %v8147 = vor.u32 %v8145, %v8146
      %vm8148 = vcmp.lt.s32.totalorder %v8129, 1
      %vm8149 = vcmp.lt.s32.totalorder %v8129, 2
      %vm8150 = vcmp.lt.s32.totalorder %v8129, 3
      %vm8151 = vcmp.lt.s32.totalorder %v8129, 4
      %v8152 = vsel %vm8148, %v8132, %v8135
      %v8153 = vsel %vm8151, %v8141, 2102212464
      %v8154 = vsel %vm8150, %v8138, %v8153
      %v8155 = vsel %vm8149, %v8152, %v8154
      %v8156 = vsel %vm8148, %v8135, %v8138
      %v8157 = vsel %vm8151, %v8144, 920167782
      %v8158 = vsel %vm8150, %v8141, %v8157
      %v8159 = vsel %vm8149, %v8156, %v8158
      %v8160 = vsel %vm8148, %v8138, %v8141
      %v8161 = vsel %vm8151, %v8147, 1326507024
      %v8162 = vsel %vm8150, %v8144, %v8161
      %v8163 = vsel %vm8149, %v8160, %v8162
      %v8164 = vshll.u32 %v8124, 8
      %v8165 = vand.u32 %v8164, 65535
      %v8166 = vshrl.u32 %v8164, 16
      %v8167 = vand.u32 %v8163, 65535
      %v8168 = vshrl.u32 %v8163, 16
      %v8169 = vmul.u32 %v8165, %v8167
      %v8170 = vmul.u32 %v8165, %v8168
      %v8171 = vmul.u32 %v8166, %v8167
      %v8172 = vmul.u32 %v8166, %v8168
      %v8173 = vshll.u32 %v8170, 16
      %v8174 = vshrl.u32 %v8170, 16
      %v8175 = vshll.u32 %v8171, 16
      %v8176 = vshrl.u32 %v8171, 16
      %vm8177 = vc.u32 %v8169, %v8173
      %v8178 = vsel %vm8177, 1, 0
      %v8179 = vadd.s32 %v8169, %v8173
      %v8180 = vadd.s32 %v8172, %v8178
      %vm8181 = vc.u32 %v8179, %v8175
      %v8182 = vsel %vm8181, 1, 0
      %v8183 = vadd.s32 %v8179, %v8175
      %v8184 = vadd.s32 %v8180, %v8182
      %v8185 = vadd.s32 %v8184, %v8174
      %v8186 = vadd.s32 %v8185, %v8176
      %v8187 = vand.u32 %v8164, 65535
      %v8188 = vshrl.u32 %v8164, 16
      %v8189 = vand.u32 %v8159, 65535
      %v8190 = vshrl.u32 %v8159, 16
      %v8191 = vmul.u32 %v8187, %v8189
      %v8192 = vmul.u32 %v8187, %v8190
      %v8193 = vmul.u32 %v8188, %v8189
      %v8194 = vmul.u32 %v8188, %v8190
      %v8195 = vshll.u32 %v8192, 16
      %v8196 = vshrl.u32 %v8192, 16
      %v8197 = vshll.u32 %v8193, 16
      %v8198 = vshrl.u32 %v8193, 16
      %vm8199 = vc.u32 %v8191, %v8195
      %v8200 = vsel %vm8199, 1, 0
      %v8201 = vadd.s32 %v8191, %v8195
      %v8202 = vadd.s32 %v8194, %v8200
      %vm8203 = vc.u32 %v8201, %v8197
      %v8204 = vsel %vm8203, 1, 0
      %v8205 = vadd.s32 %v8201, %v8197
      %v8206 = vadd.s32 %v8202, %v8204
      %v8207 = vadd.s32 %v8206, %v8196
      %v8208 = vadd.s32 %v8207, %v8198
      %v8209 = vmul.u32 %v8164, %v8155
      %v8210 = vadd.s32 %v8186, %v8205
      %vm8211 = vc.u32 %v8186, %v8205
      %v8212 = vadd.s32 %v8208, 1
      %v8213 = vsel %vm8211, %v8212, %v8208
      %v8214 = vadd.s32 %v8209, %v8213
      %v8215 = vadd.s32 %v8214, 536870912
      %v8216 = vshrl.u32 %v8215, 30
      %v8217 = vshll.u32 %v8216, 30
      %v8218 = vsub.s32 %v8214, %v8217
      %vm8219 = vcmp.lt.s32.totalorder %v8218, 0
      %v8220 = vsub.s32 0, %v8218
      %v8221 = vsel %vm8219, %v8220, %v8218
      %v8222 = vclz %v8221
      %v8223 = vsub.s32 %v8222, 2
      %vm8224 = vcmp.gt.s32.totalorder 0, %v8223
      %v8225 = vsel %vm8224, 0, %v8223
      %v8226 = vsub.s32 32, %v8225
      %v8227 = vshll.u32 %v8218, %v8225
      %v8228 = vshrl.u32 %v8210, %v8226
      %v8229 = vor.u32 %v8227, %v8228
      %v8230 = vsub.s32 4294967266, %v8225
      %v8231 = vadd.s32 %v8230, 127
      %v8232 = vshll.u32 %v8231, 23
      %v8233 = vor.u32 4788187, %v8232
      %v8234 = vand.u32 2147483647, %v8233
      %v8236 = vcvt.s32.f32 %v8229
      %v8237 = vmul.f32 %v8236, %v8234
      %v8238 = vxor.u32 %v8237, 2147483648
      %v8239 = vsel %vm8118, %v8238, %v8237
      %v8240 = vsub.s32 4, %v8216
      %v8241 = vsel %vm8118, %v8240, %v8216
      %v8242 = vsel %vm8117, %v629, %v8239
      %v8243 = vsel %vm8117, 0, %v8241
      %v8244 = vmul.f32 %v8242, %v8242
      %v8245 = vmul.f32 %v8244, -0.001358992
      %v8246 = vadd.f32 %v8245, 0.041655596
      %v8247 = vmul.f32 %v8244, %v8246
      %v8248 = vadd.f32 %v8247, -0.4999988
      %v8249 = vmul.f32 %v8244, %v8248
      %v8250 = vadd.f32 1.0, %v8249
      %v8251 = vmul.f32 %v8242, %v8242
      %v8252 = vmul.f32 %v8251, -0.00019511016
      %v8253 = vadd.f32 %v8252, 0.008332121
      %v8254 = vmul.f32 %v8251, %v8253
      %v8255 = vadd.f32 %v8254, -0.16666654
      %v8256 = vmul.f32 %v8251, %v8255
      %v8257 = vadd.f32 %v8256, 1.0
      %v8258 = vmul.f32 %v8257, %v8242
      %vm8259 = vweird.f32 %v629
      %v8260 = vadd.s32 %v8243, 3
      %v8261 = vand.u32 %v8260, 3
      %vm8262 = vcmp.lt.s32.totalorder %v8261, 2
      %vm8263 = vcmp.eq.s32.totalorder %v8261, 0
      %v8264 = vxor.u32 %v8258, 2147483648
      %v8265 = vsel %vm8263, %v8250, %v8264
      %vm8266 = vcmp.eq.s32.totalorder %v8261, 2
      %v8267 = vxor.u32 %v8250, 2147483648
      %v8268 = vsel %vm8266, %v8267, %v8258
      %v8269 = vsel %vm8262, %v8265, %v8268
      %v8270 = vsel %vm8259, nan, %v8269
      %v8271 = vand.u32 2147483647, %v632
      %vm8272 = vcmp.le.f32.partialorder %v8271, 0.7853982
      %vm8273 = vcmp.lt.s32.totalorder %v632, 0
      %v8274 = vand.u32 %v632, 2139095040
      %v8275 = vshrl.u32 %v8274, 23
      %v8276 = vsub.s32 %v8275, 127
      %v8277 = vand.u32 2147483647, %v632
      %v8278 = vand.u32 %v8277, 8388607
      %v8279 = vor.u32 %v8278, 8388608
      %v8280 = vsub.s32 0, %v8279
      %v8281 = vadd.s32 %v8276, 1
      %vm8282 = vcmp.gt.s32.totalorder %v8281, 0
      %v8283 = vsel %vm8282, %v8281, 0
      %v8284 = vshrl.u32 %v8283, 5
      %v8285 = vand.u32 %v8283, 31
      %v8286 = vsub.s32 32, %v8285
      %v8287 = vshrl.u32 683565275, %v8286
      %v8288 = vshll.u32 683565275, %v8285
      %v8289 = vshrl.u32 2475754826, %v8286
      %v8290 = vor.u32 %v8288, %v8289
      %v8291 = vshll.u32 2475754826, %v8285
      %v8292 = vshrl.u32 2131351028, %v8286
      %v8293 = vor.u32 %v8291, %v8292
      %v8294 = vshll.u32 2131351028, %v8285
      %v8295 = vshrl.u32 2102212464, %v8286
      %v8296 = vor.u32 %v8294, %v8295
      %v8297 = vshll.u32 2102212464, %v8285
      %v8298 = vshrl.u32 920167782, %v8286
      %v8299 = vor.u32 %v8297, %v8298
      %v8300 = vshll.u32 920167782, %v8285
      %v8301 = vshrl.u32 1326507024, %v8286
      %v8302 = vor.u32 %v8300, %v8301
      %vm8303 = vcmp.lt.s32.totalorder %v8284, 1
      %vm8304 = vcmp.lt.s32.totalorder %v8284, 2
      %vm8305 = vcmp.lt.s32.totalorder %v8284, 3
      %vm8306 = vcmp.lt.s32.totalorder %v8284, 4
      %v8307 = vsel %vm8303, %v8287, %v8290
      %v8308 = vsel %vm8306, %v8296, 2102212464
      %v8309 = vsel %vm8305, %v8293, %v8308
      %v8310 = vsel %vm8304, %v8307, %v8309
      %v8311 = vsel %vm8303, %v8290, %v8293
      %v8312 = vsel %vm8306, %v8299, 920167782
      %v8313 = vsel %vm8305, %v8296, %v8312
      %v8314 = vsel %vm8304, %v8311, %v8313
      %v8315 = vsel %vm8303, %v8293, %v8296
      %v8316 = vsel %vm8306, %v8302, 1326507024
      %v8317 = vsel %vm8305, %v8299, %v8316
      %v8318 = vsel %vm8304, %v8315, %v8317
      %v8319 = vshll.u32 %v8279, 8
      %v8320 = vand.u32 %v8319, 65535
      %v8321 = vshrl.u32 %v8319, 16
      %v8322 = vand.u32 %v8318, 65535
      %v8323 = vshrl.u32 %v8318, 16
      %v8324 = vmul.u32 %v8320, %v8322
      %v8325 = vmul.u32 %v8320, %v8323
      %v8326 = vmul.u32 %v8321, %v8322
      %v8327 = vmul.u32 %v8321, %v8323
      %v8328 = vshll.u32 %v8325, 16
      %v8329 = vshrl.u32 %v8325, 16
      %v8330 = vshll.u32 %v8326, 16
      %v8331 = vshrl.u32 %v8326, 16
      %vm8332 = vc.u32 %v8324, %v8328
      %v8333 = vsel %vm8332, 1, 0
      %v8334 = vadd.s32 %v8324, %v8328
      %v8335 = vadd.s32 %v8327, %v8333
      %vm8336 = vc.u32 %v8334, %v8330
      %v8337 = vsel %vm8336, 1, 0
      %v8338 = vadd.s32 %v8334, %v8330
      %v8339 = vadd.s32 %v8335, %v8337
      %v8340 = vadd.s32 %v8339, %v8329
      %v8341 = vadd.s32 %v8340, %v8331
      %v8342 = vand.u32 %v8319, 65535
      %v8343 = vshrl.u32 %v8319, 16
      %v8344 = vand.u32 %v8314, 65535
      %v8345 = vshrl.u32 %v8314, 16
      %v8346 = vmul.u32 %v8342, %v8344
      %v8347 = vmul.u32 %v8342, %v8345
      %v8348 = vmul.u32 %v8343, %v8344
      %v8349 = vmul.u32 %v8343, %v8345
      %v8350 = vshll.u32 %v8347, 16
      %v8351 = vshrl.u32 %v8347, 16
      %v8352 = vshll.u32 %v8348, 16
      %v8353 = vshrl.u32 %v8348, 16
      %vm8354 = vc.u32 %v8346, %v8350
      %v8355 = vsel %vm8354, 1, 0
      %v8356 = vadd.s32 %v8346, %v8350
      %v8357 = vadd.s32 %v8349, %v8355
      %vm8358 = vc.u32 %v8356, %v8352
      %v8359 = vsel %vm8358, 1, 0
      %v8360 = vadd.s32 %v8356, %v8352
      %v8361 = vadd.s32 %v8357, %v8359
      %v8362 = vadd.s32 %v8361, %v8351
      %v8363 = vadd.s32 %v8362, %v8353
      %v8364 = vmul.u32 %v8319, %v8310
      %v8365 = vadd.s32 %v8341, %v8360
      %vm8366 = vc.u32 %v8341, %v8360
      %v8367 = vadd.s32 %v8363, 1
      %v8368 = vsel %vm8366, %v8367, %v8363
      %v8369 = vadd.s32 %v8364, %v8368
      %v8370 = vadd.s32 %v8369, 536870912
      %v8371 = vshrl.u32 %v8370, 30
      %v8372 = vshll.u32 %v8371, 30
      %v8373 = vsub.s32 %v8369, %v8372
      %vm8374 = vcmp.lt.s32.totalorder %v8373, 0
      %v8375 = vsub.s32 0, %v8373
      %v8376 = vsel %vm8374, %v8375, %v8373
      %v8377 = vclz %v8376
      %v8378 = vsub.s32 %v8377, 2
      %vm8379 = vcmp.gt.s32.totalorder 0, %v8378
      %v8380 = vsel %vm8379, 0, %v8378
      %v8381 = vsub.s32 32, %v8380
      %v8382 = vshll.u32 %v8373, %v8380
      %v8383 = vshrl.u32 %v8365, %v8381
      %v8384 = vor.u32 %v8382, %v8383
      %v8385 = vsub.s32 4294967266, %v8380
      %v8386 = vadd.s32 %v8385, 127
      %v8387 = vshll.u32 %v8386, 23
      %v8388 = vor.u32 4788187, %v8387
      %v8389 = vand.u32 2147483647, %v8388
      %v8391 = vcvt.s32.f32 %v8384
      %v8392 = vmul.f32 %v8391, %v8389
      %v8393 = vxor.u32 %v8392, 2147483648
      %v8394 = vsel %vm8273, %v8393, %v8392
      %v8395 = vsub.s32 4, %v8371
      %v8396 = vsel %vm8273, %v8395, %v8371
      %v8397 = vsel %vm8272, %v632, %v8394
      %v8398 = vsel %vm8272, 0, %v8396
      %v8399 = vmul.f32 %v8397, %v8397
      %v8400 = vmul.f32 %v8399, -0.001358992
      %v8401 = vadd.f32 %v8400, 0.041655596
      %v8402 = vmul.f32 %v8399, %v8401
      %v8403 = vadd.f32 %v8402, -0.4999988
      %v8404 = vmul.f32 %v8399, %v8403
      %v8405 = vadd.f32 1.0, %v8404
      %v8406 = vmul.f32 %v8397, %v8397
      %v8407 = vmul.f32 %v8406, -0.00019511016
      %v8408 = vadd.f32 %v8407, 0.008332121
      %v8409 = vmul.f32 %v8406, %v8408
      %v8410 = vadd.f32 %v8409, -0.16666654
      %v8411 = vmul.f32 %v8406, %v8410
      %v8412 = vadd.f32 %v8411, 1.0
      %v8413 = vmul.f32 %v8412, %v8397
      %vm8414 = vweird.f32 %v632
      %v8415 = vadd.s32 %v8398, 3
      %v8416 = vand.u32 %v8415, 3
      %vm8417 = vcmp.lt.s32.totalorder %v8416, 2
      %vm8418 = vcmp.eq.s32.totalorder %v8416, 0
      %v8419 = vxor.u32 %v8413, 2147483648
      %v8420 = vsel %vm8418, %v8405, %v8419
      %vm8421 = vcmp.eq.s32.totalorder %v8416, 2
      %v8422 = vxor.u32 %v8405, 2147483648
      %v8423 = vsel %vm8421, %v8422, %v8413
      %v8424 = vsel %vm8417, %v8420, %v8423
      %v8425 = vsel %vm8414, nan, %v8424
      %v8426 = vand.u32 2147483647, %v635
      %vm8427 = vcmp.le.f32.partialorder %v8426, 0.7853982
      %vm8428 = vcmp.lt.s32.totalorder %v635, 0
      %v8429 = vand.u32 %v635, 2139095040
      %v8430 = vshrl.u32 %v8429, 23
      %v8431 = vsub.s32 %v8430, 127
      %v8432 = vand.u32 2147483647, %v635
      %v8433 = vand.u32 %v8432, 8388607
      %v8434 = vor.u32 %v8433, 8388608
      %v8435 = vsub.s32 0, %v8434
      %v8436 = vadd.s32 %v8431, 1
      %vm8437 = vcmp.gt.s32.totalorder %v8436, 0
      %v8438 = vsel %vm8437, %v8436, 0
      %v8439 = vshrl.u32 %v8438, 5
      %v8440 = vand.u32 %v8438, 31
      %v8441 = vsub.s32 32, %v8440
      %v8442 = vshrl.u32 683565275, %v8441
      %v8443 = vshll.u32 683565275, %v8440
      %v8444 = vshrl.u32 2475754826, %v8441
      %v8445 = vor.u32 %v8443, %v8444
      %v8446 = vshll.u32 2475754826, %v8440
      %v8447 = vshrl.u32 2131351028, %v8441
      %v8448 = vor.u32 %v8446, %v8447
      %v8449 = vshll.u32 2131351028, %v8440
      %v8450 = vshrl.u32 2102212464, %v8441
      %v8451 = vor.u32 %v8449, %v8450
      %v8452 = vshll.u32 2102212464, %v8440
      %v8453 = vshrl.u32 920167782, %v8441
      %v8454 = vor.u32 %v8452, %v8453
      %v8455 = vshll.u32 920167782, %v8440
      %v8456 = vshrl.u32 1326507024, %v8441
      %v8457 = vor.u32 %v8455, %v8456
      %vm8458 = vcmp.lt.s32.totalorder %v8439, 1
      %vm8459 = vcmp.lt.s32.totalorder %v8439, 2
      %vm8460 = vcmp.lt.s32.totalorder %v8439, 3
      %vm8461 = vcmp.lt.s32.totalorder %v8439, 4
      %v8462 = vsel %vm8458, %v8442, %v8445
      %v8463 = vsel %vm8461, %v8451, 2102212464
      %v8464 = vsel %vm8460, %v8448, %v8463
      %v8465 = vsel %vm8459, %v8462, %v8464
      %v8466 = vsel %vm8458, %v8445, %v8448
      %v8467 = vsel %vm8461, %v8454, 920167782
      %v8468 = vsel %vm8460, %v8451, %v8467
      %v8469 = vsel %vm8459, %v8466, %v8468
      %v8470 = vsel %vm8458, %v8448, %v8451
      %v8471 = vsel %vm8461, %v8457, 1326507024
      %v8472 = vsel %vm8460, %v8454, %v8471
      %v8473 = vsel %vm8459, %v8470, %v8472
      %v8474 = vshll.u32 %v8434, 8
      %v8475 = vand.u32 %v8474, 65535
      %v8476 = vshrl.u32 %v8474, 16
      %v8477 = vand.u32 %v8473, 65535
      %v8478 = vshrl.u32 %v8473, 16
      %v8479 = vmul.u32 %v8475, %v8477
      %v8480 = vmul.u32 %v8475, %v8478
      %v8481 = vmul.u32 %v8476, %v8477
      %v8482 = vmul.u32 %v8476, %v8478
      %v8483 = vshll.u32 %v8480, 16
      %v8484 = vshrl.u32 %v8480, 16
      %v8485 = vshll.u32 %v8481, 16
      %v8486 = vshrl.u32 %v8481, 16
      %vm8487 = vc.u32 %v8479, %v8483
      %v8488 = vsel %vm8487, 1, 0
      %v8489 = vadd.s32 %v8479, %v8483
      %v8490 = vadd.s32 %v8482, %v8488
      %vm8491 = vc.u32 %v8489, %v8485
      %v8492 = vsel %vm8491, 1, 0
      %v8493 = vadd.s32 %v8489, %v8485
      %v8494 = vadd.s32 %v8490, %v8492
      %v8495 = vadd.s32 %v8494, %v8484
      %v8496 = vadd.s32 %v8495, %v8486
      %v8497 = vand.u32 %v8474, 65535
      %v8498 = vshrl.u32 %v8474, 16
      %v8499 = vand.u32 %v8469, 65535
      %v8500 = vshrl.u32 %v8469, 16
      %v8501 = vmul.u32 %v8497, %v8499
      %v8502 = vmul.u32 %v8497, %v8500
      %v8503 = vmul.u32 %v8498, %v8499
      %v8504 = vmul.u32 %v8498, %v8500
      %v8505 = vshll.u32 %v8502, 16
      %v8506 = vshrl.u32 %v8502, 16
      %v8507 = vshll.u32 %v8503, 16
      %v8508 = vshrl.u32 %v8503, 16
      %vm8509 = vc.u32 %v8501, %v8505
      %v8510 = vsel %vm8509, 1, 0
      %v8511 = vadd.s32 %v8501, %v8505
      %v8512 = vadd.s32 %v8504, %v8510
      %vm8513 = vc.u32 %v8511, %v8507
      %v8514 = vsel %vm8513, 1, 0
      %v8515 = vadd.s32 %v8511, %v8507
      %v8516 = vadd.s32 %v8512, %v8514
      %v8517 = vadd.s32 %v8516, %v8506
      %v8518 = vadd.s32 %v8517, %v8508
      %v8519 = vmul.u32 %v8474, %v8465
      %v8520 = vadd.s32 %v8496, %v8515
      %vm8521 = vc.u32 %v8496, %v8515
      %v8522 = vadd.s32 %v8518, 1
      %v8523 = vsel %vm8521, %v8522, %v8518
      %v8524 = vadd.s32 %v8519, %v8523
      %v8525 = vadd.s32 %v8524, 536870912
      %v8526 = vshrl.u32 %v8525, 30
      %v8527 = vshll.u32 %v8526, 30
      %v8528 = vsub.s32 %v8524, %v8527
      %vm8529 = vcmp.lt.s32.totalorder %v8528, 0
      %v8530 = vsub.s32 0, %v8528
      %v8531 = vsel %vm8529, %v8530, %v8528
      %v8532 = vclz %v8531
      %v8533 = vsub.s32 %v8532, 2
      %vm8534 = vcmp.gt.s32.totalorder 0, %v8533
      %v8535 = vsel %vm8534, 0, %v8533
      %v8536 = vsub.s32 32, %v8535
      %v8537 = vshll.u32 %v8528, %v8535
      %v8538 = vshrl.u32 %v8520, %v8536
      %v8539 = vor.u32 %v8537, %v8538
      %v8540 = vsub.s32 4294967266, %v8535
      %v8541 = vadd.s32 %v8540, 127
      %v8542 = vshll.u32 %v8541, 23
      %v8543 = vor.u32 4788187, %v8542
      %v8544 = vand.u32 2147483647, %v8543
      %v8546 = vcvt.s32.f32 %v8539
      %v8547 = vmul.f32 %v8546, %v8544
      %v8548 = vxor.u32 %v8547, 2147483648
      %v8549 = vsel %vm8428, %v8548, %v8547
      %v8550 = vsub.s32 4, %v8526
      %v8551 = vsel %vm8428, %v8550, %v8526
      %v8552 = vsel %vm8427, %v635, %v8549
      %v8553 = vsel %vm8427, 0, %v8551
      %v8554 = vmul.f32 %v8552, %v8552
      %v8555 = vmul.f32 %v8554, -0.001358992
      %v8556 = vadd.f32 %v8555, 0.041655596
      %v8557 = vmul.f32 %v8554, %v8556
      %v8558 = vadd.f32 %v8557, -0.4999988
      %v8559 = vmul.f32 %v8554, %v8558
      %v8560 = vadd.f32 1.0, %v8559
      %v8561 = vmul.f32 %v8552, %v8552
      %v8562 = vmul.f32 %v8561, -0.00019511016
      %v8563 = vadd.f32 %v8562, 0.008332121
      %v8564 = vmul.f32 %v8561, %v8563
      %v8565 = vadd.f32 %v8564, -0.16666654
      %v8566 = vmul.f32 %v8561, %v8565
      %v8567 = vadd.f32 %v8566, 1.0
      %v8568 = vmul.f32 %v8567, %v8552
      %vm8569 = vweird.f32 %v635
      %v8570 = vadd.s32 %v8553, 3
      %v8571 = vand.u32 %v8570, 3
      %vm8572 = vcmp.lt.s32.totalorder %v8571, 2
      %vm8573 = vcmp.eq.s32.totalorder %v8571, 0
      %v8574 = vxor.u32 %v8568, 2147483648
      %v8575 = vsel %vm8573, %v8560, %v8574
      %vm8576 = vcmp.eq.s32.totalorder %v8571, 2
      %v8577 = vxor.u32 %v8560, 2147483648
      %v8578 = vsel %vm8576, %v8577, %v8568
      %v8579 = vsel %vm8572, %v8575, %v8578
      %v8580 = vsel %vm8569, nan, %v8579
      %v8581 = vand.u32 2147483647, %v638
      %vm8582 = vcmp.le.f32.partialorder %v8581, 0.7853982
      %vm8583 = vcmp.lt.s32.totalorder %v638, 0
      %v8584 = vand.u32 %v638, 2139095040
      %v8585 = vshrl.u32 %v8584, 23
      %v8586 = vsub.s32 %v8585, 127
      %v8587 = vand.u32 2147483647, %v638
      %v8588 = vand.u32 %v8587, 8388607
      %v8589 = vor.u32 %v8588, 8388608
      %v8590 = vsub.s32 0, %v8589
      %v8591 = vadd.s32 %v8586, 1
      %vm8592 = vcmp.gt.s32.totalorder %v8591, 0
      %v8593 = vsel %vm8592, %v8591, 0
      %v8594 = vshrl.u32 %v8593, 5
      %v8595 = vand.u32 %v8593, 31
      %v8596 = vsub.s32 32, %v8595
      %v8597 = vshrl.u32 683565275, %v8596
      %v8598 = vshll.u32 683565275, %v8595
      %v8599 = vshrl.u32 2475754826, %v8596
      %v8600 = vor.u32 %v8598, %v8599
      %v8601 = vshll.u32 2475754826, %v8595
      %v8602 = vshrl.u32 2131351028, %v8596
      %v8603 = vor.u32 %v8601, %v8602
      %v8604 = vshll.u32 2131351028, %v8595
      %v8605 = vshrl.u32 2102212464, %v8596
      %v8606 = vor.u32 %v8604, %v8605
      %v8607 = vshll.u32 2102212464, %v8595
      %v8608 = vshrl.u32 920167782, %v8596
      %v8609 = vor.u32 %v8607, %v8608
      %v8610 = vshll.u32 920167782, %v8595
      %v8611 = vshrl.u32 1326507024, %v8596
      %v8612 = vor.u32 %v8610, %v8611
      %vm8613 = vcmp.lt.s32.totalorder %v8594, 1
      %vm8614 = vcmp.lt.s32.totalorder %v8594, 2
      %vm8615 = vcmp.lt.s32.totalorder %v8594, 3
      %vm8616 = vcmp.lt.s32.totalorder %v8594, 4
      %v8617 = vsel %vm8613, %v8597, %v8600
      %v8618 = vsel %vm8616, %v8606, 2102212464
      %v8619 = vsel %vm8615, %v8603, %v8618
      %v8620 = vsel %vm8614, %v8617, %v8619
      %v8621 = vsel %vm8613, %v8600, %v8603
      %v8622 = vsel %vm8616, %v8609, 920167782
      %v8623 = vsel %vm8615, %v8606, %v8622
      %v8624 = vsel %vm8614, %v8621, %v8623
      %v8625 = vsel %vm8613, %v8603, %v8606
      %v8626 = vsel %vm8616, %v8612, 1326507024
      %v8627 = vsel %vm8615, %v8609, %v8626
      %v8628 = vsel %vm8614, %v8625, %v8627
      %v8629 = vshll.u32 %v8589, 8
      %v8630 = vand.u32 %v8629, 65535
      %v8631 = vshrl.u32 %v8629, 16
      %v8632 = vand.u32 %v8628, 65535
      %v8633 = vshrl.u32 %v8628, 16
      %v8634 = vmul.u32 %v8630, %v8632
      %v8635 = vmul.u32 %v8630, %v8633
      %v8636 = vmul.u32 %v8631, %v8632
      %v8637 = vmul.u32 %v8631, %v8633
      %v8638 = vshll.u32 %v8635, 16
      %v8639 = vshrl.u32 %v8635, 16
      %v8640 = vshll.u32 %v8636, 16
      %v8641 = vshrl.u32 %v8636, 16
      %vm8642 = vc.u32 %v8634, %v8638
      %v8643 = vsel %vm8642, 1, 0
      %v8644 = vadd.s32 %v8634, %v8638
      %v8645 = vadd.s32 %v8637, %v8643
      %vm8646 = vc.u32 %v8644, %v8640
      %v8647 = vsel %vm8646, 1, 0
      %v8648 = vadd.s32 %v8644, %v8640
      %v8649 = vadd.s32 %v8645, %v8647
      %v8650 = vadd.s32 %v8649, %v8639
      %v8651 = vadd.s32 %v8650, %v8641
      %v8652 = vand.u32 %v8629, 65535
      %v8653 = vshrl.u32 %v8629, 16
      %v8654 = vand.u32 %v8624, 65535
      %v8655 = vshrl.u32 %v8624, 16
      %v8656 = vmul.u32 %v8652, %v8654
      %v8657 = vmul.u32 %v8652, %v8655
      %v8658 = vmul.u32 %v8653, %v8654
      %v8659 = vmul.u32 %v8653, %v8655
      %v8660 = vshll.u32 %v8657, 16
      %v8661 = vshrl.u32 %v8657, 16
      %v8662 = vshll.u32 %v8658, 16
      %v8663 = vshrl.u32 %v8658, 16
      %vm8664 = vc.u32 %v8656, %v8660
      %v8665 = vsel %vm8664, 1, 0
      %v8666 = vadd.s32 %v8656, %v8660
      %v8667 = vadd.s32 %v8659, %v8665
      %vm8668 = vc.u32 %v8666, %v8662
      %v8669 = vsel %vm8668, 1, 0
      %v8670 = vadd.s32 %v8666, %v8662
      %v8671 = vadd.s32 %v8667, %v8669
      %v8672 = vadd.s32 %v8671, %v8661
      %v8673 = vadd.s32 %v8672, %v8663
      %v8674 = vmul.u32 %v8629, %v8620
      %v8675 = vadd.s32 %v8651, %v8670
      %vm8676 = vc.u32 %v8651, %v8670
      %v8677 = vadd.s32 %v8673, 1
      %v8678 = vsel %vm8676, %v8677, %v8673
      %v8679 = vadd.s32 %v8674, %v8678
      %v8680 = vadd.s32 %v8679, 536870912
      %v8681 = vshrl.u32 %v8680, 30
      %v8682 = vshll.u32 %v8681, 30
      %v8683 = vsub.s32 %v8679, %v8682
      %vm8684 = vcmp.lt.s32.totalorder %v8683, 0
      %v8685 = vsub.s32 0, %v8683
      %v8686 = vsel %vm8684, %v8685, %v8683
      %v8687 = vclz %v8686
      %v8688 = vsub.s32 %v8687, 2
      %vm8689 = vcmp.gt.s32.totalorder 0, %v8688
      %v8690 = vsel %vm8689, 0, %v8688
      %v8691 = vsub.s32 32, %v8690
      %v8692 = vshll.u32 %v8683, %v8690
      %v8693 = vshrl.u32 %v8675, %v8691
      %v8694 = vor.u32 %v8692, %v8693
      %v8695 = vsub.s32 4294967266, %v8690
      %v8696 = vadd.s32 %v8695, 127
      %v8697 = vshll.u32 %v8696, 23
      %v8698 = vor.u32 4788187, %v8697
      %v8699 = vand.u32 2147483647, %v8698
      %v8701 = vcvt.s32.f32 %v8694
      %v8702 = vmul.f32 %v8701, %v8699
      %v8703 = vxor.u32 %v8702, 2147483648
      %v8704 = vsel %vm8583, %v8703, %v8702
      %v8705 = vsub.s32 4, %v8681
      %v8706 = vsel %vm8583, %v8705, %v8681
      %v8707 = vsel %vm8582, %v638, %v8704
      %v8708 = vsel %vm8582, 0, %v8706
      %v8709 = vmul.f32 %v8707, %v8707
      %v8710 = vmul.f32 %v8709, -0.001358992
      %v8711 = vadd.f32 %v8710, 0.041655596
      %v8712 = vmul.f32 %v8709, %v8711
      %v8713 = vadd.f32 %v8712, -0.4999988
      %v8714 = vmul.f32 %v8709, %v8713
      %v8715 = vadd.f32 1.0, %v8714
      %v8716 = vmul.f32 %v8707, %v8707
      %v8717 = vmul.f32 %v8716, -0.00019511016
      %v8718 = vadd.f32 %v8717, 0.008332121
      %v8719 = vmul.f32 %v8716, %v8718
      %v8720 = vadd.f32 %v8719, -0.16666654
      %v8721 = vmul.f32 %v8716, %v8720
      %v8722 = vadd.f32 %v8721, 1.0
      %v8723 = vmul.f32 %v8722, %v8707
      %vm8724 = vweird.f32 %v638
      %v8725 = vadd.s32 %v8708, 3
      %v8726 = vand.u32 %v8725, 3
      %vm8727 = vcmp.lt.s32.totalorder %v8726, 2
      %vm8728 = vcmp.eq.s32.totalorder %v8726, 0
      %v8729 = vxor.u32 %v8723, 2147483648
      %v8730 = vsel %vm8728, %v8715, %v8729
      %vm8731 = vcmp.eq.s32.totalorder %v8726, 2
      %v8732 = vxor.u32 %v8715, 2147483648
      %v8733 = vsel %vm8731, %v8732, %v8723
      %v8734 = vsel %vm8727, %v8730, %v8733
      %v8735 = vsel %vm8724, nan, %v8734
      %v8736 = vand.u32 2147483647, %v641
      %vm8737 = vcmp.le.f32.partialorder %v8736, 0.7853982
      %vm8738 = vcmp.lt.s32.totalorder %v641, 0
      %v8739 = vand.u32 %v641, 2139095040
      %v8740 = vshrl.u32 %v8739, 23
      %v8741 = vsub.s32 %v8740, 127
      %v8742 = vand.u32 2147483647, %v641
      %v8743 = vand.u32 %v8742, 8388607
      %v8744 = vor.u32 %v8743, 8388608
      %v8745 = vsub.s32 0, %v8744
      %v8746 = vadd.s32 %v8741, 1
      %vm8747 = vcmp.gt.s32.totalorder %v8746, 0
      %v8748 = vsel %vm8747, %v8746, 0
      %v8749 = vshrl.u32 %v8748, 5
      %v8750 = vand.u32 %v8748, 31
      %v8751 = vsub.s32 32, %v8750
      %v8752 = vshrl.u32 683565275, %v8751
      %v8753 = vshll.u32 683565275, %v8750
      %v8754 = vshrl.u32 2475754826, %v8751
      %v8755 = vor.u32 %v8753, %v8754
      %v8756 = vshll.u32 2475754826, %v8750
      %v8757 = vshrl.u32 2131351028, %v8751
      %v8758 = vor.u32 %v8756, %v8757
      %v8759 = vshll.u32 2131351028, %v8750
      %v8760 = vshrl.u32 2102212464, %v8751
      %v8761 = vor.u32 %v8759, %v8760
      %v8762 = vshll.u32 2102212464, %v8750
      %v8763 = vshrl.u32 920167782, %v8751
      %v8764 = vor.u32 %v8762, %v8763
      %v8765 = vshll.u32 920167782, %v8750
      %v8766 = vshrl.u32 1326507024, %v8751
      %v8767 = vor.u32 %v8765, %v8766
      %vm8768 = vcmp.lt.s32.totalorder %v8749, 1
      %vm8769 = vcmp.lt.s32.totalorder %v8749, 2
      %vm8770 = vcmp.lt.s32.totalorder %v8749, 3
      %vm8771 = vcmp.lt.s32.totalorder %v8749, 4
      %v8772 = vsel %vm8768, %v8752, %v8755
      %v8773 = vsel %vm8771, %v8761, 2102212464
      %v8774 = vsel %vm8770, %v8758, %v8773
      %v8775 = vsel %vm8769, %v8772, %v8774
      %v8776 = vsel %vm8768, %v8755, %v8758
      %v8777 = vsel %vm8771, %v8764, 920167782
      %v8778 = vsel %vm8770, %v8761, %v8777
      %v8779 = vsel %vm8769, %v8776, %v8778
      %v8780 = vsel %vm8768, %v8758, %v8761
      %v8781 = vsel %vm8771, %v8767, 1326507024
      %v8782 = vsel %vm8770, %v8764, %v8781
      %v8783 = vsel %vm8769, %v8780, %v8782
      %v8784 = vshll.u32 %v8744, 8
      %v8785 = vand.u32 %v8784, 65535
      %v8786 = vshrl.u32 %v8784, 16
      %v8787 = vand.u32 %v8783, 65535
      %v8788 = vshrl.u32 %v8783, 16
      %v8789 = vmul.u32 %v8785, %v8787
      %v8790 = vmul.u32 %v8785, %v8788
      %v8791 = vmul.u32 %v8786, %v8787
      %v8792 = vmul.u32 %v8786, %v8788
      %v8793 = vshll.u32 %v8790, 16
      %v8794 = vshrl.u32 %v8790, 16
      %v8795 = vshll.u32 %v8791, 16
      %v8796 = vshrl.u32 %v8791, 16
      %vm8797 = vc.u32 %v8789, %v8793
      %v8798 = vsel %vm8797, 1, 0
      %v8799 = vadd.s32 %v8789, %v8793
      %v8800 = vadd.s32 %v8792, %v8798
      %vm8801 = vc.u32 %v8799, %v8795
      %v8802 = vsel %vm8801, 1, 0
      %v8803 = vadd.s32 %v8799, %v8795
      %v8804 = vadd.s32 %v8800, %v8802
      %v8805 = vadd.s32 %v8804, %v8794
      %v8806 = vadd.s32 %v8805, %v8796
      %v8807 = vand.u32 %v8784, 65535
      %v8808 = vshrl.u32 %v8784, 16
      %v8809 = vand.u32 %v8779, 65535
      %v8810 = vshrl.u32 %v8779, 16
      %v8811 = vmul.u32 %v8807, %v8809
      %v8812 = vmul.u32 %v8807, %v8810
      %v8813 = vmul.u32 %v8808, %v8809
      %v8814 = vmul.u32 %v8808, %v8810
      %v8815 = vshll.u32 %v8812, 16
      %v8816 = vshrl.u32 %v8812, 16
      %v8817 = vshll.u32 %v8813, 16
      %v8818 = vshrl.u32 %v8813, 16
      %vm8819 = vc.u32 %v8811, %v8815
      %v8820 = vsel %vm8819, 1, 0
      %v8821 = vadd.s32 %v8811, %v8815
      %v8822 = vadd.s32 %v8814, %v8820
      %vm8823 = vc.u32 %v8821, %v8817
      %v8824 = vsel %vm8823, 1, 0
      %v8825 = vadd.s32 %v8821, %v8817
      %v8826 = vadd.s32 %v8822, %v8824
      %v8827 = vadd.s32 %v8826, %v8816
      %v8828 = vadd.s32 %v8827, %v8818
      %v8829 = vmul.u32 %v8784, %v8775
      %v8830 = vadd.s32 %v8806, %v8825
      %vm8831 = vc.u32 %v8806, %v8825
      %v8832 = vadd.s32 %v8828, 1
      %v8833 = vsel %vm8831, %v8832, %v8828
      %v8834 = vadd.s32 %v8829, %v8833
      %v8835 = vadd.s32 %v8834, 536870912
      %v8836 = vshrl.u32 %v8835, 30
      %v8837 = vshll.u32 %v8836, 30
      %v8838 = vsub.s32 %v8834, %v8837
      %vm8839 = vcmp.lt.s32.totalorder %v8838, 0
      %v8840 = vsub.s32 0, %v8838
      %v8841 = vsel %vm8839, %v8840, %v8838
      %v8842 = vclz %v8841
      %v8843 = vsub.s32 %v8842, 2
      %vm8844 = vcmp.gt.s32.totalorder 0, %v8843
      %v8845 = vsel %vm8844, 0, %v8843
      %v8846 = vsub.s32 32, %v8845
      %v8847 = vshll.u32 %v8838, %v8845
      %v8848 = vshrl.u32 %v8830, %v8846
      %v8849 = vor.u32 %v8847, %v8848
      %v8850 = vsub.s32 4294967266, %v8845
      %v8851 = vadd.s32 %v8850, 127
      %v8852 = vshll.u32 %v8851, 23
      %v8853 = vor.u32 4788187, %v8852
      %v8854 = vand.u32 2147483647, %v8853
      %v8856 = vcvt.s32.f32 %v8849
      %v8857 = vmul.f32 %v8856, %v8854
      %v8858 = vxor.u32 %v8857, 2147483648
      %v8859 = vsel %vm8738, %v8858, %v8857
      %v8860 = vsub.s32 4, %v8836
      %v8861 = vsel %vm8738, %v8860, %v8836
      %v8862 = vsel %vm8737, %v641, %v8859
      %v8863 = vsel %vm8737, 0, %v8861
      %v8864 = vmul.f32 %v8862, %v8862
      %v8865 = vmul.f32 %v8864, -0.001358992
      %v8866 = vadd.f32 %v8865, 0.041655596
      %v8867 = vmul.f32 %v8864, %v8866
      %v8868 = vadd.f32 %v8867, -0.4999988
      %v8869 = vmul.f32 %v8864, %v8868
      %v8870 = vadd.f32 1.0, %v8869
      %v8871 = vmul.f32 %v8862, %v8862
      %v8872 = vmul.f32 %v8871, -0.00019511016
      %v8873 = vadd.f32 %v8872, 0.008332121
      %v8874 = vmul.f32 %v8871, %v8873
      %v8875 = vadd.f32 %v8874, -0.16666654
      %v8876 = vmul.f32 %v8871, %v8875
      %v8877 = vadd.f32 %v8876, 1.0
      %v8878 = vmul.f32 %v8877, %v8862
      %vm8879 = vweird.f32 %v641
      %v8880 = vadd.s32 %v8863, 3
      %v8881 = vand.u32 %v8880, 3
      %vm8882 = vcmp.lt.s32.totalorder %v8881, 2
      %vm8883 = vcmp.eq.s32.totalorder %v8881, 0
      %v8884 = vxor.u32 %v8878, 2147483648
      %v8885 = vsel %vm8883, %v8870, %v8884
      %vm8886 = vcmp.eq.s32.totalorder %v8881, 2
      %v8887 = vxor.u32 %v8870, 2147483648
      %v8888 = vsel %vm8886, %v8887, %v8878
      %v8889 = vsel %vm8882, %v8885, %v8888
      %v8890 = vsel %vm8879, nan, %v8889
      %v8891 = vand.u32 2147483647, %v644
      %vm8892 = vcmp.le.f32.partialorder %v8891, 0.7853982
      %vm8893 = vcmp.lt.s32.totalorder %v644, 0
      %v8894 = vand.u32 %v644, 2139095040
      %v8895 = vshrl.u32 %v8894, 23
      %v8896 = vsub.s32 %v8895, 127
      %v8897 = vand.u32 2147483647, %v644
      %v8898 = vand.u32 %v8897, 8388607
      %v8899 = vor.u32 %v8898, 8388608
      %v8900 = vsub.s32 0, %v8899
      %v8901 = vadd.s32 %v8896, 1
      %vm8902 = vcmp.gt.s32.totalorder %v8901, 0
      %v8903 = vsel %vm8902, %v8901, 0
      %v8904 = vshrl.u32 %v8903, 5
      %v8905 = vand.u32 %v8903, 31
      %v8906 = vsub.s32 32, %v8905
      %v8907 = vshrl.u32 683565275, %v8906
      %v8908 = vshll.u32 683565275, %v8905
      %v8909 = vshrl.u32 2475754826, %v8906
      %v8910 = vor.u32 %v8908, %v8909
      %v8911 = vshll.u32 2475754826, %v8905
      %v8912 = vshrl.u32 2131351028, %v8906
      %v8913 = vor.u32 %v8911, %v8912
      %v8914 = vshll.u32 2131351028, %v8905
      %v8915 = vshrl.u32 2102212464, %v8906
      %v8916 = vor.u32 %v8914, %v8915
      %v8917 = vshll.u32 2102212464, %v8905
      %v8918 = vshrl.u32 920167782, %v8906
      %v8919 = vor.u32 %v8917, %v8918
      %v8920 = vshll.u32 920167782, %v8905
      %v8921 = vshrl.u32 1326507024, %v8906
      %v8922 = vor.u32 %v8920, %v8921
      %vm8923 = vcmp.lt.s32.totalorder %v8904, 1
      %vm8924 = vcmp.lt.s32.totalorder %v8904, 2
      %vm8925 = vcmp.lt.s32.totalorder %v8904, 3
      %vm8926 = vcmp.lt.s32.totalorder %v8904, 4
      %v8927 = vsel %vm8923, %v8907, %v8910
      %v8928 = vsel %vm8926, %v8916, 2102212464
      %v8929 = vsel %vm8925, %v8913, %v8928
      %v8930 = vsel %vm8924, %v8927, %v8929
      %v8931 = vsel %vm8923, %v8910, %v8913
      %v8932 = vsel %vm8926, %v8919, 920167782
      %v8933 = vsel %vm8925, %v8916, %v8932
      %v8934 = vsel %vm8924, %v8931, %v8933
      %v8935 = vsel %vm8923, %v8913, %v8916
      %v8936 = vsel %vm8926, %v8922, 1326507024
      %v8937 = vsel %vm8925, %v8919, %v8936
      %v8938 = vsel %vm8924, %v8935, %v8937
      %v8939 = vshll.u32 %v8899, 8
      %v8940 = vand.u32 %v8939, 65535
      %v8941 = vshrl.u32 %v8939, 16
      %v8942 = vand.u32 %v8938, 65535
      %v8943 = vshrl.u32 %v8938, 16
      %v8944 = vmul.u32 %v8940, %v8942
      %v8945 = vmul.u32 %v8940, %v8943
      %v8946 = vmul.u32 %v8941, %v8942
      %v8947 = vmul.u32 %v8941, %v8943
      %v8948 = vshll.u32 %v8945, 16
      %v8949 = vshrl.u32 %v8945, 16
      %v8950 = vshll.u32 %v8946, 16
      %v8951 = vshrl.u32 %v8946, 16
      %vm8952 = vc.u32 %v8944, %v8948
      %v8953 = vsel %vm8952, 1, 0
      %v8954 = vadd.s32 %v8944, %v8948
      %v8955 = vadd.s32 %v8947, %v8953
      %vm8956 = vc.u32 %v8954, %v8950
      %v8957 = vsel %vm8956, 1, 0
      %v8958 = vadd.s32 %v8954, %v8950
      %v8959 = vadd.s32 %v8955, %v8957
      %v8960 = vadd.s32 %v8959, %v8949
      %v8961 = vadd.s32 %v8960, %v8951
      %v8962 = vand.u32 %v8939, 65535
      %v8963 = vshrl.u32 %v8939, 16
      %v8964 = vand.u32 %v8934, 65535
      %v8965 = vshrl.u32 %v8934, 16
      %v8966 = vmul.u32 %v8962, %v8964
      %v8967 = vmul.u32 %v8962, %v8965
      %v8968 = vmul.u32 %v8963, %v8964
      %v8969 = vmul.u32 %v8963, %v8965
      %v8970 = vshll.u32 %v8967, 16
      %v8971 = vshrl.u32 %v8967, 16
      %v8972 = vshll.u32 %v8968, 16
      %v8973 = vshrl.u32 %v8968, 16
      %vm8974 = vc.u32 %v8966, %v8970
      %v8975 = vsel %vm8974, 1, 0
      %v8976 = vadd.s32 %v8966, %v8970
      %v8977 = vadd.s32 %v8969, %v8975
      %vm8978 = vc.u32 %v8976, %v8972
      %v8979 = vsel %vm8978, 1, 0
      %v8980 = vadd.s32 %v8976, %v8972
      %v8981 = vadd.s32 %v8977, %v8979
      %v8982 = vadd.s32 %v8981, %v8971
      %v8983 = vadd.s32 %v8982, %v8973
      %v8984 = vmul.u32 %v8939, %v8930
      %v8985 = vadd.s32 %v8961, %v8980
      %vm8986 = vc.u32 %v8961, %v8980
      %v8987 = vadd.s32 %v8983, 1
      %v8988 = vsel %vm8986, %v8987, %v8983
      %v8989 = vadd.s32 %v8984, %v8988
      %v8990 = vadd.s32 %v8989, 536870912
      %v8991 = vshrl.u32 %v8990, 30
      %v8992 = vshll.u32 %v8991, 30
      %v8993 = vsub.s32 %v8989, %v8992
      %vm8994 = vcmp.lt.s32.totalorder %v8993, 0
      %v8995 = vsub.s32 0, %v8993
      %v8996 = vsel %vm8994, %v8995, %v8993
      %v8997 = vclz %v8996
      %v8998 = vsub.s32 %v8997, 2
      %vm8999 = vcmp.gt.s32.totalorder 0, %v8998
      %v9000 = vsel %vm8999, 0, %v8998
      %v9001 = vsub.s32 32, %v9000
      %v9002 = vshll.u32 %v8993, %v9000
      %v9003 = vshrl.u32 %v8985, %v9001
      %v9004 = vor.u32 %v9002, %v9003
      %v9005 = vsub.s32 4294967266, %v9000
      %v9006 = vadd.s32 %v9005, 127
      %v9007 = vshll.u32 %v9006, 23
      %v9008 = vor.u32 4788187, %v9007
      %v9009 = vand.u32 2147483647, %v9008
      %v9011 = vcvt.s32.f32 %v9004
      %v9012 = vmul.f32 %v9011, %v9009
      %v9013 = vxor.u32 %v9012, 2147483648
      %v9014 = vsel %vm8893, %v9013, %v9012
      %v9015 = vsub.s32 4, %v8991
      %v9016 = vsel %vm8893, %v9015, %v8991
      %v9017 = vsel %vm8892, %v644, %v9014
      %v9018 = vsel %vm8892, 0, %v9016
      %v9019 = vmul.f32 %v9017, %v9017
      %v9020 = vmul.f32 %v9019, -0.001358992
      %v9021 = vadd.f32 %v9020, 0.041655596
      %v9022 = vmul.f32 %v9019, %v9021
      %v9023 = vadd.f32 %v9022, -0.4999988
      %v9024 = vmul.f32 %v9019, %v9023
      %v9025 = vadd.f32 1.0, %v9024
      %v9026 = vmul.f32 %v9017, %v9017
      %v9027 = vmul.f32 %v9026, -0.00019511016
      %v9028 = vadd.f32 %v9027, 0.008332121
      %v9029 = vmul.f32 %v9026, %v9028
      %v9030 = vadd.f32 %v9029, -0.16666654
      %v9031 = vmul.f32 %v9026, %v9030
      %v9032 = vadd.f32 %v9031, 1.0
      %v9033 = vmul.f32 %v9032, %v9017
      %vm9034 = vweird.f32 %v644
      %v9035 = vadd.s32 %v9018, 3
      %v9036 = vand.u32 %v9035, 3
      %vm9037 = vcmp.lt.s32.totalorder %v9036, 2
      %vm9038 = vcmp.eq.s32.totalorder %v9036, 0
      %v9039 = vxor.u32 %v9033, 2147483648
      %v9040 = vsel %vm9038, %v9025, %v9039
      %vm9041 = vcmp.eq.s32.totalorder %v9036, 2
      %v9042 = vxor.u32 %v9025, 2147483648
      %v9043 = vsel %vm9041, %v9042, %v9033
      %v9044 = vsel %vm9037, %v9040, %v9043
      %v9045 = vsel %vm9034, nan, %v9044
      %v9046 = vand.u32 2147483647, %v647
      %vm9047 = vcmp.le.f32.partialorder %v9046, 0.7853982
      %vm9048 = vcmp.lt.s32.totalorder %v647, 0
      %v9049 = vand.u32 %v647, 2139095040
      %v9050 = vshrl.u32 %v9049, 23
      %v9051 = vsub.s32 %v9050, 127
      %v9052 = vand.u32 2147483647, %v647
      %v9053 = vand.u32 %v9052, 8388607
      %v9054 = vor.u32 %v9053, 8388608
      %v9055 = vsub.s32 0, %v9054
      %v9056 = vadd.s32 %v9051, 1
      %vm9057 = vcmp.gt.s32.totalorder %v9056, 0
      %v9058 = vsel %vm9057, %v9056, 0
      %v9059 = vshrl.u32 %v9058, 5
      %v9060 = vand.u32 %v9058, 31
      %v9061 = vsub.s32 32, %v9060
      %v9062 = vshrl.u32 683565275, %v9061
      %v9063 = vshll.u32 683565275, %v9060
      %v9064 = vshrl.u32 2475754826, %v9061
      %v9065 = vor.u32 %v9063, %v9064
      %v9066 = vshll.u32 2475754826, %v9060
      %v9067 = vshrl.u32 2131351028, %v9061
      %v9068 = vor.u32 %v9066, %v9067
      %v9069 = vshll.u32 2131351028, %v9060
      %v9070 = vshrl.u32 2102212464, %v9061
      %v9071 = vor.u32 %v9069, %v9070
      %v9072 = vshll.u32 2102212464, %v9060
      %v9073 = vshrl.u32 920167782, %v9061
      %v9074 = vor.u32 %v9072, %v9073
      %v9075 = vshll.u32 920167782, %v9060
      %v9076 = vshrl.u32 1326507024, %v9061
      %v9077 = vor.u32 %v9075, %v9076
      %vm9078 = vcmp.lt.s32.totalorder %v9059, 1
      %vm9079 = vcmp.lt.s32.totalorder %v9059, 2
      %vm9080 = vcmp.lt.s32.totalorder %v9059, 3
      %vm9081 = vcmp.lt.s32.totalorder %v9059, 4
      %v9082 = vsel %vm9078, %v9062, %v9065
      %v9083 = vsel %vm9081, %v9071, 2102212464
      %v9084 = vsel %vm9080, %v9068, %v9083
      %v9085 = vsel %vm9079, %v9082, %v9084
      %v9086 = vsel %vm9078, %v9065, %v9068
      %v9087 = vsel %vm9081, %v9074, 920167782
      %v9088 = vsel %vm9080, %v9071, %v9087
      %v9089 = vsel %vm9079, %v9086, %v9088
      %v9090 = vsel %vm9078, %v9068, %v9071
      %v9091 = vsel %vm9081, %v9077, 1326507024
      %v9092 = vsel %vm9080, %v9074, %v9091
      %v9093 = vsel %vm9079, %v9090, %v9092
      %v9094 = vshll.u32 %v9054, 8
      %v9095 = vand.u32 %v9094, 65535
      %v9096 = vshrl.u32 %v9094, 16
      %v9097 = vand.u32 %v9093, 65535
      %v9098 = vshrl.u32 %v9093, 16
      %v9099 = vmul.u32 %v9095, %v9097
      %v9100 = vmul.u32 %v9095, %v9098
      %v9101 = vmul.u32 %v9096, %v9097
      %v9102 = vmul.u32 %v9096, %v9098
      %v9103 = vshll.u32 %v9100, 16
      %v9104 = vshrl.u32 %v9100, 16
      %v9105 = vshll.u32 %v9101, 16
      %v9106 = vshrl.u32 %v9101, 16
      %vm9107 = vc.u32 %v9099, %v9103
      %v9108 = vsel %vm9107, 1, 0
      %v9109 = vadd.s32 %v9099, %v9103
      %v9110 = vadd.s32 %v9102, %v9108
      %vm9111 = vc.u32 %v9109, %v9105
      %v9112 = vsel %vm9111, 1, 0
      %v9113 = vadd.s32 %v9109, %v9105
      %v9114 = vadd.s32 %v9110, %v9112
      %v9115 = vadd.s32 %v9114, %v9104
      %v9116 = vadd.s32 %v9115, %v9106
      %v9117 = vand.u32 %v9094, 65535
      %v9118 = vshrl.u32 %v9094, 16
      %v9119 = vand.u32 %v9089, 65535
      %v9120 = vshrl.u32 %v9089, 16
      %v9121 = vmul.u32 %v9117, %v9119
      %v9122 = vmul.u32 %v9117, %v9120
      %v9123 = vmul.u32 %v9118, %v9119
      %v9124 = vmul.u32 %v9118, %v9120
      %v9125 = vshll.u32 %v9122, 16
      %v9126 = vshrl.u32 %v9122, 16
      %v9127 = vshll.u32 %v9123, 16
      %v9128 = vshrl.u32 %v9123, 16
      %vm9129 = vc.u32 %v9121, %v9125
      %v9130 = vsel %vm9129, 1, 0
      %v9131 = vadd.s32 %v9121, %v9125
      %v9132 = vadd.s32 %v9124, %v9130
      %vm9133 = vc.u32 %v9131, %v9127
      %v9134 = vsel %vm9133, 1, 0
      %v9135 = vadd.s32 %v9131, %v9127
      %v9136 = vadd.s32 %v9132, %v9134
      %v9137 = vadd.s32 %v9136, %v9126
      %v9138 = vadd.s32 %v9137, %v9128
      %v9139 = vmul.u32 %v9094, %v9085
      %v9140 = vadd.s32 %v9116, %v9135
      %vm9141 = vc.u32 %v9116, %v9135
      %v9142 = vadd.s32 %v9138, 1
      %v9143 = vsel %vm9141, %v9142, %v9138
      %v9144 = vadd.s32 %v9139, %v9143
      %v9145 = vadd.s32 %v9144, 536870912
      %v9146 = vshrl.u32 %v9145, 30
      %v9147 = vshll.u32 %v9146, 30
      %v9148 = vsub.s32 %v9144, %v9147
      %vm9149 = vcmp.lt.s32.totalorder %v9148, 0
      %v9150 = vsub.s32 0, %v9148
      %v9151 = vsel %vm9149, %v9150, %v9148
      %v9152 = vclz %v9151
      %v9153 = vsub.s32 %v9152, 2
      %vm9154 = vcmp.gt.s32.totalorder 0, %v9153
      %v9155 = vsel %vm9154, 0, %v9153
      %v9156 = vsub.s32 32, %v9155
      %v9157 = vshll.u32 %v9148, %v9155
      %v9158 = vshrl.u32 %v9140, %v9156
      %v9159 = vor.u32 %v9157, %v9158
      %v9160 = vsub.s32 4294967266, %v9155
      %v9161 = vadd.s32 %v9160, 127
      %v9162 = vshll.u32 %v9161, 23
      %v9163 = vor.u32 4788187, %v9162
      %v9164 = vand.u32 2147483647, %v9163
      %v9166 = vcvt.s32.f32 %v9159
      %v9167 = vmul.f32 %v9166, %v9164
      %v9168 = vxor.u32 %v9167, 2147483648
      %v9169 = vsel %vm9048, %v9168, %v9167
      %v9170 = vsub.s32 4, %v9146
      %v9171 = vsel %vm9048, %v9170, %v9146
      %v9172 = vsel %vm9047, %v647, %v9169
      %v9173 = vsel %vm9047, 0, %v9171
      %v9174 = vmul.f32 %v9172, %v9172
      %v9175 = vmul.f32 %v9174, -0.001358992
      %v9176 = vadd.f32 %v9175, 0.041655596
      %v9177 = vmul.f32 %v9174, %v9176
      %v9178 = vadd.f32 %v9177, -0.4999988
      %v9179 = vmul.f32 %v9174, %v9178
      %v9180 = vadd.f32 1.0, %v9179
      %v9181 = vmul.f32 %v9172, %v9172
      %v9182 = vmul.f32 %v9181, -0.00019511016
      %v9183 = vadd.f32 %v9182, 0.008332121
      %v9184 = vmul.f32 %v9181, %v9183
      %v9185 = vadd.f32 %v9184, -0.16666654
      %v9186 = vmul.f32 %v9181, %v9185
      %v9187 = vadd.f32 %v9186, 1.0
      %v9188 = vmul.f32 %v9187, %v9172
      %vm9189 = vweird.f32 %v647
      %v9190 = vadd.s32 %v9173, 3
      %v9191 = vand.u32 %v9190, 3
      %vm9192 = vcmp.lt.s32.totalorder %v9191, 2
      %vm9193 = vcmp.eq.s32.totalorder %v9191, 0
      %v9194 = vxor.u32 %v9188, 2147483648
      %v9195 = vsel %vm9193, %v9180, %v9194
      %vm9196 = vcmp.eq.s32.totalorder %v9191, 2
      %v9197 = vxor.u32 %v9180, 2147483648
      %v9198 = vsel %vm9196, %v9197, %v9188
      %v9199 = vsel %vm9192, %v9195, %v9198
      %v9200 = vsel %vm9189, nan, %v9199
      %v9201 = vand.u32 2147483647, %v650
      %vm9202 = vcmp.le.f32.partialorder %v9201, 0.7853982
      %vm9203 = vcmp.lt.s32.totalorder %v650, 0
      %v9204 = vand.u32 %v650, 2139095040
      %v9205 = vshrl.u32 %v9204, 23
      %v9206 = vsub.s32 %v9205, 127
      %v9207 = vand.u32 2147483647, %v650
      %v9208 = vand.u32 %v9207, 8388607
      %v9209 = vor.u32 %v9208, 8388608
      %v9210 = vsub.s32 0, %v9209
      %v9211 = vadd.s32 %v9206, 1
      %vm9212 = vcmp.gt.s32.totalorder %v9211, 0
      %v9213 = vsel %vm9212, %v9211, 0
      %v9214 = vshrl.u32 %v9213, 5
      %v9215 = vand.u32 %v9213, 31
      %v9216 = vsub.s32 32, %v9215
      %v9217 = vshrl.u32 683565275, %v9216
      %v9218 = vshll.u32 683565275, %v9215
      %v9219 = vshrl.u32 2475754826, %v9216
      %v9220 = vor.u32 %v9218, %v9219
      %v9221 = vshll.u32 2475754826, %v9215
      %v9222 = vshrl.u32 2131351028, %v9216
      %v9223 = vor.u32 %v9221, %v9222
      %v9224 = vshll.u32 2131351028, %v9215
      %v9225 = vshrl.u32 2102212464, %v9216
      %v9226 = vor.u32 %v9224, %v9225
      %v9227 = vshll.u32 2102212464, %v9215
      %v9228 = vshrl.u32 920167782, %v9216
      %v9229 = vor.u32 %v9227, %v9228
      %v9230 = vshll.u32 920167782, %v9215
      %v9231 = vshrl.u32 1326507024, %v9216
      %v9232 = vor.u32 %v9230, %v9231
      %vm9233 = vcmp.lt.s32.totalorder %v9214, 1
      %vm9234 = vcmp.lt.s32.totalorder %v9214, 2
      %vm9235 = vcmp.lt.s32.totalorder %v9214, 3
      %vm9236 = vcmp.lt.s32.totalorder %v9214, 4
      %v9237 = vsel %vm9233, %v9217, %v9220
      %v9238 = vsel %vm9236, %v9226, 2102212464
      %v9239 = vsel %vm9235, %v9223, %v9238
      %v9240 = vsel %vm9234, %v9237, %v9239
      %v9241 = vsel %vm9233, %v9220, %v9223
      %v9242 = vsel %vm9236, %v9229, 920167782
      %v9243 = vsel %vm9235, %v9226, %v9242
      %v9244 = vsel %vm9234, %v9241, %v9243
      %v9245 = vsel %vm9233, %v9223, %v9226
      %v9246 = vsel %vm9236, %v9232, 1326507024
      %v9247 = vsel %vm9235, %v9229, %v9246
      %v9248 = vsel %vm9234, %v9245, %v9247
      %v9249 = vshll.u32 %v9209, 8
      %v9250 = vand.u32 %v9249, 65535
      %v9251 = vshrl.u32 %v9249, 16
      %v9252 = vand.u32 %v9248, 65535
      %v9253 = vshrl.u32 %v9248, 16
      %v9254 = vmul.u32 %v9250, %v9252
      %v9255 = vmul.u32 %v9250, %v9253
      %v9256 = vmul.u32 %v9251, %v9252
      %v9257 = vmul.u32 %v9251, %v9253
      %v9258 = vshll.u32 %v9255, 16
      %v9259 = vshrl.u32 %v9255, 16
      %v9260 = vshll.u32 %v9256, 16
      %v9261 = vshrl.u32 %v9256, 16
      %vm9262 = vc.u32 %v9254, %v9258
      %v9263 = vsel %vm9262, 1, 0
      %v9264 = vadd.s32 %v9254, %v9258
      %v9265 = vadd.s32 %v9257, %v9263
      %vm9266 = vc.u32 %v9264, %v9260
      %v9267 = vsel %vm9266, 1, 0
      %v9268 = vadd.s32 %v9264, %v9260
      %v9269 = vadd.s32 %v9265, %v9267
      %v9270 = vadd.s32 %v9269, %v9259
      %v9271 = vadd.s32 %v9270, %v9261
      %v9272 = vand.u32 %v9249, 65535
      %v9273 = vshrl.u32 %v9249, 16
      %v9274 = vand.u32 %v9244, 65535
      %v9275 = vshrl.u32 %v9244, 16
      %v9276 = vmul.u32 %v9272, %v9274
      %v9277 = vmul.u32 %v9272, %v9275
      %v9278 = vmul.u32 %v9273, %v9274
      %v9279 = vmul.u32 %v9273, %v9275
      %v9280 = vshll.u32 %v9277, 16
      %v9281 = vshrl.u32 %v9277, 16
      %v9282 = vshll.u32 %v9278, 16
      %v9283 = vshrl.u32 %v9278, 16
      %vm9284 = vc.u32 %v9276, %v9280
      %v9285 = vsel %vm9284, 1, 0
      %v9286 = vadd.s32 %v9276, %v9280
      %v9287 = vadd.s32 %v9279, %v9285
      %vm9288 = vc.u32 %v9286, %v9282
      %v9289 = vsel %vm9288, 1, 0
      %v9290 = vadd.s32 %v9286, %v9282
      %v9291 = vadd.s32 %v9287, %v9289
      %v9292 = vadd.s32 %v9291, %v9281
      %v9293 = vadd.s32 %v9292, %v9283
      %v9294 = vmul.u32 %v9249, %v9240
      %v9295 = vadd.s32 %v9271, %v9290
      %vm9296 = vc.u32 %v9271, %v9290
      %v9297 = vadd.s32 %v9293, 1
      %v9298 = vsel %vm9296, %v9297, %v9293
      %v9299 = vadd.s32 %v9294, %v9298
      %v9300 = vadd.s32 %v9299, 536870912
      %v9301 = vshrl.u32 %v9300, 30
      %v9302 = vshll.u32 %v9301, 30
      %v9303 = vsub.s32 %v9299, %v9302
      %vm9304 = vcmp.lt.s32.totalorder %v9303, 0
      %v9305 = vsub.s32 0, %v9303
      %v9306 = vsel %vm9304, %v9305, %v9303
      %v9307 = vclz %v9306
      %v9308 = vsub.s32 %v9307, 2
      %vm9309 = vcmp.gt.s32.totalorder 0, %v9308
      %v9310 = vsel %vm9309, 0, %v9308
      %v9311 = vsub.s32 32, %v9310
      %v9312 = vshll.u32 %v9303, %v9310
      %v9313 = vshrl.u32 %v9295, %v9311
      %v9314 = vor.u32 %v9312, %v9313
      %v9315 = vsub.s32 4294967266, %v9310
      %v9316 = vadd.s32 %v9315, 127
      %v9317 = vshll.u32 %v9316, 23
      %v9318 = vor.u32 4788187, %v9317
      %v9319 = vand.u32 2147483647, %v9318
      %v9321 = vcvt.s32.f32 %v9314
      %v9322 = vmul.f32 %v9321, %v9319
      %v9323 = vxor.u32 %v9322, 2147483648
      %v9324 = vsel %vm9203, %v9323, %v9322
      %v9325 = vsub.s32 4, %v9301
      %v9326 = vsel %vm9203, %v9325, %v9301
      %v9327 = vsel %vm9202, %v650, %v9324
      %v9328 = vsel %vm9202, 0, %v9326
      %v9329 = vmul.f32 %v9327, %v9327
      %v9330 = vmul.f32 %v9329, -0.001358992
      %v9331 = vadd.f32 %v9330, 0.041655596
      %v9332 = vmul.f32 %v9329, %v9331
      %v9333 = vadd.f32 %v9332, -0.4999988
      %v9334 = vmul.f32 %v9329, %v9333
      %v9335 = vadd.f32 1.0, %v9334
      %v9336 = vmul.f32 %v9327, %v9327
      %v9337 = vmul.f32 %v9336, -0.00019511016
      %v9338 = vadd.f32 %v9337, 0.008332121
      %v9339 = vmul.f32 %v9336, %v9338
      %v9340 = vadd.f32 %v9339, -0.16666654
      %v9341 = vmul.f32 %v9336, %v9340
      %v9342 = vadd.f32 %v9341, 1.0
      %v9343 = vmul.f32 %v9342, %v9327
      %vm9344 = vweird.f32 %v650
      %v9345 = vadd.s32 %v9328, 3
      %v9346 = vand.u32 %v9345, 3
      %vm9347 = vcmp.lt.s32.totalorder %v9346, 2
      %vm9348 = vcmp.eq.s32.totalorder %v9346, 0
      %v9349 = vxor.u32 %v9343, 2147483648
      %v9350 = vsel %vm9348, %v9335, %v9349
      %vm9351 = vcmp.eq.s32.totalorder %v9346, 2
      %v9352 = vxor.u32 %v9335, 2147483648
      %v9353 = vsel %vm9351, %v9352, %v9343
      %v9354 = vsel %vm9347, %v9350, %v9353
      %v9355 = vsel %vm9344, nan, %v9354
      %v9356 = vand.u32 2147483647, %v653
      %vm9357 = vcmp.le.f32.partialorder %v9356, 0.7853982
      %vm9358 = vcmp.lt.s32.totalorder %v653, 0
      %v9359 = vand.u32 %v653, 2139095040
      %v9360 = vshrl.u32 %v9359, 23
      %v9361 = vsub.s32 %v9360, 127
      %v9362 = vand.u32 2147483647, %v653
      %v9363 = vand.u32 %v9362, 8388607
      %v9364 = vor.u32 %v9363, 8388608
      %v9365 = vsub.s32 0, %v9364
      %v9366 = vadd.s32 %v9361, 1
      %vm9367 = vcmp.gt.s32.totalorder %v9366, 0
      %v9368 = vsel %vm9367, %v9366, 0
      %v9369 = vshrl.u32 %v9368, 5
      %v9370 = vand.u32 %v9368, 31
      %v9371 = vsub.s32 32, %v9370
      %v9372 = vshrl.u32 683565275, %v9371
      %v9373 = vshll.u32 683565275, %v9370
      %v9374 = vshrl.u32 2475754826, %v9371
      %v9375 = vor.u32 %v9373, %v9374
      %v9376 = vshll.u32 2475754826, %v9370
      %v9377 = vshrl.u32 2131351028, %v9371
      %v9378 = vor.u32 %v9376, %v9377
      %v9379 = vshll.u32 2131351028, %v9370
      %v9380 = vshrl.u32 2102212464, %v9371
      %v9381 = vor.u32 %v9379, %v9380
      %v9382 = vshll.u32 2102212464, %v9370
      %v9383 = vshrl.u32 920167782, %v9371
      %v9384 = vor.u32 %v9382, %v9383
      %v9385 = vshll.u32 920167782, %v9370
      %v9386 = vshrl.u32 1326507024, %v9371
      %v9387 = vor.u32 %v9385, %v9386
      %vm9388 = vcmp.lt.s32.totalorder %v9369, 1
      %vm9389 = vcmp.lt.s32.totalorder %v9369, 2
      %vm9390 = vcmp.lt.s32.totalorder %v9369, 3
      %vm9391 = vcmp.lt.s32.totalorder %v9369, 4
      %v9392 = vsel %vm9388, %v9372, %v9375
      %v9393 = vsel %vm9391, %v9381, 2102212464
      %v9394 = vsel %vm9390, %v9378, %v9393
      %v9395 = vsel %vm9389, %v9392, %v9394
      %v9396 = vsel %vm9388, %v9375, %v9378
      %v9397 = vsel %vm9391, %v9384, 920167782
      %v9398 = vsel %vm9390, %v9381, %v9397
      %v9399 = vsel %vm9389, %v9396, %v9398
      %v9400 = vsel %vm9388, %v9378, %v9381
      %v9401 = vsel %vm9391, %v9387, 1326507024
      %v9402 = vsel %vm9390, %v9384, %v9401
      %v9403 = vsel %vm9389, %v9400, %v9402
      %v9404 = vshll.u32 %v9364, 8
      %v9405 = vand.u32 %v9404, 65535
      %v9406 = vshrl.u32 %v9404, 16
      %v9407 = vand.u32 %v9403, 65535
      %v9408 = vshrl.u32 %v9403, 16
      %v9409 = vmul.u32 %v9405, %v9407
      %v9410 = vmul.u32 %v9405, %v9408
      %v9411 = vmul.u32 %v9406, %v9407
      %v9412 = vmul.u32 %v9406, %v9408
      %v9413 = vshll.u32 %v9410, 16
      %v9414 = vshrl.u32 %v9410, 16
      %v9415 = vshll.u32 %v9411, 16
      %v9416 = vshrl.u32 %v9411, 16
      %vm9417 = vc.u32 %v9409, %v9413
      %v9418 = vsel %vm9417, 1, 0
      %v9419 = vadd.s32 %v9409, %v9413
      %v9420 = vadd.s32 %v9412, %v9418
      %vm9421 = vc.u32 %v9419, %v9415
      %v9422 = vsel %vm9421, 1, 0
      %v9423 = vadd.s32 %v9419, %v9415
      %v9424 = vadd.s32 %v9420, %v9422
      %v9425 = vadd.s32 %v9424, %v9414
      %v9426 = vadd.s32 %v9425, %v9416
      %v9427 = vand.u32 %v9404, 65535
      %v9428 = vshrl.u32 %v9404, 16
      %v9429 = vand.u32 %v9399, 65535
      %v9430 = vshrl.u32 %v9399, 16
      %v9431 = vmul.u32 %v9427, %v9429
      %v9432 = vmul.u32 %v9427, %v9430
      %v9433 = vmul.u32 %v9428, %v9429
      %v9434 = vmul.u32 %v9428, %v9430
      %v9435 = vshll.u32 %v9432, 16
      %v9436 = vshrl.u32 %v9432, 16
      %v9437 = vshll.u32 %v9433, 16
      %v9438 = vshrl.u32 %v9433, 16
      %vm9439 = vc.u32 %v9431, %v9435
      %v9440 = vsel %vm9439, 1, 0
      %v9441 = vadd.s32 %v9431, %v9435
      %v9442 = vadd.s32 %v9434, %v9440
      %vm9443 = vc.u32 %v9441, %v9437
      %v9444 = vsel %vm9443, 1, 0
      %v9445 = vadd.s32 %v9441, %v9437
      %v9446 = vadd.s32 %v9442, %v9444
      %v9447 = vadd.s32 %v9446, %v9436
      %v9448 = vadd.s32 %v9447, %v9438
      %v9449 = vmul.u32 %v9404, %v9395
      %v9450 = vadd.s32 %v9426, %v9445
      %vm9451 = vc.u32 %v9426, %v9445
      %v9452 = vadd.s32 %v9448, 1
      %v9453 = vsel %vm9451, %v9452, %v9448
      %v9454 = vadd.s32 %v9449, %v9453
      %v9455 = vadd.s32 %v9454, 536870912
      %v9456 = vshrl.u32 %v9455, 30
      %v9457 = vshll.u32 %v9456, 30
      %v9458 = vsub.s32 %v9454, %v9457
      %vm9459 = vcmp.lt.s32.totalorder %v9458, 0
      %v9460 = vsub.s32 0, %v9458
      %v9461 = vsel %vm9459, %v9460, %v9458
      %v9462 = vclz %v9461
      %v9463 = vsub.s32 %v9462, 2
      %vm9464 = vcmp.gt.s32.totalorder 0, %v9463
      %v9465 = vsel %vm9464, 0, %v9463
      %v9466 = vsub.s32 32, %v9465
      %v9467 = vshll.u32 %v9458, %v9465
      %v9468 = vshrl.u32 %v9450, %v9466
      %v9469 = vor.u32 %v9467, %v9468
      %v9470 = vsub.s32 4294967266, %v9465
      %v9471 = vadd.s32 %v9470, 127
      %v9472 = vshll.u32 %v9471, 23
      %v9473 = vor.u32 4788187, %v9472
      %v9474 = vand.u32 2147483647, %v9473
      %v9476 = vcvt.s32.f32 %v9469
      %v9477 = vmul.f32 %v9476, %v9474
      %v9478 = vxor.u32 %v9477, 2147483648
      %v9479 = vsel %vm9358, %v9478, %v9477
      %v9480 = vsub.s32 4, %v9456
      %v9481 = vsel %vm9358, %v9480, %v9456
      %v9482 = vsel %vm9357, %v653, %v9479
      %v9483 = vsel %vm9357, 0, %v9481
      %v9484 = vmul.f32 %v9482, %v9482
      %v9485 = vmul.f32 %v9484, -0.001358992
      %v9486 = vadd.f32 %v9485, 0.041655596
      %v9487 = vmul.f32 %v9484, %v9486
      %v9488 = vadd.f32 %v9487, -0.4999988
      %v9489 = vmul.f32 %v9484, %v9488
      %v9490 = vadd.f32 1.0, %v9489
      %v9491 = vmul.f32 %v9482, %v9482
      %v9492 = vmul.f32 %v9491, -0.00019511016
      %v9493 = vadd.f32 %v9492, 0.008332121
      %v9494 = vmul.f32 %v9491, %v9493
      %v9495 = vadd.f32 %v9494, -0.16666654
      %v9496 = vmul.f32 %v9491, %v9495
      %v9497 = vadd.f32 %v9496, 1.0
      %v9498 = vmul.f32 %v9497, %v9482
      %vm9499 = vweird.f32 %v653
      %v9500 = vadd.s32 %v9483, 3
      %v9501 = vand.u32 %v9500, 3
      %vm9502 = vcmp.lt.s32.totalorder %v9501, 2
      %vm9503 = vcmp.eq.s32.totalorder %v9501, 0
      %v9504 = vxor.u32 %v9498, 2147483648
      %v9505 = vsel %vm9503, %v9490, %v9504
      %vm9506 = vcmp.eq.s32.totalorder %v9501, 2
      %v9507 = vxor.u32 %v9490, 2147483648
      %v9508 = vsel %vm9506, %v9507, %v9498
      %v9509 = vsel %vm9502, %v9505, %v9508
      %v9510 = vsel %vm9499, nan, %v9509
      %v9511 = vand.u32 2147483647, %v656
      %vm9512 = vcmp.le.f32.partialorder %v9511, 0.7853982
      %vm9513 = vcmp.lt.s32.totalorder %v656, 0
      %v9514 = vand.u32 %v656, 2139095040
      %v9515 = vshrl.u32 %v9514, 23
      %v9516 = vsub.s32 %v9515, 127
      %v9517 = vand.u32 2147483647, %v656
      %v9518 = vand.u32 %v9517, 8388607
      %v9519 = vor.u32 %v9518, 8388608
      %v9520 = vsub.s32 0, %v9519
      %v9521 = vadd.s32 %v9516, 1
      %vm9522 = vcmp.gt.s32.totalorder %v9521, 0
      %v9523 = vsel %vm9522, %v9521, 0
      %v9524 = vshrl.u32 %v9523, 5
      %v9525 = vand.u32 %v9523, 31
      %v9526 = vsub.s32 32, %v9525
      %v9527 = vshrl.u32 683565275, %v9526
      %v9528 = vshll.u32 683565275, %v9525
      %v9529 = vshrl.u32 2475754826, %v9526
      %v9530 = vor.u32 %v9528, %v9529
      %v9531 = vshll.u32 2475754826, %v9525
      %v9532 = vshrl.u32 2131351028, %v9526
      %v9533 = vor.u32 %v9531, %v9532
      %v9534 = vshll.u32 2131351028, %v9525
      %v9535 = vshrl.u32 2102212464, %v9526
      %v9536 = vor.u32 %v9534, %v9535
      %v9537 = vshll.u32 2102212464, %v9525
      %v9538 = vshrl.u32 920167782, %v9526
      %v9539 = vor.u32 %v9537, %v9538
      %v9540 = vshll.u32 920167782, %v9525
      %v9541 = vshrl.u32 1326507024, %v9526
      %v9542 = vor.u32 %v9540, %v9541
      %vm9543 = vcmp.lt.s32.totalorder %v9524, 1
      %vm9544 = vcmp.lt.s32.totalorder %v9524, 2
      %vm9545 = vcmp.lt.s32.totalorder %v9524, 3
      %vm9546 = vcmp.lt.s32.totalorder %v9524, 4
      %v9547 = vsel %vm9543, %v9527, %v9530
      %v9548 = vsel %vm9546, %v9536, 2102212464
      %v9549 = vsel %vm9545, %v9533, %v9548
      %v9550 = vsel %vm9544, %v9547, %v9549
      %v9551 = vsel %vm9543, %v9530, %v9533
      %v9552 = vsel %vm9546, %v9539, 920167782
      %v9553 = vsel %vm9545, %v9536, %v9552
      %v9554 = vsel %vm9544, %v9551, %v9553
      %v9555 = vsel %vm9543, %v9533, %v9536
      %v9556 = vsel %vm9546, %v9542, 1326507024
      %v9557 = vsel %vm9545, %v9539, %v9556
      %v9558 = vsel %vm9544, %v9555, %v9557
      %v9559 = vshll.u32 %v9519, 8
      %v9560 = vand.u32 %v9559, 65535
      %v9561 = vshrl.u32 %v9559, 16
      %v9562 = vand.u32 %v9558, 65535
      %v9563 = vshrl.u32 %v9558, 16
      %v9564 = vmul.u32 %v9560, %v9562
      %v9565 = vmul.u32 %v9560, %v9563
      %v9566 = vmul.u32 %v9561, %v9562
      %v9567 = vmul.u32 %v9561, %v9563
      %v9568 = vshll.u32 %v9565, 16
      %v9569 = vshrl.u32 %v9565, 16
      %v9570 = vshll.u32 %v9566, 16
      %v9571 = vshrl.u32 %v9566, 16
      %vm9572 = vc.u32 %v9564, %v9568
      %v9573 = vsel %vm9572, 1, 0
      %v9574 = vadd.s32 %v9564, %v9568
      %v9575 = vadd.s32 %v9567, %v9573
      %vm9576 = vc.u32 %v9574, %v9570
      %v9577 = vsel %vm9576, 1, 0
      %v9578 = vadd.s32 %v9574, %v9570
      %v9579 = vadd.s32 %v9575, %v9577
      %v9580 = vadd.s32 %v9579, %v9569
      %v9581 = vadd.s32 %v9580, %v9571
      %v9582 = vand.u32 %v9559, 65535
      %v9583 = vshrl.u32 %v9559, 16
      %v9584 = vand.u32 %v9554, 65535
      %v9585 = vshrl.u32 %v9554, 16
      %v9586 = vmul.u32 %v9582, %v9584
      %v9587 = vmul.u32 %v9582, %v9585
      %v9588 = vmul.u32 %v9583, %v9584
      %v9589 = vmul.u32 %v9583, %v9585
      %v9590 = vshll.u32 %v9587, 16
      %v9591 = vshrl.u32 %v9587, 16
      %v9592 = vshll.u32 %v9588, 16
      %v9593 = vshrl.u32 %v9588, 16
      %vm9594 = vc.u32 %v9586, %v9590
      %v9595 = vsel %vm9594, 1, 0
      %v9596 = vadd.s32 %v9586, %v9590
      %v9597 = vadd.s32 %v9589, %v9595
      %vm9598 = vc.u32 %v9596, %v9592
      %v9599 = vsel %vm9598, 1, 0
      %v9600 = vadd.s32 %v9596, %v9592
      %v9601 = vadd.s32 %v9597, %v9599
      %v9602 = vadd.s32 %v9601, %v9591
      %v9603 = vadd.s32 %v9602, %v9593
      %v9604 = vmul.u32 %v9559, %v9550
      %v9605 = vadd.s32 %v9581, %v9600
      %vm9606 = vc.u32 %v9581, %v9600
      %v9607 = vadd.s32 %v9603, 1
      %v9608 = vsel %vm9606, %v9607, %v9603
      %v9609 = vadd.s32 %v9604, %v9608
      %v9610 = vadd.s32 %v9609, 536870912
      %v9611 = vshrl.u32 %v9610, 30
      %v9612 = vshll.u32 %v9611, 30
      %v9613 = vsub.s32 %v9609, %v9612
      %vm9614 = vcmp.lt.s32.totalorder %v9613, 0
      %v9615 = vsub.s32 0, %v9613
      %v9616 = vsel %vm9614, %v9615, %v9613
      %v9617 = vclz %v9616
      %v9618 = vsub.s32 %v9617, 2
      %vm9619 = vcmp.gt.s32.totalorder 0, %v9618
      %v9620 = vsel %vm9619, 0, %v9618
      %v9621 = vsub.s32 32, %v9620
      %v9622 = vshll.u32 %v9613, %v9620
      %v9623 = vshrl.u32 %v9605, %v9621
      %v9624 = vor.u32 %v9622, %v9623
      %v9625 = vsub.s32 4294967266, %v9620
      %v9626 = vadd.s32 %v9625, 127
      %v9627 = vshll.u32 %v9626, 23
      %v9628 = vor.u32 4788187, %v9627
      %v9629 = vand.u32 2147483647, %v9628
      %v9631 = vcvt.s32.f32 %v9624
      %v9632 = vmul.f32 %v9631, %v9629
      %v9633 = vxor.u32 %v9632, 2147483648
      %v9634 = vsel %vm9513, %v9633, %v9632
      %v9635 = vsub.s32 4, %v9611
      %v9636 = vsel %vm9513, %v9635, %v9611
      %v9637 = vsel %vm9512, %v656, %v9634
      %v9638 = vsel %vm9512, 0, %v9636
      %v9639 = vmul.f32 %v9637, %v9637
      %v9640 = vmul.f32 %v9639, -0.001358992
      %v9641 = vadd.f32 %v9640, 0.041655596
      %v9642 = vmul.f32 %v9639, %v9641
      %v9643 = vadd.f32 %v9642, -0.4999988
      %v9644 = vmul.f32 %v9639, %v9643
      %v9645 = vadd.f32 1.0, %v9644
      %v9646 = vmul.f32 %v9637, %v9637
      %v9647 = vmul.f32 %v9646, -0.00019511016
      %v9648 = vadd.f32 %v9647, 0.008332121
      %v9649 = vmul.f32 %v9646, %v9648
      %v9650 = vadd.f32 %v9649, -0.16666654
      %v9651 = vmul.f32 %v9646, %v9650
      %v9652 = vadd.f32 %v9651, 1.0
      %v9653 = vmul.f32 %v9652, %v9637
      %vm9654 = vweird.f32 %v656
      %v9655 = vadd.s32 %v9638, 3
      %v9656 = vand.u32 %v9655, 3
      %vm9657 = vcmp.lt.s32.totalorder %v9656, 2
      %vm9658 = vcmp.eq.s32.totalorder %v9656, 0
      %v9659 = vxor.u32 %v9653, 2147483648
      %v9660 = vsel %vm9658, %v9645, %v9659
      %vm9661 = vcmp.eq.s32.totalorder %v9656, 2
      %v9662 = vxor.u32 %v9645, 2147483648
      %v9663 = vsel %vm9661, %v9662, %v9653
      %v9664 = vsel %vm9657, %v9660, %v9663
      %v9665 = vsel %vm9654, nan, %v9664
      %v9666 = vand.u32 2147483647, %v659
      %vm9667 = vcmp.le.f32.partialorder %v9666, 0.7853982
      %vm9668 = vcmp.lt.s32.totalorder %v659, 0
      %v9669 = vand.u32 %v659, 2139095040
      %v9670 = vshrl.u32 %v9669, 23
      %v9671 = vsub.s32 %v9670, 127
      %v9672 = vand.u32 2147483647, %v659
      %v9673 = vand.u32 %v9672, 8388607
      %v9674 = vor.u32 %v9673, 8388608
      %v9675 = vsub.s32 0, %v9674
      %v9676 = vadd.s32 %v9671, 1
      %vm9677 = vcmp.gt.s32.totalorder %v9676, 0
      %v9678 = vsel %vm9677, %v9676, 0
      %v9679 = vshrl.u32 %v9678, 5
      %v9680 = vand.u32 %v9678, 31
      %v9681 = vsub.s32 32, %v9680
      %v9682 = vshrl.u32 683565275, %v9681
      %v9683 = vshll.u32 683565275, %v9680
      %v9684 = vshrl.u32 2475754826, %v9681
      %v9685 = vor.u32 %v9683, %v9684
      %v9686 = vshll.u32 2475754826, %v9680
      %v9687 = vshrl.u32 2131351028, %v9681
      %v9688 = vor.u32 %v9686, %v9687
      %v9689 = vshll.u32 2131351028, %v9680
      %v9690 = vshrl.u32 2102212464, %v9681
      %v9691 = vor.u32 %v9689, %v9690
      %v9692 = vshll.u32 2102212464, %v9680
      %v9693 = vshrl.u32 920167782, %v9681
      %v9694 = vor.u32 %v9692, %v9693
      %v9695 = vshll.u32 920167782, %v9680
      %v9696 = vshrl.u32 1326507024, %v9681
      %v9697 = vor.u32 %v9695, %v9696
      %vm9698 = vcmp.lt.s32.totalorder %v9679, 1
      %vm9699 = vcmp.lt.s32.totalorder %v9679, 2
      %vm9700 = vcmp.lt.s32.totalorder %v9679, 3
      %vm9701 = vcmp.lt.s32.totalorder %v9679, 4
      %v9702 = vsel %vm9698, %v9682, %v9685
      %v9703 = vsel %vm9701, %v9691, 2102212464
      %v9704 = vsel %vm9700, %v9688, %v9703
      %v9705 = vsel %vm9699, %v9702, %v9704
      %v9706 = vsel %vm9698, %v9685, %v9688
      %v9707 = vsel %vm9701, %v9694, 920167782
      %v9708 = vsel %vm9700, %v9691, %v9707
      %v9709 = vsel %vm9699, %v9706, %v9708
      %v9710 = vsel %vm9698, %v9688, %v9691
      %v9711 = vsel %vm9701, %v9697, 1326507024
      %v9712 = vsel %vm9700, %v9694, %v9711
      %v9713 = vsel %vm9699, %v9710, %v9712
      %v9714 = vshll.u32 %v9674, 8
      %v9715 = vand.u32 %v9714, 65535
      %v9716 = vshrl.u32 %v9714, 16
      %v9717 = vand.u32 %v9713, 65535
      %v9718 = vshrl.u32 %v9713, 16
      %v9719 = vmul.u32 %v9715, %v9717
      %v9720 = vmul.u32 %v9715, %v9718
      %v9721 = vmul.u32 %v9716, %v9717
      %v9722 = vmul.u32 %v9716, %v9718
      %v9723 = vshll.u32 %v9720, 16
      %v9724 = vshrl.u32 %v9720, 16
      %v9725 = vshll.u32 %v9721, 16
      %v9726 = vshrl.u32 %v9721, 16
      %vm9727 = vc.u32 %v9719, %v9723
      %v9728 = vsel %vm9727, 1, 0
      %v9729 = vadd.s32 %v9719, %v9723
      %v9730 = vadd.s32 %v9722, %v9728
      %vm9731 = vc.u32 %v9729, %v9725
      %v9732 = vsel %vm9731, 1, 0
      %v9733 = vadd.s32 %v9729, %v9725
      %v9734 = vadd.s32 %v9730, %v9732
      %v9735 = vadd.s32 %v9734, %v9724
      %v9736 = vadd.s32 %v9735, %v9726
      %v9737 = vand.u32 %v9714, 65535
      %v9738 = vshrl.u32 %v9714, 16
      %v9739 = vand.u32 %v9709, 65535
      %v9740 = vshrl.u32 %v9709, 16
      %v9741 = vmul.u32 %v9737, %v9739
      %v9742 = vmul.u32 %v9737, %v9740
      %v9743 = vmul.u32 %v9738, %v9739
      %v9744 = vmul.u32 %v9738, %v9740
      %v9745 = vshll.u32 %v9742, 16
      %v9746 = vshrl.u32 %v9742, 16
      %v9747 = vshll.u32 %v9743, 16
      %v9748 = vshrl.u32 %v9743, 16
      %vm9749 = vc.u32 %v9741, %v9745
      %v9750 = vsel %vm9749, 1, 0
      %v9751 = vadd.s32 %v9741, %v9745
      %v9752 = vadd.s32 %v9744, %v9750
      %vm9753 = vc.u32 %v9751, %v9747
      %v9754 = vsel %vm9753, 1, 0
      %v9755 = vadd.s32 %v9751, %v9747
      %v9756 = vadd.s32 %v9752, %v9754
      %v9757 = vadd.s32 %v9756, %v9746
      %v9758 = vadd.s32 %v9757, %v9748
      %v9759 = vmul.u32 %v9714, %v9705
      %v9760 = vadd.s32 %v9736, %v9755
      %vm9761 = vc.u32 %v9736, %v9755
      %v9762 = vadd.s32 %v9758, 1
      %v9763 = vsel %vm9761, %v9762, %v9758
      %v9764 = vadd.s32 %v9759, %v9763
      %v9765 = vadd.s32 %v9764, 536870912
      %v9766 = vshrl.u32 %v9765, 30
      %v9767 = vshll.u32 %v9766, 30
      %v9768 = vsub.s32 %v9764, %v9767
      %vm9769 = vcmp.lt.s32.totalorder %v9768, 0
      %v9770 = vsub.s32 0, %v9768
      %v9771 = vsel %vm9769, %v9770, %v9768
      %v9772 = vclz %v9771
      %v9773 = vsub.s32 %v9772, 2
      %vm9774 = vcmp.gt.s32.totalorder 0, %v9773
      %v9775 = vsel %vm9774, 0, %v9773
      %v9776 = vsub.s32 32, %v9775
      %v9777 = vshll.u32 %v9768, %v9775
      %v9778 = vshrl.u32 %v9760, %v9776
      %v9779 = vor.u32 %v9777, %v9778
      %v9780 = vsub.s32 4294967266, %v9775
      %v9781 = vadd.s32 %v9780, 127
      %v9782 = vshll.u32 %v9781, 23
      %v9783 = vor.u32 4788187, %v9782
      %v9784 = vand.u32 2147483647, %v9783
      %v9786 = vcvt.s32.f32 %v9779
      %v9787 = vmul.f32 %v9786, %v9784
      %v9788 = vxor.u32 %v9787, 2147483648
      %v9789 = vsel %vm9668, %v9788, %v9787
      %v9790 = vsub.s32 4, %v9766
      %v9791 = vsel %vm9668, %v9790, %v9766
      %v9792 = vsel %vm9667, %v659, %v9789
      %v9793 = vsel %vm9667, 0, %v9791
      %v9794 = vmul.f32 %v9792, %v9792
      %v9795 = vmul.f32 %v9794, -0.001358992
      %v9796 = vadd.f32 %v9795, 0.041655596
      %v9797 = vmul.f32 %v9794, %v9796
      %v9798 = vadd.f32 %v9797, -0.4999988
      %v9799 = vmul.f32 %v9794, %v9798
      %v9800 = vadd.f32 1.0, %v9799
      %v9801 = vmul.f32 %v9792, %v9792
      %v9802 = vmul.f32 %v9801, -0.00019511016
      %v9803 = vadd.f32 %v9802, 0.008332121
      %v9804 = vmul.f32 %v9801, %v9803
      %v9805 = vadd.f32 %v9804, -0.16666654
      %v9806 = vmul.f32 %v9801, %v9805
      %v9807 = vadd.f32 %v9806, 1.0
      %v9808 = vmul.f32 %v9807, %v9792
      %vm9809 = vweird.f32 %v659
      %v9810 = vadd.s32 %v9793, 3
      %v9811 = vand.u32 %v9810, 3
      %vm9812 = vcmp.lt.s32.totalorder %v9811, 2
      %vm9813 = vcmp.eq.s32.totalorder %v9811, 0
      %v9814 = vxor.u32 %v9808, 2147483648
      %v9815 = vsel %vm9813, %v9800, %v9814
      %vm9816 = vcmp.eq.s32.totalorder %v9811, 2
      %v9817 = vxor.u32 %v9800, 2147483648
      %v9818 = vsel %vm9816, %v9817, %v9808
      %v9819 = vsel %vm9812, %v9815, %v9818
      %v9820 = vsel %vm9809, nan, %v9819
      %v9821 = vand.u32 2147483647, %v662
      %vm9822 = vcmp.le.f32.partialorder %v9821, 0.7853982
      %vm9823 = vcmp.lt.s32.totalorder %v662, 0
      %v9824 = vand.u32 %v662, 2139095040
      %v9825 = vshrl.u32 %v9824, 23
      %v9826 = vsub.s32 %v9825, 127
      %v9827 = vand.u32 2147483647, %v662
      %v9828 = vand.u32 %v9827, 8388607
      %v9829 = vor.u32 %v9828, 8388608
      %v9830 = vsub.s32 0, %v9829
      %v9831 = vadd.s32 %v9826, 1
      %vm9832 = vcmp.gt.s32.totalorder %v9831, 0
      %v9833 = vsel %vm9832, %v9831, 0
      %v9834 = vshrl.u32 %v9833, 5
      %v9835 = vand.u32 %v9833, 31
      %v9836 = vsub.s32 32, %v9835
      %v9837 = vshrl.u32 683565275, %v9836
      %v9838 = vshll.u32 683565275, %v9835
      %v9839 = vshrl.u32 2475754826, %v9836
      %v9840 = vor.u32 %v9838, %v9839
      %v9841 = vshll.u32 2475754826, %v9835
      %v9842 = vshrl.u32 2131351028, %v9836
      %v9843 = vor.u32 %v9841, %v9842
      %v9844 = vshll.u32 2131351028, %v9835
      %v9845 = vshrl.u32 2102212464, %v9836
      %v9846 = vor.u32 %v9844, %v9845
      %v9847 = vshll.u32 2102212464, %v9835
      %v9848 = vshrl.u32 920167782, %v9836
      %v9849 = vor.u32 %v9847, %v9848
      %v9850 = vshll.u32 920167782, %v9835
      %v9851 = vshrl.u32 1326507024, %v9836
      %v9852 = vor.u32 %v9850, %v9851
      %vm9853 = vcmp.lt.s32.totalorder %v9834, 1
      %vm9854 = vcmp.lt.s32.totalorder %v9834, 2
      %vm9855 = vcmp.lt.s32.totalorder %v9834, 3
      %vm9856 = vcmp.lt.s32.totalorder %v9834, 4
      %v9857 = vsel %vm9853, %v9837, %v9840
      %v9858 = vsel %vm9856, %v9846, 2102212464
      %v9859 = vsel %vm9855, %v9843, %v9858
      %v9860 = vsel %vm9854, %v9857, %v9859
      %v9861 = vsel %vm9853, %v9840, %v9843
      %v9862 = vsel %vm9856, %v9849, 920167782
      %v9863 = vsel %vm9855, %v9846, %v9862
      %v9864 = vsel %vm9854, %v9861, %v9863
      %v9865 = vsel %vm9853, %v9843, %v9846
      %v9866 = vsel %vm9856, %v9852, 1326507024
      %v9867 = vsel %vm9855, %v9849, %v9866
      %v9868 = vsel %vm9854, %v9865, %v9867
      %v9869 = vshll.u32 %v9829, 8
      %v9870 = vand.u32 %v9869, 65535
      %v9871 = vshrl.u32 %v9869, 16
      %v9872 = vand.u32 %v9868, 65535
      %v9873 = vshrl.u32 %v9868, 16
      %v9874 = vmul.u32 %v9870, %v9872
      %v9875 = vmul.u32 %v9870, %v9873
      %v9876 = vmul.u32 %v9871, %v9872
      %v9877 = vmul.u32 %v9871, %v9873
      %v9878 = vshll.u32 %v9875, 16
      %v9879 = vshrl.u32 %v9875, 16
      %v9880 = vshll.u32 %v9876, 16
      %v9881 = vshrl.u32 %v9876, 16
      %vm9882 = vc.u32 %v9874, %v9878
      %v9883 = vsel %vm9882, 1, 0
      %v9884 = vadd.s32 %v9874, %v9878
      %v9885 = vadd.s32 %v9877, %v9883
      %vm9886 = vc.u32 %v9884, %v9880
      %v9887 = vsel %vm9886, 1, 0
      %v9888 = vadd.s32 %v9884, %v9880
      %v9889 = vadd.s32 %v9885, %v9887
      %v9890 = vadd.s32 %v9889, %v9879
      %v9891 = vadd.s32 %v9890, %v9881
      %v9892 = vand.u32 %v9869, 65535
      %v9893 = vshrl.u32 %v9869, 16
      %v9894 = vand.u32 %v9864, 65535
      %v9895 = vshrl.u32 %v9864, 16
      %v9896 = vmul.u32 %v9892, %v9894
      %v9897 = vmul.u32 %v9892, %v9895
      %v9898 = vmul.u32 %v9893, %v9894
      %v9899 = vmul.u32 %v9893, %v9895
      %v9900 = vshll.u32 %v9897, 16
      %v9901 = vshrl.u32 %v9897, 16
      %v9902 = vshll.u32 %v9898, 16
      %v9903 = vshrl.u32 %v9898, 16
      %vm9904 = vc.u32 %v9896, %v9900
      %v9905 = vsel %vm9904, 1, 0
      %v9906 = vadd.s32 %v9896, %v9900
      %v9907 = vadd.s32 %v9899, %v9905
      %vm9908 = vc.u32 %v9906, %v9902
      %v9909 = vsel %vm9908, 1, 0
      %v9910 = vadd.s32 %v9906, %v9902
      %v9911 = vadd.s32 %v9907, %v9909
      %v9912 = vadd.s32 %v9911, %v9901
      %v9913 = vadd.s32 %v9912, %v9903
      %v9914 = vmul.u32 %v9869, %v9860
      %v9915 = vadd.s32 %v9891, %v9910
      %vm9916 = vc.u32 %v9891, %v9910
      %v9917 = vadd.s32 %v9913, 1
      %v9918 = vsel %vm9916, %v9917, %v9913
      %v9919 = vadd.s32 %v9914, %v9918
      %v9920 = vadd.s32 %v9919, 536870912
      %v9921 = vshrl.u32 %v9920, 30
      %v9922 = vshll.u32 %v9921, 30
      %v9923 = vsub.s32 %v9919, %v9922
      %vm9924 = vcmp.lt.s32.totalorder %v9923, 0
      %v9925 = vsub.s32 0, %v9923
      %v9926 = vsel %vm9924, %v9925, %v9923
      %v9927 = vclz %v9926
      %v9928 = vsub.s32 %v9927, 2
      %vm9929 = vcmp.gt.s32.totalorder 0, %v9928
      %v9930 = vsel %vm9929, 0, %v9928
      %v9931 = vsub.s32 32, %v9930
      %v9932 = vshll.u32 %v9923, %v9930
      %v9933 = vshrl.u32 %v9915, %v9931
      %v9934 = vor.u32 %v9932, %v9933
      %v9935 = vsub.s32 4294967266, %v9930
      %v9936 = vadd.s32 %v9935, 127
      %v9937 = vshll.u32 %v9936, 23
      %v9938 = vor.u32 4788187, %v9937
      %v9939 = vand.u32 2147483647, %v9938
      %v9941 = vcvt.s32.f32 %v9934
      %v9942 = vmul.f32 %v9941, %v9939
      %v9943 = vxor.u32 %v9942, 2147483648
      %v9944 = vsel %vm9823, %v9943, %v9942
      %v9945 = vsub.s32 4, %v9921
      %v9946 = vsel %vm9823, %v9945, %v9921
      %v9947 = vsel %vm9822, %v662, %v9944
      %v9948 = vsel %vm9822, 0, %v9946
      %v9949 = vmul.f32 %v9947, %v9947
      %v9950 = vmul.f32 %v9949, -0.001358992
      %v9951 = vadd.f32 %v9950, 0.041655596
      %v9952 = vmul.f32 %v9949, %v9951
      %v9953 = vadd.f32 %v9952, -0.4999988
      %v9954 = vmul.f32 %v9949, %v9953
      %v9955 = vadd.f32 1.0, %v9954
      %v9956 = vmul.f32 %v9947, %v9947
      %v9957 = vmul.f32 %v9956, -0.00019511016
      %v9958 = vadd.f32 %v9957, 0.008332121
      %v9959 = vmul.f32 %v9956, %v9958
      %v9960 = vadd.f32 %v9959, -0.16666654
      %v9961 = vmul.f32 %v9956, %v9960
      %v9962 = vadd.f32 %v9961, 1.0
      %v9963 = vmul.f32 %v9962, %v9947
      %vm9964 = vweird.f32 %v662
      %v9965 = vadd.s32 %v9948, 3
      %v9966 = vand.u32 %v9965, 3
      %vm9967 = vcmp.lt.s32.totalorder %v9966, 2
      %vm9968 = vcmp.eq.s32.totalorder %v9966, 0
      %v9969 = vxor.u32 %v9963, 2147483648
      %v9970 = vsel %vm9968, %v9955, %v9969
      %vm9971 = vcmp.eq.s32.totalorder %v9966, 2
      %v9972 = vxor.u32 %v9955, 2147483648
      %v9973 = vsel %vm9971, %v9972, %v9963
      %v9974 = vsel %vm9967, %v9970, %v9973
      %v9975 = vsel %vm9964, nan, %v9974
      %v9976 = vand.u32 2147483647, %v665
      %vm9977 = vcmp.le.f32.partialorder %v9976, 0.7853982
      %vm9978 = vcmp.lt.s32.totalorder %v665, 0
      %v9979 = vand.u32 %v665, 2139095040
      %v9980 = vshrl.u32 %v9979, 23
      %v9981 = vsub.s32 %v9980, 127
      %v9982 = vand.u32 2147483647, %v665
      %v9983 = vand.u32 %v9982, 8388607
      %v9984 = vor.u32 %v9983, 8388608
      %v9985 = vsub.s32 0, %v9984
      %v9986 = vadd.s32 %v9981, 1
      %vm9987 = vcmp.gt.s32.totalorder %v9986, 0
      %v9988 = vsel %vm9987, %v9986, 0
      %v9989 = vshrl.u32 %v9988, 5
      %v9990 = vand.u32 %v9988, 31
      %v9991 = vsub.s32 32, %v9990
      %v9992 = vshrl.u32 683565275, %v9991
      %v9993 = vshll.u32 683565275, %v9990
      %v9994 = vshrl.u32 2475754826, %v9991
      %v9995 = vor.u32 %v9993, %v9994
      %v9996 = vshll.u32 2475754826, %v9990
      %v9997 = vshrl.u32 2131351028, %v9991
      %v9998 = vor.u32 %v9996, %v9997
      %v9999 = vshll.u32 2131351028, %v9990
      %v10000 = vshrl.u32 2102212464, %v9991
      %v10001 = vor.u32 %v9999, %v10000
      %v10002 = vshll.u32 2102212464, %v9990
      %v10003 = vshrl.u32 920167782, %v9991
      %v10004 = vor.u32 %v10002, %v10003
      %v10005 = vshll.u32 920167782, %v9990
      %v10006 = vshrl.u32 1326507024, %v9991
      %v10007 = vor.u32 %v10005, %v10006
      %vm10008 = vcmp.lt.s32.totalorder %v9989, 1
      %vm10009 = vcmp.lt.s32.totalorder %v9989, 2
      %vm10010 = vcmp.lt.s32.totalorder %v9989, 3
      %vm10011 = vcmp.lt.s32.totalorder %v9989, 4
      %v10012 = vsel %vm10008, %v9992, %v9995
      %v10013 = vsel %vm10011, %v10001, 2102212464
      %v10014 = vsel %vm10010, %v9998, %v10013
      %v10015 = vsel %vm10009, %v10012, %v10014
      %v10016 = vsel %vm10008, %v9995, %v9998
      %v10017 = vsel %vm10011, %v10004, 920167782
      %v10018 = vsel %vm10010, %v10001, %v10017
      %v10019 = vsel %vm10009, %v10016, %v10018
      %v10020 = vsel %vm10008, %v9998, %v10001
      %v10021 = vsel %vm10011, %v10007, 1326507024
      %v10022 = vsel %vm10010, %v10004, %v10021
      %v10023 = vsel %vm10009, %v10020, %v10022
      %v10024 = vshll.u32 %v9984, 8
      %v10025 = vand.u32 %v10024, 65535
      %v10026 = vshrl.u32 %v10024, 16
      %v10027 = vand.u32 %v10023, 65535
      %v10028 = vshrl.u32 %v10023, 16
      %v10029 = vmul.u32 %v10025, %v10027
      %v10030 = vmul.u32 %v10025, %v10028
      %v10031 = vmul.u32 %v10026, %v10027
      %v10032 = vmul.u32 %v10026, %v10028
      %v10033 = vshll.u32 %v10030, 16
      %v10034 = vshrl.u32 %v10030, 16
      %v10035 = vshll.u32 %v10031, 16
      %v10036 = vshrl.u32 %v10031, 16
      %vm10037 = vc.u32 %v10029, %v10033
      %v10038 = vsel %vm10037, 1, 0
      %v10039 = vadd.s32 %v10029, %v10033
      %v10040 = vadd.s32 %v10032, %v10038
      %vm10041 = vc.u32 %v10039, %v10035
      %v10042 = vsel %vm10041, 1, 0
      %v10043 = vadd.s32 %v10039, %v10035
      %v10044 = vadd.s32 %v10040, %v10042
      %v10045 = vadd.s32 %v10044, %v10034
      %v10046 = vadd.s32 %v10045, %v10036
      %v10047 = vand.u32 %v10024, 65535
      %v10048 = vshrl.u32 %v10024, 16
      %v10049 = vand.u32 %v10019, 65535
      %v10050 = vshrl.u32 %v10019, 16
      %v10051 = vmul.u32 %v10047, %v10049
      %v10052 = vmul.u32 %v10047, %v10050
      %v10053 = vmul.u32 %v10048, %v10049
      %v10054 = vmul.u32 %v10048, %v10050
      %v10055 = vshll.u32 %v10052, 16
      %v10056 = vshrl.u32 %v10052, 16
      %v10057 = vshll.u32 %v10053, 16
      %v10058 = vshrl.u32 %v10053, 16
      %vm10059 = vc.u32 %v10051, %v10055
      %v10060 = vsel %vm10059, 1, 0
      %v10061 = vadd.s32 %v10051, %v10055
      %v10062 = vadd.s32 %v10054, %v10060
      %vm10063 = vc.u32 %v10061, %v10057
      %v10064 = vsel %vm10063, 1, 0
      %v10065 = vadd.s32 %v10061, %v10057
      %v10066 = vadd.s32 %v10062, %v10064
      %v10067 = vadd.s32 %v10066, %v10056
      %v10068 = vadd.s32 %v10067, %v10058
      %v10069 = vmul.u32 %v10024, %v10015
      %v10070 = vadd.s32 %v10046, %v10065
      %vm10071 = vc.u32 %v10046, %v10065
      %v10072 = vadd.s32 %v10068, 1
      %v10073 = vsel %vm10071, %v10072, %v10068
      %v10074 = vadd.s32 %v10069, %v10073
      %v10075 = vadd.s32 %v10074, 536870912
      %v10076 = vshrl.u32 %v10075, 30
      %v10077 = vshll.u32 %v10076, 30
      %v10078 = vsub.s32 %v10074, %v10077
      %vm10079 = vcmp.lt.s32.totalorder %v10078, 0
      %v10080 = vsub.s32 0, %v10078
      %v10081 = vsel %vm10079, %v10080, %v10078
      %v10082 = vclz %v10081
      %v10083 = vsub.s32 %v10082, 2
      %vm10084 = vcmp.gt.s32.totalorder 0, %v10083
      %v10085 = vsel %vm10084, 0, %v10083
      %v10086 = vsub.s32 32, %v10085
      %v10087 = vshll.u32 %v10078, %v10085
      %v10088 = vshrl.u32 %v10070, %v10086
      %v10089 = vor.u32 %v10087, %v10088
      %v10090 = vsub.s32 4294967266, %v10085
      %v10091 = vadd.s32 %v10090, 127
      %v10092 = vshll.u32 %v10091, 23
      %v10093 = vor.u32 4788187, %v10092
      %v10094 = vand.u32 2147483647, %v10093
      %v10096 = vcvt.s32.f32 %v10089
      %v10097 = vmul.f32 %v10096, %v10094
      %v10098 = vxor.u32 %v10097, 2147483648
      %v10099 = vsel %vm9978, %v10098, %v10097
      %v10100 = vsub.s32 4, %v10076
      %v10101 = vsel %vm9978, %v10100, %v10076
      %v10102 = vsel %vm9977, %v665, %v10099
      %v10103 = vsel %vm9977, 0, %v10101
      %v10104 = vmul.f32 %v10102, %v10102
      %v10105 = vmul.f32 %v10104, -0.001358992
      %v10106 = vadd.f32 %v10105, 0.041655596
      %v10107 = vmul.f32 %v10104, %v10106
      %v10108 = vadd.f32 %v10107, -0.4999988
      %v10109 = vmul.f32 %v10104, %v10108
      %v10110 = vadd.f32 1.0, %v10109
      %v10111 = vmul.f32 %v10102, %v10102
      %v10112 = vmul.f32 %v10111, -0.00019511016
      %v10113 = vadd.f32 %v10112, 0.008332121
      %v10114 = vmul.f32 %v10111, %v10113
      %v10115 = vadd.f32 %v10114, -0.16666654
      %v10116 = vmul.f32 %v10111, %v10115
      %v10117 = vadd.f32 %v10116, 1.0
      %v10118 = vmul.f32 %v10117, %v10102
      %vm10119 = vweird.f32 %v665
      %v10120 = vadd.s32 %v10103, 3
      %v10121 = vand.u32 %v10120, 3
      %vm10122 = vcmp.lt.s32.totalorder %v10121, 2
      %vm10123 = vcmp.eq.s32.totalorder %v10121, 0
      %v10124 = vxor.u32 %v10118, 2147483648
      %v10125 = vsel %vm10123, %v10110, %v10124
      %vm10126 = vcmp.eq.s32.totalorder %v10121, 2
      %v10127 = vxor.u32 %v10110, 2147483648
      %v10128 = vsel %vm10126, %v10127, %v10118
      %v10129 = vsel %vm10122, %v10125, %v10128
      %v10130 = vsel %vm10119, nan, %v10129
      %v10131 = vand.u32 2147483647, %v668
      %vm10132 = vcmp.le.f32.partialorder %v10131, 0.7853982
      %vm10133 = vcmp.lt.s32.totalorder %v668, 0
      %v10134 = vand.u32 %v668, 2139095040
      %v10135 = vshrl.u32 %v10134, 23
      %v10136 = vsub.s32 %v10135, 127
      %v10137 = vand.u32 2147483647, %v668
      %v10138 = vand.u32 %v10137, 8388607
      %v10139 = vor.u32 %v10138, 8388608
      %v10140 = vsub.s32 0, %v10139
      %v10141 = vadd.s32 %v10136, 1
      %vm10142 = vcmp.gt.s32.totalorder %v10141, 0
      %v10143 = vsel %vm10142, %v10141, 0
      %v10144 = vshrl.u32 %v10143, 5
      %v10145 = vand.u32 %v10143, 31
      %v10146 = vsub.s32 32, %v10145
      %v10147 = vshrl.u32 683565275, %v10146
      %v10148 = vshll.u32 683565275, %v10145
      %v10149 = vshrl.u32 2475754826, %v10146
      %v10150 = vor.u32 %v10148, %v10149
      %v10151 = vshll.u32 2475754826, %v10145
      %v10152 = vshrl.u32 2131351028, %v10146
      %v10153 = vor.u32 %v10151, %v10152
      %v10154 = vshll.u32 2131351028, %v10145
      %v10155 = vshrl.u32 2102212464, %v10146
      %v10156 = vor.u32 %v10154, %v10155
      %v10157 = vshll.u32 2102212464, %v10145
      %v10158 = vshrl.u32 920167782, %v10146
      %v10159 = vor.u32 %v10157, %v10158
      %v10160 = vshll.u32 920167782, %v10145
      %v10161 = vshrl.u32 1326507024, %v10146
      %v10162 = vor.u32 %v10160, %v10161
      %vm10163 = vcmp.lt.s32.totalorder %v10144, 1
      %vm10164 = vcmp.lt.s32.totalorder %v10144, 2
      %vm10165 = vcmp.lt.s32.totalorder %v10144, 3
      %vm10166 = vcmp.lt.s32.totalorder %v10144, 4
      %v10167 = vsel %vm10163, %v10147, %v10150
      %v10168 = vsel %vm10166, %v10156, 2102212464
      %v10169 = vsel %vm10165, %v10153, %v10168
      %v10170 = vsel %vm10164, %v10167, %v10169
      %v10171 = vsel %vm10163, %v10150, %v10153
      %v10172 = vsel %vm10166, %v10159, 920167782
      %v10173 = vsel %vm10165, %v10156, %v10172
      %v10174 = vsel %vm10164, %v10171, %v10173
      %v10175 = vsel %vm10163, %v10153, %v10156
      %v10176 = vsel %vm10166, %v10162, 1326507024
      %v10177 = vsel %vm10165, %v10159, %v10176
      %v10178 = vsel %vm10164, %v10175, %v10177
      %v10179 = vshll.u32 %v10139, 8
      %v10180 = vand.u32 %v10179, 65535
      %v10181 = vshrl.u32 %v10179, 16
      %v10182 = vand.u32 %v10178, 65535
      %v10183 = vshrl.u32 %v10178, 16
      %v10184 = vmul.u32 %v10180, %v10182
      %v10185 = vmul.u32 %v10180, %v10183
      %v10186 = vmul.u32 %v10181, %v10182
      %v10187 = vmul.u32 %v10181, %v10183
      %v10188 = vshll.u32 %v10185, 16
      %v10189 = vshrl.u32 %v10185, 16
      %v10190 = vshll.u32 %v10186, 16
      %v10191 = vshrl.u32 %v10186, 16
      %vm10192 = vc.u32 %v10184, %v10188
      %v10193 = vsel %vm10192, 1, 0
      %v10194 = vadd.s32 %v10184, %v10188
      %v10195 = vadd.s32 %v10187, %v10193
      %vm10196 = vc.u32 %v10194, %v10190
      %v10197 = vsel %vm10196, 1, 0
      %v10198 = vadd.s32 %v10194, %v10190
      %v10199 = vadd.s32 %v10195, %v10197
      %v10200 = vadd.s32 %v10199, %v10189
      %v10201 = vadd.s32 %v10200, %v10191
      %v10202 = vand.u32 %v10179, 65535
      %v10203 = vshrl.u32 %v10179, 16
      %v10204 = vand.u32 %v10174, 65535
      %v10205 = vshrl.u32 %v10174, 16
      %v10206 = vmul.u32 %v10202, %v10204
      %v10207 = vmul.u32 %v10202, %v10205
      %v10208 = vmul.u32 %v10203, %v10204
      %v10209 = vmul.u32 %v10203, %v10205
      %v10210 = vshll.u32 %v10207, 16
      %v10211 = vshrl.u32 %v10207, 16
      %v10212 = vshll.u32 %v10208, 16
      %v10213 = vshrl.u32 %v10208, 16
      %vm10214 = vc.u32 %v10206, %v10210
      %v10215 = vsel %vm10214, 1, 0
      %v10216 = vadd.s32 %v10206, %v10210
      %v10217 = vadd.s32 %v10209, %v10215
      %vm10218 = vc.u32 %v10216, %v10212
      %v10219 = vsel %vm10218, 1, 0
      %v10220 = vadd.s32 %v10216, %v10212
      %v10221 = vadd.s32 %v10217, %v10219
      %v10222 = vadd.s32 %v10221, %v10211
      %v10223 = vadd.s32 %v10222, %v10213
      %v10224 = vmul.u32 %v10179, %v10170
      %v10225 = vadd.s32 %v10201, %v10220
      %vm10226 = vc.u32 %v10201, %v10220
      %v10227 = vadd.s32 %v10223, 1
      %v10228 = vsel %vm10226, %v10227, %v10223
      %v10229 = vadd.s32 %v10224, %v10228
      %v10230 = vadd.s32 %v10229, 536870912
      %v10231 = vshrl.u32 %v10230, 30
      %v10232 = vshll.u32 %v10231, 30
      %v10233 = vsub.s32 %v10229, %v10232
      %vm10234 = vcmp.lt.s32.totalorder %v10233, 0
      %v10235 = vsub.s32 0, %v10233
      %v10236 = vsel %vm10234, %v10235, %v10233
      %v10237 = vclz %v10236
      %v10238 = vsub.s32 %v10237, 2
      %vm10239 = vcmp.gt.s32.totalorder 0, %v10238
      %v10240 = vsel %vm10239, 0, %v10238
      %v10241 = vsub.s32 32, %v10240
      %v10242 = vshll.u32 %v10233, %v10240
      %v10243 = vshrl.u32 %v10225, %v10241
      %v10244 = vor.u32 %v10242, %v10243
      %v10245 = vsub.s32 4294967266, %v10240
      %v10246 = vadd.s32 %v10245, 127
      %v10247 = vshll.u32 %v10246, 23
      %v10248 = vor.u32 4788187, %v10247
      %v10249 = vand.u32 2147483647, %v10248
      %v10251 = vcvt.s32.f32 %v10244
      %v10252 = vmul.f32 %v10251, %v10249
      %v10253 = vxor.u32 %v10252, 2147483648
      %v10254 = vsel %vm10133, %v10253, %v10252
      %v10255 = vsub.s32 4, %v10231
      %v10256 = vsel %vm10133, %v10255, %v10231
      %v10257 = vsel %vm10132, %v668, %v10254
      %v10258 = vsel %vm10132, 0, %v10256
      %v10259 = vmul.f32 %v10257, %v10257
      %v10260 = vmul.f32 %v10259, -0.001358992
      %v10261 = vadd.f32 %v10260, 0.041655596
      %v10262 = vmul.f32 %v10259, %v10261
      %v10263 = vadd.f32 %v10262, -0.4999988
      %v10264 = vmul.f32 %v10259, %v10263
      %v10265 = vadd.f32 1.0, %v10264
      %v10266 = vmul.f32 %v10257, %v10257
      %v10267 = vmul.f32 %v10266, -0.00019511016
      %v10268 = vadd.f32 %v10267, 0.008332121
      %v10269 = vmul.f32 %v10266, %v10268
      %v10270 = vadd.f32 %v10269, -0.16666654
      %v10271 = vmul.f32 %v10266, %v10270
      %v10272 = vadd.f32 %v10271, 1.0
      %v10273 = vmul.f32 %v10272, %v10257
      %vm10274 = vweird.f32 %v668
      %v10275 = vadd.s32 %v10258, 3
      %v10276 = vand.u32 %v10275, 3
      %vm10277 = vcmp.lt.s32.totalorder %v10276, 2
      %vm10278 = vcmp.eq.s32.totalorder %v10276, 0
      %v10279 = vxor.u32 %v10273, 2147483648
      %v10280 = vsel %vm10278, %v10265, %v10279
      %vm10281 = vcmp.eq.s32.totalorder %v10276, 2
      %v10282 = vxor.u32 %v10265, 2147483648
      %v10283 = vsel %vm10281, %v10282, %v10273
      %v10284 = vsel %vm10277, %v10280, %v10283
      %v10285 = vsel %vm10274, nan, %v10284
      %v10286 = vand.u32 2147483647, %v671
      %vm10287 = vcmp.le.f32.partialorder %v10286, 0.7853982
      %vm10288 = vcmp.lt.s32.totalorder %v671, 0
      %v10289 = vand.u32 %v671, 2139095040
      %v10290 = vshrl.u32 %v10289, 23
      %v10291 = vsub.s32 %v10290, 127
      %v10292 = vand.u32 2147483647, %v671
      %v10293 = vand.u32 %v10292, 8388607
      %v10294 = vor.u32 %v10293, 8388608
      %v10295 = vsub.s32 0, %v10294
      %v10296 = vadd.s32 %v10291, 1
      %vm10297 = vcmp.gt.s32.totalorder %v10296, 0
      %v10298 = vsel %vm10297, %v10296, 0
      %v10299 = vshrl.u32 %v10298, 5
      %v10300 = vand.u32 %v10298, 31
      %v10301 = vsub.s32 32, %v10300
      %v10302 = vshrl.u32 683565275, %v10301
      %v10303 = vshll.u32 683565275, %v10300
      %v10304 = vshrl.u32 2475754826, %v10301
      %v10305 = vor.u32 %v10303, %v10304
      %v10306 = vshll.u32 2475754826, %v10300
      %v10307 = vshrl.u32 2131351028, %v10301
      %v10308 = vor.u32 %v10306, %v10307
      %v10309 = vshll.u32 2131351028, %v10300
      %v10310 = vshrl.u32 2102212464, %v10301
      %v10311 = vor.u32 %v10309, %v10310
      %v10312 = vshll.u32 2102212464, %v10300
      %v10313 = vshrl.u32 920167782, %v10301
      %v10314 = vor.u32 %v10312, %v10313
      %v10315 = vshll.u32 920167782, %v10300
      %v10316 = vshrl.u32 1326507024, %v10301
      %v10317 = vor.u32 %v10315, %v10316
      %vm10318 = vcmp.lt.s32.totalorder %v10299, 1
      %vm10319 = vcmp.lt.s32.totalorder %v10299, 2
      %vm10320 = vcmp.lt.s32.totalorder %v10299, 3
      %vm10321 = vcmp.lt.s32.totalorder %v10299, 4
      %v10322 = vsel %vm10318, %v10302, %v10305
      %v10323 = vsel %vm10321, %v10311, 2102212464
      %v10324 = vsel %vm10320, %v10308, %v10323
      %v10325 = vsel %vm10319, %v10322, %v10324
      %v10326 = vsel %vm10318, %v10305, %v10308
      %v10327 = vsel %vm10321, %v10314, 920167782
      %v10328 = vsel %vm10320, %v10311, %v10327
      %v10329 = vsel %vm10319, %v10326, %v10328
      %v10330 = vsel %vm10318, %v10308, %v10311
      %v10331 = vsel %vm10321, %v10317, 1326507024
      %v10332 = vsel %vm10320, %v10314, %v10331
      %v10333 = vsel %vm10319, %v10330, %v10332
      %v10334 = vshll.u32 %v10294, 8
      %v10335 = vand.u32 %v10334, 65535
      %v10336 = vshrl.u32 %v10334, 16
      %v10337 = vand.u32 %v10333, 65535
      %v10338 = vshrl.u32 %v10333, 16
      %v10339 = vmul.u32 %v10335, %v10337
      %v10340 = vmul.u32 %v10335, %v10338
      %v10341 = vmul.u32 %v10336, %v10337
      %v10342 = vmul.u32 %v10336, %v10338
      %v10343 = vshll.u32 %v10340, 16
      %v10344 = vshrl.u32 %v10340, 16
      %v10345 = vshll.u32 %v10341, 16
      %v10346 = vshrl.u32 %v10341, 16
      %vm10347 = vc.u32 %v10339, %v10343
      %v10348 = vsel %vm10347, 1, 0
      %v10349 = vadd.s32 %v10339, %v10343
      %v10350 = vadd.s32 %v10342, %v10348
      %vm10351 = vc.u32 %v10349, %v10345
      %v10352 = vsel %vm10351, 1, 0
      %v10353 = vadd.s32 %v10349, %v10345
      %v10354 = vadd.s32 %v10350, %v10352
      %v10355 = vadd.s32 %v10354, %v10344
      %v10356 = vadd.s32 %v10355, %v10346
      %v10357 = vand.u32 %v10334, 65535
      %v10358 = vshrl.u32 %v10334, 16
      %v10359 = vand.u32 %v10329, 65535
      %v10360 = vshrl.u32 %v10329, 16
      %v10361 = vmul.u32 %v10357, %v10359
      %v10362 = vmul.u32 %v10357, %v10360
      %v10363 = vmul.u32 %v10358, %v10359
      %v10364 = vmul.u32 %v10358, %v10360
      %v10365 = vshll.u32 %v10362, 16
      %v10366 = vshrl.u32 %v10362, 16
      %v10367 = vshll.u32 %v10363, 16
      %v10368 = vshrl.u32 %v10363, 16
      %vm10369 = vc.u32 %v10361, %v10365
      %v10370 = vsel %vm10369, 1, 0
      %v10371 = vadd.s32 %v10361, %v10365
      %v10372 = vadd.s32 %v10364, %v10370
      %vm10373 = vc.u32 %v10371, %v10367
      %v10374 = vsel %vm10373, 1, 0
      %v10375 = vadd.s32 %v10371, %v10367
      %v10376 = vadd.s32 %v10372, %v10374
      %v10377 = vadd.s32 %v10376, %v10366
      %v10378 = vadd.s32 %v10377, %v10368
      %v10379 = vmul.u32 %v10334, %v10325
      %v10380 = vadd.s32 %v10356, %v10375
      %vm10381 = vc.u32 %v10356, %v10375
      %v10382 = vadd.s32 %v10378, 1
      %v10383 = vsel %vm10381, %v10382, %v10378
      %v10384 = vadd.s32 %v10379, %v10383
      %v10385 = vadd.s32 %v10384, 536870912
      %v10386 = vshrl.u32 %v10385, 30
      %v10387 = vshll.u32 %v10386, 30
      %v10388 = vsub.s32 %v10384, %v10387
      %vm10389 = vcmp.lt.s32.totalorder %v10388, 0
      %v10390 = vsub.s32 0, %v10388
      %v10391 = vsel %vm10389, %v10390, %v10388
      %v10392 = vclz %v10391
      %v10393 = vsub.s32 %v10392, 2
      %vm10394 = vcmp.gt.s32.totalorder 0, %v10393
      %v10395 = vsel %vm10394, 0, %v10393
      %v10396 = vsub.s32 32, %v10395
      %v10397 = vshll.u32 %v10388, %v10395
      %v10398 = vshrl.u32 %v10380, %v10396
      %v10399 = vor.u32 %v10397, %v10398
      %v10400 = vsub.s32 4294967266, %v10395
      %v10401 = vadd.s32 %v10400, 127
      %v10402 = vshll.u32 %v10401, 23
      %v10403 = vor.u32 4788187, %v10402
      %v10404 = vand.u32 2147483647, %v10403
      %v10406 = vcvt.s32.f32 %v10399
      %v10407 = vmul.f32 %v10406, %v10404
      %v10408 = vxor.u32 %v10407, 2147483648
      %v10409 = vsel %vm10288, %v10408, %v10407
      %v10410 = vsub.s32 4, %v10386
      %v10411 = vsel %vm10288, %v10410, %v10386
      %v10412 = vsel %vm10287, %v671, %v10409
      %v10413 = vsel %vm10287, 0, %v10411
      %v10414 = vmul.f32 %v10412, %v10412
      %v10415 = vmul.f32 %v10414, -0.001358992
      %v10416 = vadd.f32 %v10415, 0.041655596
      %v10417 = vmul.f32 %v10414, %v10416
      %v10418 = vadd.f32 %v10417, -0.4999988
      %v10419 = vmul.f32 %v10414, %v10418
      %v10420 = vadd.f32 1.0, %v10419
      %v10421 = vmul.f32 %v10412, %v10412
      %v10422 = vmul.f32 %v10421, -0.00019511016
      %v10423 = vadd.f32 %v10422, 0.008332121
      %v10424 = vmul.f32 %v10421, %v10423
      %v10425 = vadd.f32 %v10424, -0.16666654
      %v10426 = vmul.f32 %v10421, %v10425
      %v10427 = vadd.f32 %v10426, 1.0
      %v10428 = vmul.f32 %v10427, %v10412
      %vm10429 = vweird.f32 %v671
      %v10430 = vadd.s32 %v10413, 3
      %v10431 = vand.u32 %v10430, 3
      %vm10432 = vcmp.lt.s32.totalorder %v10431, 2
      %vm10433 = vcmp.eq.s32.totalorder %v10431, 0
      %v10434 = vxor.u32 %v10428, 2147483648
      %v10435 = vsel %vm10433, %v10420, %v10434
      %vm10436 = vcmp.eq.s32.totalorder %v10431, 2
      %v10437 = vxor.u32 %v10420, 2147483648
      %v10438 = vsel %vm10436, %v10437, %v10428
      %v10439 = vsel %vm10432, %v10435, %v10438
      %v10440 = vsel %vm10429, nan, %v10439
      %v10441 = vand.u32 2147483647, %v674
      %vm10442 = vcmp.le.f32.partialorder %v10441, 0.7853982
      %vm10443 = vcmp.lt.s32.totalorder %v674, 0
      %v10444 = vand.u32 %v674, 2139095040
      %v10445 = vshrl.u32 %v10444, 23
      %v10446 = vsub.s32 %v10445, 127
      %v10447 = vand.u32 2147483647, %v674
      %v10448 = vand.u32 %v10447, 8388607
      %v10449 = vor.u32 %v10448, 8388608
      %v10450 = vsub.s32 0, %v10449
      %v10451 = vadd.s32 %v10446, 1
      %vm10452 = vcmp.gt.s32.totalorder %v10451, 0
      %v10453 = vsel %vm10452, %v10451, 0
      %v10454 = vshrl.u32 %v10453, 5
      %v10455 = vand.u32 %v10453, 31
      %v10456 = vsub.s32 32, %v10455
      %v10457 = vshrl.u32 683565275, %v10456
      %v10458 = vshll.u32 683565275, %v10455
      %v10459 = vshrl.u32 2475754826, %v10456
      %v10460 = vor.u32 %v10458, %v10459
      %v10461 = vshll.u32 2475754826, %v10455
      %v10462 = vshrl.u32 2131351028, %v10456
      %v10463 = vor.u32 %v10461, %v10462
      %v10464 = vshll.u32 2131351028, %v10455
      %v10465 = vshrl.u32 2102212464, %v10456
      %v10466 = vor.u32 %v10464, %v10465
      %v10467 = vshll.u32 2102212464, %v10455
      %v10468 = vshrl.u32 920167782, %v10456
      %v10469 = vor.u32 %v10467, %v10468
      %v10470 = vshll.u32 920167782, %v10455
      %v10471 = vshrl.u32 1326507024, %v10456
      %v10472 = vor.u32 %v10470, %v10471
      %vm10473 = vcmp.lt.s32.totalorder %v10454, 1
      %vm10474 = vcmp.lt.s32.totalorder %v10454, 2
      %vm10475 = vcmp.lt.s32.totalorder %v10454, 3
      %vm10476 = vcmp.lt.s32.totalorder %v10454, 4
      %v10477 = vsel %vm10473, %v10457, %v10460
      %v10478 = vsel %vm10476, %v10466, 2102212464
      %v10479 = vsel %vm10475, %v10463, %v10478
      %v10480 = vsel %vm10474, %v10477, %v10479
      %v10481 = vsel %vm10473, %v10460, %v10463
      %v10482 = vsel %vm10476, %v10469, 920167782
      %v10483 = vsel %vm10475, %v10466, %v10482
      %v10484 = vsel %vm10474, %v10481, %v10483
      %v10485 = vsel %vm10473, %v10463, %v10466
      %v10486 = vsel %vm10476, %v10472, 1326507024
      %v10487 = vsel %vm10475, %v10469, %v10486
      %v10488 = vsel %vm10474, %v10485, %v10487
      %v10489 = vshll.u32 %v10449, 8
      %v10490 = vand.u32 %v10489, 65535
      %v10491 = vshrl.u32 %v10489, 16
      %v10492 = vand.u32 %v10488, 65535
      %v10493 = vshrl.u32 %v10488, 16
      %v10494 = vmul.u32 %v10490, %v10492
      %v10495 = vmul.u32 %v10490, %v10493
      %v10496 = vmul.u32 %v10491, %v10492
      %v10497 = vmul.u32 %v10491, %v10493
      %v10498 = vshll.u32 %v10495, 16
      %v10499 = vshrl.u32 %v10495, 16
      %v10500 = vshll.u32 %v10496, 16
      %v10501 = vshrl.u32 %v10496, 16
      %vm10502 = vc.u32 %v10494, %v10498
      %v10503 = vsel %vm10502, 1, 0
      %v10504 = vadd.s32 %v10494, %v10498
      %v10505 = vadd.s32 %v10497, %v10503
      %vm10506 = vc.u32 %v10504, %v10500
      %v10507 = vsel %vm10506, 1, 0
      %v10508 = vadd.s32 %v10504, %v10500
      %v10509 = vadd.s32 %v10505, %v10507
      %v10510 = vadd.s32 %v10509, %v10499
      %v10511 = vadd.s32 %v10510, %v10501
      %v10512 = vand.u32 %v10489, 65535
      %v10513 = vshrl.u32 %v10489, 16
      %v10514 = vand.u32 %v10484, 65535
      %v10515 = vshrl.u32 %v10484, 16
      %v10516 = vmul.u32 %v10512, %v10514
      %v10517 = vmul.u32 %v10512, %v10515
      %v10518 = vmul.u32 %v10513, %v10514
      %v10519 = vmul.u32 %v10513, %v10515
      %v10520 = vshll.u32 %v10517, 16
      %v10521 = vshrl.u32 %v10517, 16
      %v10522 = vshll.u32 %v10518, 16
      %v10523 = vshrl.u32 %v10518, 16
      %vm10524 = vc.u32 %v10516, %v10520
      %v10525 = vsel %vm10524, 1, 0
      %v10526 = vadd.s32 %v10516, %v10520
      %v10527 = vadd.s32 %v10519, %v10525
      %vm10528 = vc.u32 %v10526, %v10522
      %v10529 = vsel %vm10528, 1, 0
      %v10530 = vadd.s32 %v10526, %v10522
      %v10531 = vadd.s32 %v10527, %v10529
      %v10532 = vadd.s32 %v10531, %v10521
      %v10533 = vadd.s32 %v10532, %v10523
      %v10534 = vmul.u32 %v10489, %v10480
      %v10535 = vadd.s32 %v10511, %v10530
      %vm10536 = vc.u32 %v10511, %v10530
      %v10537 = vadd.s32 %v10533, 1
      %v10538 = vsel %vm10536, %v10537, %v10533
      %v10539 = vadd.s32 %v10534, %v10538
      %v10540 = vadd.s32 %v10539, 536870912
      %v10541 = vshrl.u32 %v10540, 30
      %v10542 = vshll.u32 %v10541, 30
      %v10543 = vsub.s32 %v10539, %v10542
      %vm10544 = vcmp.lt.s32.totalorder %v10543, 0
      %v10545 = vsub.s32 0, %v10543
      %v10546 = vsel %vm10544, %v10545, %v10543
      %v10547 = vclz %v10546
      %v10548 = vsub.s32 %v10547, 2
      %vm10549 = vcmp.gt.s32.totalorder 0, %v10548
      %v10550 = vsel %vm10549, 0, %v10548
      %v10551 = vsub.s32 32, %v10550
      %v10552 = vshll.u32 %v10543, %v10550
      %v10553 = vshrl.u32 %v10535, %v10551
      %v10554 = vor.u32 %v10552, %v10553
      %v10555 = vsub.s32 4294967266, %v10550
      %v10556 = vadd.s32 %v10555, 127
      %v10557 = vshll.u32 %v10556, 23
      %v10558 = vor.u32 4788187, %v10557
      %v10559 = vand.u32 2147483647, %v10558
      %v10561 = vcvt.s32.f32 %v10554
      %v10562 = vmul.f32 %v10561, %v10559
      %v10563 = vxor.u32 %v10562, 2147483648
      %v10564 = vsel %vm10443, %v10563, %v10562
      %v10565 = vsub.s32 4, %v10541
      %v10566 = vsel %vm10443, %v10565, %v10541
      %v10567 = vsel %vm10442, %v674, %v10564
      %v10568 = vsel %vm10442, 0, %v10566
      %v10569 = vmul.f32 %v10567, %v10567
      %v10570 = vmul.f32 %v10569, -0.001358992
      %v10571 = vadd.f32 %v10570, 0.041655596
      %v10572 = vmul.f32 %v10569, %v10571
      %v10573 = vadd.f32 %v10572, -0.4999988
      %v10574 = vmul.f32 %v10569, %v10573
      %v10575 = vadd.f32 1.0, %v10574
      %v10576 = vmul.f32 %v10567, %v10567
      %v10577 = vmul.f32 %v10576, -0.00019511016
      %v10578 = vadd.f32 %v10577, 0.008332121
      %v10579 = vmul.f32 %v10576, %v10578
      %v10580 = vadd.f32 %v10579, -0.16666654
      %v10581 = vmul.f32 %v10576, %v10580
      %v10582 = vadd.f32 %v10581, 1.0
      %v10583 = vmul.f32 %v10582, %v10567
      %vm10584 = vweird.f32 %v674
      %v10585 = vadd.s32 %v10568, 3
      %v10586 = vand.u32 %v10585, 3
      %vm10587 = vcmp.lt.s32.totalorder %v10586, 2
      %vm10588 = vcmp.eq.s32.totalorder %v10586, 0
      %v10589 = vxor.u32 %v10583, 2147483648
      %v10590 = vsel %vm10588, %v10575, %v10589
      %vm10591 = vcmp.eq.s32.totalorder %v10586, 2
      %v10592 = vxor.u32 %v10575, 2147483648
      %v10593 = vsel %vm10591, %v10592, %v10583
      %v10594 = vsel %vm10587, %v10590, %v10593
      %v10595 = vsel %vm10584, nan, %v10594
      %vm10596 = vcmask 523264
      %10597 = vst.msk [vmem:[%s172] sm:$0xff] %vm10596, %v830
      %10598 = vst.msk [vmem:[%s172 + $0x8] sm:$0xff] %vm10596, %v985
      %10599 = vst.msk [vmem:[%s172 + $0x10] sm:$0xff] %vm10596, %v1140
      %10600 = vst.msk [vmem:[%s172 + $0x18] sm:$0xff] %vm10596, %v1295
      %10601 = vst.msk [vmem:[%s172 + $0x20] sm:$0xff] %vm10596, %v1450
      %10602 = vst.msk [vmem:[%s172 + $0x28] sm:$0xff] %vm10596, %v1605
      %10603 = vst.msk [vmem:[%s172 + $0x30] sm:$0xff] %vm10596, %v1760
      %10604 = vst.msk [vmem:[%s172 + $0x38] sm:$0xff] %vm10596, %v1915
      %10605 = vst.msk [vmem:[%s172 + $0x40] sm:$0xff] %vm10596, %v2070
      %10606 = vst.msk [vmem:[%s172 + $0x48] sm:$0xff] %vm10596, %v2225
      %10607 = vst.msk [vmem:[%s172 + $0x50] sm:$0xff] %vm10596, %v2380
      %10608 = vst.msk [vmem:[%s172 + $0x58] sm:$0xff] %vm10596, %v2535
      %10609 = vst.msk [vmem:[%s172 + $0x60] sm:$0xff] %vm10596, %v2690
      %10610 = vst.msk [vmem:[%s172 + $0x68] sm:$0xff] %vm10596, %v2845
      %10611 = vst.msk [vmem:[%s172 + $0x70] sm:$0xff] %vm10596, %v3000
      %10612 = vst.msk [vmem:[%s172 + $0x78] sm:$0xff] %vm10596, %v3155
      %10613 = vst.msk [vmem:[%s172 + $0x80] sm:$0xff] %vm10596, %v3310
      %10614 = vst.msk [vmem:[%s172 + $0x88] sm:$0xff] %vm10596, %v3465
      %10615 = vst.msk [vmem:[%s172 + $0x90] sm:$0xff] %vm10596, %v3620
      %10616 = vst.msk [vmem:[%s172 + $0x98] sm:$0xff] %vm10596, %v3775
      %10617 = vst.msk [vmem:[%s172 + $0xa0] sm:$0xff] %vm10596, %v3930
      %10618 = vst.msk [vmem:[%s172 + $0xa8] sm:$0xff] %vm10596, %v4085
      %10619 = vst.msk [vmem:[%s172 + $0xb0] sm:$0xff] %vm10596, %v4240
      %10620 = vst.msk [vmem:[%s172 + $0xb8] sm:$0xff] %vm10596, %v4395
      %10621 = vst.msk [vmem:[%s172 + $0xc0] sm:$0xff] %vm10596, %v4550
      %10622 = vst.msk [vmem:[%s172 + $0xc8] sm:$0xff] %vm10596, %v4705
      %10623 = vst.msk [vmem:[%s172 + $0xd0] sm:$0xff] %vm10596, %v4860
      %10624 = vst.msk [vmem:[%s172 + $0xd8] sm:$0xff] %vm10596, %v5015
      %10625 = vst.msk [vmem:[%s172 + $0xe0] sm:$0xff] %vm10596, %v5170
      %10626 = vst.msk [vmem:[%s172 + $0xe8] sm:$0xff] %vm10596, %v5325
      %10627 = vst.msk [vmem:[%s172 + $0xf0] sm:$0xff] %vm10596, %v5480
      %10628 = vst.msk [vmem:[%s172 + $0xf8] sm:$0xff] %vm10596, %v5635
      %10629 = vst.msk [vmem:[%s172 + $0x100] sm:$0xff] %vm10596, %v5790
      %10630 = vst.msk [vmem:[%s172 + $0x108] sm:$0xff] %vm10596, %v5945
      %10631 = vst.msk [vmem:[%s172 + $0x110] sm:$0xff] %vm10596, %v6100
      %10632 = vst.msk [vmem:[%s172 + $0x118] sm:$0xff] %vm10596, %v6255
      %10633 = vst.msk [vmem:[%s172 + $0x120] sm:$0xff] %vm10596, %v6410
      %10634 = vst.msk [vmem:[%s172 + $0x128] sm:$0xff] %vm10596, %v6565
      %10635 = vst.msk [vmem:[%s172 + $0x130] sm:$0xff] %vm10596, %v6720
      %10636 = vst.msk [vmem:[%s172 + $0x138] sm:$0xff] %vm10596, %v6875
      %10637 = vst.msk [vmem:[%s172 + $0x140] sm:$0xff] %vm10596, %v7030
      %10638 = vst.msk [vmem:[%s172 + $0x148] sm:$0xff] %vm10596, %v7185
      %10639 = vst.msk [vmem:[%s172 + $0x150] sm:$0xff] %vm10596, %v7340
      %10640 = vst.msk [vmem:[%s172 + $0x158] sm:$0xff] %vm10596, %v7495
      %10641 = vst.msk [vmem:[%s172 + $0x160] sm:$0xff] %vm10596, %v7650
      %10642 = vst.msk [vmem:[%s172 + $0x168] sm:$0xff] %vm10596, %v7805
      %10643 = vst.msk [vmem:[%s172 + $0x170] sm:$0xff] %vm10596, %v7960
      %10644 = vst.msk [vmem:[%s172 + $0x178] sm:$0xff] %vm10596, %v8115
      %10645 = vst.msk [vmem:[%s172 + $0x180] sm:$0xff] %vm10596, %v8270
      %10646 = vst.msk [vmem:[%s172 + $0x188] sm:$0xff] %vm10596, %v8425
      %10647 = vst.msk [vmem:[%s172 + $0x190] sm:$0xff] %vm10596, %v8580
      %10648 = vst.msk [vmem:[%s172 + $0x198] sm:$0xff] %vm10596, %v8735
      %10649 = vst.msk [vmem:[%s172 + $0x1a0] sm:$0xff] %vm10596, %v8890
      %10650 = vst.msk [vmem:[%s172 + $0x1a8] sm:$0xff] %vm10596, %v9045
      %10651 = vst.msk [vmem:[%s172 + $0x1b0] sm:$0xff] %vm10596, %v9200
      %10652 = vst.msk [vmem:[%s172 + $0x1b8] sm:$0xff] %vm10596, %v9355
      %10653 = vst.msk [vmem:[%s172 + $0x1c0] sm:$0xff] %vm10596, %v9510
      %10654 = vst.msk [vmem:[%s172 + $0x1c8] sm:$0xff] %vm10596, %v9665
      %10655 = vst.msk [vmem:[%s172 + $0x1d0] sm:$0xff] %vm10596, %v9820
      %10656 = vst.msk [vmem:[%s172 + $0x1d8] sm:$0xff] %vm10596, %v9975
      %10657 = vst.msk [vmem:[%s172 + $0x1e0] sm:$0xff] %vm10596, %v10130
      %10658 = vst.msk [vmem:[%s172 + $0x1e8] sm:$0xff] %vm10596, %v10285
      %10659 = vst.msk [vmem:[%s172 + $0x1f0] sm:$0xff] %vm10596, %v10440
      %10660 = vst.msk [vmem:[%s172 + $0x1f8] sm:$0xff] %vm10596, %v10595
      %s10661 = smul.u32 64, %s14
      %p10662 = scmp.lt.s32.totalorder %s10661, 127
      %s10663 = scalar_select %p10662, %s10661, 127
      %s10664 = smul.addr %s10663, 8
      %s10665 = scalar_lea.vmem %s3, %s10664
      // Predicated region
      $region33: #{tpu_custom_call.1} parent=31 // pred_check
        %p10666 = pneg %p100
      $region34: #{tpu_custom_call.1} parent=31 // pred_check_branch
        %10668 = sbr.rel (%p10666) target = $region36
      $region35: #{tpu_custom_call.1} parent=31 // pred_region
        %s10669 = smul.u32 64, %s14
      $region36: #{tpu_custom_call.1} parent=31 // pred_fallthru
        _
    $region32: #{tpu_custom_call.1} parent=5 // pred_fallthru
      _
    %p10670 = scmp.le.s32.totalorder 2, %s9
    // Predicated region
    $region37: #{tpu_custom_call.1} parent=5 // pred_check
      %p10671 = pneg %p10670
    $region38: #{tpu_custom_call.1} parent=5 // pred_check_branch
      %10673 = sbr.rel (%p10671) target = $region40
    $region39: #{tpu_custom_call.1} parent=5 // pred_region
      %s10674 = ssub.s32 %s9, 2
      // Predicated region
      $region41: #{tpu_custom_call.1} parent=39 // pred_check
        %p10675 = pneg %p106
      $region42: #{tpu_custom_call.1} parent=39 // pred_check_branch
        %10677 = sbr.rel (%p10675) target = $region44
      $region43: #{tpu_custom_call.1} parent=39 // pred_region
        %s10678 = smul.u32 64, %s15
        %p10679 = scmp.lt.s32.totalorder %s10678, 127
        %s10680 = scalar_select %p10679, %s10678, 127
        %s10681 = smul.addr %s10680, 8
        %s10682 = scalar_lea.vmem %s3, %s10681
      $region44: #{tpu_custom_call.1} parent=39 // pred_fallthru
        _
    $region40: #{tpu_custom_call.1} parent=5 // pred_fallthru
      _
  $region6: #{tpu_custom_call.1} parent=0 // loop_footer
    %s13 = sadd.s32 1, %s9
  $region7: #{tpu_custom_call.1} parent=0 // loop_footer_branch
    %8 = sbr.rel target = $region3
  $region8: #{tpu_custom_call.1} parent=0 // loop_exit
    _

</llo_original>
